<compile_context>
chip_gen: v7x
topology: tpu7x:2x2x1
jax: 0.10.0
libtpu: 0.0.40
codegen_flags: <defaults>
</compile_context>

<pallas_src>
import math
import jax
import jax.numpy as jnp
from jax.experimental import pallas as pl
from jax.experimental.pallas import tpu as pltpu

LANE = 128
SUBLANE = 8
VMEM_LIMIT = 48 * 1024 * 1024  # fits v5e/v6e (128 MiB) and v7x (64 MiB)


def _round_up(x, m):
    return (x + m - 1) // m * m


def _pick_chunk(T, max_chunk=32):
    """Largest TT <= max_chunk that divides T (falls back to 1)."""
    for tt in range(min(T, max_chunk), 0, -1):
        if T % tt == 0:
            return tt
    return 1


def _pad_gate_cols(w, H, Hp):
    """Pad the 4H gate axis (order i,f,g,o) to 4*Hp, gate block by gate block."""
    lead = w.shape[:-1]
    w4 = w.reshape(*lead, 4, H)
    w4 = jnp.pad(w4, [(0, 0)] * len(lead) + [(0, 0), (0, Hp - H)])
    return w4.reshape(*lead, 4 * Hp)


# ----------------------------- LSTM layer kernel -----------------------------
def lstm_layer_kernel(x_ref, h0_ref, c0_ref, wih_ref, whh_ref, b_ref,
                      y_ref, hn_ref, cn_ref, h_sc, c_sc, gx_sc):
    g = pl.program_id(0)

    @pl.when(g == 0)
    def _init():
        h_sc[...] = h0_ref[...]
        c_sc[...] = c0_ref[...]

    TT = gx_sc.shape[0]
    Hp = hn_ref.shape[-1]

    # One big MXU pass for the input->gate projection of the whole timestep
    # chunk: (TT*Bp, E) @ (E, 4*Hp), bf16 inputs, f32 accumulation.  The fused
    # (b_ih + b_hh) bias is added here once.
    gx = jnp.dot(x_ref[...], wih_ref[...], preferred_element_type=jnp.float32)
    gx_sc[...] = (gx + b_ref[...]).reshape(gx_sc.shape)

    # Recurrent part: statically unrolled over the TT timesteps of this chunk
    # (equivalent to lax.fori_loop(..., unroll=True), but with static indices
    # so gx_sc / y_ref accesses are static slices).  h/c live in vregs across
    # the chunk and only touch VMEM scratch once per grid step.
    h = h_sc[...]
    c = c_sc[...]
    for t in range(TT):
        gates = gx_sc[t] + jnp.dot(h.astype(jnp.bfloat16), whh_ref[...],
                                   preferred_element_type=jnp.float32)
        # Hp is a multiple of 128 -> each gate slice is whole 128-lane vregs
        # (pure VPU + EUP work, no cross-lane traffic).  Gate math stays f32.
        i_g = jax.nn.sigmoid(gates[:, 0 * Hp:1 * Hp])
        f_g = jax.nn.sigmoid(gates[:, 1 * Hp:2 * Hp])
        g_g = jnp.tanh(gates[:, 2 * Hp:3 * Hp])
        o_g = jax.nn.sigmoid(gates[:, 3 * Hp:4 * Hp])
        c = f_g * c + i_g * g_g
        h = o_g * jnp.tanh(c)
        y_ref[t] = h.astype(y_ref.dtype)      # lane-dense (Bp, Hp) store
    h_sc[...] = h
    c_sc[...] = c

    @pl.when(g == pl.num_programs(0) - 1)
    def _final():
        hn_ref[...] = h
        cn_ref[...] = c


def lstm_layer(x_tm, h0, c0, wih_t, whh_t, b):
    """x_tm: (T, Bp, E) time-major bf16 (batch/hidden already padded).
    Returns y (T, Bp, Hp) bf16, h_T (Bp, Hp) f32, c_T (Bp, Hp) f32."""
    T, Bp, E = x_tm.shape
    Hp = h0.shape[-1]
    TT = _pick_chunk(T, 32)
    x2 = x_tm.reshape(T * Bp, E)   # contiguous reshape; (TT*Bp, E) blocks

    flops = 2 * T * Bp * (E + Hp) * 4 * Hp
    transc = 5 * T * Bp * Hp
    bytes_acc = (x2.size * 2 + T * Bp * Hp * 2            # x in, y out (bf16)
                 + (E + Hp) * 4 * Hp * 2 + 4 * Hp * 4     # weights + bias
                 + 4 * Bp * Hp * 4)                        # h0/c0 in, hn/cn out

    def call(weight_mode):
        def const_spec(shape):
            kw = {} if weight_mode is None else {"pipeline_mode": weight_mode}
            return pl.BlockSpec(shape, lambda g: (0,) * len(shape), **kw)

        return pl.pallas_call(
            lstm_layer_kernel,
            out_shape=(jax.ShapeDtypeStruct((T, Bp, Hp), jnp.bfloat16),
                       jax.ShapeDtypeStruct((Bp, Hp), jnp.float32),
                       jax.ShapeDtypeStruct((Bp, Hp), jnp.float32)),
            grid_spec=pltpu.PrefetchScalarGridSpec(
                num_scalar_prefetch=0,
                grid=(T // TT,),
                in_specs=[pl.BlockSpec((TT * Bp, E), lambda g: (g, 0)),
                          const_spec((Bp, Hp)),            # h0
                          const_spec((Bp, Hp)),            # c0
                          const_spec((E, 4 * Hp)),         # wih (resident)
                          const_spec((Hp, 4 * Hp)),        # whh (resident)
                          const_spec((1, 4 * Hp))],        # fused bias
                out_specs=[pl.BlockSpec((TT, Bp, Hp), lambda g: (g, 0, 0)),
                           pl.BlockSpec((Bp, Hp), lambda g: (0, 0)),
                           pl.BlockSpec((Bp, Hp), lambda g: (0, 0))],
                scratch_shapes=[pltpu.VMEM((Bp, Hp), jnp.float32),       # h
                                pltpu.VMEM((Bp, Hp), jnp.float32),       # c
                                pltpu.VMEM((TT, Bp, 4 * Hp), jnp.float32)]),  # gx
            compiler_params=pltpu.CompilerParams(
                dimension_semantics=("arbitrary",),        # sequential recurrence
                vmem_limit_bytes=VMEM_LIMIT),
            cost_estimate=pl.CostEstimate(flops=int(flops),
                                          transcendentals=int(transc),
                                          bytes_accessed=int(bytes_acc)),
        )(x2, h0, c0, wih_t, whh_t, b)

    try:
        # Constant-index-map weights: single-buffer them (halves weight VMEM).
        return call(pl.Buffered(1))
    except Exception:
        # pipeline_mode / Buffered(1) unsupported on this jax build -> default.
        return call(None)


# --------------------------------- FC kernel ---------------------------------
def fc_kernel(x_ref, w_ref, b_ref, o_ref):
    o_ref[...] = (jnp.dot(x_ref[...], w_ref[...],
                          preferred_element_type=jnp.float32)
                  + b_ref[...]).astype(o_ref.dtype)


def fc(x, w, b, *, tm=256, tn=512):
    """Tiled x @ w + b.  x: (N, H) bf16, w: (H, V) f32, b: (V,) f32 -> (N, V) f32."""
    N, H = x.shape
    V = w.shape[1]
    Np = _round_up(N, SUBLANE)
    tm = min(tm, Np)
    Np = _round_up(Np, tm)
    Vp = _round_up(V, LANE)          # lane-aligned output -> unmasked stores
    tn = min(tn, Vp)
    Vp = _round_up(Vp, tn)

    xp = jnp.pad(x, ((0, Np - N), (0, 0)))
    wp = jnp.pad(w, ((0, 0), (0, Vp - V))).astype(jnp.bfloat16)
    bp = jnp.pad(b, (0, Vp - V)).reshape(1, Vp)

    out = pl.pallas_call(
        fc_kernel,
        out_shape=jax.ShapeDtypeStruct((Np, Vp), jnp.float32),
        grid_spec=pltpu.PrefetchScalarGridSpec(
            num_scalar_prefetch=0,
            grid=(Np // tm, Vp // tn),
            in_specs=[pl.BlockSpec((tm, H), lambda i, j: (i, 0)),
                      pl.BlockSpec((H, tn), lambda i, j: (0, j)),
                      pl.BlockSpec((1, tn), lambda i, j: (0, j))],
            out_specs=pl.BlockSpec((tm, tn), lambda i, j: (i, j))),
        compiler_params=pltpu.CompilerParams(
            dimension_semantics=("parallel", "parallel"),  # 2 TCs on v7x
            vmem_limit_bytes=VMEM_LIMIT),
        cost_estimate=pl.CostEstimate(
            flops=2 * Np * H * Vp, transcendentals=0,
            bytes_accessed=int(xp.size * 2 + wp.size * 2 + bp.size * 4
                               + Np * Vp * 4)),
    )(xp, wp, bp)
    return out[:N, :V]


# ------------------------------ Parameter setup ------------------------------
def init_params(key, vocab_size, emb_dim, hid_dim, num_layers):
    init_range_emb = 0.1
    r = 1.0 / math.sqrt(hid_dim)
    Hp = _round_up(hid_dim, LANE)
    keys = jax.random.split(key, 2 + 4 * num_layers)
    # NOTE: asymmetric embedding range matches the PyTorch reference exactly:
    # embedding.weight.uniform_(-init_range_emb, init_range_other).
    params = {
        "emb": jax.random.uniform(keys[0], (vocab_size, emb_dim), jnp.float32,
                                  -init_range_emb, r),
        "fc_w": jax.random.uniform(keys[1], (hid_dim, vocab_size), jnp.float32, -r, r),
        "fc_b": jnp.zeros((vocab_size,), jnp.float32),
        "lstm": [],
        "hid_dim": hid_dim,
        "hid_pad": Hp,
    }
    k = 2
    for l in range(num_layers):
        in_dim = emb_dim if l == 0 else hid_dim
        in_pad = emb_dim if l == 0 else Hp
        # PyTorch LSTM weights are (4H, in)/(4H, H); stored pre-transposed for x @ W,
        # zero-padded per gate block to the lane-aligned hidden size, cast to bf16.
        wih = jax.random.uniform(keys[k], (in_dim, 4 * hid_dim), jnp.float32, -r, r); k += 1
        whh = jax.random.uniform(keys[k], (hid_dim, 4 * hid_dim), jnp.float32, -r, r); k += 1
        b_ih = jax.random.uniform(keys[k], (4 * hid_dim,), jnp.float32, -r, r); k += 1
        b_hh = jax.random.uniform(keys[k], (4 * hid_dim,), jnp.float32, -r, r); k += 1
        wih_p = jnp.pad(_pad_gate_cols(wih, hid_dim, Hp), ((0, in_pad - in_dim), (0, 0)))
        whh_p = jnp.pad(_pad_gate_cols(whh, hid_dim, Hp), ((0, Hp - hid_dim), (0, 0)))
        b_p = _pad_gate_cols(b_ih + b_hh, hid_dim, Hp).reshape(1, 4 * Hp)
        params["lstm"].append((wih_p.astype(jnp.bfloat16),
                               whh_p.astype(jnp.bfloat16),
                               b_p))
    return params


def init_hidden(num_layers, batch_size, hid_dim):
    return (jnp.zeros((num_layers, batch_size, hid_dim), jnp.float32),
            jnp.zeros((num_layers, batch_size, hid_dim), jnp.float32))


# --------------------------------- Forward -----------------------------------
def lstm_language_model_forward(params, src, hidden):
    """src: (B, T) int32. Returns (prediction (B,T,V), (h_n, c_n) each (L,B,H))."""
    h0, c0 = hidden
    B, T = src.shape
    H = params["hid_dim"]
    Hp = params["hid_pad"]
    Bp = _round_up(B, SUBLANE)

    # Embedding gather in plain JAX; dropout is identity (eval mode).
    # TODO(synk): training-mode dropout (RNG masks) not implemented.
    emb = jnp.take(params["emb"], src, axis=0)                 # (B, T, E) f32
    x = jnp.transpose(emb, (1, 0, 2)).astype(jnp.bfloat16)     # (T, B, E) time-major
    x = jnp.pad(x, ((0, 0), (0, Bp - B), (0, 0)))              # pad batch -> sublane fill

    h0p = jnp.pad(h0, ((0, 0), (0, Bp - B), (0, Hp - H)))
    c0p = jnp.pad(c0, ((0, 0), (0, Bp - B), (0, Hp - H)))

    hn_list, cn_list = [], []
    for l, (wih_t, whh_t, b) in enumerate(params["lstm"]):
        y, h_last, c_last = lstm_layer(x, h0p[l], c0p[l], wih_t, whh_t, b)
        hn_list.append(h_last[:B, :H])
        cn_list.append(c_last[:B, :H])
        x = y                       # (T, Bp, Hp) bf16; inter-layer dropout = identity

    out = jnp.transpose(x[:, :B, :H], (1, 0, 2))               # (B, T, H)
    pred = fc(out.reshape(B * T, H), params["fc_w"], params["fc_b"])
    pred = pred.reshape(B, T, -1)
    return pred, (jnp.stack(hn_list), jnp.stack(cn_list))


# ----------------------------------- Main ------------------------------------
if __name__ == "__main__":
    vocab_size, emb_dim, hid_dim, num_layers = 50, 32, 32, 2
    batch, seq = 2, 8

    key = jax.random.PRNGKey(0)
    k_param, k_src = jax.random.split(key)

    params = init_params(k_param, vocab_size, emb_dim, hid_dim, num_layers)
    src = jax.random.randint(k_src, (batch, seq), 0, vocab_size, dtype=jnp.int32)
    hidden = init_hidden(num_layers, batch, hid_dim)

    pred, (h_n, c_n) = lstm_language_model_forward(params, src, hidden)
    jax.block_until_ready((pred, h_n, c_n))

    assert pred.shape == (batch, seq, vocab_size)
    assert h_n.shape == (num_layers, batch, hid_dim)
    assert c_n.shape == (num_layers, batch, hid_dim)
    print("KERNEL_OK")
</pallas_src>

<mosaic_0001>
module attributes {stable_mosaic.version = 11 : i64} {
  func.func @lstm_layer_kernel(%arg0: i32, %arg1: memref<64x32xbf16, #tpu.memory_space<vmem>>, %arg2: memref<8x128xf32, #tpu.memory_space<vmem>>, %arg3: memref<8x128xf32, #tpu.memory_space<vmem>>, %arg4: memref<32x512xbf16, #tpu.memory_space<vmem>>, %arg5: memref<128x512xbf16, #tpu.memory_space<vmem>>, %arg6: memref<1x512xf32, #tpu.memory_space<vmem>>, %arg7: memref<8x8x128xbf16, #tpu.memory_space<vmem>>, %arg8: memref<8x128xf32, #tpu.memory_space<vmem>>, %arg9: memref<8x128xf32, #tpu.memory_space<vmem>>, %arg10: memref<8x128xf32, #tpu.memory_space<vmem>>, %arg11: memref<8x128xf32, #tpu.memory_space<vmem>>, %arg12: memref<8x8x512xf32, #tpu.memory_space<vmem>>) attributes {dimension_semantics = [#tpu.dimension_semantics<arbitrary>], iteration_bounds = array<i64: 1>, scalar_prefetch = 0 : i64, scratch_operands = 3 : i64, tpu.core_type = #tpu.core_type<tc>, window_params = [{transform_indices = @transform_0, window_bounds = array<i64: 64, 32>}, {pipeline_mode = #tpu.pipeline_mode<synchronous>, transform_indices = @transform_1, window_bounds = array<i64: 8, 128>}, {pipeline_mode = #tpu.pipeline_mode<synchronous>, transform_indices = @transform_2, window_bounds = array<i64: 8, 128>}, {pipeline_mode = #tpu.pipeline_mode<synchronous>, transform_indices = @transform_3, window_bounds = array<i64: 32, 512>}, {pipeline_mode = #tpu.pipeline_mode<synchronous>, transform_indices = @transform_4, window_bounds = array<i64: 128, 512>}, {pipeline_mode = #tpu.pipeline_mode<synchronous>, transform_indices = @transform_5, window_bounds = array<i64: 1, 512>}, {transform_indices = @transform_6, window_bounds = array<i64: 8, 8, 128>}, {pipeline_mode = #tpu.pipeline_mode<synchronous>, transform_indices = @transform_7, window_bounds = array<i64: 8, 128>}, {pipeline_mode = #tpu.pipeline_mode<synchronous>, transform_indices = @transform_8, window_bounds = array<i64: 8, 128>}]} {
    %c0_i32 = arith.constant 0 : i32
    %0 = arith.cmpi eq, %arg0, %c0_i32 : i32
    %1 = arith.extui %0 : i1 to i32
    %c0_i32_0 = arith.constant 0 : i32
    %2 = arith.cmpi ne, %1, %c0_i32_0 : i32
    scf.if %2 {
      %c0_108 = arith.constant 0 : index
      %c0_109 = arith.constant 0 : index
      %298 = vector.load %arg2[%c0_108, %c0_109] : memref<8x128xf32, #tpu.memory_space<vmem>>, vector<8x128xf32>
      %c0_110 = arith.constant 0 : index
      %c0_111 = arith.constant 0 : index
      %299 = vector.load %arg10[%c0_110, %c0_111] : memref<8x128xf32, #tpu.memory_space<vmem>>, vector<8x128xf32>
      tpu.vector_store %arg10[%c0_110, %c0_111], %298 {strides = array<i32>} : memref<8x128xf32, #tpu.memory_space<vmem>>, vector<8x128xf32>,
      %c0_112 = arith.constant 0 : index
      %c0_113 = arith.constant 0 : index
      %300 = vector.load %arg3[%c0_112, %c0_113] : memref<8x128xf32, #tpu.memory_space<vmem>>, vector<8x128xf32>
      %c0_114 = arith.constant 0 : index
      %c0_115 = arith.constant 0 : index
      %301 = vector.load %arg11[%c0_114, %c0_115] : memref<8x128xf32, #tpu.memory_space<vmem>>, vector<8x128xf32>
      tpu.vector_store %arg11[%c0_114, %c0_115], %300 {strides = array<i32>} : memref<8x128xf32, #tpu.memory_space<vmem>>, vector<8x128xf32>,
    } else {
    }
    %c0 = arith.constant 0 : index
    %c0_1 = arith.constant 0 : index
    %3 = vector.load %arg1[%c0, %c0_1] : memref<64x32xbf16, #tpu.memory_space<vmem>>, vector<64x32xbf16>
    %c0_2 = arith.constant 0 : index
    %c0_3 = arith.constant 0 : index
    %4 = vector.load %arg4[%c0_2, %c0_3] : memref<32x512xbf16, #tpu.memory_space<vmem>>, vector<32x512xbf16>
    %cst = arith.constant dense<0.000000e+00> : vector<64x512xf32>
    %5 = tpu.matmul %3, %4, %cst {dimension_numbers = #tpu.dot_dimension_numbers<[1], [0], [0], [1], [0, 0, 1, 1], [], []>} : vector<64x32xbf16>, vector<32x512xbf16>, vector<64x512xf32> -> vector<64x512xf32>
    %c0_4 = arith.constant 0 : index
    %c0_5 = arith.constant 0 : index
    %6 = vector.load %arg6[%c0_4, %c0_5] : memref<1x512xf32, #tpu.memory_space<vmem>>, vector<1x512xf32>
    %7 = vector.broadcast %6 : vector<1x512xf32> to vector<64x512xf32>
    %8 = arith.addf %5, %7 : vector<64x512xf32>
    %9 = vector.shape_cast %8 : vector<64x512xf32> to vector<8x8x512xf32>
    %c0_6 = arith.constant 0 : index
    %c0_7 = arith.constant 0 : index
    %c0_8 = arith.constant 0 : index
    %10 = vector.load %arg12[%c0_6, %c0_7, %c0_8] : memref<8x8x512xf32, #tpu.memory_space<vmem>>, vector<8x8x512xf32>
    tpu.vector_store %arg12[%c0_6, %c0_7, %c0_8], %9 {strides = array<i32>} : memref<8x8x512xf32, #tpu.memory_space<vmem>>, vector<8x8x512xf32>,
    %c0_9 = arith.constant 0 : index
    %c0_10 = arith.constant 0 : index
    %11 = vector.load %arg10[%c0_9, %c0_10] : memref<8x128xf32, #tpu.memory_space<vmem>>, vector<8x128xf32>
    %c0_11 = arith.constant 0 : index
    %c0_12 = arith.constant 0 : index
    %12 = vector.load %arg11[%c0_11, %c0_12] : memref<8x128xf32, #tpu.memory_space<vmem>>, vector<8x128xf32>
    %c0_13 = arith.constant 0 : index
    %c0_14 = arith.constant 0 : index
    %c0_15 = arith.constant 0 : index
    %13 = vector.load %arg12[%c0_13, %c0_14, %c0_15] : memref<8x8x512xf32, #tpu.memory_space<vmem>>, vector<1x8x512xf32>
    %14 = vector.shape_cast %13 : vector<1x8x512xf32> to vector<8x512xf32>
    %15 = arith.truncf %11 : vector<8x128xf32> to vector<8x128xbf16>
    %c0_16 = arith.constant 0 : index
    %c0_17 = arith.constant 0 : index
    %16 = vector.load %arg5[%c0_16, %c0_17] : memref<128x512xbf16, #tpu.memory_space<vmem>>, vector<128x512xbf16>
    %cst_18 = arith.constant dense<0.000000e+00> : vector<8x512xf32>
    %17 = tpu.matmul %15, %16, %cst_18 {dimension_numbers = #tpu.dot_dimension_numbers<[1], [0], [0], [1], [0, 0, 1, 1], [], []>} : vector<8x128xbf16>, vector<128x512xbf16>, vector<8x512xf32> -> vector<8x512xf32>
    %18 = arith.addf %14, %17 : vector<8x512xf32>
    %19 = vector.extract_strided_slice %18 {offsets = [0, 0], sizes = [8, 128], strides = [1, 1]} : vector<8x512xf32> to vector<8x128xf32>
    %20 = arith.negf %19 : vector<8x128xf32>
    %21 = math.exp %20 : vector<8x128xf32>
    %cst_19 = arith.constant 1.000000e+00 : f32
    %22 = vector.broadcast %cst_19 : f32 to vector<8x128xf32>
    %23 = arith.addf %22, %21 : vector<8x128xf32>
    %24 = arith.divf %22, %23 : vector<8x128xf32>
    %25 = vector.extract_strided_slice %18 {offsets = [0, 128], sizes = [8, 128], strides = [1, 1]} : vector<8x512xf32> to vector<8x128xf32>
    %26 = arith.negf %25 : vector<8x128xf32>
    %27 = math.exp %26 : vector<8x128xf32>
    %cst_20 = arith.constant 1.000000e+00 : f32
    %28 = vector.broadcast %cst_20 : f32 to vector<8x128xf32>
    %29 = arith.addf %28, %27 : vector<8x128xf32>
    %30 = arith.divf %28, %29 : vector<8x128xf32>
    %31 = vector.extract_strided_slice %18 {offsets = [0, 256], sizes = [8, 128], strides = [1, 1]} : vector<8x512xf32> to vector<8x128xf32>
    %32 = math.tanh %31 : vector<8x128xf32>
    %33 = vector.extract_strided_slice %18 {offsets = [0, 384], sizes = [8, 128], strides = [1, 1]} : vector<8x512xf32> to vector<8x128xf32>
    %34 = arith.negf %33 : vector<8x128xf32>
    %35 = math.exp %34 : vector<8x128xf32>
    %cst_21 = arith.constant 1.000000e+00 : f32
    %36 = vector.broadcast %cst_21 : f32 to vector<8x128xf32>
    %37 = arith.addf %36, %35 : vector<8x128xf32>
    %38 = arith.divf %36, %37 : vector<8x128xf32>
    %39 = arith.mulf %30, %12 : vector<8x128xf32>
    %40 = arith.mulf %24, %32 : vector<8x128xf32>
    %41 = arith.addf %39, %40 : vector<8x128xf32>
    %42 = math.tanh %41 : vector<8x128xf32>
    %43 = arith.mulf %38, %42 : vector<8x128xf32>
    %44 = arith.truncf %43 : vector<8x128xf32> to vector<8x128xbf16>
    %c0_22 = arith.constant 0 : index
    %c0_23 = arith.constant 0 : index
    %c0_24 = arith.constant 0 : index
    %45 = vector.load %arg7[%c0_22, %c0_23, %c0_24] : memref<8x8x128xbf16, #tpu.memory_space<vmem>>, vector<1x8x128xbf16>
    %46 = vector.shape_cast %45 : vector<1x8x128xbf16> to vector<8x128xbf16>
    %47 = vector.shape_cast %44 : vector<8x128xbf16> to vector<1x8x128xbf16>
    tpu.vector_store %arg7[%c0_22, %c0_23, %c0_24], %47 {strides = array<i32>} : memref<8x8x128xbf16, #tpu.memory_space<vmem>>, vector<1x8x128xbf16>,
    %c1 = arith.constant 1 : index
    %c0_25 = arith.constant 0 : index
    %c0_26 = arith.constant 0 : index
    %48 = vector.load %arg12[%c1, %c0_25, %c0_26] : memref<8x8x512xf32, #tpu.memory_space<vmem>>, vector<1x8x512xf32>
    %49 = vector.shape_cast %48 : vector<1x8x512xf32> to vector<8x512xf32>
    %50 = arith.truncf %43 : vector<8x128xf32> to vector<8x128xbf16>
    %c0_27 = arith.constant 0 : index
    %c0_28 = arith.constant 0 : index
    %51 = vector.load %arg5[%c0_27, %c0_28] : memref<128x512xbf16, #tpu.memory_space<vmem>>, vector<128x512xbf16>
    %cst_29 = arith.constant dense<0.000000e+00> : vector<8x512xf32>
    %52 = tpu.matmul %50, %51, %cst_29 {dimension_numbers = #tpu.dot_dimension_numbers<[1], [0], [0], [1], [0, 0, 1, 1], [], []>} : vector<8x128xbf16>, vector<128x512xbf16>, vector<8x512xf32> -> vector<8x512xf32>
    %53 = arith.addf %49, %52 : vector<8x512xf32>
    %54 = vector.extract_strided_slice %53 {offsets = [0, 0], sizes = [8, 128], strides = [1, 1]} : vector<8x512xf32> to vector<8x128xf32>
    %55 = arith.negf %54 : vector<8x128xf32>
    %56 = math.exp %55 : vector<8x128xf32>
    %cst_30 = arith.constant 1.000000e+00 : f32
    %57 = vector.broadcast %cst_30 : f32 to vector<8x128xf32>
    %58 = arith.addf %57, %56 : vector<8x128xf32>
    %59 = arith.divf %57, %58 : vector<8x128xf32>
    %60 = vector.extract_strided_slice %53 {offsets = [0, 128], sizes = [8, 128], strides = [1, 1]} : vector<8x512xf32> to vector<8x128xf32>
    %61 = arith.negf %60 : vector<8x128xf32>
    %62 = math.exp %61 : vector<8x128xf32>
    %cst_31 = arith.constant 1.000000e+00 : f32
    %63 = vector.broadcast %cst_31 : f32 to vector<8x128xf32>
    %64 = arith.addf %63, %62 : vector<8x128xf32>
    %65 = arith.divf %63, %64 : vector<8x128xf32>
    %66 = vector.extract_strided_slice %53 {offsets = [0, 256], sizes = [8, 128], strides = [1, 1]} : vector<8x512xf32> to vector<8x128xf32>
    %67 = math.tanh %66 : vector<8x128xf32>
    %68 = vector.extract_strided_slice %53 {offsets = [0, 384], sizes = [8, 128], strides = [1, 1]} : vector<8x512xf32> to vector<8x128xf32>
    %69 = arith.negf %68 : vector<8x128xf32>
    %70 = math.exp %69 : vector<8x128xf32>
    %cst_32 = arith.constant 1.000000e+00 : f32
    %71 = vector.broadcast %cst_32 : f32 to vector<8x128xf32>
    %72 = arith.addf %71, %70 : vector<8x128xf32>
    %73 = arith.divf %71, %72 : vector<8x128xf32>
    %74 = arith.mulf %65, %41 : vector<8x128xf32>
    %75 = arith.mulf %59, %67 : vector<8x128xf32>
    %76 = arith.addf %74, %75 : vector<8x128xf32>
    %77 = math.tanh %76 : vector<8x128xf32>
    %78 = arith.mulf %73, %77 : vector<8x128xf32>
    %79 = arith.truncf %78 : vector<8x128xf32> to vector<8x128xbf16>
    %c1_33 = arith.constant 1 : index
    %c0_34 = arith.constant 0 : index
    %c0_35 = arith.constant 0 : index
    %80 = vector.load %arg7[%c1_33, %c0_34, %c0_35] : memref<8x8x128xbf16, #tpu.memory_space<vmem>>, vector<1x8x128xbf16>
    %81 = vector.shape_cast %80 : vector<1x8x128xbf16> to vector<8x128xbf16>
    %82 = vector.shape_cast %79 : vector<8x128xbf16> to vector<1x8x128xbf16>
    tpu.vector_store %arg7[%c1_33, %c0_34, %c0_35], %82 {strides = array<i32>} : memref<8x8x128xbf16, #tpu.memory_space<vmem>>, vector<1x8x128xbf16>,
    %c2 = arith.constant 2 : index
    %c0_36 = arith.constant 0 : index
    %c0_37 = arith.constant 0 : index
    %83 = vector.load %arg12[%c2, %c0_36, %c0_37] : memref<8x8x512xf32, #tpu.memory_space<vmem>>, vector<1x8x512xf32>
    %84 = vector.shape_cast %83 : vector<1x8x512xf32> to vector<8x512xf32>
    %85 = arith.truncf %78 : vector<8x128xf32> to vector<8x128xbf16>
    %c0_38 = arith.constant 0 : index
    %c0_39 = arith.constant 0 : index
    %86 = vector.load %arg5[%c0_38, %c0_39] : memref<128x512xbf16, #tpu.memory_space<vmem>>, vector<128x512xbf16>
    %cst_40 = arith.constant dense<0.000000e+00> : vector<8x512xf32>
    %87 = tpu.matmul %85, %86, %cst_40 {dimension_numbers = #tpu.dot_dimension_numbers<[1], [0], [0], [1], [0, 0, 1, 1], [], []>} : vector<8x128xbf16>, vector<128x512xbf16>, vector<8x512xf32> -> vector<8x512xf32>
    %88 = arith.addf %84, %87 : vector<8x512xf32>
    %89 = vector.extract_strided_slice %88 {offsets = [0, 0], sizes = [8, 128], strides = [1, 1]} : vector<8x512xf32> to vector<8x128xf32>
    %90 = arith.negf %89 : vector<8x128xf32>
    %91 = math.exp %90 : vector<8x128xf32>
    %cst_41 = arith.constant 1.000000e+00 : f32
    %92 = vector.broadcast %cst_41 : f32 to vector<8x128xf32>
    %93 = arith.addf %92, %91 : vector<8x128xf32>
    %94 = arith.divf %92, %93 : vector<8x128xf32>
    %95 = vector.extract_strided_slice %88 {offsets = [0, 128], sizes = [8, 128], strides = [1, 1]} : vector<8x512xf32> to vector<8x128xf32>
    %96 = arith.negf %95 : vector<8x128xf32>
    %97 = math.exp %96 : vector<8x128xf32>
    %cst_42 = arith.constant 1.000000e+00 : f32
    %98 = vector.broadcast %cst_42 : f32 to vector<8x128xf32>
    %99 = arith.addf %98, %97 : vector<8x128xf32>
    %100 = arith.divf %98, %99 : vector<8x128xf32>
    %101 = vector.extract_strided_slice %88 {offsets = [0, 256], sizes = [8, 128], strides = [1, 1]} : vector<8x512xf32> to vector<8x128xf32>
    %102 = math.tanh %101 : vector<8x128xf32>
    %103 = vector.extract_strided_slice %88 {offsets = [0, 384], sizes = [8, 128], strides = [1, 1]} : vector<8x512xf32> to vector<8x128xf32>
    %104 = arith.negf %103 : vector<8x128xf32>
    %105 = math.exp %104 : vector<8x128xf32>
    %cst_43 = arith.constant 1.000000e+00 : f32
    %106 = vector.broadcast %cst_43 : f32 to vector<8x128xf32>
    %107 = arith.addf %106, %105 : vector<8x128xf32>
    %108 = arith.divf %106, %107 : vector<8x128xf32>
    %109 = arith.mulf %100, %76 : vector<8x128xf32>
    %110 = arith.mulf %94, %102 : vector<8x128xf32>
    %111 = arith.addf %109, %110 : vector<8x128xf32>
    %112 = math.tanh %111 : vector<8x128xf32>
    %113 = arith.mulf %108, %112 : vector<8x128xf32>
    %114 = arith.truncf %113 : vector<8x128xf32> to vector<8x128xbf16>
    %c2_44 = arith.constant 2 : index
    %c0_45 = arith.constant 0 : index
    %c0_46 = arith.constant 0 : index
    %115 = vector.load %arg7[%c2_44, %c0_45, %c0_46] : memref<8x8x128xbf16, #tpu.memory_space<vmem>>, vector<1x8x128xbf16>
    %116 = vector.shape_cast %115 : vector<1x8x128xbf16> to vector<8x128xbf16>
    %117 = vector.shape_cast %114 : vector<8x128xbf16> to vector<1x8x128xbf16>
    tpu.vector_store %arg7[%c2_44, %c0_45, %c0_46], %117 {strides = array<i32>} : memref<8x8x128xbf16, #tpu.memory_space<vmem>>, vector<1x8x128xbf16>,
    %c3 = arith.constant 3 : index
    %c0_47 = arith.constant 0 : index
    %c0_48 = arith.constant 0 : index
    %118 = vector.load %arg12[%c3, %c0_47, %c0_48] : memref<8x8x512xf32, #tpu.memory_space<vmem>>, vector<1x8x512xf32>
    %119 = vector.shape_cast %118 : vector<1x8x512xf32> to vector<8x512xf32>
    %120 = arith.truncf %113 : vector<8x128xf32> to vector<8x128xbf16>
    %c0_49 = arith.constant 0 : index
    %c0_50 = arith.constant 0 : index
    %121 = vector.load %arg5[%c0_49, %c0_50] : memref<128x512xbf16, #tpu.memory_space<vmem>>, vector<128x512xbf16>
    %cst_51 = arith.constant dense<0.000000e+00> : vector<8x512xf32>
    %122 = tpu.matmul %120, %121, %cst_51 {dimension_numbers = #tpu.dot_dimension_numbers<[1], [0], [0], [1], [0, 0, 1, 1], [], []>} : vector<8x128xbf16>, vector<128x512xbf16>, vector<8x512xf32> -> vector<8x512xf32>
    %123 = arith.addf %119, %122 : vector<8x512xf32>
    %124 = vector.extract_strided_slice %123 {offsets = [0, 0], sizes = [8, 128], strides = [1, 1]} : vector<8x512xf32> to vector<8x128xf32>
    %125 = arith.negf %124 : vector<8x128xf32>
    %126 = math.exp %125 : vector<8x128xf32>
    %cst_52 = arith.constant 1.000000e+00 : f32
    %127 = vector.broadcast %cst_52 : f32 to vector<8x128xf32>
    %128 = arith.addf %127, %126 : vector<8x128xf32>
    %129 = arith.divf %127, %128 : vector<8x128xf32>
    %130 = vector.extract_strided_slice %123 {offsets = [0, 128], sizes = [8, 128], strides = [1, 1]} : vector<8x512xf32> to vector<8x128xf32>
    %131 = arith.negf %130 : vector<8x128xf32>
    %132 = math.exp %131 : vector<8x128xf32>
    %cst_53 = arith.constant 1.000000e+00 : f32
    %133 = vector.broadcast %cst_53 : f32 to vector<8x128xf32>
    %134 = arith.addf %133, %132 : vector<8x128xf32>
    %135 = arith.divf %133, %134 : vector<8x128xf32>
    %136 = vector.extract_strided_slice %123 {offsets = [0, 256], sizes = [8, 128], strides = [1, 1]} : vector<8x512xf32> to vector<8x128xf32>
    %137 = math.tanh %136 : vector<8x128xf32>
    %138 = vector.extract_strided_slice %123 {offsets = [0, 384], sizes = [8, 128], strides = [1, 1]} : vector<8x512xf32> to vector<8x128xf32>
    %139 = arith.negf %138 : vector<8x128xf32>
    %140 = math.exp %139 : vector<8x128xf32>
    %cst_54 = arith.constant 1.000000e+00 : f32
    %141 = vector.broadcast %cst_54 : f32 to vector<8x128xf32>
    %142 = arith.addf %141, %140 : vector<8x128xf32>
    %143 = arith.divf %141, %142 : vector<8x128xf32>
    %144 = arith.mulf %135, %111 : vector<8x128xf32>
    %145 = arith.mulf %129, %137 : vector<8x128xf32>
    %146 = arith.addf %144, %145 : vector<8x128xf32>
    %147 = math.tanh %146 : vector<8x128xf32>
    %148 = arith.mulf %143, %147 : vector<8x128xf32>
    %149 = arith.truncf %148 : vector<8x128xf32> to vector<8x128xbf16>
    %c3_55 = arith.constant 3 : index
    %c0_56 = arith.constant 0 : index
    %c0_57 = arith.constant 0 : index
    %150 = vector.load %arg7[%c3_55, %c0_56, %c0_57] : memref<8x8x128xbf16, #tpu.memory_space<vmem>>, vector<1x8x128xbf16>
    %151 = vector.shape_cast %150 : vector<1x8x128xbf16> to vector<8x128xbf16>
    %152 = vector.shape_cast %149 : vector<8x128xbf16> to vector<1x8x128xbf16>
    tpu.vector_store %arg7[%c3_55, %c0_56, %c0_57], %152 {strides = array<i32>} : memref<8x8x128xbf16, #tpu.memory_space<vmem>>, vector<1x8x128xbf16>,
    %c4 = arith.constant 4 : index
    %c0_58 = arith.constant 0 : index
    %c0_59 = arith.constant 0 : index
    %153 = vector.load %arg12[%c4, %c0_58, %c0_59] : memref<8x8x512xf32, #tpu.memory_space<vmem>>, vector<1x8x512xf32>
    %154 = vector.shape_cast %153 : vector<1x8x512xf32> to vector<8x512xf32>
    %155 = arith.truncf %148 : vector<8x128xf32> to vector<8x128xbf16>
    %c0_60 = arith.constant 0 : index
    %c0_61 = arith.constant 0 : index
    %156 = vector.load %arg5[%c0_60, %c0_61] : memref<128x512xbf16, #tpu.memory_space<vmem>>, vector<128x512xbf16>
    %cst_62 = arith.constant dense<0.000000e+00> : vector<8x512xf32>
    %157 = tpu.matmul %155, %156, %cst_62 {dimension_numbers = #tpu.dot_dimension_numbers<[1], [0], [0], [1], [0, 0, 1, 1], [], []>} : vector<8x128xbf16>, vector<128x512xbf16>, vector<8x512xf32> -> vector<8x512xf32>
    %158 = arith.addf %154, %157 : vector<8x512xf32>
    %159 = vector.extract_strided_slice %158 {offsets = [0, 0], sizes = [8, 128], strides = [1, 1]} : vector<8x512xf32> to vector<8x128xf32>
    %160 = arith.negf %159 : vector<8x128xf32>
    %161 = math.exp %160 : vector<8x128xf32>
    %cst_63 = arith.constant 1.000000e+00 : f32
    %162 = vector.broadcast %cst_63 : f32 to vector<8x128xf32>
    %163 = arith.addf %162, %161 : vector<8x128xf32>
    %164 = arith.divf %162, %163 : vector<8x128xf32>
    %165 = vector.extract_strided_slice %158 {offsets = [0, 128], sizes = [8, 128], strides = [1, 1]} : vector<8x512xf32> to vector<8x128xf32>
    %166 = arith.negf %165 : vector<8x128xf32>
    %167 = math.exp %166 : vector<8x128xf32>
    %cst_64 = arith.constant 1.000000e+00 : f32
    %168 = vector.broadcast %cst_64 : f32 to vector<8x128xf32>
    %169 = arith.addf %168, %167 : vector<8x128xf32>
    %170 = arith.divf %168, %169 : vector<8x128xf32>
    %171 = vector.extract_strided_slice %158 {offsets = [0, 256], sizes = [8, 128], strides = [1, 1]} : vector<8x512xf32> to vector<8x128xf32>
    %172 = math.tanh %171 : vector<8x128xf32>
    %173 = vector.extract_strided_slice %158 {offsets = [0, 384], sizes = [8, 128], strides = [1, 1]} : vector<8x512xf32> to vector<8x128xf32>
    %174 = arith.negf %173 : vector<8x128xf32>
    %175 = math.exp %174 : vector<8x128xf32>
    %cst_65 = arith.constant 1.000000e+00 : f32
    %176 = vector.broadcast %cst_65 : f32 to vector<8x128xf32>
    %177 = arith.addf %176, %175 : vector<8x128xf32>
    %178 = arith.divf %176, %177 : vector<8x128xf32>
    %179 = arith.mulf %170, %146 : vector<8x128xf32>
    %180 = arith.mulf %164, %172 : vector<8x128xf32>
    %181 = arith.addf %179, %180 : vector<8x128xf32>
    %182 = math.tanh %181 : vector<8x128xf32>
    %183 = arith.mulf %178, %182 : vector<8x128xf32>
    %184 = arith.truncf %183 : vector<8x128xf32> to vector<8x128xbf16>
    %c4_66 = arith.constant 4 : index
    %c0_67 = arith.constant 0 : index
    %c0_68 = arith.constant 0 : index
    %185 = vector.load %arg7[%c4_66, %c0_67, %c0_68] : memref<8x8x128xbf16, #tpu.memory_space<vmem>>, vector<1x8x128xbf16>
    %186 = vector.shape_cast %185 : vector<1x8x128xbf16> to vector<8x128xbf16>
    %187 = vector.shape_cast %184 : vector<8x128xbf16> to vector<1x8x128xbf16>
    tpu.vector_store %arg7[%c4_66, %c0_67, %c0_68], %187 {strides = array<i32>} : memref<8x8x128xbf16, #tpu.memory_space<vmem>>, vector<1x8x128xbf16>,
    %c5 = arith.constant 5 : index
    %c0_69 = arith.constant 0 : index
    %c0_70 = arith.constant 0 : index
    %188 = vector.load %arg12[%c5, %c0_69, %c0_70] : memref<8x8x512xf32, #tpu.memory_space<vmem>>, vector<1x8x512xf32>
    %189 = vector.shape_cast %188 : vector<1x8x512xf32> to vector<8x512xf32>
    %190 = arith.truncf %183 : vector<8x128xf32> to vector<8x128xbf16>
    %c0_71 = arith.constant 0 : index
    %c0_72 = arith.constant 0 : index
    %191 = vector.load %arg5[%c0_71, %c0_72] : memref<128x512xbf16, #tpu.memory_space<vmem>>, vector<128x512xbf16>
    %cst_73 = arith.constant dense<0.000000e+00> : vector<8x512xf32>
    %192 = tpu.matmul %190, %191, %cst_73 {dimension_numbers = #tpu.dot_dimension_numbers<[1], [0], [0], [1], [0, 0, 1, 1], [], []>} : vector<8x128xbf16>, vector<128x512xbf16>, vector<8x512xf32> -> vector<8x512xf32>
    %193 = arith.addf %189, %192 : vector<8x512xf32>
    %194 = vector.extract_strided_slice %193 {offsets = [0, 0], sizes = [8, 128], strides = [1, 1]} : vector<8x512xf32> to vector<8x128xf32>
    %195 = arith.negf %194 : vector<8x128xf32>
    %196 = math.exp %195 : vector<8x128xf32>
    %cst_74 = arith.constant 1.000000e+00 : f32
    %197 = vector.broadcast %cst_74 : f32 to vector<8x128xf32>
    %198 = arith.addf %197, %196 : vector<8x128xf32>
    %199 = arith.divf %197, %198 : vector<8x128xf32>
    %200 = vector.extract_strided_slice %193 {offsets = [0, 128], sizes = [8, 128], strides = [1, 1]} : vector<8x512xf32> to vector<8x128xf32>
    %201 = arith.negf %200 : vector<8x128xf32>
    %202 = math.exp %201 : vector<8x128xf32>
    %cst_75 = arith.constant 1.000000e+00 : f32
    %203 = vector.broadcast %cst_75 : f32 to vector<8x128xf32>
    %204 = arith.addf %203, %202 : vector<8x128xf32>
    %205 = arith.divf %203, %204 : vector<8x128xf32>
    %206 = vector.extract_strided_slice %193 {offsets = [0, 256], sizes = [8, 128], strides = [1, 1]} : vector<8x512xf32> to vector<8x128xf32>
    %207 = math.tanh %206 : vector<8x128xf32>
    %208 = vector.extract_strided_slice %193 {offsets = [0, 384], sizes = [8, 128], strides = [1, 1]} : vector<8x512xf32> to vector<8x128xf32>
    %209 = arith.negf %208 : vector<8x128xf32>
    %210 = math.exp %209 : vector<8x128xf32>
    %cst_76 = arith.constant 1.000000e+00 : f32
    %211 = vector.broadcast %cst_76 : f32 to vector<8x128xf32>
    %212 = arith.addf %211, %210 : vector<8x128xf32>
    %213 = arith.divf %211, %212 : vector<8x128xf32>
    %214 = arith.mulf %205, %181 : vector<8x128xf32>
    %215 = arith.mulf %199, %207 : vector<8x128xf32>
    %216 = arith.addf %214, %215 : vector<8x128xf32>
    %217 = math.tanh %216 : vector<8x128xf32>
    %218 = arith.mulf %213, %217 : vector<8x128xf32>
    %219 = arith.truncf %218 : vector<8x128xf32> to vector<8x128xbf16>
    %c5_77 = arith.constant 5 : index
    %c0_78 = arith.constant 0 : index
    %c0_79 = arith.constant 0 : index
    %220 = vector.load %arg7[%c5_77, %c0_78, %c0_79] : memref<8x8x128xbf16, #tpu.memory_space<vmem>>, vector<1x8x128xbf16>
    %221 = vector.shape_cast %220 : vector<1x8x128xbf16> to vector<8x128xbf16>
    %222 = vector.shape_cast %219 : vector<8x128xbf16> to vector<1x8x128xbf16>
    tpu.vector_store %arg7[%c5_77, %c0_78, %c0_79], %222 {strides = array<i32>} : memref<8x8x128xbf16, #tpu.memory_space<vmem>>, vector<1x8x128xbf16>,
    %c6 = arith.constant 6 : index
    %c0_80 = arith.constant 0 : index
    %c0_81 = arith.constant 0 : index
    %223 = vector.load %arg12[%c6, %c0_80, %c0_81] : memref<8x8x512xf32, #tpu.memory_space<vmem>>, vector<1x8x512xf32>
    %224 = vector.shape_cast %223 : vector<1x8x512xf32> to vector<8x512xf32>
    %225 = arith.truncf %218 : vector<8x128xf32> to vector<8x128xbf16>
    %c0_82 = arith.constant 0 : index
    %c0_83 = arith.constant 0 : index
    %226 = vector.load %arg5[%c0_82, %c0_83] : memref<128x512xbf16, #tpu.memory_space<vmem>>, vector<128x512xbf16>
    %cst_84 = arith.constant dense<0.000000e+00> : vector<8x512xf32>
    %227 = tpu.matmul %225, %226, %cst_84 {dimension_numbers = #tpu.dot_dimension_numbers<[1], [0], [0], [1], [0, 0, 1, 1], [], []>} : vector<8x128xbf16>, vector<128x512xbf16>, vector<8x512xf32> -> vector<8x512xf32>
    %228 = arith.addf %224, %227 : vector<8x512xf32>
    %229 = vector.extract_strided_slice %228 {offsets = [0, 0], sizes = [8, 128], strides = [1, 1]} : vector<8x512xf32> to vector<8x128xf32>
    %230 = arith.negf %229 : vector<8x128xf32>
    %231 = math.exp %230 : vector<8x128xf32>
    %cst_85 = arith.constant 1.000000e+00 : f32
    %232 = vector.broadcast %cst_85 : f32 to vector<8x128xf32>
    %233 = arith.addf %232, %231 : vector<8x128xf32>
    %234 = arith.divf %232, %233 : vector<8x128xf32>
    %235 = vector.extract_strided_slice %228 {offsets = [0, 128], sizes = [8, 128], strides = [1, 1]} : vector<8x512xf32> to vector<8x128xf32>
    %236 = arith.negf %235 : vector<8x128xf32>
    %237 = math.exp %236 : vector<8x128xf32>
    %cst_86 = arith.constant 1.000000e+00 : f32
    %238 = vector.broadcast %cst_86 : f32 to vector<8x128xf32>
    %239 = arith.addf %238, %237 : vector<8x128xf32>
    %240 = arith.divf %238, %239 : vector<8x128xf32>
    %241 = vector.extract_strided_slice %228 {offsets = [0, 256], sizes = [8, 128], strides = [1, 1]} : vector<8x512xf32> to vector<8x128xf32>
    %242 = math.tanh %241 : vector<8x128xf32>
    %243 = vector.extract_strided_slice %228 {offsets = [0, 384], sizes = [8, 128], strides = [1, 1]} : vector<8x512xf32> to vector<8x128xf32>
    %244 = arith.negf %243 : vector<8x128xf32>
    %245 = math.exp %244 : vector<8x128xf32>
    %cst_87 = arith.constant 1.000000e+00 : f32
    %246 = vector.broadcast %cst_87 : f32 to vector<8x128xf32>
    %247 = arith.addf %246, %245 : vector<8x128xf32>
    %248 = arith.divf %246, %247 : vector<8x128xf32>
    %249 = arith.mulf %240, %216 : vector<8x128xf32>
    %250 = arith.mulf %234, %242 : vector<8x128xf32>
    %251 = arith.addf %249, %250 : vector<8x128xf32>
    %252 = math.tanh %251 : vector<8x128xf32>
    %253 = arith.mulf %248, %252 : vector<8x128xf32>
    %254 = arith.truncf %253 : vector<8x128xf32> to vector<8x128xbf16>
    %c6_88 = arith.constant 6 : index
    %c0_89 = arith.constant 0 : index
    %c0_90 = arith.constant 0 : index
    %255 = vector.load %arg7[%c6_88, %c0_89, %c0_90] : memref<8x8x128xbf16, #tpu.memory_space<vmem>>, vector<1x8x128xbf16>
    %256 = vector.shape_cast %255 : vector<1x8x128xbf16> to vector<8x128xbf16>
    %257 = vector.shape_cast %254 : vector<8x128xbf16> to vector<1x8x128xbf16>
    tpu.vector_store %arg7[%c6_88, %c0_89, %c0_90], %257 {strides = array<i32>} : memref<8x8x128xbf16, #tpu.memory_space<vmem>>, vector<1x8x128xbf16>,
    %c7 = arith.constant 7 : index
    %c0_91 = arith.constant 0 : index
    %c0_92 = arith.constant 0 : index
    %258 = vector.load %arg12[%c7, %c0_91, %c0_92] : memref<8x8x512xf32, #tpu.memory_space<vmem>>, vector<1x8x512xf32>
    %259 = vector.shape_cast %258 : vector<1x8x512xf32> to vector<8x512xf32>
    %260 = arith.truncf %253 : vector<8x128xf32> to vector<8x128xbf16>
    %c0_93 = arith.constant 0 : index
    %c0_94 = arith.constant 0 : index
    %261 = vector.load %arg5[%c0_93, %c0_94] : memref<128x512xbf16, #tpu.memory_space<vmem>>, vector<128x512xbf16>
    %cst_95 = arith.constant dense<0.000000e+00> : vector<8x512xf32>
    %262 = tpu.matmul %260, %261, %cst_95 {dimension_numbers = #tpu.dot_dimension_numbers<[1], [0], [0], [1], [0, 0, 1, 1], [], []>} : vector<8x128xbf16>, vector<128x512xbf16>, vector<8x512xf32> -> vector<8x512xf32>
    %263 = arith.addf %259, %262 : vector<8x512xf32>
    %264 = vector.extract_strided_slice %263 {offsets = [0, 0], sizes = [8, 128], strides = [1, 1]} : vector<8x512xf32> to vector<8x128xf32>
    %265 = arith.negf %264 : vector<8x128xf32>
    %266 = math.exp %265 : vector<8x128xf32>
    %cst_96 = arith.constant 1.000000e+00 : f32
    %267 = vector.broadcast %cst_96 : f32 to vector<8x128xf32>
    %268 = arith.addf %267, %266 : vector<8x128xf32>
    %269 = arith.divf %267, %268 : vector<8x128xf32>
    %270 = vector.extract_strided_slice %263 {offsets = [0, 128], sizes = [8, 128], strides = [1, 1]} : vector<8x512xf32> to vector<8x128xf32>
    %271 = arith.negf %270 : vector<8x128xf32>
    %272 = math.exp %271 : vector<8x128xf32>
    %cst_97 = arith.constant 1.000000e+00 : f32
    %273 = vector.broadcast %cst_97 : f32 to vector<8x128xf32>
    %274 = arith.addf %273, %272 : vector<8x128xf32>
    %275 = arith.divf %273, %274 : vector<8x128xf32>
    %276 = vector.extract_strided_slice %263 {offsets = [0, 256], sizes = [8, 128], strides = [1, 1]} : vector<8x512xf32> to vector<8x128xf32>
    %277 = math.tanh %276 : vector<8x128xf32>
    %278 = vector.extract_strided_slice %263 {offsets = [0, 384], sizes = [8, 128], strides = [1, 1]} : vector<8x512xf32> to vector<8x128xf32>
    %279 = arith.negf %278 : vector<8x128xf32>
    %280 = math.exp %279 : vector<8x128xf32>
    %cst_98 = arith.constant 1.000000e+00 : f32
    %281 = vector.broadcast %cst_98 : f32 to vector<8x128xf32>
    %282 = arith.addf %281, %280 : vector<8x128xf32>
    %283 = arith.divf %281, %282 : vector<8x128xf32>
    %284 = arith.mulf %275, %251 : vector<8x128xf32>
    %285 = arith.mulf %269, %277 : vector<8x128xf32>
    %286 = arith.addf %284, %285 : vector<8x128xf32>
    %287 = math.tanh %286 : vector<8x128xf32>
    %288 = arith.mulf %283, %287 : vector<8x128xf32>
    %289 = arith.truncf %288 : vector<8x128xf32> to vector<8x128xbf16>
    %c7_99 = arith.constant 7 : index
    %c0_100 = arith.constant 0 : index
    %c0_101 = arith.constant 0 : index
    %290 = vector.load %arg7[%c7_99, %c0_100, %c0_101] : memref<8x8x128xbf16, #tpu.memory_space<vmem>>, vector<1x8x128xbf16>
    %291 = vector.shape_cast %290 : vector<1x8x128xbf16> to vector<8x128xbf16>
    %292 = vector.shape_cast %289 : vector<8x128xbf16> to vector<1x8x128xbf16>
    tpu.vector_store %arg7[%c7_99, %c0_100, %c0_101], %292 {strides = array<i32>} : memref<8x8x128xbf16, #tpu.memory_space<vmem>>, vector<1x8x128xbf16>,
    %c0_102 = arith.constant 0 : index
    %c0_103 = arith.constant 0 : index
    %293 = vector.load %arg10[%c0_102, %c0_103] : memref<8x128xf32, #tpu.memory_space<vmem>>, vector<8x128xf32>
    tpu.vector_store %arg10[%c0_102, %c0_103], %288 {strides = array<i32>} : memref<8x128xf32, #tpu.memory_space<vmem>>, vector<8x128xf32>,
    %c0_104 = arith.constant 0 : index
    %c0_105 = arith.constant 0 : index
    %294 = vector.load %arg11[%c0_104, %c0_105] : memref<8x128xf32, #tpu.memory_space<vmem>>, vector<8x128xf32>
    tpu.vector_store %arg11[%c0_104, %c0_105], %286 {strides = array<i32>} : memref<8x128xf32, #tpu.memory_space<vmem>>, vector<8x128xf32>,
    %c0_i32_106 = arith.constant 0 : i32
    %295 = arith.cmpi eq, %arg0, %c0_i32_106 : i32
    %296 = arith.extui %295 : i1 to i32
    %c0_i32_107 = arith.constant 0 : i32
    %297 = arith.cmpi ne, %296, %c0_i32_107 : i32
    scf.if %297 {
      %c0_108 = arith.constant 0 : index
      %c0_109 = arith.constant 0 : index
      %298 = vector.load %arg8[%c0_108, %c0_109] : memref<8x128xf32, #tpu.memory_space<vmem>>, vector<8x128xf32>
      tpu.vector_store %arg8[%c0_108, %c0_109], %288 {strides = array<i32>} : memref<8x128xf32, #tpu.memory_space<vmem>>, vector<8x128xf32>,
      %c0_110 = arith.constant 0 : index
      %c0_111 = arith.constant 0 : index
      %299 = vector.load %arg9[%c0_110, %c0_111] : memref<8x128xf32, #tpu.memory_space<vmem>>, vector<8x128xf32>
      tpu.vector_store %arg9[%c0_110, %c0_111], %286 {strides = array<i32>} : memref<8x128xf32, #tpu.memory_space<vmem>>, vector<8x128xf32>,
    } else {
    }
    return
  }
  func.func @transform_0(%arg0: i32) -> (i32, i32) {
    %c0_i32 = arith.constant 0 : i32
    %c0_i32_0 = arith.constant 0 : i32
    return %arg0, %c0_i32 : i32, i32
  }
  func.func @transform_1(%arg0: i32) -> (i32, i32) {
    %c0_i32 = arith.constant 0 : i32
    %c0_i32_0 = arith.constant 0 : i32
    %c0_i32_1 = arith.constant 0 : i32
    return %c0_i32, %c0_i32_0 : i32, i32
  }
  func.func @transform_2(%arg0: i32) -> (i32, i32) {
    %c0_i32 = arith.constant 0 : i32
    %c0_i32_0 = arith.constant 0 : i32
    %c0_i32_1 = arith.constant 0 : i32
    return %c0_i32, %c0_i32_0 : i32, i32
  }
  func.func @transform_3(%arg0: i32) -> (i32, i32) {
    %c0_i32 = arith.constant 0 : i32
    %c0_i32_0 = arith.constant 0 : i32
    %c0_i32_1 = arith.constant 0 : i32
    return %c0_i32, %c0_i32_0 : i32, i32
  }
  func.func @transform_4(%arg0: i32) -> (i32, i32) {
    %c0_i32 = arith.constant 0 : i32
    %c0_i32_0 = arith.constant 0 : i32
    %c0_i32_1 = arith.constant 0 : i32
    return %c0_i32, %c0_i32_0 : i32, i32
  }
  func.func @transform_5(%arg0: i32) -> (i32, i32) {
    %c0_i32 = arith.constant 0 : i32
    %c0_i32_0 = arith.constant 0 : i32
    %c0_i32_1 = arith.constant 0 : i32
    return %c0_i32, %c0_i32_0 : i32, i32
  }
  func.func @transform_6(%arg0: i32) -> (i32, i32, i32) {
    %c0_i32 = arith.constant 0 : i32
    %c0_i32_0 = arith.constant 0 : i32
    %c0_i32_1 = arith.constant 0 : i32
    return %arg0, %c0_i32, %c0_i32_0 : i32, i32, i32
  }
  func.func @transform_7(%arg0: i32) -> (i32, i32) {
    %c0_i32 = arith.constant 0 : i32
    %c0_i32_0 = arith.constant 0 : i32
    %c0_i32_1 = arith.constant 0 : i32
    return %c0_i32, %c0_i32_0 : i32, i32
  }
  func.func @transform_8(%arg0: i32) -> (i32, i32) {
    %c0_i32 = arith.constant 0 : i32
    %c0_i32_0 = arith.constant 0 : i32
    %c0_i32_1 = arith.constant 0 : i32
    return %c0_i32, %c0_i32_0 : i32, i32
  }
}

module attributes {stable_mosaic.version = 11 : i64} {
  func.func @lstm_layer_kernel(%arg0: i32, %arg1: memref<64x32xbf16, #tpu.memory_space<vmem>>, %arg2: memref<8x128xf32, #tpu.memory_space<vmem>>, %arg3: memref<8x128xf32, #tpu.memory_space<vmem>>, %arg4: memref<32x512xbf16, #tpu.memory_space<vmem>>, %arg5: memref<128x512xbf16, #tpu.memory_space<vmem>>, %arg6: memref<1x512xf32, #tpu.memory_space<vmem>>, %arg7: memref<8x8x128xbf16, #tpu.memory_space<vmem>>, %arg8: memref<8x128xf32, #tpu.memory_space<vmem>>, %arg9: memref<8x128xf32, #tpu.memory_space<vmem>>, %arg10: memref<8x128xf32, #tpu.memory_space<vmem>>, %arg11: memref<8x128xf32, #tpu.memory_space<vmem>>, %arg12: memref<8x8x512xf32, #tpu.memory_space<vmem>>) attributes {dimension_semantics = [#tpu.dimension_semantics<arbitrary>], iteration_bounds = array<i64: 1>, scalar_prefetch = 0 : i64, scratch_operands = 3 : i64, tpu.core_type = #tpu.core_type<tc>, window_params = [{transform_indices = @transform_0, window_bounds = array<i64: 64, 32>}, {pipeline_mode = #tpu.pipeline_mode<synchronous>, transform_indices = @transform_1, window_bounds = array<i64: 8, 128>}, {pipeline_mode = #tpu.pipeline_mode<synchronous>, transform_indices = @transform_2, window_bounds = array<i64: 8, 128>}, {pipeline_mode = #tpu.pipeline_mode<synchronous>, transform_indices = @transform_3, window_bounds = array<i64: 32, 512>}, {pipeline_mode = #tpu.pipeline_mode<synchronous>, transform_indices = @transform_4, window_bounds = array<i64: 128, 512>}, {pipeline_mode = #tpu.pipeline_mode<synchronous>, transform_indices = @transform_5, window_bounds = array<i64: 1, 512>}, {transform_indices = @transform_6, window_bounds = array<i64: 8, 8, 128>}, {pipeline_mode = #tpu.pipeline_mode<synchronous>, transform_indices = @transform_7, window_bounds = array<i64: 8, 128>}, {pipeline_mode = #tpu.pipeline_mode<synchronous>, transform_indices = @transform_8, window_bounds = array<i64: 8, 128>}]} {
    %c0_i32 = arith.constant 0 : i32
    %0 = arith.cmpi eq, %arg0, %c0_i32 : i32
    %1 = arith.extui %0 : i1 to i32
    %c0_i32_0 = arith.constant 0 : i32
    %2 = arith.cmpi ne, %1, %c0_i32_0 : i32
    scf.if %2 {
      %c0_108 = arith.constant 0 : index
      %c0_109 = arith.constant 0 : index
      %298 = vector.load %arg2[%c0_108, %c0_109] : memref<8x128xf32, #tpu.memory_space<vmem>>, vector<8x128xf32>
      %c0_110 = arith.constant 0 : index
      %c0_111 = arith.constant 0 : index
      %299 = vector.load %arg10[%c0_110, %c0_111] : memref<8x128xf32, #tpu.memory_space<vmem>>, vector<8x128xf32>
      tpu.vector_store %arg10[%c0_110, %c0_111], %298 {strides = array<i32>} : memref<8x128xf32, #tpu.memory_space<vmem>>, vector<8x128xf32>,
      %c0_112 = arith.constant 0 : index
      %c0_113 = arith.constant 0 : index
      %300 = vector.load %arg3[%c0_112, %c0_113] : memref<8x128xf32, #tpu.memory_space<vmem>>, vector<8x128xf32>
      %c0_114 = arith.constant 0 : index
      %c0_115 = arith.constant 0 : index
      %301 = vector.load %arg11[%c0_114, %c0_115] : memref<8x128xf32, #tpu.memory_space<vmem>>, vector<8x128xf32>
      tpu.vector_store %arg11[%c0_114, %c0_115], %300 {strides = array<i32>} : memref<8x128xf32, #tpu.memory_space<vmem>>, vector<8x128xf32>,
    } else {
    }
    %c0 = arith.constant 0 : index
    %c0_1 = arith.constant 0 : index
    %3 = vector.load %arg1[%c0, %c0_1] : memref<64x32xbf16, #tpu.memory_space<vmem>>, vector<64x32xbf16>
    %c0_2 = arith.constant 0 : index
    %c0_3 = arith.constant 0 : index
    %4 = vector.load %arg4[%c0_2, %c0_3] : memref<32x512xbf16, #tpu.memory_space<vmem>>, vector<32x512xbf16>
    %cst = arith.constant dense<0.000000e+00> : vector<64x512xf32>
    %5 = tpu.matmul %3, %4, %cst {dimension_numbers = #tpu.dot_dimension_numbers<[1], [0], [0], [1], [0, 0, 1, 1], [], []>} : vector<64x32xbf16>, vector<32x512xbf16>, vector<64x512xf32> -> vector<64x512xf32>
    %c0_4 = arith.constant 0 : index
    %c0_5 = arith.constant 0 : index
    %6 = vector.load %arg6[%c0_4, %c0_5] : memref<1x512xf32, #tpu.memory_space<vmem>>, vector<1x512xf32>
    %7 = vector.broadcast %6 : vector<1x512xf32> to vector<64x512xf32>
    %8 = arith.addf %5, %7 : vector<64x512xf32>
    %9 = vector.shape_cast %8 : vector<64x512xf32> to vector<8x8x512xf32>
    %c0_6 = arith.constant 0 : index
    %c0_7 = arith.constant 0 : index
    %c0_8 = arith.constant 0 : index
    %10 = vector.load %arg12[%c0_6, %c0_7, %c0_8] : memref<8x8x512xf32, #tpu.memory_space<vmem>>, vector<8x8x512xf32>
    tpu.vector_store %arg12[%c0_6, %c0_7, %c0_8], %9 {strides = array<i32>} : memref<8x8x512xf32, #tpu.memory_space<vmem>>, vector<8x8x512xf32>,
    %c0_9 = arith.constant 0 : index
    %c0_10 = arith.constant 0 : index
    %11 = vector.load %arg10[%c0_9, %c0_10] : memref<8x128xf32, #tpu.memory_space<vmem>>, vector<8x128xf32>
    %c0_11 = arith.constant 0 : index
    %c0_12 = arith.constant 0 : index
    %12 = vector.load %arg11[%c0_11, %c0_12] : memref<8x128xf32, #tpu.memory_space<vmem>>, vector<8x128xf32>
    %c0_13 = arith.constant 0 : index
    %c0_14 = arith.constant 0 : index
    %c0_15 = arith.constant 0 : index
    %13 = vector.load %arg12[%c0_13, %c0_14, %c0_15] : memref<8x8x512xf32, #tpu.memory_space<vmem>>, vector<1x8x512xf32>
    %14 = vector.shape_cast %13 : vector<1x8x512xf32> to vector<8x512xf32>
    %15 = arith.truncf %11 : vector<8x128xf32> to vector<8x128xbf16>
    %c0_16 = arith.constant 0 : index
    %c0_17 = arith.constant 0 : index
    %16 = vector.load %arg5[%c0_16, %c0_17] : memref<128x512xbf16, #tpu.memory_space<vmem>>, vector<128x512xbf16>
    %cst_18 = arith.constant dense<0.000000e+00> : vector<8x512xf32>
    %17 = tpu.matmul %15, %16, %cst_18 {dimension_numbers = #tpu.dot_dimension_numbers<[1], [0], [0], [1], [0, 0, 1, 1], [], []>} : vector<8x128xbf16>, vector<128x512xbf16>, vector<8x512xf32> -> vector<8x512xf32>
    %18 = arith.addf %14, %17 : vector<8x512xf32>
    %19 = vector.extract_strided_slice %18 {offsets = [0, 0], sizes = [8, 128], strides = [1, 1]} : vector<8x512xf32> to vector<8x128xf32>
    %20 = arith.negf %19 : vector<8x128xf32>
    %21 = math.exp %20 : vector<8x128xf32>
    %cst_19 = arith.constant 1.000000e+00 : f32
    %22 = vector.broadcast %cst_19 : f32 to vector<8x128xf32>
    %23 = arith.addf %22, %21 : vector<8x128xf32>
    %24 = arith.divf %22, %23 : vector<8x128xf32>
    %25 = vector.extract_strided_slice %18 {offsets = [0, 128], sizes = [8, 128], strides = [1, 1]} : vector<8x512xf32> to vector<8x128xf32>
    %26 = arith.negf %25 : vector<8x128xf32>
    %27 = math.exp %26 : vector<8x128xf32>
    %cst_20 = arith.constant 1.000000e+00 : f32
    %28 = vector.broadcast %cst_20 : f32 to vector<8x128xf32>
    %29 = arith.addf %28, %27 : vector<8x128xf32>
    %30 = arith.divf %28, %29 : vector<8x128xf32>
    %31 = vector.extract_strided_slice %18 {offsets = [0, 256], sizes = [8, 128], strides = [1, 1]} : vector<8x512xf32> to vector<8x128xf32>
    %32 = math.tanh %31 : vector<8x128xf32>
    %33 = vector.extract_strided_slice %18 {offsets = [0, 384], sizes = [8, 128], strides = [1, 1]} : vector<8x512xf32> to vector<8x128xf32>
    %34 = arith.negf %33 : vector<8x128xf32>
    %35 = math.exp %34 : vector<8x128xf32>
    %cst_21 = arith.constant 1.000000e+00 : f32
    %36 = vector.broadcast %cst_21 : f32 to vector<8x128xf32>
    %37 = arith.addf %36, %35 : vector<8x128xf32>
    %38 = arith.divf %36, %37 : vector<8x128xf32>
    %39 = arith.mulf %30, %12 : vector<8x128xf32>
    %40 = arith.mulf %24, %32 : vector<8x128xf32>
    %41 = arith.addf %39, %40 : vector<8x128xf32>
    %42 = math.tanh %41 : vector<8x128xf32>
    %43 = arith.mulf %38, %42 : vector<8x128xf32>
    %44 = arith.truncf %43 : vector<8x128xf32> to vector<8x128xbf16>
    %c0_22 = arith.constant 0 : index
    %c0_23 = arith.constant 0 : index
    %c0_24 = arith.constant 0 : index
    %45 = vector.load %arg7[%c0_22, %c0_23, %c0_24] : memref<8x8x128xbf16, #tpu.memory_space<vmem>>, vector<1x8x128xbf16>
    %46 = vector.shape_cast %45 : vector<1x8x128xbf16> to vector<8x128xbf16>
    %47 = vector.shape_cast %44 : vector<8x128xbf16> to vector<1x8x128xbf16>
    tpu.vector_store %arg7[%c0_22, %c0_23, %c0_24], %47 {strides = array<i32>} : memref<8x8x128xbf16, #tpu.memory_space<vmem>>, vector<1x8x128xbf16>,
    %c1 = arith.constant 1 : index
    %c0_25 = arith.constant 0 : index
    %c0_26 = arith.constant 0 : index
    %48 = vector.load %arg12[%c1, %c0_25, %c0_26] : memref<8x8x512xf32, #tpu.memory_space<vmem>>, vector<1x8x512xf32>
    %49 = vector.shape_cast %48 : vector<1x8x512xf32> to vector<8x512xf32>
    %50 = arith.truncf %43 : vector<8x128xf32> to vector<8x128xbf16>
    %c0_27 = arith.constant 0 : index
    %c0_28 = arith.constant 0 : index
    %51 = vector.load %arg5[%c0_27, %c0_28] : memref<128x512xbf16, #tpu.memory_space<vmem>>, vector<128x512xbf16>
    %cst_29 = arith.constant dense<0.000000e+00> : vector<8x512xf32>
    %52 = tpu.matmul %50, %51, %cst_29 {dimension_numbers = #tpu.dot_dimension_numbers<[1], [0], [0], [1], [0, 0, 1, 1], [], []>} : vector<8x128xbf16>, vector<128x512xbf16>, vector<8x512xf32> -> vector<8x512xf32>
    %53 = arith.addf %49, %52 : vector<8x512xf32>
    %54 = vector.extract_strided_slice %53 {offsets = [0, 0], sizes = [8, 128], strides = [1, 1]} : vector<8x512xf32> to vector<8x128xf32>
    %55 = arith.negf %54 : vector<8x128xf32>
    %56 = math.exp %55 : vector<8x128xf32>
    %cst_30 = arith.constant 1.000000e+00 : f32
    %57 = vector.broadcast %cst_30 : f32 to vector<8x128xf32>
    %58 = arith.addf %57, %56 : vector<8x128xf32>
    %59 = arith.divf %57, %58 : vector<8x128xf32>
    %60 = vector.extract_strided_slice %53 {offsets = [0, 128], sizes = [8, 128], strides = [1, 1]} : vector<8x512xf32> to vector<8x128xf32>
    %61 = arith.negf %60 : vector<8x128xf32>
    %62 = math.exp %61 : vector<8x128xf32>
    %cst_31 = arith.constant 1.000000e+00 : f32
    %63 = vector.broadcast %cst_31 : f32 to vector<8x128xf32>
    %64 = arith.addf %63, %62 : vector<8x128xf32>
    %65 = arith.divf %63, %64 : vector<8x128xf32>
    %66 = vector.extract_strided_slice %53 {offsets = [0, 256], sizes = [8, 128], strides = [1, 1]} : vector<8x512xf32> to vector<8x128xf32>
    %67 = math.tanh %66 : vector<8x128xf32>
    %68 = vector.extract_strided_slice %53 {offsets = [0, 384], sizes = [8, 128], strides = [1, 1]} : vector<8x512xf32> to vector<8x128xf32>
    %69 = arith.negf %68 : vector<8x128xf32>
    %70 = math.exp %69 : vector<8x128xf32>
    %cst_32 = arith.constant 1.000000e+00 : f32
    %71 = vector.broadcast %cst_32 : f32 to vector<8x128xf32>
    %72 = arith.addf %71, %70 : vector<8x128xf32>
    %73 = arith.divf %71, %72 : vector<8x128xf32>
    %74 = arith.mulf %65, %41 : vector<8x128xf32>
    %75 = arith.mulf %59, %67 : vector<8x128xf32>
    %76 = arith.addf %74, %75 : vector<8x128xf32>
    %77 = math.tanh %76 : vector<8x128xf32>
    %78 = arith.mulf %73, %77 : vector<8x128xf32>
    %79 = arith.truncf %78 : vector<8x128xf32> to vector<8x128xbf16>
    %c1_33 = arith.constant 1 : index
    %c0_34 = arith.constant 0 : index
    %c0_35 = arith.constant 0 : index
    %80 = vector.load %arg7[%c1_33, %c0_34, %c0_35] : memref<8x8x128xbf16, #tpu.memory_space<vmem>>, vector<1x8x128xbf16>
    %81 = vector.shape_cast %80 : vector<1x8x128xbf16> to vector<8x128xbf16>
    %82 = vector.shape_cast %79 : vector<8x128xbf16> to vector<1x8x128xbf16>
    tpu.vector_store %arg7[%c1_33, %c0_34, %c0_35], %82 {strides = array<i32>} : memref<8x8x128xbf16, #tpu.memory_space<vmem>>, vector<1x8x128xbf16>,
    %c2 = arith.constant 2 : index
    %c0_36 = arith.constant 0 : index
    %c0_37 = arith.constant 0 : index
    %83 = vector.load %arg12[%c2, %c0_36, %c0_37] : memref<8x8x512xf32, #tpu.memory_space<vmem>>, vector<1x8x512xf32>
    %84 = vector.shape_cast %83 : vector<1x8x512xf32> to vector<8x512xf32>
    %85 = arith.truncf %78 : vector<8x128xf32> to vector<8x128xbf16>
    %c0_38 = arith.constant 0 : index
    %c0_39 = arith.constant 0 : index
    %86 = vector.load %arg5[%c0_38, %c0_39] : memref<128x512xbf16, #tpu.memory_space<vmem>>, vector<128x512xbf16>
    %cst_40 = arith.constant dense<0.000000e+00> : vector<8x512xf32>
    %87 = tpu.matmul %85, %86, %cst_40 {dimension_numbers = #tpu.dot_dimension_numbers<[1], [0], [0], [1], [0, 0, 1, 1], [], []>} : vector<8x128xbf16>, vector<128x512xbf16>, vector<8x512xf32> -> vector<8x512xf32>
    %88 = arith.addf %84, %87 : vector<8x512xf32>
    %89 = vector.extract_strided_slice %88 {offsets = [0, 0], sizes = [8, 128], strides = [1, 1]} : vector<8x512xf32> to vector<8x128xf32>
    %90 = arith.negf %89 : vector<8x128xf32>
    %91 = math.exp %90 : vector<8x128xf32>
    %cst_41 = arith.constant 1.000000e+00 : f32
    %92 = vector.broadcast %cst_41 : f32 to vector<8x128xf32>
    %93 = arith.addf %92, %91 : vector<8x128xf32>
    %94 = arith.divf %92, %93 : vector<8x128xf32>
    %95 = vector.extract_strided_slice %88 {offsets = [0, 128], sizes = [8, 128], strides = [1, 1]} : vector<8x512xf32> to vector<8x128xf32>
    %96 = arith.negf %95 : vector<8x128xf32>
    %97 = math.exp %96 : vector<8x128xf32>
    %cst_42 = arith.constant 1.000000e+00 : f32
    %98 = vector.broadcast %cst_42 : f32 to vector<8x128xf32>
    %99 = arith.addf %98, %97 : vector<8x128xf32>
    %100 = arith.divf %98, %99 : vector<8x128xf32>
    %101 = vector.extract_strided_slice %88 {offsets = [0, 256], sizes = [8, 128], strides = [1, 1]} : vector<8x512xf32> to vector<8x128xf32>
    %102 = math.tanh %101 : vector<8x128xf32>
    %103 = vector.extract_strided_slice %88 {offsets = [0, 384], sizes = [8, 128], strides = [1, 1]} : vector<8x512xf32> to vector<8x128xf32>
    %104 = arith.negf %103 : vector<8x128xf32>
    %105 = math.exp %104 : vector<8x128xf32>
    %cst_43 = arith.constant 1.000000e+00 : f32
    %106 = vector.broadcast %cst_43 : f32 to vector<8x128xf32>
    %107 = arith.addf %106, %105 : vector<8x128xf32>
    %108 = arith.divf %106, %107 : vector<8x128xf32>
    %109 = arith.mulf %100, %76 : vector<8x128xf32>
    %110 = arith.mulf %94, %102 : vector<8x128xf32>
    %111 = arith.addf %109, %110 : vector<8x128xf32>
    %112 = math.tanh %111 : vector<8x128xf32>
    %113 = arith.mulf %108, %112 : vector<8x128xf32>
    %114 = arith.truncf %113 : vector<8x128xf32> to vector<8x128xbf16>
    %c2_44 = arith.constant 2 : index
    %c0_45 = arith.constant 0 : index
    %c0_46 = arith.constant 0 : index
    %115 = vector.load %arg7[%c2_44, %c0_45, %c0_46] : memref<8x8x128xbf16, #tpu.memory_space<vmem>>, vector<1x8x128xbf16>
    %116 = vector.shape_cast %115 : vector<1x8x128xbf16> to vector<8x128xbf16>
    %117 = vector.shape_cast %114 : vector<8x128xbf16> to vector<1x8x128xbf16>
    tpu.vector_store %arg7[%c2_44, %c0_45, %c0_46], %117 {strides = array<i32>} : memref<8x8x128xbf16, #tpu.memory_space<vmem>>, vector<1x8x128xbf16>,
    %c3 = arith.constant 3 : index
    %c0_47 = arith.constant 0 : index
    %c0_48 = arith.constant 0 : index
    %118 = vector.load %arg12[%c3, %c0_47, %c0_48] : memref<8x8x512xf32, #tpu.memory_space<vmem>>, vector<1x8x512xf32>
    %119 = vector.shape_cast %118 : vector<1x8x512xf32> to vector<8x512xf32>
    %120 = arith.truncf %113 : vector<8x128xf32> to vector<8x128xbf16>
    %c0_49 = arith.constant 0 : index
    %c0_50 = arith.constant 0 : index
    %121 = vector.load %arg5[%c0_49, %c0_50] : memref<128x512xbf16, #tpu.memory_space<vmem>>, vector<128x512xbf16>
    %cst_51 = arith.constant dense<0.000000e+00> : vector<8x512xf32>
    %122 = tpu.matmul %120, %121, %cst_51 {dimension_numbers = #tpu.dot_dimension_numbers<[1], [0], [0], [1], [0, 0, 1, 1], [], []>} : vector<8x128xbf16>, vector<128x512xbf16>, vector<8x512xf32> -> vector<8x512xf32>
    %123 = arith.addf %119, %122 : vector<8x512xf32>
    %124 = vector.extract_strided_slice %123 {offsets = [0, 0], sizes = [8, 128], strides = [1, 1]} : vector<8x512xf32> to vector<8x128xf32>
    %125 = arith.negf %124 : vector<8x128xf32>
    %126 = math.exp %125 : vector<8x128xf32>
    %cst_52 = arith.constant 1.000000e+00 : f32
    %127 = vector.broadcast %cst_52 : f32 to vector<8x128xf32>
    %128 = arith.addf %127, %126 : vector<8x128xf32>
    %129 = arith.divf %127, %128 : vector<8x128xf32>
    %130 = vector.extract_strided_slice %123 {offsets = [0, 128], sizes = [8, 128], strides = [1, 1]} : vector<8x512xf32> to vector<8x128xf32>
    %131 = arith.negf %130 : vector<8x128xf32>
    %132 = math.exp %131 : vector<8x128xf32>
    %cst_53 = arith.constant 1.000000e+00 : f32
    %133 = vector.broadcast %cst_53 : f32 to vector<8x128xf32>
    %134 = arith.addf %133, %132 : vector<8x128xf32>
    %135 = arith.divf %133, %134 : vector<8x128xf32>
    %136 = vector.extract_strided_slice %123 {offsets = [0, 256], sizes = [8, 128], strides = [1, 1]} : vector<8x512xf32> to vector<8x128xf32>
    %137 = math.tanh %136 : vector<8x128xf32>
    %138 = vector.extract_strided_slice %123 {offsets = [0, 384], sizes = [8, 128], strides = [1, 1]} : vector<8x512xf32> to vector<8x128xf32>
    %139 = arith.negf %138 : vector<8x128xf32>
    %140 = math.exp %139 : vector<8x128xf32>
    %cst_54 = arith.constant 1.000000e+00 : f32
    %141 = vector.broadcast %cst_54 : f32 to vector<8x128xf32>
    %142 = arith.addf %141, %140 : vector<8x128xf32>
    %143 = arith.divf %141, %142 : vector<8x128xf32>
    %144 = arith.mulf %135, %111 : vector<8x128xf32>
    %145 = arith.mulf %129, %137 : vector<8x128xf32>
    %146 = arith.addf %144, %145 : vector<8x128xf32>
    %147 = math.tanh %146 : vector<8x128xf32>
    %148 = arith.mulf %143, %147 : vector<8x128xf32>
    %149 = arith.truncf %148 : vector<8x128xf32> to vector<8x128xbf16>
    %c3_55 = arith.constant 3 : index
    %c0_56 = arith.constant 0 : index
    %c0_57 = arith.constant 0 : index
    %150 = vector.load %arg7[%c3_55, %c0_56, %c0_57] : memref<8x8x128xbf16, #tpu.memory_space<vmem>>, vector<1x8x128xbf16>
    %151 = vector.shape_cast %150 : vector<1x8x128xbf16> to vector<8x128xbf16>
    %152 = vector.shape_cast %149 : vector<8x128xbf16> to vector<1x8x128xbf16>
    tpu.vector_store %arg7[%c3_55, %c0_56, %c0_57], %152 {strides = array<i32>} : memref<8x8x128xbf16, #tpu.memory_space<vmem>>, vector<1x8x128xbf16>,
    %c4 = arith.constant 4 : index
    %c0_58 = arith.constant 0 : index
    %c0_59 = arith.constant 0 : index
    %153 = vector.load %arg12[%c4, %c0_58, %c0_59] : memref<8x8x512xf32, #tpu.memory_space<vmem>>, vector<1x8x512xf32>
    %154 = vector.shape_cast %153 : vector<1x8x512xf32> to vector<8x512xf32>
    %155 = arith.truncf %148 : vector<8x128xf32> to vector<8x128xbf16>
    %c0_60 = arith.constant 0 : index
    %c0_61 = arith.constant 0 : index
    %156 = vector.load %arg5[%c0_60, %c0_61] : memref<128x512xbf16, #tpu.memory_space<vmem>>, vector<128x512xbf16>
    %cst_62 = arith.constant dense<0.000000e+00> : vector<8x512xf32>
    %157 = tpu.matmul %155, %156, %cst_62 {dimension_numbers = #tpu.dot_dimension_numbers<[1], [0], [0], [1], [0, 0, 1, 1], [], []>} : vector<8x128xbf16>, vector<128x512xbf16>, vector<8x512xf32> -> vector<8x512xf32>
    %158 = arith.addf %154, %157 : vector<8x512xf32>
    %159 = vector.extract_strided_slice %158 {offsets = [0, 0], sizes = [8, 128], strides = [1, 1]} : vector<8x512xf32> to vector<8x128xf32>
    %160 = arith.negf %159 : vector<8x128xf32>
    %161 = math.exp %160 : vector<8x128xf32>
    %cst_63 = arith.constant 1.000000e+00 : f32
    %162 = vector.broadcast %cst_63 : f32 to vector<8x128xf32>
    %163 = arith.addf %162, %161 : vector<8x128xf32>
    %164 = arith.divf %162, %163 : vector<8x128xf32>
    %165 = vector.extract_strided_slice %158 {offsets = [0, 128], sizes = [8, 128], strides = [1, 1]} : vector<8x512xf32> to vector<8x128xf32>
    %166 = arith.negf %165 : vector<8x128xf32>
    %167 = math.exp %166 : vector<8x128xf32>
    %cst_64 = arith.constant 1.000000e+00 : f32
    %168 = vector.broadcast %cst_64 : f32 to vector<8x128xf32>
    %169 = arith.addf %168, %167 : vector<8x128xf32>
    %170 = arith.divf %168, %169 : vector<8x128xf32>
    %171 = vector.extract_strided_slice %158 {offsets = [0, 256], sizes = [8, 128], strides = [1, 1]} : vector<8x512xf32> to vector<8x128xf32>
    %172 = math.tanh %171 : vector<8x128xf32>
    %173 = vector.extract_strided_slice %158 {offsets = [0, 384], sizes = [8, 128], strides = [1, 1]} : vector<8x512xf32> to vector<8x128xf32>
    %174 = arith.negf %173 : vector<8x128xf32>
    %175 = math.exp %174 : vector<8x128xf32>
    %cst_65 = arith.constant 1.000000e+00 : f32
    %176 = vector.broadcast %cst_65 : f32 to vector<8x128xf32>
    %177 = arith.addf %176, %175 : vector<8x128xf32>
    %178 = arith.divf %176, %177 : vector<8x128xf32>
    %179 = arith.mulf %170, %146 : vector<8x128xf32>
    %180 = arith.mulf %164, %172 : vector<8x128xf32>
    %181 = arith.addf %179, %180 : vector<8x128xf32>
    %182 = math.tanh %181 : vector<8x128xf32>
    %183 = arith.mulf %178, %182 : vector<8x128xf32>
    %184 = arith.truncf %183 : vector<8x128xf32> to vector<8x128xbf16>
    %c4_66 = arith.constant 4 : index
    %c0_67 = arith.constant 0 : index
    %c0_68 = arith.constant 0 : index
    %185 = vector.load %arg7[%c4_66, %c0_67, %c0_68] : memref<8x8x128xbf16, #tpu.memory_space<vmem>>, vector<1x8x128xbf16>
    %186 = vector.shape_cast %185 : vector<1x8x128xbf16> to vector<8x128xbf16>
    %187 = vector.shape_cast %184 : vector<8x128xbf16> to vector<1x8x128xbf16>
    tpu.vector_store %arg7[%c4_66, %c0_67, %c0_68], %187 {strides = array<i32>} : memref<8x8x128xbf16, #tpu.memory_space<vmem>>, vector<1x8x128xbf16>,
    %c5 = arith.constant 5 : index
    %c0_69 = arith.constant 0 : index
    %c0_70 = arith.constant 0 : index
    %188 = vector.load %arg12[%c5, %c0_69, %c0_70] : memref<8x8x512xf32, #tpu.memory_space<vmem>>, vector<1x8x512xf32>
    %189 = vector.shape_cast %188 : vector<1x8x512xf32> to vector<8x512xf32>
    %190 = arith.truncf %183 : vector<8x128xf32> to vector<8x128xbf16>
    %c0_71 = arith.constant 0 : index
    %c0_72 = arith.constant 0 : index
    %191 = vector.load %arg5[%c0_71, %c0_72] : memref<128x512xbf16, #tpu.memory_space<vmem>>, vector<128x512xbf16>
    %cst_73 = arith.constant dense<0.000000e+00> : vector<8x512xf32>
    %192 = tpu.matmul %190, %191, %cst_73 {dimension_numbers = #tpu.dot_dimension_numbers<[1], [0], [0], [1], [0, 0, 1, 1], [], []>} : vector<8x128xbf16>, vector<128x512xbf16>, vector<8x512xf32> -> vector<8x512xf32>
    %193 = arith.addf %189, %192 : vector<8x512xf32>
    %194 = vector.extract_strided_slice %193 {offsets = [0, 0], sizes = [8, 128], strides = [1, 1]} : vector<8x512xf32> to vector<8x128xf32>
    %195 = arith.negf %194 : vector<8x128xf32>
    %196 = math.exp %195 : vector<8x128xf32>
    %cst_74 = arith.constant 1.000000e+00 : f32
    %197 = vector.broadcast %cst_74 : f32 to vector<8x128xf32>
    %198 = arith.addf %197, %196 : vector<8x128xf32>
    %199 = arith.divf %197, %198 : vector<8x128xf32>
    %200 = vector.extract_strided_slice %193 {offsets = [0, 128], sizes = [8, 128], strides = [1, 1]} : vector<8x512xf32> to vector<8x128xf32>
    %201 = arith.negf %200 : vector<8x128xf32>
    %202 = math.exp %201 : vector<8x128xf32>
    %cst_75 = arith.constant 1.000000e+00 : f32
    %203 = vector.broadcast %cst_75 : f32 to vector<8x128xf32>
    %204 = arith.addf %203, %202 : vector<8x128xf32>
    %205 = arith.divf %203, %204 : vector<8x128xf32>
    %206 = vector.extract_strided_slice %193 {offsets = [0, 256], sizes = [8, 128], strides = [1, 1]} : vector<8x512xf32> to vector<8x128xf32>
    %207 = math.tanh %206 : vector<8x128xf32>
    %208 = vector.extract_strided_slice %193 {offsets = [0, 384], sizes = [8, 128], strides = [1, 1]} : vector<8x512xf32> to vector<8x128xf32>
    %209 = arith.negf %208 : vector<8x128xf32>
    %210 = math.exp %209 : vector<8x128xf32>
    %cst_76 = arith.constant 1.000000e+00 : f32
    %211 = vector.broadcast %cst_76 : f32 to vector<8x128xf32>
    %212 = arith.addf %211, %210 : vector<8x128xf32>
    %213 = arith.divf %211, %212 : vector<8x128xf32>
    %214 = arith.mulf %205, %181 : vector<8x128xf32>
    %215 = arith.mulf %199, %207 : vector<8x128xf32>
    %216 = arith.addf %214, %215 : vector<8x128xf32>
    %217 = math.tanh %216 : vector<8x128xf32>
    %218 = arith.mulf %213, %217 : vector<8x128xf32>
    %219 = arith.truncf %218 : vector<8x128xf32> to vector<8x128xbf16>
    %c5_77 = arith.constant 5 : index
    %c0_78 = arith.constant 0 : index
    %c0_79 = arith.constant 0 : index
    %220 = vector.load %arg7[%c5_77, %c0_78, %c0_79] : memref<8x8x128xbf16, #tpu.memory_space<vmem>>, vector<1x8x128xbf16>
    %221 = vector.shape_cast %220 : vector<1x8x128xbf16> to vector<8x128xbf16>
    %222 = vector.shape_cast %219 : vector<8x128xbf16> to vector<1x8x128xbf16>
    tpu.vector_store %arg7[%c5_77, %c0_78, %c0_79], %222 {strides = array<i32>} : memref<8x8x128xbf16, #tpu.memory_space<vmem>>, vector<1x8x128xbf16>,
    %c6 = arith.constant 6 : index
    %c0_80 = arith.constant 0 : index
    %c0_81 = arith.constant 0 : index
    %223 = vector.load %arg12[%c6, %c0_80, %c0_81] : memref<8x8x512xf32, #tpu.memory_space<vmem>>, vector<1x8x512xf32>
    %224 = vector.shape_cast %223 : vector<1x8x512xf32> to vector<8x512xf32>
    %225 = arith.truncf %218 : vector<8x128xf32> to vector<8x128xbf16>
    %c0_82 = arith.constant 0 : index
    %c0_83 = arith.constant 0 : index
    %226 = vector.load %arg5[%c0_82, %c0_83] : memref<128x512xbf16, #tpu.memory_space<vmem>>, vector<128x512xbf16>
    %cst_84 = arith.constant dense<0.000000e+00> : vector<8x512xf32>
    %227 = tpu.matmul %225, %226, %cst_84 {dimension_numbers = #tpu.dot_dimension_numbers<[1], [0], [0], [1], [0, 0, 1, 1], [], []>} : vector<8x128xbf16>, vector<128x512xbf16>, vector<8x512xf32> -> vector<8x512xf32>
    %228 = arith.addf %224, %227 : vector<8x512xf32>
    %229 = vector.extract_strided_slice %228 {offsets = [0, 0], sizes = [8, 128], strides = [1, 1]} : vector<8x512xf32> to vector<8x128xf32>
    %230 = arith.negf %229 : vector<8x128xf32>
    %231 = math.exp %230 : vector<8x128xf32>
    %cst_85 = arith.constant 1.000000e+00 : f32
    %232 = vector.broadcast %cst_85 : f32 to vector<8x128xf32>
    %233 = arith.addf %232, %231 : vector<8x128xf32>
    %234 = arith.divf %232, %233 : vector<8x128xf32>
    %235 = vector.extract_strided_slice %228 {offsets = [0, 128], sizes = [8, 128], strides = [1, 1]} : vector<8x512xf32> to vector<8x128xf32>
    %236 = arith.negf %235 : vector<8x128xf32>
    %237 = math.exp %236 : vector<8x128xf32>
    %cst_86 = arith.constant 1.000000e+00 : f32
    %238 = vector.broadcast %cst_86 : f32 to vector<8x128xf32>
    %239 = arith.addf %238, %237 : vector<8x128xf32>
    %240 = arith.divf %238, %239 : vector<8x128xf32>
    %241 = vector.extract_strided_slice %228 {offsets = [0, 256], sizes = [8, 128], strides = [1, 1]} : vector<8x512xf32> to vector<8x128xf32>
    %242 = math.tanh %241 : vector<8x128xf32>
    %243 = vector.extract_strided_slice %228 {offsets = [0, 384], sizes = [8, 128], strides = [1, 1]} : vector<8x512xf32> to vector<8x128xf32>
    %244 = arith.negf %243 : vector<8x128xf32>
    %245 = math.exp %244 : vector<8x128xf32>
    %cst_87 = arith.constant 1.000000e+00 : f32
    %246 = vector.broadcast %cst_87 : f32 to vector<8x128xf32>
    %247 = arith.addf %246, %245 : vector<8x128xf32>
    %248 = arith.divf %246, %247 : vector<8x128xf32>
    %249 = arith.mulf %240, %216 : vector<8x128xf32>
    %250 = arith.mulf %234, %242 : vector<8x128xf32>
    %251 = arith.addf %249, %250 : vector<8x128xf32>
    %252 = math.tanh %251 : vector<8x128xf32>
    %253 = arith.mulf %248, %252 : vector<8x128xf32>
    %254 = arith.truncf %253 : vector<8x128xf32> to vector<8x128xbf16>
    %c6_88 = arith.constant 6 : index
    %c0_89 = arith.constant 0 : index
    %c0_90 = arith.constant 0 : index
    %255 = vector.load %arg7[%c6_88, %c0_89, %c0_90] : memref<8x8x128xbf16, #tpu.memory_space<vmem>>, vector<1x8x128xbf16>
    %256 = vector.shape_cast %255 : vector<1x8x128xbf16> to vector<8x128xbf16>
    %257 = vector.shape_cast %254 : vector<8x128xbf16> to vector<1x8x128xbf16>
    tpu.vector_store %arg7[%c6_88, %c0_89, %c0_90], %257 {strides = array<i32>} : memref<8x8x128xbf16, #tpu.memory_space<vmem>>, vector<1x8x128xbf16>,
    %c7 = arith.constant 7 : index
    %c0_91 = arith.constant 0 : index
    %c0_92 = arith.constant 0 : index
    %258 = vector.load %arg12[%c7, %c0_91, %c0_92] : memref<8x8x512xf32, #tpu.memory_space<vmem>>, vector<1x8x512xf32>
    %259 = vector.shape_cast %258 : vector<1x8x512xf32> to vector<8x512xf32>
    %260 = arith.truncf %253 : vector<8x128xf32> to vector<8x128xbf16>
    %c0_93 = arith.constant 0 : index
    %c0_94 = arith.constant 0 : index
    %261 = vector.load %arg5[%c0_93, %c0_94] : memref<128x512xbf16, #tpu.memory_space<vmem>>, vector<128x512xbf16>
    %cst_95 = arith.constant dense<0.000000e+00> : vector<8x512xf32>
    %262 = tpu.matmul %260, %261, %cst_95 {dimension_numbers = #tpu.dot_dimension_numbers<[1], [0], [0], [1], [0, 0, 1, 1], [], []>} : vector<8x128xbf16>, vector<128x512xbf16>, vector<8x512xf32> -> vector<8x512xf32>
    %263 = arith.addf %259, %262 : vector<8x512xf32>
    %264 = vector.extract_strided_slice %263 {offsets = [0, 0], sizes = [8, 128], strides = [1, 1]} : vector<8x512xf32> to vector<8x128xf32>
    %265 = arith.negf %264 : vector<8x128xf32>
    %266 = math.exp %265 : vector<8x128xf32>
    %cst_96 = arith.constant 1.000000e+00 : f32
    %267 = vector.broadcast %cst_96 : f32 to vector<8x128xf32>
    %268 = arith.addf %267, %266 : vector<8x128xf32>
    %269 = arith.divf %267, %268 : vector<8x128xf32>
    %270 = vector.extract_strided_slice %263 {offsets = [0, 128], sizes = [8, 128], strides = [1, 1]} : vector<8x512xf32> to vector<8x128xf32>
    %271 = arith.negf %270 : vector<8x128xf32>
    %272 = math.exp %271 : vector<8x128xf32>
    %cst_97 = arith.constant 1.000000e+00 : f32
    %273 = vector.broadcast %cst_97 : f32 to vector<8x128xf32>
    %274 = arith.addf %273, %272 : vector<8x128xf32>
    %275 = arith.divf %273, %274 : vector<8x128xf32>
    %276 = vector.extract_strided_slice %263 {offsets = [0, 256], sizes = [8, 128], strides = [1, 1]} : vector<8x512xf32> to vector<8x128xf32>
    %277 = math.tanh %276 : vector<8x128xf32>
    %278 = vector.extract_strided_slice %263 {offsets = [0, 384], sizes = [8, 128], strides = [1, 1]} : vector<8x512xf32> to vector<8x128xf32>
    %279 = arith.negf %278 : vector<8x128xf32>
    %280 = math.exp %279 : vector<8x128xf32>
    %cst_98 = arith.constant 1.000000e+00 : f32
    %281 = vector.broadcast %cst_98 : f32 to vector<8x128xf32>
    %282 = arith.addf %281, %280 : vector<8x128xf32>
    %283 = arith.divf %281, %282 : vector<8x128xf32>
    %284 = arith.mulf %275, %251 : vector<8x128xf32>
    %285 = arith.mulf %269, %277 : vector<8x128xf32>
    %286 = arith.addf %284, %285 : vector<8x128xf32>
    %287 = math.tanh %286 : vector<8x128xf32>
    %288 = arith.mulf %283, %287 : vector<8x128xf32>
    %289 = arith.truncf %288 : vector<8x128xf32> to vector<8x128xbf16>
    %c7_99 = arith.constant 7 : index
    %c0_100 = arith.constant 0 : index
    %c0_101 = arith.constant 0 : index
    %290 = vector.load %arg7[%c7_99, %c0_100, %c0_101] : memref<8x8x128xbf16, #tpu.memory_space<vmem>>, vector<1x8x128xbf16>
    %291 = vector.shape_cast %290 : vector<1x8x128xbf16> to vector<8x128xbf16>
    %292 = vector.shape_cast %289 : vector<8x128xbf16> to vector<1x8x128xbf16>
    tpu.vector_store %arg7[%c7_99, %c0_100, %c0_101], %292 {strides = array<i32>} : memref<8x8x128xbf16, #tpu.memory_space<vmem>>, vector<1x8x128xbf16>,
    %c0_102 = arith.constant 0 : index
    %c0_103 = arith.constant 0 : index
    %293 = vector.load %arg10[%c0_102, %c0_103] : memref<8x128xf32, #tpu.memory_space<vmem>>, vector<8x128xf32>
    tpu.vector_store %arg10[%c0_102, %c0_103], %288 {strides = array<i32>} : memref<8x128xf32, #tpu.memory_space<vmem>>, vector<8x128xf32>,
    %c0_104 = arith.constant 0 : index
    %c0_105 = arith.constant 0 : index
    %294 = vector.load %arg11[%c0_104, %c0_105] : memref<8x128xf32, #tpu.memory_space<vmem>>, vector<8x128xf32>
    tpu.vector_store %arg11[%c0_104, %c0_105], %286 {strides = array<i32>} : memref<8x128xf32, #tpu.memory_space<vmem>>, vector<8x128xf32>,
    %c0_i32_106 = arith.constant 0 : i32
    %295 = arith.cmpi eq, %arg0, %c0_i32_106 : i32
    %296 = arith.extui %295 : i1 to i32
    %c0_i32_107 = arith.constant 0 : i32
    %297 = arith.cmpi ne, %296, %c0_i32_107 : i32
    scf.if %297 {
      %c0_108 = arith.constant 0 : index
      %c0_109 = arith.constant 0 : index
      %298 = vector.load %arg8[%c0_108, %c0_109] : memref<8x128xf32, #tpu.memory_space<vmem>>, vector<8x128xf32>
      tpu.vector_store %arg8[%c0_108, %c0_109], %288 {strides = array<i32>} : memref<8x128xf32, #tpu.memory_space<vmem>>, vector<8x128xf32>,
      %c0_110 = arith.constant 0 : index
      %c0_111 = arith.constant 0 : index
      %299 = vector.load %arg9[%c0_110, %c0_111] : memref<8x128xf32, #tpu.memory_space<vmem>>, vector<8x128xf32>
      tpu.vector_store %arg9[%c0_110, %c0_111], %286 {strides = array<i32>} : memref<8x128xf32, #tpu.memory_space<vmem>>, vector<8x128xf32>,
    } else {
    }
    return
  }
  func.func @transform_0(%arg0: i32) -> (i32, i32) {
    %c0_i32 = arith.constant 0 : i32
    %c0_i32_0 = arith.constant 0 : i32
    return %arg0, %c0_i32 : i32, i32
  }
  func.func @transform_1(%arg0: i32) -> (i32, i32) {
    %c0_i32 = arith.constant 0 : i32
    %c0_i32_0 = arith.constant 0 : i32
    %c0_i32_1 = arith.constant 0 : i32
    return %c0_i32, %c0_i32_0 : i32, i32
  }
  func.func @transform_2(%arg0: i32) -> (i32, i32) {
    %c0_i32 = arith.constant 0 : i32
    %c0_i32_0 = arith.constant 0 : i32
    %c0_i32_1 = arith.constant 0 : i32
    return %c0_i32, %c0_i32_0 : i32, i32
  }
  func.func @transform_3(%arg0: i32) -> (i32, i32) {
    %c0_i32 = arith.constant 0 : i32
    %c0_i32_0 = arith.constant 0 : i32
    %c0_i32_1 = arith.constant 0 : i32
    return %c0_i32, %c0_i32_0 : i32, i32
  }
  func.func @transform_4(%arg0: i32) -> (i32, i32) {
    %c0_i32 = arith.constant 0 : i32
    %c0_i32_0 = arith.constant 0 : i32
    %c0_i32_1 = arith.constant 0 : i32
    return %c0_i32, %c0_i32_0 : i32, i32
  }
  func.func @transform_5(%arg0: i32) -> (i32, i32) {
    %c0_i32 = arith.constant 0 : i32
    %c0_i32_0 = arith.constant 0 : i32
    %c0_i32_1 = arith.constant 0 : i32
    return %c0_i32, %c0_i32_0 : i32, i32
  }
  func.func @transform_6(%arg0: i32) -> (i32, i32, i32) {
    %c0_i32 = arith.constant 0 : i32
    %c0_i32_0 = arith.constant 0 : i32
    %c0_i32_1 = arith.constant 0 : i32
    return %arg0, %c0_i32, %c0_i32_0 : i32, i32, i32
  }
  func.func @transform_7(%arg0: i32) -> (i32, i32) {
    %c0_i32 = arith.constant 0 : i32
    %c0_i32_0 = arith.constant 0 : i32
    %c0_i32_1 = arith.constant 0 : i32
    return %c0_i32, %c0_i32_0 : i32, i32
  }
  func.func @transform_8(%arg0: i32) -> (i32, i32) {
    %c0_i32 = arith.constant 0 : i32
    %c0_i32_0 = arith.constant 0 : i32
    %c0_i32_1 = arith.constant 0 : i32
    return %c0_i32, %c0_i32_0 : i32, i32
  }
}

</mosaic_0001>

<llo_original>
// kernel: tpu_custom_call.1
$region0: #{tpu_custom_call.1}
  #allocation0 [shape = 'u32[]', space=smem, size = 0x4, offset = 0x4, fixed_abs, tag = 'smem constant byte address 0x4 - core index']
  #allocation1 [shape = 'u32[144,128]{1,0:T(1,128)}', space=vmem, size = 0x12000, scoped, tag = 'internal scratch']
  #allocation2 [shape = 'f32[8,128]{1,0:T(8,128)}', space=vmem, size = 0x1000, scoped, tag = 'scratch operand']
  #allocation3 [shape = 'f32[8,128]{1,0:T(8,128)}', space=vmem, size = 0x1000, scoped, tag = 'scratch operand']
  #allocation4 [shape = 'f32[8,8,512]{2,1,0:T(8,128)}', space=vmem, size = 0x20000, scoped, tag = 'scratch operand']
  %s0 = inlined_call_operand.vmem [shape: bf16[64,32], index: 0, kind: input, shape index: {}]
  %s1 = inlined_call_operand.vmem [shape: f32[8,128], index: 1, kind: input, shape index: {}]
  %s2 = inlined_call_operand.vmem [shape: f32[8,128], index: 2, kind: input, shape index: {}]
  %s3 = inlined_call_operand.hbm [shape: bf16[32,512], index: 3, kind: input, shape index: {}]
  %s4 = inlined_call_operand.hbm [shape: bf16[128,512], index: 4, kind: input, shape index: {}]
  %s5 = inlined_call_operand.vmem [shape: f32[1,512], index: 5, kind: input, shape index: {}]
  %s6 = inlined_call_operand.hbm [shape: bf16[8,8,128], index: 6, kind: output, shape index: {0}]
  %s7 = inlined_call_operand.hbm [shape: f32[8,128], index: 7, kind: output, shape index: {1}]
  %s8 = inlined_call_operand.hbm [shape: f32[8,128], index: 8, kind: output, shape index: {2}]
  %9 = xla_tuple %s6, %s7, %s8
  %s10 = sld [smem:[#allocation0]]
  $region66: #{tpu_custom_call.1} parent=0
    _
  %s12 = ssub.s32 1, %s10
  %s13 = scalar_select 0, %s12, %s10
  $region1: #{tpu_custom_call.1} parent=0
    #allocation5 [shape = 'u8[32768]{0}', space=vmem, size = 0x8000, scoped, tag = 'input window, operand 3, single buffered']
    #allocation6 [shape = 's32[1]{0}', space=sflag, size = 0x4, scoped, tag = 'scoped memory for tpu_custom_call.1']
    #allocation7 [shape = 's32[1]{0}', space=sflag, size = 0x4, scoped, tag = 'scoped memory for tpu_custom_call.1']
    #allocation8 [shape = 'u8[131072]{0}', space=vmem, size = 0x20000, scoped, tag = 'input window, operand 4, single buffered']
    #allocation9 [shape = 's32[1]{0}', space=sflag, size = 0x4, scoped, tag = 'scoped memory for tpu_custom_call.1']
    #allocation10 [shape = 'u8[16384]{0}', space=vmem, size = 0x4000, scoped, tag = 'output window, operand 0, single buffered']
    #allocation11 [shape = 'u8[4096]{0}', space=vmem, size = 0x1000, scoped, tag = 'output window, operand 1, single buffered']
    #allocation12 [shape = 's32[1]{0}', space=sflag, size = 0x4, scoped, tag = 'scoped memory for tpu_custom_call.1']
    #allocation13 [shape = 'u8[4096]{0}', space=vmem, size = 0x1000, scoped, tag = 'output window, operand 2, single buffered']
    %14 = vsyncpa [#allocation6], 0
    %15 = vsyncpa [#allocation9], 0
    %16 = vsyncpa [#allocation7], 0
    %17 = vsyncpa [#allocation12], 0
    // Predicated region
    $region2: #{tpu_custom_call.1} parent=1 // pred_check
      _
    $region3: #{tpu_custom_call.1} parent=1 // pred_check_branch
      %19 = sbr.rel (0) target = $region5
    $region4: #{tpu_custom_call.1} parent=1 // pred_region
      _
    $region5: #{tpu_custom_call.1} parent=1 // pred_fallthru
      _
    // Predicated region
    $region6: #{tpu_custom_call.1} parent=1 // pred_check
      _
    $region7: #{tpu_custom_call.1} parent=1 // pred_check_branch
      %21 = sbr.rel (0) target = $region9
    $region8: #{tpu_custom_call.1} parent=1 // pred_region
      _
    $region9: #{tpu_custom_call.1} parent=1 // pred_fallthru
      _
    // Predicated region
    $region10: #{tpu_custom_call.1} parent=1 // pred_check
      _
    $region11: #{tpu_custom_call.1} parent=1 // pred_check_branch
      %23 = sbr.rel (0) target = $region13
    $region12: #{tpu_custom_call.1} parent=1 // pred_region
      _
    $region13: #{tpu_custom_call.1} parent=1 // pred_fallthru
      _
    // Predicated region
    $region14: #{tpu_custom_call.1} parent=1 // pred_check
      _
    $region15: #{tpu_custom_call.1} parent=1 // pred_check_branch
      %25 = sbr.rel (0) target = $region17
    $region16: #{tpu_custom_call.1} parent=1 // pred_region
      %s27 = ssub.s32 1024, 1024
      %28 = vsyncadd [#allocation6], %s27
      %s29 = sshll.u32 [#allocation5], 4
      %s30 = int_to_ptr.vmem [resolvable:$true] %s29
      %35 = dma.hbm_to_vmem [thread:$0]  %s3, 1024, %s30, [#allocation6], 256, 256, 16
    $region17: #{tpu_custom_call.1} parent=1 // pred_fallthru
      _
    // Predicated region
    $region18: #{tpu_custom_call.1} parent=1 // pred_check
      _
    $region19: #{tpu_custom_call.1} parent=1 // pred_check_branch
      %37 = sbr.rel (0) target = $region21
    $region20: #{tpu_custom_call.1} parent=1 // pred_region
      %s39 = ssub.s32 4096, 4096
      %40 = vsyncadd [#allocation9], %s39
      %s41 = sshll.u32 [#allocation8], 4
      %s42 = int_to_ptr.vmem [resolvable:$true] %s41
      %47 = dma.hbm_to_vmem [thread:$0]  %s4, 4096, %s42, [#allocation9], 256, 256, 16
    $region21: #{tpu_custom_call.1} parent=1 // pred_fallthru
      _
    // Predicated region
    $region22: #{tpu_custom_call.1} parent=1 // pred_check
      _
    $region23: #{tpu_custom_call.1} parent=1 // pred_check_branch
      %49 = sbr.rel (0) target = $region25
    $region24: #{tpu_custom_call.1} parent=1 // pred_region
      _
    $region25: #{tpu_custom_call.1} parent=1 // pred_fallthru
      _
    // Predicated region
    $region26: #{tpu_custom_call.1} parent=1 // pred_check
      _
    $region27: #{tpu_custom_call.1} parent=1 // pred_check_branch
      %51 = sbr.rel (0) target = $region29
    $region28: #{tpu_custom_call.1} parent=1 // pred_region
      %52 = dma.done [#allocation6], 1024
    $region29: #{tpu_custom_call.1} parent=1 // pred_fallthru
      _
    // Predicated region
    $region30: #{tpu_custom_call.1} parent=1 // pred_check
      _
    $region31: #{tpu_custom_call.1} parent=1 // pred_check_branch
      %54 = sbr.rel (0) target = $region33
    $region32: #{tpu_custom_call.1} parent=1 // pred_region
      %55 = dma.done [#allocation9], 4096
    $region33: #{tpu_custom_call.1} parent=1 // pred_fallthru
      _
    %p57 = scmp.eq.s32.totalorder 0, 0
    // Predicated region
    $region34: #{tpu_custom_call.1} parent=1 // pred_check
      %p58 = pneg %p57
    $region35: #{tpu_custom_call.1} parent=1 // pred_check_branch
      %60 = sbr.rel (%p58) target = $region37
    $region36: #{tpu_custom_call.1} parent=1 // pred_region
      %v61 = vld [vmem:[%s1] sm:$0xff]
      %62 = vst [vmem:[#allocation2] sm:$0xff] %v61
      %v63 = vld [vmem:[%s2] sm:$0xff]
      %64 = vst [vmem:[#allocation3] sm:$0xff] %v63
    $region37: #{tpu_custom_call.1} parent=1 // pred_fallthru
      _
    %v65 = vld [vmem:[%s0] sm:$0xf]
    %v66 = vld [vmem:[%s0 + $0x4] sm:$0xf]
    %v67 = vld [vmem:[%s0 + $0x8] sm:$0xf]
    %v68 = vld [vmem:[%s0 + $0xc] sm:$0xf]
    %v69 = vld [vmem:[%s0 + $0x10] sm:$0xf]
    %v70 = vld [vmem:[%s0 + $0x14] sm:$0xf]
    %v71 = vld [vmem:[%s0 + $0x18] sm:$0xf]
    %v72 = vld [vmem:[%s0 + $0x1c] sm:$0xf]
    %v73 = vld [vmem:[#allocation5] sm:$0xff]
    %v74 = vld [vmem:[#allocation5 + $0x8] sm:$0xff]
    %v75 = vld [vmem:[#allocation5 + $0x10] sm:$0xff]
    %v76 = vld [vmem:[#allocation5 + $0x18] sm:$0xff]
    %v77 = vld [vmem:[#allocation5 + $0x20] sm:$0xff]
    %v78 = vld [vmem:[#allocation5 + $0x28] sm:$0xff]
    %v79 = vld [vmem:[#allocation5 + $0x30] sm:$0xff]
    %v80 = vld [vmem:[#allocation5 + $0x38] sm:$0xff]
    %v81 = vld [vmem:[%s5] sm:$0xf]
    %v83 = vlaneseq
    %v84 = vshrl.u32 %v83, 7
    %v85 = vsub.s32 0, %v84
    %v86 = vrot.slane %v81, %v85
    %v87 = vlaneseq
    %v88 = vshrl.u32 %v87, 7
    %v89 = vsub.s32 1, %v88
    %v90 = vrot.slane %v81, %v89
    %v91 = vlaneseq
    %v92 = vshrl.u32 %v91, 7
    %v93 = vsub.s32 2, %v92
    %v94 = vrot.slane %v81, %v93
    %v95 = vlaneseq
    %v96 = vshrl.u32 %v95, 7
    %v97 = vsub.s32 3, %v96
    %v98 = vrot.slane %v81, %v97
    %v111 = vunpack.c.l.b16 %v65
    %v112 = vunpack.c.l.b16 %v66
    %v113 = vunpack.c.l.b16 %v67
    %v114 = vunpack.c.l.b16 %v68
    %v115 = vunpack.c.l.b16 %v69
    %v116 = vunpack.c.l.b16 %v70
    %v117 = vunpack.c.l.b16 %v71
    %v118 = vunpack.c.l.b16 %v72
    %v119 = vpack.c.b16 %v112, %v111
    %v120 = vpack.c.b16 %v114, %v113
    %v121 = vpack.c.b16 %v116, %v115
    %v122 = vpack.c.b16 %v118, %v117
    %v131 = vunpack.c.l.b16 %v73
    %v132 = vunpack.c.h.b16 %v73
    %v133 = vunpack.c.l.b16 %v74
    %v134 = vunpack.c.h.b16 %v74
    %v135 = vunpack.c.l.b16 %v75
    %v136 = vunpack.c.h.b16 %v75
    %v137 = vunpack.c.l.b16 %v76
    %v138 = vunpack.c.h.b16 %v76
    %v139 = vunpack.c.l.b16 %v77
    %v140 = vunpack.c.h.b16 %v77
    %v141 = vunpack.c.l.b16 %v78
    %v142 = vunpack.c.h.b16 %v78
    %v143 = vunpack.c.l.b16 %v79
    %v144 = vunpack.c.h.b16 %v79
    %v145 = vunpack.c.l.b16 %v80
    %v146 = vunpack.c.h.b16 %v80
    %v147 = vpack.c.b16 %v135, %v131
    %v148 = vpack.c.b16 %v136, %v132
    %v149 = vpack.c.b16 %v137, %v133
    %v150 = vpack.c.b16 %v138, %v134
    %v151 = vpack.c.b16 %v143, %v139
    %v152 = vpack.c.b16 %v144, %v140
    %v153 = vpack.c.b16 %v145, %v141
    %v154 = vpack.c.b16 %v146, %v142
    %vm163 = vcmask 261120
    %v165 = vsel %vm163, %v119, 0
    %v168 = vsel %vm163, %v120, 0
    %v171 = vsel %vm163, %v121, 0
    %v174 = vsel %vm163, %v122, 0
    %176 = vmatprep.subr.bf16.mxu0 %v148
    %177 = vmatpush1.bf16.msra.mxu0 %v147
    %178 = vmatprep.subr.bf16.mxu0 %v152
    %179 = vmatpush1.bf16.msra.mxu0 %v151
    %180 = vmatprep.subr.bf16.mxu0 0
    %181 = vmatpush1.bf16.msra.mxu0 0
    %182 = vmatprep.subr.bf16.mxu0 0
    %183 = vmatpush1.bf16.msra.mxu0 0
    %184 = vmatprep.subr.bf16.mxu0 0
    %185 = vmatpush1.bf16.msra.mxu0 0
    %186 = vmatprep.subr.bf16.mxu0 0
    %187 = vmatpush1.bf16.msra.mxu0 0
    %188 = vmatprep.subr.bf16.mxu0 0
    %189 = vmatpush1.bf16.msra.mxu0 0
    %190 = vmatprep.subr.bf16.mxu0 0
    %191 = vmatpush1.bf16.msra.mxu0 0
    %192 = vmatprep.subr.bf16.mxu0 0
    %193 = vmatpush1.bf16.msra.mxu0 0
    %194 = vmatprep.subr.bf16.mxu0 0
    %195 = vmatpush1.bf16.msra.mxu0 0
    %196 = vmatprep.subr.bf16.mxu0 0
    %197 = vmatpush1.bf16.msra.mxu0 0
    %198 = vmatprep.subr.bf16.mxu0 0
    %199 = vmatpush1.bf16.msra.mxu0 0
    %200 = vmatprep.subr.bf16.mxu0 0
    %201 = vmatpush1.bf16.msra.mxu0 0
    %202 = vmatprep.subr.bf16.mxu0 0
    %203 = vmatpush1.bf16.msra.mxu0 0
    %204 = vmatprep.subr.bf16.mxu0 0
    %205 = vmatpush1.bf16.msra.mxu0 0
    %206 = vmatprep.subr.bf16.mxu0 0
    %207 = vmatpush1.bf16.msra.mxu0 0
    %208 = vmatprep.mubr.bf16.mxu0 0
    %209 = vmatmul.mubr.bf16.gmra.mrb[0].mxu0 %v165
    %v210 = vpop.f32.mrb[0].mxu0
    %v211 = vadd.f32 %v86, %v210
    %v212 = vpop.f32.mrb[0].mxu0
    %v213 = vadd.f32 %v90, %v212
    %v214 = vpop.f32.mrb[0].mxu0
    %v215 = vadd.f32 %v86, %v214
    %v216 = vpop.f32.mrb[0].mxu0
    %v217 = vadd.f32 %v90, %v216
    %218 = vmatprep.mubr.bf16.mxu0 0
    %219 = vmatmul.mubr.bf16.gmra.mrb[0].mxu0 %v168
    %v220 = vpop.f32.mrb[0].mxu0
    %v221 = vadd.f32 %v86, %v220
    %v222 = vpop.f32.mrb[0].mxu0
    %v223 = vadd.f32 %v90, %v222
    %v224 = vpop.f32.mrb[0].mxu0
    %v225 = vadd.f32 %v86, %v224
    %v226 = vpop.f32.mrb[0].mxu0
    %v227 = vadd.f32 %v90, %v226
    %228 = vmatprep.mubr.bf16.mxu0 0
    %229 = vmatmul.mubr.bf16.gmra.mrb[0].mxu0 %v171
    %v230 = vpop.f32.mrb[0].mxu0
    %v231 = vadd.f32 %v86, %v230
    %v232 = vpop.f32.mrb[0].mxu0
    %v233 = vadd.f32 %v90, %v232
    %v234 = vpop.f32.mrb[0].mxu0
    %v235 = vadd.f32 %v86, %v234
    %v236 = vpop.f32.mrb[0].mxu0
    %v237 = vadd.f32 %v90, %v236
    %238 = vmatprep.mubr.bf16.mxu0 0
    %239 = vmatmul.mubr.bf16.gmra.mrb[0].mxu0 %v174
    %v240 = vpop.f32.mrb[0].mxu0
    %v241 = vadd.f32 %v86, %v240
    %v242 = vpop.f32.mrb[0].mxu0
    %v243 = vadd.f32 %v90, %v242
    %v244 = vpop.f32.mrb[0].mxu0
    %v245 = vadd.f32 %v86, %v244
    %v246 = vpop.f32.mrb[0].mxu0
    %v247 = vadd.f32 %v90, %v246
    %248 = vdwg.mxu0
    %249 = vmatprep.subr.bf16.mxu0 %v150
    %250 = vmatpush1.bf16.msra.mxu0 %v149
    %251 = vmatprep.subr.bf16.mxu0 %v154
    %252 = vmatpush1.bf16.msra.mxu0 %v153
    %253 = vmatprep.subr.bf16.mxu0 0
    %254 = vmatpush1.bf16.msra.mxu0 0
    %255 = vmatprep.subr.bf16.mxu0 0
    %256 = vmatpush1.bf16.msra.mxu0 0
    %257 = vmatprep.subr.bf16.mxu0 0
    %258 = vmatpush1.bf16.msra.mxu0 0
    %259 = vmatprep.subr.bf16.mxu0 0
    %260 = vmatpush1.bf16.msra.mxu0 0
    %261 = vmatprep.subr.bf16.mxu0 0
    %262 = vmatpush1.bf16.msra.mxu0 0
    %263 = vmatprep.subr.bf16.mxu0 0
    %264 = vmatpush1.bf16.msra.mxu0 0
    %265 = vmatprep.subr.bf16.mxu0 0
    %266 = vmatpush1.bf16.msra.mxu0 0
    %267 = vmatprep.subr.bf16.mxu0 0
    %268 = vmatpush1.bf16.msra.mxu0 0
    %269 = vmatprep.subr.bf16.mxu0 0
    %270 = vmatpush1.bf16.msra.mxu0 0
    %271 = vmatprep.subr.bf16.mxu0 0
    %272 = vmatpush1.bf16.msra.mxu0 0
    %273 = vmatprep.subr.bf16.mxu0 0
    %274 = vmatpush1.bf16.msra.mxu0 0
    %275 = vmatprep.subr.bf16.mxu0 0
    %276 = vmatpush1.bf16.msra.mxu0 0
    %277 = vmatprep.subr.bf16.mxu0 0
    %278 = vmatpush1.bf16.msra.mxu0 0
    %279 = vmatprep.subr.bf16.mxu0 0
    %280 = vmatpush1.bf16.msra.mxu0 0
    %281 = vmatprep.mubr.bf16.mxu0 0
    %282 = vmatmul.mubr.bf16.gmra.mrb[0].mxu0 %v165
    %v283 = vpop.f32.mrb[0].mxu0
    %v284 = vadd.f32 %v94, %v283
    %v285 = vpop.f32.mrb[0].mxu0
    %v286 = vadd.f32 %v98, %v285
    %v287 = vpop.f32.mrb[0].mxu0
    %v288 = vadd.f32 %v94, %v287
    %v289 = vpop.f32.mrb[0].mxu0
    %v290 = vadd.f32 %v98, %v289
    %291 = vmatprep.mubr.bf16.mxu0 0
    %292 = vmatmul.mubr.bf16.gmra.mrb[0].mxu0 %v168
    %v293 = vpop.f32.mrb[0].mxu0
    %v294 = vadd.f32 %v94, %v293
    %v295 = vpop.f32.mrb[0].mxu0
    %v296 = vadd.f32 %v98, %v295
    %v297 = vpop.f32.mrb[0].mxu0
    %v298 = vadd.f32 %v94, %v297
    %v299 = vpop.f32.mrb[0].mxu0
    %v300 = vadd.f32 %v98, %v299
    %301 = vmatprep.mubr.bf16.mxu0 0
    %302 = vmatmul.mubr.bf16.gmra.mrb[0].mxu0 %v171
    %v303 = vpop.f32.mrb[0].mxu0
    %v304 = vadd.f32 %v94, %v303
    %v305 = vpop.f32.mrb[0].mxu0
    %v306 = vadd.f32 %v98, %v305
    %v307 = vpop.f32.mrb[0].mxu0
    %v308 = vadd.f32 %v94, %v307
    %v309 = vpop.f32.mrb[0].mxu0
    %v310 = vadd.f32 %v98, %v309
    %311 = vmatprep.mubr.bf16.mxu0 0
    %312 = vmatmul.mubr.bf16.gmra.mrb[0].mxu0 %v174
    %v313 = vpop.f32.mrb[0].mxu0
    %v314 = vadd.f32 %v94, %v313
    %v315 = vpop.f32.mrb[0].mxu0
    %v316 = vadd.f32 %v98, %v315
    %v317 = vpop.f32.mrb[0].mxu0
    %v318 = vadd.f32 %v94, %v317
    %v319 = vpop.f32.mrb[0].mxu0
    %v320 = vadd.f32 %v98, %v319
    %321 = vdwg.mxu0
    %322 = vst [vmem:[#allocation4] sm:$0xff] %v211
    %323 = vst [vmem:[#allocation4 + $0x8] sm:$0xff] %v213
    %324 = vst [vmem:[#allocation4 + $0x10] sm:$0xff] %v284
    %325 = vst [vmem:[#allocation4 + $0x18] sm:$0xff] %v286
    %326 = vst [vmem:[#allocation4 + $0x20] sm:$0xff] %v215
    %327 = vst [vmem:[#allocation4 + $0x28] sm:$0xff] %v217
    %328 = vst [vmem:[#allocation4 + $0x30] sm:$0xff] %v288
    %329 = vst [vmem:[#allocation4 + $0x38] sm:$0xff] %v290
    %330 = vst [vmem:[#allocation4 + $0x40] sm:$0xff] %v221
    %331 = vst [vmem:[#allocation4 + $0x48] sm:$0xff] %v223
    %332 = vst [vmem:[#allocation4 + $0x50] sm:$0xff] %v294
    %333 = vst [vmem:[#allocation4 + $0x58] sm:$0xff] %v296
    %334 = vst [vmem:[#allocation4 + $0x60] sm:$0xff] %v225
    %335 = vst [vmem:[#allocation4 + $0x68] sm:$0xff] %v227
    %336 = vst [vmem:[#allocation4 + $0x70] sm:$0xff] %v298
    %337 = vst [vmem:[#allocation4 + $0x78] sm:$0xff] %v300
    %338 = vst [vmem:[#allocation4 + $0x80] sm:$0xff] %v231
    %339 = vst [vmem:[#allocation4 + $0x88] sm:$0xff] %v233
    %340 = vst [vmem:[#allocation4 + $0x90] sm:$0xff] %v304
    %341 = vst [vmem:[#allocation4 + $0x98] sm:$0xff] %v306
    %342 = vst [vmem:[#allocation4 + $0xa0] sm:$0xff] %v235
    %343 = vst [vmem:[#allocation4 + $0xa8] sm:$0xff] %v237
    %344 = vst [vmem:[#allocation4 + $0xb0] sm:$0xff] %v308
    %345 = vst [vmem:[#allocation4 + $0xb8] sm:$0xff] %v310
    %346 = vst [vmem:[#allocation4 + $0xc0] sm:$0xff] %v241
    %347 = vst [vmem:[#allocation4 + $0xc8] sm:$0xff] %v243
    %348 = vst [vmem:[#allocation4 + $0xd0] sm:$0xff] %v314
    %349 = vst [vmem:[#allocation4 + $0xd8] sm:$0xff] %v316
    %350 = vst [vmem:[#allocation4 + $0xe0] sm:$0xff] %v245
    %351 = vst [vmem:[#allocation4 + $0xe8] sm:$0xff] %v247
    %352 = vst [vmem:[#allocation4 + $0xf0] sm:$0xff] %v318
    %353 = vst [vmem:[#allocation4 + $0xf8] sm:$0xff] %v320
    %v354 = vld [vmem:[#allocation2] sm:$0xff]
    %v355 = vld [vmem:[#allocation3] sm:$0xff]
    %v356 = vld [vmem:[#allocation4] sm:$0xff]
    %v357 = vld [vmem:[#allocation4 + $0x8] sm:$0xff]
    %v358 = vld [vmem:[#allocation4 + $0x10] sm:$0xff]
    %v359 = vld [vmem:[#allocation4 + $0x18] sm:$0xff]
    %v360 = vpack.c.bf16 %v354, %v354
    %v361 = vld [vmem:[#allocation8] sm:$0xff]
    %v362 = vld [vmem:[#allocation8 + $0x8] sm:$0xff]
    %v363 = vld [vmem:[#allocation8 + $0x10] sm:$0xff]
    %v364 = vld [vmem:[#allocation8 + $0x18] sm:$0xff]
    %v365 = vld [vmem:[#allocation8 + $0x20] sm:$0xff]
    %v366 = vld [vmem:[#allocation8 + $0x28] sm:$0xff]
    %v367 = vld [vmem:[#allocation8 + $0x30] sm:$0xff]
    %v368 = vld [vmem:[#allocation8 + $0x38] sm:$0xff]
    %v369 = vld [vmem:[#allocation8 + $0x40] sm:$0xff]
    %v370 = vld [vmem:[#allocation8 + $0x48] sm:$0xff]
    %v371 = vld [vmem:[#allocation8 + $0x50] sm:$0xff]
    %v372 = vld [vmem:[#allocation8 + $0x58] sm:$0xff]
    %v373 = vld [vmem:[#allocation8 + $0x60] sm:$0xff]
    %v374 = vld [vmem:[#allocation8 + $0x68] sm:$0xff]
    %v375 = vld [vmem:[#allocation8 + $0x70] sm:$0xff]
    %v376 = vld [vmem:[#allocation8 + $0x78] sm:$0xff]
    %v377 = vld [vmem:[#allocation8 + $0x80] sm:$0xff]
    %v378 = vld [vmem:[#allocation8 + $0x88] sm:$0xff]
    %v379 = vld [vmem:[#allocation8 + $0x90] sm:$0xff]
    %v380 = vld [vmem:[#allocation8 + $0x98] sm:$0xff]
    %v381 = vld [vmem:[#allocation8 + $0xa0] sm:$0xff]
    %v382 = vld [vmem:[#allocation8 + $0xa8] sm:$0xff]
    %v383 = vld [vmem:[#allocation8 + $0xb0] sm:$0xff]
    %v384 = vld [vmem:[#allocation8 + $0xb8] sm:$0xff]
    %v385 = vld [vmem:[#allocation8 + $0xc0] sm:$0xff]
    %v386 = vld [vmem:[#allocation8 + $0xc8] sm:$0xff]
    %v387 = vld [vmem:[#allocation8 + $0xd0] sm:$0xff]
    %v388 = vld [vmem:[#allocation8 + $0xd8] sm:$0xff]
    %v389 = vld [vmem:[#allocation8 + $0xe0] sm:$0xff]
    %v390 = vld [vmem:[#allocation8 + $0xe8] sm:$0xff]
    %v391 = vld [vmem:[#allocation8 + $0xf0] sm:$0xff]
    %v392 = vld [vmem:[#allocation8 + $0xf8] sm:$0xff]
    %v425 = vunpack.c.l.b16 %v361
    %v426 = vunpack.c.h.b16 %v361
    %v427 = vunpack.c.l.b16 %v362
    %v428 = vunpack.c.h.b16 %v362
    %v429 = vunpack.c.l.b16 %v363
    %v430 = vunpack.c.h.b16 %v363
    %v431 = vunpack.c.l.b16 %v364
    %v432 = vunpack.c.h.b16 %v364
    %v433 = vunpack.c.l.b16 %v365
    %v434 = vunpack.c.h.b16 %v365
    %v435 = vunpack.c.l.b16 %v366
    %v436 = vunpack.c.h.b16 %v366
    %v437 = vunpack.c.l.b16 %v367
    %v438 = vunpack.c.h.b16 %v367
    %v439 = vunpack.c.l.b16 %v368
    %v440 = vunpack.c.h.b16 %v368
    %v441 = vunpack.c.l.b16 %v369
    %v442 = vunpack.c.h.b16 %v369
    %v443 = vunpack.c.l.b16 %v370
    %v444 = vunpack.c.h.b16 %v370
    %v445 = vunpack.c.l.b16 %v371
    %v446 = vunpack.c.h.b16 %v371
    %v447 = vunpack.c.l.b16 %v372
    %v448 = vunpack.c.h.b16 %v372
    %v449 = vunpack.c.l.b16 %v373
    %v450 = vunpack.c.h.b16 %v373
    %v451 = vunpack.c.l.b16 %v374
    %v452 = vunpack.c.h.b16 %v374
    %v453 = vunpack.c.l.b16 %v375
    %v454 = vunpack.c.h.b16 %v375
    %v455 = vunpack.c.l.b16 %v376
    %v456 = vunpack.c.h.b16 %v376
    %v457 = vunpack.c.l.b16 %v377
    %v458 = vunpack.c.h.b16 %v377
    %v459 = vunpack.c.l.b16 %v378
    %v460 = vunpack.c.h.b16 %v378
    %v461 = vunpack.c.l.b16 %v379
    %v462 = vunpack.c.h.b16 %v379
    %v463 = vunpack.c.l.b16 %v380
    %v464 = vunpack.c.h.b16 %v380
    %v465 = vunpack.c.l.b16 %v381
    %v466 = vunpack.c.h.b16 %v381
    %v467 = vunpack.c.l.b16 %v382
    %v468 = vunpack.c.h.b16 %v382
    %v469 = vunpack.c.l.b16 %v383
    %v470 = vunpack.c.h.b16 %v383
    %v471 = vunpack.c.l.b16 %v384
    %v472 = vunpack.c.h.b16 %v384
    %v473 = vunpack.c.l.b16 %v385
    %v474 = vunpack.c.h.b16 %v385
    %v475 = vunpack.c.l.b16 %v386
    %v476 = vunpack.c.h.b16 %v386
    %v477 = vunpack.c.l.b16 %v387
    %v478 = vunpack.c.h.b16 %v387
    %v479 = vunpack.c.l.b16 %v388
    %v480 = vunpack.c.h.b16 %v388
    %v481 = vunpack.c.l.b16 %v389
    %v482 = vunpack.c.h.b16 %v389
    %v483 = vunpack.c.l.b16 %v390
    %v484 = vunpack.c.h.b16 %v390
    %v485 = vunpack.c.l.b16 %v391
    %v486 = vunpack.c.h.b16 %v391
    %v487 = vunpack.c.l.b16 %v392
    %v488 = vunpack.c.h.b16 %v392
    %v489 = vpack.c.b16 %v429, %v425
    %v490 = vpack.c.b16 %v430, %v426
    %v491 = vpack.c.b16 %v431, %v427
    %v492 = vpack.c.b16 %v432, %v428
    %v493 = vpack.c.b16 %v437, %v433
    %v494 = vpack.c.b16 %v438, %v434
    %v495 = vpack.c.b16 %v439, %v435
    %v496 = vpack.c.b16 %v440, %v436
    %v497 = vpack.c.b16 %v445, %v441
    %v498 = vpack.c.b16 %v446, %v442
    %v499 = vpack.c.b16 %v447, %v443
    %v500 = vpack.c.b16 %v448, %v444
    %v501 = vpack.c.b16 %v453, %v449
    %v502 = vpack.c.b16 %v454, %v450
    %v503 = vpack.c.b16 %v455, %v451
    %v504 = vpack.c.b16 %v456, %v452
    %v505 = vpack.c.b16 %v461, %v457
    %v506 = vpack.c.b16 %v462, %v458
    %v507 = vpack.c.b16 %v463, %v459
    %v508 = vpack.c.b16 %v464, %v460
    %v509 = vpack.c.b16 %v469, %v465
    %v510 = vpack.c.b16 %v470, %v466
    %v511 = vpack.c.b16 %v471, %v467
    %v512 = vpack.c.b16 %v472, %v468
    %v513 = vpack.c.b16 %v477, %v473
    %v514 = vpack.c.b16 %v478, %v474
    %v515 = vpack.c.b16 %v479, %v475
    %v516 = vpack.c.b16 %v480, %v476
    %v517 = vpack.c.b16 %v485, %v481
    %v518 = vpack.c.b16 %v486, %v482
    %v519 = vpack.c.b16 %v487, %v483
    %v520 = vpack.c.b16 %v488, %v484
    %553 = vmatprep.subr.bf16.mxu0 %v490
    %554 = vmatpush1.bf16.msra.mxu0 %v489
    %555 = vmatprep.subr.bf16.mxu0 %v494
    %556 = vmatpush1.bf16.msra.mxu0 %v493
    %557 = vmatprep.subr.bf16.mxu0 %v498
    %558 = vmatpush1.bf16.msra.mxu0 %v497
    %559 = vmatprep.subr.bf16.mxu0 %v502
    %560 = vmatpush1.bf16.msra.mxu0 %v501
    %561 = vmatprep.subr.bf16.mxu0 %v506
    %562 = vmatpush1.bf16.msra.mxu0 %v505
    %563 = vmatprep.subr.bf16.mxu0 %v510
    %564 = vmatpush1.bf16.msra.mxu0 %v509
    %565 = vmatprep.subr.bf16.mxu0 %v514
    %566 = vmatpush1.bf16.msra.mxu0 %v513
    %567 = vmatprep.subr.bf16.mxu0 %v518
    %568 = vmatpush1.bf16.msra.mxu0 %v517
    %569 = vmatprep.subr.bf16.mxu0 0
    %570 = vmatpush1.bf16.msra.mxu0 0
    %571 = vmatprep.subr.bf16.mxu0 0
    %572 = vmatpush1.bf16.msra.mxu0 0
    %573 = vmatprep.subr.bf16.mxu0 0
    %574 = vmatpush1.bf16.msra.mxu0 0
    %575 = vmatprep.subr.bf16.mxu0 0
    %576 = vmatpush1.bf16.msra.mxu0 0
    %577 = vmatprep.subr.bf16.mxu0 0
    %578 = vmatpush1.bf16.msra.mxu0 0
    %579 = vmatprep.subr.bf16.mxu0 0
    %580 = vmatpush1.bf16.msra.mxu0 0
    %581 = vmatprep.subr.bf16.mxu0 0
    %582 = vmatpush1.bf16.msra.mxu0 0
    %583 = vmatprep.subr.bf16.mxu0 0
    %584 = vmatpush1.bf16.msra.mxu0 0
    %585 = vmatprep.mubr.bf16.mxu0 0
    %586 = vmatmul.mubr.bf16.gmra.mrb[0].mxu0 %v360
    %v587 = vpop.f32.mrb[0].mxu0
    %v588 = vadd.f32 0.0, %v587
    %v589 = vpop.f32.mrb[0].mxu0
    %v590 = vadd.f32 0.0, %v589
    %v591 = vpop.f32.mrb[0].mxu0
    %v592 = vpop.f32.mrb[0].mxu0
    %593 = vdwg.mxu0
    %594 = vmatprep.subr.bf16.mxu0 %v492
    %595 = vmatpush1.bf16.msra.mxu0 %v491
    %596 = vmatprep.subr.bf16.mxu0 %v496
    %597 = vmatpush1.bf16.msra.mxu0 %v495
    %598 = vmatprep.subr.bf16.mxu0 %v500
    %599 = vmatpush1.bf16.msra.mxu0 %v499
    %600 = vmatprep.subr.bf16.mxu0 %v504
    %601 = vmatpush1.bf16.msra.mxu0 %v503
    %602 = vmatprep.subr.bf16.mxu0 %v508
    %603 = vmatpush1.bf16.msra.mxu0 %v507
    %604 = vmatprep.subr.bf16.mxu0 %v512
    %605 = vmatpush1.bf16.msra.mxu0 %v511
    %606 = vmatprep.subr.bf16.mxu0 %v516
    %607 = vmatpush1.bf16.msra.mxu0 %v515
    %608 = vmatprep.subr.bf16.mxu0 %v520
    %609 = vmatpush1.bf16.msra.mxu0 %v519
    %610 = vmatprep.subr.bf16.mxu0 0
    %611 = vmatpush1.bf16.msra.mxu0 0
    %612 = vmatprep.subr.bf16.mxu0 0
    %613 = vmatpush1.bf16.msra.mxu0 0
    %614 = vmatprep.subr.bf16.mxu0 0
    %615 = vmatpush1.bf16.msra.mxu0 0
    %616 = vmatprep.subr.bf16.mxu0 0
    %617 = vmatpush1.bf16.msra.mxu0 0
    %618 = vmatprep.subr.bf16.mxu0 0
    %619 = vmatpush1.bf16.msra.mxu0 0
    %620 = vmatprep.subr.bf16.mxu0 0
    %621 = vmatpush1.bf16.msra.mxu0 0
    %622 = vmatprep.subr.bf16.mxu0 0
    %623 = vmatpush1.bf16.msra.mxu0 0
    %624 = vmatprep.subr.bf16.mxu0 0
    %625 = vmatpush1.bf16.msra.mxu0 0
    %626 = vmatprep.mubr.bf16.mxu0 0
    %627 = vmatmul.mubr.bf16.gmra.mrb[0].mxu0 %v360
    %v628 = vpop.f32.mrb[0].mxu0
    %v629 = vadd.f32 0.0, %v628
    %v630 = vpop.f32.mrb[0].mxu0
    %v631 = vadd.f32 0.0, %v630
    %v632 = vpop.f32.mrb[0].mxu0
    %v633 = vpop.f32.mrb[0].mxu0
    %634 = vdwg.mxu0
    %v635 = vadd.f32 %v356, %v588
    %v636 = vadd.f32 %v357, %v590
    %v637 = vadd.f32 %v358, %v629
    %v638 = vadd.f32 %v359, %v631
    %v639 = vxor.u32 %v635, 2147483648
    %v640 = vmul.f32 %v639, 1.442695
    %v641 = vpow.pop %v640
    %v642 = vadd.f32 %v641, 1.0
    %v643 = vrcp.pop %v642
    %v644 = vmul.f32 1.0, %v643
    %v645 = vxor.u32 %v636, 2147483648
    %v646 = vmul.f32 %v645, 1.442695
    %v647 = vpow.pop %v646
    %v648 = vadd.f32 %v647, 1.0
    %v649 = vrcp.pop %v648
    %v650 = vmul.f32 1.0, %v649
    %v651 = vtanh.pop %v637
    %v652 = vxor.u32 %v638, 2147483648
    %v653 = vmul.f32 %v652, 1.442695
    %v654 = vpow.pop %v653
    %v655 = vadd.f32 %v654, 1.0
    %v656 = vrcp.pop %v655
    %v657 = vmul.f32 1.0, %v656
    %v658 = vmul.f32 %v650, %v355
    %v659 = vmul.f32 %v644, %v651
    %v660 = vadd.f32 %v658, %v659
    %v661 = vtanh.pop %v660
    %v662 = vmul.f32 %v657, %v661
    %v663 = vpack.c.bf16 %v662, %v662
    %664 = vst [vmem:[#allocation10] sm:$0xf] %v663
    %s665 = scalar_lea.vmem [#allocation4], 32
    %v666 = vld [vmem:[%s665] sm:$0xff]
    %v667 = vld [vmem:[%s665 + $0x8] sm:$0xff]
    %v668 = vld [vmem:[%s665 + $0x10] sm:$0xff]
    %v669 = vld [vmem:[%s665 + $0x18] sm:$0xff]
    %v670 = vld [vmem:[#allocation8] sm:$0xff]
    %v671 = vld [vmem:[#allocation8 + $0x8] sm:$0xff]
    %v672 = vld [vmem:[#allocation8 + $0x10] sm:$0xff]
    %v673 = vld [vmem:[#allocation8 + $0x18] sm:$0xff]
    %v674 = vld [vmem:[#allocation8 + $0x20] sm:$0xff]
    %v675 = vld [vmem:[#allocation8 + $0x28] sm:$0xff]
    %v676 = vld [vmem:[#allocation8 + $0x30] sm:$0xff]
    %v677 = vld [vmem:[#allocation8 + $0x38] sm:$0xff]
    %v678 = vld [vmem:[#allocation8 + $0x40] sm:$0xff]
    %v679 = vld [vmem:[#allocation8 + $0x48] sm:$0xff]
    %v680 = vld [vmem:[#allocation8 + $0x50] sm:$0xff]
    %v681 = vld [vmem:[#allocation8 + $0x58] sm:$0xff]
    %v682 = vld [vmem:[#allocation8 + $0x60] sm:$0xff]
    %v683 = vld [vmem:[#allocation8 + $0x68] sm:$0xff]
    %v684 = vld [vmem:[#allocation8 + $0x70] sm:$0xff]
    %v685 = vld [vmem:[#allocation8 + $0x78] sm:$0xff]
    %v686 = vld [vmem:[#allocation8 + $0x80] sm:$0xff]
    %v687 = vld [vmem:[#allocation8 + $0x88] sm:$0xff]
    %v688 = vld [vmem:[#allocation8 + $0x90] sm:$0xff]
    %v689 = vld [vmem:[#allocation8 + $0x98] sm:$0xff]
    %v690 = vld [vmem:[#allocation8 + $0xa0] sm:$0xff]
    %v691 = vld [vmem:[#allocation8 + $0xa8] sm:$0xff]
    %v692 = vld [vmem:[#allocation8 + $0xb0] sm:$0xff]
    %v693 = vld [vmem:[#allocation8 + $0xb8] sm:$0xff]
    %v694 = vld [vmem:[#allocation8 + $0xc0] sm:$0xff]
    %v695 = vld [vmem:[#allocation8 + $0xc8] sm:$0xff]
    %v696 = vld [vmem:[#allocation8 + $0xd0] sm:$0xff]
    %v697 = vld [vmem:[#allocation8 + $0xd8] sm:$0xff]
    %v698 = vld [vmem:[#allocation8 + $0xe0] sm:$0xff]
    %v699 = vld [vmem:[#allocation8 + $0xe8] sm:$0xff]
    %v700 = vld [vmem:[#allocation8 + $0xf0] sm:$0xff]
    %v701 = vld [vmem:[#allocation8 + $0xf8] sm:$0xff]
    %v734 = vunpack.c.l.b16 %v670
    %v735 = vunpack.c.h.b16 %v670
    %v736 = vunpack.c.l.b16 %v671
    %v737 = vunpack.c.h.b16 %v671
    %v738 = vunpack.c.l.b16 %v672
    %v739 = vunpack.c.h.b16 %v672
    %v740 = vunpack.c.l.b16 %v673
    %v741 = vunpack.c.h.b16 %v673
    %v742 = vunpack.c.l.b16 %v674
    %v743 = vunpack.c.h.b16 %v674
    %v744 = vunpack.c.l.b16 %v675
    %v745 = vunpack.c.h.b16 %v675
    %v746 = vunpack.c.l.b16 %v676
    %v747 = vunpack.c.h.b16 %v676
    %v748 = vunpack.c.l.b16 %v677
    %v749 = vunpack.c.h.b16 %v677
    %v750 = vunpack.c.l.b16 %v678
    %v751 = vunpack.c.h.b16 %v678
    %v752 = vunpack.c.l.b16 %v679
    %v753 = vunpack.c.h.b16 %v679
    %v754 = vunpack.c.l.b16 %v680
    %v755 = vunpack.c.h.b16 %v680
    %v756 = vunpack.c.l.b16 %v681
    %v757 = vunpack.c.h.b16 %v681
    %v758 = vunpack.c.l.b16 %v682
    %v759 = vunpack.c.h.b16 %v682
    %v760 = vunpack.c.l.b16 %v683
    %v761 = vunpack.c.h.b16 %v683
    %v762 = vunpack.c.l.b16 %v684
    %v763 = vunpack.c.h.b16 %v684
    %v764 = vunpack.c.l.b16 %v685
    %v765 = vunpack.c.h.b16 %v685
    %v766 = vunpack.c.l.b16 %v686
    %v767 = vunpack.c.h.b16 %v686
    %v768 = vunpack.c.l.b16 %v687
    %v769 = vunpack.c.h.b16 %v687
    %v770 = vunpack.c.l.b16 %v688
    %v771 = vunpack.c.h.b16 %v688
    %v772 = vunpack.c.l.b16 %v689
    %v773 = vunpack.c.h.b16 %v689
    %v774 = vunpack.c.l.b16 %v690
    %v775 = vunpack.c.h.b16 %v690
    %v776 = vunpack.c.l.b16 %v691
    %v777 = vunpack.c.h.b16 %v691
    %v778 = vunpack.c.l.b16 %v692
    %v779 = vunpack.c.h.b16 %v692
    %v780 = vunpack.c.l.b16 %v693
    %v781 = vunpack.c.h.b16 %v693
    %v782 = vunpack.c.l.b16 %v694
    %v783 = vunpack.c.h.b16 %v694
    %v784 = vunpack.c.l.b16 %v695
    %v785 = vunpack.c.h.b16 %v695
    %v786 = vunpack.c.l.b16 %v696
    %v787 = vunpack.c.h.b16 %v696
    %v788 = vunpack.c.l.b16 %v697
    %v789 = vunpack.c.h.b16 %v697
    %v790 = vunpack.c.l.b16 %v698
    %v791 = vunpack.c.h.b16 %v698
    %v792 = vunpack.c.l.b16 %v699
    %v793 = vunpack.c.h.b16 %v699
    %v794 = vunpack.c.l.b16 %v700
    %v795 = vunpack.c.h.b16 %v700
    %v796 = vunpack.c.l.b16 %v701
    %v797 = vunpack.c.h.b16 %v701
    %v798 = vpack.c.b16 %v738, %v734
    %v799 = vpack.c.b16 %v739, %v735
    %v800 = vpack.c.b16 %v740, %v736
    %v801 = vpack.c.b16 %v741, %v737
    %v802 = vpack.c.b16 %v746, %v742
    %v803 = vpack.c.b16 %v747, %v743
    %v804 = vpack.c.b16 %v748, %v744
    %v805 = vpack.c.b16 %v749, %v745
    %v806 = vpack.c.b16 %v754, %v750
    %v807 = vpack.c.b16 %v755, %v751
    %v808 = vpack.c.b16 %v756, %v752
    %v809 = vpack.c.b16 %v757, %v753
    %v810 = vpack.c.b16 %v762, %v758
    %v811 = vpack.c.b16 %v763, %v759
    %v812 = vpack.c.b16 %v764, %v760
    %v813 = vpack.c.b16 %v765, %v761
    %v814 = vpack.c.b16 %v770, %v766
    %v815 = vpack.c.b16 %v771, %v767
    %v816 = vpack.c.b16 %v772, %v768
    %v817 = vpack.c.b16 %v773, %v769
    %v818 = vpack.c.b16 %v778, %v774
    %v819 = vpack.c.b16 %v779, %v775
    %v820 = vpack.c.b16 %v780, %v776
    %v821 = vpack.c.b16 %v781, %v777
    %v822 = vpack.c.b16 %v786, %v782
    %v823 = vpack.c.b16 %v787, %v783
    %v824 = vpack.c.b16 %v788, %v784
    %v825 = vpack.c.b16 %v789, %v785
    %v826 = vpack.c.b16 %v794, %v790
    %v827 = vpack.c.b16 %v795, %v791
    %v828 = vpack.c.b16 %v796, %v792
    %v829 = vpack.c.b16 %v797, %v793
    %862 = vmatprep.subr.bf16.mxu0 %v799
    %863 = vmatpush1.bf16.msra.mxu0 %v798
    %864 = vmatprep.subr.bf16.mxu0 %v803
    %865 = vmatpush1.bf16.msra.mxu0 %v802
    %866 = vmatprep.subr.bf16.mxu0 %v807
    %867 = vmatpush1.bf16.msra.mxu0 %v806
    %868 = vmatprep.subr.bf16.mxu0 %v811
    %869 = vmatpush1.bf16.msra.mxu0 %v810
    %870 = vmatprep.subr.bf16.mxu0 %v815
    %871 = vmatpush1.bf16.msra.mxu0 %v814
    %872 = vmatprep.subr.bf16.mxu0 %v819
    %873 = vmatpush1.bf16.msra.mxu0 %v818
    %874 = vmatprep.subr.bf16.mxu0 %v823
    %875 = vmatpush1.bf16.msra.mxu0 %v822
    %876 = vmatprep.subr.bf16.mxu0 %v827
    %877 = vmatpush1.bf16.msra.mxu0 %v826
    %878 = vmatprep.subr.bf16.mxu0 0
    %879 = vmatpush1.bf16.msra.mxu0 0
    %880 = vmatprep.subr.bf16.mxu0 0
    %881 = vmatpush1.bf16.msra.mxu0 0
    %882 = vmatprep.subr.bf16.mxu0 0
    %883 = vmatpush1.bf16.msra.mxu0 0
    %884 = vmatprep.subr.bf16.mxu0 0
    %885 = vmatpush1.bf16.msra.mxu0 0
    %886 = vmatprep.subr.bf16.mxu0 0
    %887 = vmatpush1.bf16.msra.mxu0 0
    %888 = vmatprep.subr.bf16.mxu0 0
    %889 = vmatpush1.bf16.msra.mxu0 0
    %890 = vmatprep.subr.bf16.mxu0 0
    %891 = vmatpush1.bf16.msra.mxu0 0
    %892 = vmatprep.subr.bf16.mxu0 0
    %893 = vmatpush1.bf16.msra.mxu0 0
    %894 = vmatprep.mubr.bf16.mxu0 0
    %895 = vmatmul.mubr.bf16.gmra.mrb[0].mxu0 %v663
    %v896 = vpop.f32.mrb[0].mxu0
    %v897 = vadd.f32 0.0, %v896
    %v898 = vpop.f32.mrb[0].mxu0
    %v899 = vadd.f32 0.0, %v898
    %v900 = vpop.f32.mrb[0].mxu0
    %v901 = vpop.f32.mrb[0].mxu0
    %902 = vdwg.mxu0
    %903 = vmatprep.subr.bf16.mxu0 %v801
    %904 = vmatpush1.bf16.msra.mxu0 %v800
    %905 = vmatprep.subr.bf16.mxu0 %v805
    %906 = vmatpush1.bf16.msra.mxu0 %v804
    %907 = vmatprep.subr.bf16.mxu0 %v809
    %908 = vmatpush1.bf16.msra.mxu0 %v808
    %909 = vmatprep.subr.bf16.mxu0 %v813
    %910 = vmatpush1.bf16.msra.mxu0 %v812
    %911 = vmatprep.subr.bf16.mxu0 %v817
    %912 = vmatpush1.bf16.msra.mxu0 %v816
    %913 = vmatprep.subr.bf16.mxu0 %v821
    %914 = vmatpush1.bf16.msra.mxu0 %v820
    %915 = vmatprep.subr.bf16.mxu0 %v825
    %916 = vmatpush1.bf16.msra.mxu0 %v824
    %917 = vmatprep.subr.bf16.mxu0 %v829
    %918 = vmatpush1.bf16.msra.mxu0 %v828
    %919 = vmatprep.subr.bf16.mxu0 0
    %920 = vmatpush1.bf16.msra.mxu0 0
    %921 = vmatprep.subr.bf16.mxu0 0
    %922 = vmatpush1.bf16.msra.mxu0 0
    %923 = vmatprep.subr.bf16.mxu0 0
    %924 = vmatpush1.bf16.msra.mxu0 0
    %925 = vmatprep.subr.bf16.mxu0 0
    %926 = vmatpush1.bf16.msra.mxu0 0
    %927 = vmatprep.subr.bf16.mxu0 0
    %928 = vmatpush1.bf16.msra.mxu0 0
    %929 = vmatprep.subr.bf16.mxu0 0
    %930 = vmatpush1.bf16.msra.mxu0 0
    %931 = vmatprep.subr.bf16.mxu0 0
    %932 = vmatpush1.bf16.msra.mxu0 0
    %933 = vmatprep.subr.bf16.mxu0 0
    %934 = vmatpush1.bf16.msra.mxu0 0
    %935 = vmatprep.mubr.bf16.mxu0 0
    %936 = vmatmul.mubr.bf16.gmra.mrb[0].mxu0 %v663
    %v937 = vpop.f32.mrb[0].mxu0
    %v938 = vadd.f32 0.0, %v937
    %v939 = vpop.f32.mrb[0].mxu0
    %v940 = vadd.f32 0.0, %v939
    %v941 = vpop.f32.mrb[0].mxu0
    %v942 = vpop.f32.mrb[0].mxu0
    %943 = vdwg.mxu0
    %v944 = vadd.f32 %v666, %v897
    %v945 = vadd.f32 %v667, %v899
    %v946 = vadd.f32 %v668, %v938
    %v947 = vadd.f32 %v669, %v940
    %v948 = vxor.u32 %v944, 2147483648
    %v949 = vmul.f32 %v948, 1.442695
    %v950 = vpow.pop %v949
    %v951 = vadd.f32 %v950, 1.0
    %v952 = vrcp.pop %v951
    %v953 = vmul.f32 1.0, %v952
    %v954 = vxor.u32 %v945, 2147483648
    %v955 = vmul.f32 %v954, 1.442695
    %v956 = vpow.pop %v955
    %v957 = vadd.f32 %v956, 1.0
    %v958 = vrcp.pop %v957
    %v959 = vmul.f32 1.0, %v958
    %v960 = vtanh.pop %v946
    %v961 = vxor.u32 %v947, 2147483648
    %v962 = vmul.f32 %v961, 1.442695
    %v963 = vpow.pop %v962
    %v964 = vadd.f32 %v963, 1.0
    %v965 = vrcp.pop %v964
    %v966 = vmul.f32 1.0, %v965
    %v967 = vmul.f32 %v959, %v660
    %v968 = vmul.f32 %v953, %v960
    %v969 = vadd.f32 %v967, %v968
    %v970 = vtanh.pop %v969
    %v971 = vmul.f32 %v966, %v970
    %v972 = vpack.c.bf16 %v971, %v971
    %s973 = scalar_lea.vmem [#allocation10], 4
    %974 = vst [vmem:[%s973] sm:$0xf] %v972
    %s975 = scalar_lea.vmem [#allocation4], 64
    %v976 = vld [vmem:[%s975] sm:$0xff]
    %v977 = vld [vmem:[%s975 + $0x8] sm:$0xff]
    %v978 = vld [vmem:[%s975 + $0x10] sm:$0xff]
    %v979 = vld [vmem:[%s975 + $0x18] sm:$0xff]
    %v980 = vld [vmem:[#allocation8] sm:$0xff]
    %v981 = vld [vmem:[#allocation8 + $0x8] sm:$0xff]
    %v982 = vld [vmem:[#allocation8 + $0x10] sm:$0xff]
    %v983 = vld [vmem:[#allocation8 + $0x18] sm:$0xff]
    %v984 = vld [vmem:[#allocation8 + $0x20] sm:$0xff]
    %v985 = vld [vmem:[#allocation8 + $0x28] sm:$0xff]
    %v986 = vld [vmem:[#allocation8 + $0x30] sm:$0xff]
    %v987 = vld [vmem:[#allocation8 + $0x38] sm:$0xff]
    %v988 = vld [vmem:[#allocation8 + $0x40] sm:$0xff]
    %v989 = vld [vmem:[#allocation8 + $0x48] sm:$0xff]
    %v990 = vld [vmem:[#allocation8 + $0x50] sm:$0xff]
    %v991 = vld [vmem:[#allocation8 + $0x58] sm:$0xff]
    %v992 = vld [vmem:[#allocation8 + $0x60] sm:$0xff]
    %v993 = vld [vmem:[#allocation8 + $0x68] sm:$0xff]
    %v994 = vld [vmem:[#allocation8 + $0x70] sm:$0xff]
    %v995 = vld [vmem:[#allocation8 + $0x78] sm:$0xff]
    %v996 = vld [vmem:[#allocation8 + $0x80] sm:$0xff]
    %v997 = vld [vmem:[#allocation8 + $0x88] sm:$0xff]
    %v998 = vld [vmem:[#allocation8 + $0x90] sm:$0xff]
    %v999 = vld [vmem:[#allocation8 + $0x98] sm:$0xff]
    %v1000 = vld [vmem:[#allocation8 + $0xa0] sm:$0xff]
    %v1001 = vld [vmem:[#allocation8 + $0xa8] sm:$0xff]
    %v1002 = vld [vmem:[#allocation8 + $0xb0] sm:$0xff]
    %v1003 = vld [vmem:[#allocation8 + $0xb8] sm:$0xff]
    %v1004 = vld [vmem:[#allocation8 + $0xc0] sm:$0xff]
    %v1005 = vld [vmem:[#allocation8 + $0xc8] sm:$0xff]
    %v1006 = vld [vmem:[#allocation8 + $0xd0] sm:$0xff]
    %v1007 = vld [vmem:[#allocation8 + $0xd8] sm:$0xff]
    %v1008 = vld [vmem:[#allocation8 + $0xe0] sm:$0xff]
    %v1009 = vld [vmem:[#allocation8 + $0xe8] sm:$0xff]
    %v1010 = vld [vmem:[#allocation8 + $0xf0] sm:$0xff]
    %v1011 = vld [vmem:[#allocation8 + $0xf8] sm:$0xff]
    %v1044 = vunpack.c.l.b16 %v980
    %v1045 = vunpack.c.h.b16 %v980
    %v1046 = vunpack.c.l.b16 %v981
    %v1047 = vunpack.c.h.b16 %v981
    %v1048 = vunpack.c.l.b16 %v982
    %v1049 = vunpack.c.h.b16 %v982
    %v1050 = vunpack.c.l.b16 %v983
    %v1051 = vunpack.c.h.b16 %v983
    %v1052 = vunpack.c.l.b16 %v984
    %v1053 = vunpack.c.h.b16 %v984
    %v1054 = vunpack.c.l.b16 %v985
    %v1055 = vunpack.c.h.b16 %v985
    %v1056 = vunpack.c.l.b16 %v986
    %v1057 = vunpack.c.h.b16 %v986
    %v1058 = vunpack.c.l.b16 %v987
    %v1059 = vunpack.c.h.b16 %v987
    %v1060 = vunpack.c.l.b16 %v988
    %v1061 = vunpack.c.h.b16 %v988
    %v1062 = vunpack.c.l.b16 %v989
    %v1063 = vunpack.c.h.b16 %v989
    %v1064 = vunpack.c.l.b16 %v990
    %v1065 = vunpack.c.h.b16 %v990
    %v1066 = vunpack.c.l.b16 %v991
    %v1067 = vunpack.c.h.b16 %v991
    %v1068 = vunpack.c.l.b16 %v992
    %v1069 = vunpack.c.h.b16 %v992
    %v1070 = vunpack.c.l.b16 %v993
    %v1071 = vunpack.c.h.b16 %v993
    %v1072 = vunpack.c.l.b16 %v994
    %v1073 = vunpack.c.h.b16 %v994
    %v1074 = vunpack.c.l.b16 %v995
    %v1075 = vunpack.c.h.b16 %v995
    %v1076 = vunpack.c.l.b16 %v996
    %v1077 = vunpack.c.h.b16 %v996
    %v1078 = vunpack.c.l.b16 %v997
    %v1079 = vunpack.c.h.b16 %v997
    %v1080 = vunpack.c.l.b16 %v998
    %v1081 = vunpack.c.h.b16 %v998
    %v1082 = vunpack.c.l.b16 %v999
    %v1083 = vunpack.c.h.b16 %v999
    %v1084 = vunpack.c.l.b16 %v1000
    %v1085 = vunpack.c.h.b16 %v1000
    %v1086 = vunpack.c.l.b16 %v1001
    %v1087 = vunpack.c.h.b16 %v1001
    %v1088 = vunpack.c.l.b16 %v1002
    %v1089 = vunpack.c.h.b16 %v1002
    %v1090 = vunpack.c.l.b16 %v1003
    %v1091 = vunpack.c.h.b16 %v1003
    %v1092 = vunpack.c.l.b16 %v1004
    %v1093 = vunpack.c.h.b16 %v1004
    %v1094 = vunpack.c.l.b16 %v1005
    %v1095 = vunpack.c.h.b16 %v1005
    %v1096 = vunpack.c.l.b16 %v1006
    %v1097 = vunpack.c.h.b16 %v1006
    %v1098 = vunpack.c.l.b16 %v1007
    %v1099 = vunpack.c.h.b16 %v1007
    %v1100 = vunpack.c.l.b16 %v1008
    %v1101 = vunpack.c.h.b16 %v1008
    %v1102 = vunpack.c.l.b16 %v1009
    %v1103 = vunpack.c.h.b16 %v1009
    %v1104 = vunpack.c.l.b16 %v1010
    %v1105 = vunpack.c.h.b16 %v1010
    %v1106 = vunpack.c.l.b16 %v1011
    %v1107 = vunpack.c.h.b16 %v1011
    %v1108 = vpack.c.b16 %v1048, %v1044
    %v1109 = vpack.c.b16 %v1049, %v1045
    %v1110 = vpack.c.b16 %v1050, %v1046
    %v1111 = vpack.c.b16 %v1051, %v1047
    %v1112 = vpack.c.b16 %v1056, %v1052
    %v1113 = vpack.c.b16 %v1057, %v1053
    %v1114 = vpack.c.b16 %v1058, %v1054
    %v1115 = vpack.c.b16 %v1059, %v1055
    %v1116 = vpack.c.b16 %v1064, %v1060
    %v1117 = vpack.c.b16 %v1065, %v1061
    %v1118 = vpack.c.b16 %v1066, %v1062
    %v1119 = vpack.c.b16 %v1067, %v1063
    %v1120 = vpack.c.b16 %v1072, %v1068
    %v1121 = vpack.c.b16 %v1073, %v1069
    %v1122 = vpack.c.b16 %v1074, %v1070
    %v1123 = vpack.c.b16 %v1075, %v1071
    %v1124 = vpack.c.b16 %v1080, %v1076
    %v1125 = vpack.c.b16 %v1081, %v1077
    %v1126 = vpack.c.b16 %v1082, %v1078
    %v1127 = vpack.c.b16 %v1083, %v1079
    %v1128 = vpack.c.b16 %v1088, %v1084
    %v1129 = vpack.c.b16 %v1089, %v1085
    %v1130 = vpack.c.b16 %v1090, %v1086
    %v1131 = vpack.c.b16 %v1091, %v1087
    %v1132 = vpack.c.b16 %v1096, %v1092
    %v1133 = vpack.c.b16 %v1097, %v1093
    %v1134 = vpack.c.b16 %v1098, %v1094
    %v1135 = vpack.c.b16 %v1099, %v1095
    %v1136 = vpack.c.b16 %v1104, %v1100
    %v1137 = vpack.c.b16 %v1105, %v1101
    %v1138 = vpack.c.b16 %v1106, %v1102
    %v1139 = vpack.c.b16 %v1107, %v1103
    %1172 = vmatprep.subr.bf16.mxu0 %v1109
    %1173 = vmatpush1.bf16.msra.mxu0 %v1108
    %1174 = vmatprep.subr.bf16.mxu0 %v1113
    %1175 = vmatpush1.bf16.msra.mxu0 %v1112
    %1176 = vmatprep.subr.bf16.mxu0 %v1117
    %1177 = vmatpush1.bf16.msra.mxu0 %v1116
    %1178 = vmatprep.subr.bf16.mxu0 %v1121
    %1179 = vmatpush1.bf16.msra.mxu0 %v1120
    %1180 = vmatprep.subr.bf16.mxu0 %v1125
    %1181 = vmatpush1.bf16.msra.mxu0 %v1124
    %1182 = vmatprep.subr.bf16.mxu0 %v1129
    %1183 = vmatpush1.bf16.msra.mxu0 %v1128
    %1184 = vmatprep.subr.bf16.mxu0 %v1133
    %1185 = vmatpush1.bf16.msra.mxu0 %v1132
    %1186 = vmatprep.subr.bf16.mxu0 %v1137
    %1187 = vmatpush1.bf16.msra.mxu0 %v1136
    %1188 = vmatprep.subr.bf16.mxu0 0
    %1189 = vmatpush1.bf16.msra.mxu0 0
    %1190 = vmatprep.subr.bf16.mxu0 0
    %1191 = vmatpush1.bf16.msra.mxu0 0
    %1192 = vmatprep.subr.bf16.mxu0 0
    %1193 = vmatpush1.bf16.msra.mxu0 0
    %1194 = vmatprep.subr.bf16.mxu0 0
    %1195 = vmatpush1.bf16.msra.mxu0 0
    %1196 = vmatprep.subr.bf16.mxu0 0
    %1197 = vmatpush1.bf16.msra.mxu0 0
    %1198 = vmatprep.subr.bf16.mxu0 0
    %1199 = vmatpush1.bf16.msra.mxu0 0
    %1200 = vmatprep.subr.bf16.mxu0 0
    %1201 = vmatpush1.bf16.msra.mxu0 0
    %1202 = vmatprep.subr.bf16.mxu0 0
    %1203 = vmatpush1.bf16.msra.mxu0 0
    %1204 = vmatprep.mubr.bf16.mxu0 0
    %1205 = vmatmul.mubr.bf16.gmra.mrb[0].mxu0 %v972
    %v1206 = vpop.f32.mrb[0].mxu0
    %v1207 = vadd.f32 0.0, %v1206
    %v1208 = vpop.f32.mrb[0].mxu0
    %v1209 = vadd.f32 0.0, %v1208
    %v1210 = vpop.f32.mrb[0].mxu0
    %v1211 = vpop.f32.mrb[0].mxu0
    %1212 = vdwg.mxu0
    %1213 = vmatprep.subr.bf16.mxu0 %v1111
    %1214 = vmatpush1.bf16.msra.mxu0 %v1110
    %1215 = vmatprep.subr.bf16.mxu0 %v1115
    %1216 = vmatpush1.bf16.msra.mxu0 %v1114
    %1217 = vmatprep.subr.bf16.mxu0 %v1119
    %1218 = vmatpush1.bf16.msra.mxu0 %v1118
    %1219 = vmatprep.subr.bf16.mxu0 %v1123
    %1220 = vmatpush1.bf16.msra.mxu0 %v1122
    %1221 = vmatprep.subr.bf16.mxu0 %v1127
    %1222 = vmatpush1.bf16.msra.mxu0 %v1126
    %1223 = vmatprep.subr.bf16.mxu0 %v1131
    %1224 = vmatpush1.bf16.msra.mxu0 %v1130
    %1225 = vmatprep.subr.bf16.mxu0 %v1135
    %1226 = vmatpush1.bf16.msra.mxu0 %v1134
    %1227 = vmatprep.subr.bf16.mxu0 %v1139
    %1228 = vmatpush1.bf16.msra.mxu0 %v1138
    %1229 = vmatprep.subr.bf16.mxu0 0
    %1230 = vmatpush1.bf16.msra.mxu0 0
    %1231 = vmatprep.subr.bf16.mxu0 0
    %1232 = vmatpush1.bf16.msra.mxu0 0
    %1233 = vmatprep.subr.bf16.mxu0 0
    %1234 = vmatpush1.bf16.msra.mxu0 0
    %1235 = vmatprep.subr.bf16.mxu0 0
    %1236 = vmatpush1.bf16.msra.mxu0 0
    %1237 = vmatprep.subr.bf16.mxu0 0
    %1238 = vmatpush1.bf16.msra.mxu0 0
    %1239 = vmatprep.subr.bf16.mxu0 0
    %1240 = vmatpush1.bf16.msra.mxu0 0
    %1241 = vmatprep.subr.bf16.mxu0 0
    %1242 = vmatpush1.bf16.msra.mxu0 0
    %1243 = vmatprep.subr.bf16.mxu0 0
    %1244 = vmatpush1.bf16.msra.mxu0 0
    %1245 = vmatprep.mubr.bf16.mxu0 0
    %1246 = vmatmul.mubr.bf16.gmra.mrb[0].mxu0 %v972
    %v1247 = vpop.f32.mrb[0].mxu0
    %v1248 = vadd.f32 0.0, %v1247
    %v1249 = vpop.f32.mrb[0].mxu0
    %v1250 = vadd.f32 0.0, %v1249
    %v1251 = vpop.f32.mrb[0].mxu0
    %v1252 = vpop.f32.mrb[0].mxu0
    %1253 = vdwg.mxu0
    %v1254 = vadd.f32 %v976, %v1207
    %v1255 = vadd.f32 %v977, %v1209
    %v1256 = vadd.f32 %v978, %v1248
    %v1257 = vadd.f32 %v979, %v1250
    %v1258 = vxor.u32 %v1254, 2147483648
    %v1259 = vmul.f32 %v1258, 1.442695
    %v1260 = vpow.pop %v1259
    %v1261 = vadd.f32 %v1260, 1.0
    %v1262 = vrcp.pop %v1261
    %v1263 = vmul.f32 1.0, %v1262
    %v1264 = vxor.u32 %v1255, 2147483648
    %v1265 = vmul.f32 %v1264, 1.442695
    %v1266 = vpow.pop %v1265
    %v1267 = vadd.f32 %v1266, 1.0
    %v1268 = vrcp.pop %v1267
    %v1269 = vmul.f32 1.0, %v1268
    %v1270 = vtanh.pop %v1256
    %v1271 = vxor.u32 %v1257, 2147483648
    %v1272 = vmul.f32 %v1271, 1.442695
    %v1273 = vpow.pop %v1272
    %v1274 = vadd.f32 %v1273, 1.0
    %v1275 = vrcp.pop %v1274
    %v1276 = vmul.f32 1.0, %v1275
    %v1277 = vmul.f32 %v1269, %v969
    %v1278 = vmul.f32 %v1263, %v1270
    %v1279 = vadd.f32 %v1277, %v1278
    %v1280 = vtanh.pop %v1279
    %v1281 = vmul.f32 %v1276, %v1280
    %v1282 = vpack.c.bf16 %v1281, %v1281
    %s1283 = scalar_lea.vmem [#allocation10], 8
    %1284 = vst [vmem:[%s1283] sm:$0xf] %v1282
    %s1285 = scalar_lea.vmem [#allocation4], 96
    %v1286 = vld [vmem:[%s1285] sm:$0xff]
    %v1287 = vld [vmem:[%s1285 + $0x8] sm:$0xff]
    %v1288 = vld [vmem:[%s1285 + $0x10] sm:$0xff]
    %v1289 = vld [vmem:[%s1285 + $0x18] sm:$0xff]
    %v1290 = vld [vmem:[#allocation8] sm:$0xff]
    %v1291 = vld [vmem:[#allocation8 + $0x8] sm:$0xff]
    %v1292 = vld [vmem:[#allocation8 + $0x10] sm:$0xff]
    %v1293 = vld [vmem:[#allocation8 + $0x18] sm:$0xff]
    %v1294 = vld [vmem:[#allocation8 + $0x20] sm:$0xff]
    %v1295 = vld [vmem:[#allocation8 + $0x28] sm:$0xff]
    %v1296 = vld [vmem:[#allocation8 + $0x30] sm:$0xff]
    %v1297 = vld [vmem:[#allocation8 + $0x38] sm:$0xff]
    %v1298 = vld [vmem:[#allocation8 + $0x40] sm:$0xff]
    %v1299 = vld [vmem:[#allocation8 + $0x48] sm:$0xff]
    %v1300 = vld [vmem:[#allocation8 + $0x50] sm:$0xff]
    %v1301 = vld [vmem:[#allocation8 + $0x58] sm:$0xff]
    %v1302 = vld [vmem:[#allocation8 + $0x60] sm:$0xff]
    %v1303 = vld [vmem:[#allocation8 + $0x68] sm:$0xff]
    %v1304 = vld [vmem:[#allocation8 + $0x70] sm:$0xff]
    %v1305 = vld [vmem:[#allocation8 + $0x78] sm:$0xff]
    %v1306 = vld [vmem:[#allocation8 + $0x80] sm:$0xff]
    %v1307 = vld [vmem:[#allocation8 + $0x88] sm:$0xff]
    %v1308 = vld [vmem:[#allocation8 + $0x90] sm:$0xff]
    %v1309 = vld [vmem:[#allocation8 + $0x98] sm:$0xff]
    %v1310 = vld [vmem:[#allocation8 + $0xa0] sm:$0xff]
    %v1311 = vld [vmem:[#allocation8 + $0xa8] sm:$0xff]
    %v1312 = vld [vmem:[#allocation8 + $0xb0] sm:$0xff]
    %v1313 = vld [vmem:[#allocation8 + $0xb8] sm:$0xff]
    %v1314 = vld [vmem:[#allocation8 + $0xc0] sm:$0xff]
    %v1315 = vld [vmem:[#allocation8 + $0xc8] sm:$0xff]
    %v1316 = vld [vmem:[#allocation8 + $0xd0] sm:$0xff]
    %v1317 = vld [vmem:[#allocation8 + $0xd8] sm:$0xff]
    %v1318 = vld [vmem:[#allocation8 + $0xe0] sm:$0xff]
    %v1319 = vld [vmem:[#allocation8 + $0xe8] sm:$0xff]
    %v1320 = vld [vmem:[#allocation8 + $0xf0] sm:$0xff]
    %v1321 = vld [vmem:[#allocation8 + $0xf8] sm:$0xff]
    %v1354 = vunpack.c.l.b16 %v1290
    %v1355 = vunpack.c.h.b16 %v1290
    %v1356 = vunpack.c.l.b16 %v1291
    %v1357 = vunpack.c.h.b16 %v1291
    %v1358 = vunpack.c.l.b16 %v1292
    %v1359 = vunpack.c.h.b16 %v1292
    %v1360 = vunpack.c.l.b16 %v1293
    %v1361 = vunpack.c.h.b16 %v1293
    %v1362 = vunpack.c.l.b16 %v1294
    %v1363 = vunpack.c.h.b16 %v1294
    %v1364 = vunpack.c.l.b16 %v1295
    %v1365 = vunpack.c.h.b16 %v1295
    %v1366 = vunpack.c.l.b16 %v1296
    %v1367 = vunpack.c.h.b16 %v1296
    %v1368 = vunpack.c.l.b16 %v1297
    %v1369 = vunpack.c.h.b16 %v1297
    %v1370 = vunpack.c.l.b16 %v1298
    %v1371 = vunpack.c.h.b16 %v1298
    %v1372 = vunpack.c.l.b16 %v1299
    %v1373 = vunpack.c.h.b16 %v1299
    %v1374 = vunpack.c.l.b16 %v1300
    %v1375 = vunpack.c.h.b16 %v1300
    %v1376 = vunpack.c.l.b16 %v1301
    %v1377 = vunpack.c.h.b16 %v1301
    %v1378 = vunpack.c.l.b16 %v1302
    %v1379 = vunpack.c.h.b16 %v1302
    %v1380 = vunpack.c.l.b16 %v1303
    %v1381 = vunpack.c.h.b16 %v1303
    %v1382 = vunpack.c.l.b16 %v1304
    %v1383 = vunpack.c.h.b16 %v1304
    %v1384 = vunpack.c.l.b16 %v1305
    %v1385 = vunpack.c.h.b16 %v1305
    %v1386 = vunpack.c.l.b16 %v1306
    %v1387 = vunpack.c.h.b16 %v1306
    %v1388 = vunpack.c.l.b16 %v1307
    %v1389 = vunpack.c.h.b16 %v1307
    %v1390 = vunpack.c.l.b16 %v1308
    %v1391 = vunpack.c.h.b16 %v1308
    %v1392 = vunpack.c.l.b16 %v1309
    %v1393 = vunpack.c.h.b16 %v1309
    %v1394 = vunpack.c.l.b16 %v1310
    %v1395 = vunpack.c.h.b16 %v1310
    %v1396 = vunpack.c.l.b16 %v1311
    %v1397 = vunpack.c.h.b16 %v1311
    %v1398 = vunpack.c.l.b16 %v1312
    %v1399 = vunpack.c.h.b16 %v1312
    %v1400 = vunpack.c.l.b16 %v1313
    %v1401 = vunpack.c.h.b16 %v1313
    %v1402 = vunpack.c.l.b16 %v1314
    %v1403 = vunpack.c.h.b16 %v1314
    %v1404 = vunpack.c.l.b16 %v1315
    %v1405 = vunpack.c.h.b16 %v1315
    %v1406 = vunpack.c.l.b16 %v1316
    %v1407 = vunpack.c.h.b16 %v1316
    %v1408 = vunpack.c.l.b16 %v1317
    %v1409 = vunpack.c.h.b16 %v1317
    %v1410 = vunpack.c.l.b16 %v1318
    %v1411 = vunpack.c.h.b16 %v1318
    %v1412 = vunpack.c.l.b16 %v1319
    %v1413 = vunpack.c.h.b16 %v1319
    %v1414 = vunpack.c.l.b16 %v1320
    %v1415 = vunpack.c.h.b16 %v1320
    %v1416 = vunpack.c.l.b16 %v1321
    %v1417 = vunpack.c.h.b16 %v1321
    %v1418 = vpack.c.b16 %v1358, %v1354
    %v1419 = vpack.c.b16 %v1359, %v1355
    %v1420 = vpack.c.b16 %v1360, %v1356
    %v1421 = vpack.c.b16 %v1361, %v1357
    %v1422 = vpack.c.b16 %v1366, %v1362
    %v1423 = vpack.c.b16 %v1367, %v1363
    %v1424 = vpack.c.b16 %v1368, %v1364
    %v1425 = vpack.c.b16 %v1369, %v1365
    %v1426 = vpack.c.b16 %v1374, %v1370
    %v1427 = vpack.c.b16 %v1375, %v1371
    %v1428 = vpack.c.b16 %v1376, %v1372
    %v1429 = vpack.c.b16 %v1377, %v1373
    %v1430 = vpack.c.b16 %v1382, %v1378
    %v1431 = vpack.c.b16 %v1383, %v1379
    %v1432 = vpack.c.b16 %v1384, %v1380
    %v1433 = vpack.c.b16 %v1385, %v1381
    %v1434 = vpack.c.b16 %v1390, %v1386
    %v1435 = vpack.c.b16 %v1391, %v1387
    %v1436 = vpack.c.b16 %v1392, %v1388
    %v1437 = vpack.c.b16 %v1393, %v1389
    %v1438 = vpack.c.b16 %v1398, %v1394
    %v1439 = vpack.c.b16 %v1399, %v1395
    %v1440 = vpack.c.b16 %v1400, %v1396
    %v1441 = vpack.c.b16 %v1401, %v1397
    %v1442 = vpack.c.b16 %v1406, %v1402
    %v1443 = vpack.c.b16 %v1407, %v1403
    %v1444 = vpack.c.b16 %v1408, %v1404
    %v1445 = vpack.c.b16 %v1409, %v1405
    %v1446 = vpack.c.b16 %v1414, %v1410
    %v1447 = vpack.c.b16 %v1415, %v1411
    %v1448 = vpack.c.b16 %v1416, %v1412
    %v1449 = vpack.c.b16 %v1417, %v1413
    %1482 = vmatprep.subr.bf16.mxu0 %v1419
    %1483 = vmatpush1.bf16.msra.mxu0 %v1418
    %1484 = vmatprep.subr.bf16.mxu0 %v1423
    %1485 = vmatpush1.bf16.msra.mxu0 %v1422
    %1486 = vmatprep.subr.bf16.mxu0 %v1427
    %1487 = vmatpush1.bf16.msra.mxu0 %v1426
    %1488 = vmatprep.subr.bf16.mxu0 %v1431
    %1489 = vmatpush1.bf16.msra.mxu0 %v1430
    %1490 = vmatprep.subr.bf16.mxu0 %v1435
    %1491 = vmatpush1.bf16.msra.mxu0 %v1434
    %1492 = vmatprep.subr.bf16.mxu0 %v1439
    %1493 = vmatpush1.bf16.msra.mxu0 %v1438
    %1494 = vmatprep.subr.bf16.mxu0 %v1443
    %1495 = vmatpush1.bf16.msra.mxu0 %v1442
    %1496 = vmatprep.subr.bf16.mxu0 %v1447
    %1497 = vmatpush1.bf16.msra.mxu0 %v1446
    %1498 = vmatprep.subr.bf16.mxu0 0
    %1499 = vmatpush1.bf16.msra.mxu0 0
    %1500 = vmatprep.subr.bf16.mxu0 0
    %1501 = vmatpush1.bf16.msra.mxu0 0
    %1502 = vmatprep.subr.bf16.mxu0 0
    %1503 = vmatpush1.bf16.msra.mxu0 0
    %1504 = vmatprep.subr.bf16.mxu0 0
    %1505 = vmatpush1.bf16.msra.mxu0 0
    %1506 = vmatprep.subr.bf16.mxu0 0
    %1507 = vmatpush1.bf16.msra.mxu0 0
    %1508 = vmatprep.subr.bf16.mxu0 0
    %1509 = vmatpush1.bf16.msra.mxu0 0
    %1510 = vmatprep.subr.bf16.mxu0 0
    %1511 = vmatpush1.bf16.msra.mxu0 0
    %1512 = vmatprep.subr.bf16.mxu0 0
    %1513 = vmatpush1.bf16.msra.mxu0 0
    %1514 = vmatprep.mubr.bf16.mxu0 0
    %1515 = vmatmul.mubr.bf16.gmra.mrb[0].mxu0 %v1282
    %v1516 = vpop.f32.mrb[0].mxu0
    %v1517 = vadd.f32 0.0, %v1516
    %v1518 = vpop.f32.mrb[0].mxu0
    %v1519 = vadd.f32 0.0, %v1518
    %v1520 = vpop.f32.mrb[0].mxu0
    %v1521 = vpop.f32.mrb[0].mxu0
    %1522 = vdwg.mxu0
    %1523 = vmatprep.subr.bf16.mxu0 %v1421
    %1524 = vmatpush1.bf16.msra.mxu0 %v1420
    %1525 = vmatprep.subr.bf16.mxu0 %v1425
    %1526 = vmatpush1.bf16.msra.mxu0 %v1424
    %1527 = vmatprep.subr.bf16.mxu0 %v1429
    %1528 = vmatpush1.bf16.msra.mxu0 %v1428
    %1529 = vmatprep.subr.bf16.mxu0 %v1433
    %1530 = vmatpush1.bf16.msra.mxu0 %v1432
    %1531 = vmatprep.subr.bf16.mxu0 %v1437
    %1532 = vmatpush1.bf16.msra.mxu0 %v1436
    %1533 = vmatprep.subr.bf16.mxu0 %v1441
    %1534 = vmatpush1.bf16.msra.mxu0 %v1440
    %1535 = vmatprep.subr.bf16.mxu0 %v1445
    %1536 = vmatpush1.bf16.msra.mxu0 %v1444
    %1537 = vmatprep.subr.bf16.mxu0 %v1449
    %1538 = vmatpush1.bf16.msra.mxu0 %v1448
    %1539 = vmatprep.subr.bf16.mxu0 0
    %1540 = vmatpush1.bf16.msra.mxu0 0
    %1541 = vmatprep.subr.bf16.mxu0 0
    %1542 = vmatpush1.bf16.msra.mxu0 0
    %1543 = vmatprep.subr.bf16.mxu0 0
    %1544 = vmatpush1.bf16.msra.mxu0 0
    %1545 = vmatprep.subr.bf16.mxu0 0
    %1546 = vmatpush1.bf16.msra.mxu0 0
    %1547 = vmatprep.subr.bf16.mxu0 0
    %1548 = vmatpush1.bf16.msra.mxu0 0
    %1549 = vmatprep.subr.bf16.mxu0 0
    %1550 = vmatpush1.bf16.msra.mxu0 0
    %1551 = vmatprep.subr.bf16.mxu0 0
    %1552 = vmatpush1.bf16.msra.mxu0 0
    %1553 = vmatprep.subr.bf16.mxu0 0
    %1554 = vmatpush1.bf16.msra.mxu0 0
    %1555 = vmatprep.mubr.bf16.mxu0 0
    %1556 = vmatmul.mubr.bf16.gmra.mrb[0].mxu0 %v1282
    %v1557 = vpop.f32.mrb[0].mxu0
    %v1558 = vadd.f32 0.0, %v1557
    %v1559 = vpop.f32.mrb[0].mxu0
    %v1560 = vadd.f32 0.0, %v1559
    %v1561 = vpop.f32.mrb[0].mxu0
    %v1562 = vpop.f32.mrb[0].mxu0
    %1563 = vdwg.mxu0
    %v1564 = vadd.f32 %v1286, %v1517
    %v1565 = vadd.f32 %v1287, %v1519
    %v1566 = vadd.f32 %v1288, %v1558
    %v1567 = vadd.f32 %v1289, %v1560
    %v1568 = vxor.u32 %v1564, 2147483648
    %v1569 = vmul.f32 %v1568, 1.442695
    %v1570 = vpow.pop %v1569
    %v1571 = vadd.f32 %v1570, 1.0
    %v1572 = vrcp.pop %v1571
    %v1573 = vmul.f32 1.0, %v1572
    %v1574 = vxor.u32 %v1565, 2147483648
    %v1575 = vmul.f32 %v1574, 1.442695
    %v1576 = vpow.pop %v1575
    %v1577 = vadd.f32 %v1576, 1.0
    %v1578 = vrcp.pop %v1577
    %v1579 = vmul.f32 1.0, %v1578
    %v1580 = vtanh.pop %v1566
    %v1581 = vxor.u32 %v1567, 2147483648
    %v1582 = vmul.f32 %v1581, 1.442695
    %v1583 = vpow.pop %v1582
    %v1584 = vadd.f32 %v1583, 1.0
    %v1585 = vrcp.pop %v1584
    %v1586 = vmul.f32 1.0, %v1585
    %v1587 = vmul.f32 %v1579, %v1279
    %v1588 = vmul.f32 %v1573, %v1580
    %v1589 = vadd.f32 %v1587, %v1588
    %v1590 = vtanh.pop %v1589
    %v1591 = vmul.f32 %v1586, %v1590
    %v1592 = vpack.c.bf16 %v1591, %v1591
    %s1593 = scalar_lea.vmem [#allocation10], 12
    %1594 = vst [vmem:[%s1593] sm:$0xf] %v1592
    %s1595 = scalar_lea.vmem [#allocation4], 128
    %v1596 = vld [vmem:[%s1595] sm:$0xff]
    %v1597 = vld [vmem:[%s1595 + $0x8] sm:$0xff]
    %v1598 = vld [vmem:[%s1595 + $0x10] sm:$0xff]
    %v1599 = vld [vmem:[%s1595 + $0x18] sm:$0xff]
    %v1600 = vld [vmem:[#allocation8] sm:$0xff]
    %v1601 = vld [vmem:[#allocation8 + $0x8] sm:$0xff]
    %v1602 = vld [vmem:[#allocation8 + $0x10] sm:$0xff]
    %v1603 = vld [vmem:[#allocation8 + $0x18] sm:$0xff]
    %v1604 = vld [vmem:[#allocation8 + $0x20] sm:$0xff]
    %v1605 = vld [vmem:[#allocation8 + $0x28] sm:$0xff]
    %v1606 = vld [vmem:[#allocation8 + $0x30] sm:$0xff]
    %v1607 = vld [vmem:[#allocation8 + $0x38] sm:$0xff]
    %v1608 = vld [vmem:[#allocation8 + $0x40] sm:$0xff]
    %v1609 = vld [vmem:[#allocation8 + $0x48] sm:$0xff]
    %v1610 = vld [vmem:[#allocation8 + $0x50] sm:$0xff]
    %v1611 = vld [vmem:[#allocation8 + $0x58] sm:$0xff]
    %v1612 = vld [vmem:[#allocation8 + $0x60] sm:$0xff]
    %v1613 = vld [vmem:[#allocation8 + $0x68] sm:$0xff]
    %v1614 = vld [vmem:[#allocation8 + $0x70] sm:$0xff]
    %v1615 = vld [vmem:[#allocation8 + $0x78] sm:$0xff]
    %v1616 = vld [vmem:[#allocation8 + $0x80] sm:$0xff]
    %v1617 = vld [vmem:[#allocation8 + $0x88] sm:$0xff]
    %v1618 = vld [vmem:[#allocation8 + $0x90] sm:$0xff]
    %v1619 = vld [vmem:[#allocation8 + $0x98] sm:$0xff]
    %v1620 = vld [vmem:[#allocation8 + $0xa0] sm:$0xff]
    %v1621 = vld [vmem:[#allocation8 + $0xa8] sm:$0xff]
    %v1622 = vld [vmem:[#allocation8 + $0xb0] sm:$0xff]
    %v1623 = vld [vmem:[#allocation8 + $0xb8] sm:$0xff]
    %v1624 = vld [vmem:[#allocation8 + $0xc0] sm:$0xff]
    %v1625 = vld [vmem:[#allocation8 + $0xc8] sm:$0xff]
    %v1626 = vld [vmem:[#allocation8 + $0xd0] sm:$0xff]
    %v1627 = vld [vmem:[#allocation8 + $0xd8] sm:$0xff]
    %v1628 = vld [vmem:[#allocation8 + $0xe0] sm:$0xff]
    %v1629 = vld [vmem:[#allocation8 + $0xe8] sm:$0xff]
    %v1630 = vld [vmem:[#allocation8 + $0xf0] sm:$0xff]
    %v1631 = vld [vmem:[#allocation8 + $0xf8] sm:$0xff]
    %v1664 = vunpack.c.l.b16 %v1600
    %v1665 = vunpack.c.h.b16 %v1600
    %v1666 = vunpack.c.l.b16 %v1601
    %v1667 = vunpack.c.h.b16 %v1601
    %v1668 = vunpack.c.l.b16 %v1602
    %v1669 = vunpack.c.h.b16 %v1602
    %v1670 = vunpack.c.l.b16 %v1603
    %v1671 = vunpack.c.h.b16 %v1603
    %v1672 = vunpack.c.l.b16 %v1604
    %v1673 = vunpack.c.h.b16 %v1604
    %v1674 = vunpack.c.l.b16 %v1605
    %v1675 = vunpack.c.h.b16 %v1605
    %v1676 = vunpack.c.l.b16 %v1606
    %v1677 = vunpack.c.h.b16 %v1606
    %v1678 = vunpack.c.l.b16 %v1607
    %v1679 = vunpack.c.h.b16 %v1607
    %v1680 = vunpack.c.l.b16 %v1608
    %v1681 = vunpack.c.h.b16 %v1608
    %v1682 = vunpack.c.l.b16 %v1609
    %v1683 = vunpack.c.h.b16 %v1609
    %v1684 = vunpack.c.l.b16 %v1610
    %v1685 = vunpack.c.h.b16 %v1610
    %v1686 = vunpack.c.l.b16 %v1611
    %v1687 = vunpack.c.h.b16 %v1611
    %v1688 = vunpack.c.l.b16 %v1612
    %v1689 = vunpack.c.h.b16 %v1612
    %v1690 = vunpack.c.l.b16 %v1613
    %v1691 = vunpack.c.h.b16 %v1613
    %v1692 = vunpack.c.l.b16 %v1614
    %v1693 = vunpack.c.h.b16 %v1614
    %v1694 = vunpack.c.l.b16 %v1615
    %v1695 = vunpack.c.h.b16 %v1615
    %v1696 = vunpack.c.l.b16 %v1616
    %v1697 = vunpack.c.h.b16 %v1616
    %v1698 = vunpack.c.l.b16 %v1617
    %v1699 = vunpack.c.h.b16 %v1617
    %v1700 = vunpack.c.l.b16 %v1618
    %v1701 = vunpack.c.h.b16 %v1618
    %v1702 = vunpack.c.l.b16 %v1619
    %v1703 = vunpack.c.h.b16 %v1619
    %v1704 = vunpack.c.l.b16 %v1620
    %v1705 = vunpack.c.h.b16 %v1620
    %v1706 = vunpack.c.l.b16 %v1621
    %v1707 = vunpack.c.h.b16 %v1621
    %v1708 = vunpack.c.l.b16 %v1622
    %v1709 = vunpack.c.h.b16 %v1622
    %v1710 = vunpack.c.l.b16 %v1623
    %v1711 = vunpack.c.h.b16 %v1623
    %v1712 = vunpack.c.l.b16 %v1624
    %v1713 = vunpack.c.h.b16 %v1624
    %v1714 = vunpack.c.l.b16 %v1625
    %v1715 = vunpack.c.h.b16 %v1625
    %v1716 = vunpack.c.l.b16 %v1626
    %v1717 = vunpack.c.h.b16 %v1626
    %v1718 = vunpack.c.l.b16 %v1627
    %v1719 = vunpack.c.h.b16 %v1627
    %v1720 = vunpack.c.l.b16 %v1628
    %v1721 = vunpack.c.h.b16 %v1628
    %v1722 = vunpack.c.l.b16 %v1629
    %v1723 = vunpack.c.h.b16 %v1629
    %v1724 = vunpack.c.l.b16 %v1630
    %v1725 = vunpack.c.h.b16 %v1630
    %v1726 = vunpack.c.l.b16 %v1631
    %v1727 = vunpack.c.h.b16 %v1631
    %v1728 = vpack.c.b16 %v1668, %v1664
    %v1729 = vpack.c.b16 %v1669, %v1665
    %v1730 = vpack.c.b16 %v1670, %v1666
    %v1731 = vpack.c.b16 %v1671, %v1667
    %v1732 = vpack.c.b16 %v1676, %v1672
    %v1733 = vpack.c.b16 %v1677, %v1673
    %v1734 = vpack.c.b16 %v1678, %v1674
    %v1735 = vpack.c.b16 %v1679, %v1675
    %v1736 = vpack.c.b16 %v1684, %v1680
    %v1737 = vpack.c.b16 %v1685, %v1681
    %v1738 = vpack.c.b16 %v1686, %v1682
    %v1739 = vpack.c.b16 %v1687, %v1683
    %v1740 = vpack.c.b16 %v1692, %v1688
    %v1741 = vpack.c.b16 %v1693, %v1689
    %v1742 = vpack.c.b16 %v1694, %v1690
    %v1743 = vpack.c.b16 %v1695, %v1691
    %v1744 = vpack.c.b16 %v1700, %v1696
    %v1745 = vpack.c.b16 %v1701, %v1697
    %v1746 = vpack.c.b16 %v1702, %v1698
    %v1747 = vpack.c.b16 %v1703, %v1699
    %v1748 = vpack.c.b16 %v1708, %v1704
    %v1749 = vpack.c.b16 %v1709, %v1705
    %v1750 = vpack.c.b16 %v1710, %v1706
    %v1751 = vpack.c.b16 %v1711, %v1707
    %v1752 = vpack.c.b16 %v1716, %v1712
    %v1753 = vpack.c.b16 %v1717, %v1713
    %v1754 = vpack.c.b16 %v1718, %v1714
    %v1755 = vpack.c.b16 %v1719, %v1715
    %v1756 = vpack.c.b16 %v1724, %v1720
    %v1757 = vpack.c.b16 %v1725, %v1721
    %v1758 = vpack.c.b16 %v1726, %v1722
    %v1759 = vpack.c.b16 %v1727, %v1723
    %1792 = vmatprep.subr.bf16.mxu0 %v1729
    %1793 = vmatpush1.bf16.msra.mxu0 %v1728
    %1794 = vmatprep.subr.bf16.mxu0 %v1733
    %1795 = vmatpush1.bf16.msra.mxu0 %v1732
    %1796 = vmatprep.subr.bf16.mxu0 %v1737
    %1797 = vmatpush1.bf16.msra.mxu0 %v1736
    %1798 = vmatprep.subr.bf16.mxu0 %v1741
    %1799 = vmatpush1.bf16.msra.mxu0 %v1740
    %1800 = vmatprep.subr.bf16.mxu0 %v1745
    %1801 = vmatpush1.bf16.msra.mxu0 %v1744
    %1802 = vmatprep.subr.bf16.mxu0 %v1749
    %1803 = vmatpush1.bf16.msra.mxu0 %v1748
    %1804 = vmatprep.subr.bf16.mxu0 %v1753
    %1805 = vmatpush1.bf16.msra.mxu0 %v1752
    %1806 = vmatprep.subr.bf16.mxu0 %v1757
    %1807 = vmatpush1.bf16.msra.mxu0 %v1756
    %1808 = vmatprep.subr.bf16.mxu0 0
    %1809 = vmatpush1.bf16.msra.mxu0 0
    %1810 = vmatprep.subr.bf16.mxu0 0
    %1811 = vmatpush1.bf16.msra.mxu0 0
    %1812 = vmatprep.subr.bf16.mxu0 0
    %1813 = vmatpush1.bf16.msra.mxu0 0
    %1814 = vmatprep.subr.bf16.mxu0 0
    %1815 = vmatpush1.bf16.msra.mxu0 0
    %1816 = vmatprep.subr.bf16.mxu0 0
    %1817 = vmatpush1.bf16.msra.mxu0 0
    %1818 = vmatprep.subr.bf16.mxu0 0
    %1819 = vmatpush1.bf16.msra.mxu0 0
    %1820 = vmatprep.subr.bf16.mxu0 0
    %1821 = vmatpush1.bf16.msra.mxu0 0
    %1822 = vmatprep.subr.bf16.mxu0 0
    %1823 = vmatpush1.bf16.msra.mxu0 0
    %1824 = vmatprep.mubr.bf16.mxu0 0
    %1825 = vmatmul.mubr.bf16.gmra.mrb[0].mxu0 %v1592
    %v1826 = vpop.f32.mrb[0].mxu0
    %v1827 = vadd.f32 0.0, %v1826
    %v1828 = vpop.f32.mrb[0].mxu0
    %v1829 = vadd.f32 0.0, %v1828
    %v1830 = vpop.f32.mrb[0].mxu0
    %v1831 = vpop.f32.mrb[0].mxu0
    %1832 = vdwg.mxu0
    %1833 = vmatprep.subr.bf16.mxu0 %v1731
    %1834 = vmatpush1.bf16.msra.mxu0 %v1730
    %1835 = vmatprep.subr.bf16.mxu0 %v1735
    %1836 = vmatpush1.bf16.msra.mxu0 %v1734
    %1837 = vmatprep.subr.bf16.mxu0 %v1739
    %1838 = vmatpush1.bf16.msra.mxu0 %v1738
    %1839 = vmatprep.subr.bf16.mxu0 %v1743
    %1840 = vmatpush1.bf16.msra.mxu0 %v1742
    %1841 = vmatprep.subr.bf16.mxu0 %v1747
    %1842 = vmatpush1.bf16.msra.mxu0 %v1746
    %1843 = vmatprep.subr.bf16.mxu0 %v1751
    %1844 = vmatpush1.bf16.msra.mxu0 %v1750
    %1845 = vmatprep.subr.bf16.mxu0 %v1755
    %1846 = vmatpush1.bf16.msra.mxu0 %v1754
    %1847 = vmatprep.subr.bf16.mxu0 %v1759
    %1848 = vmatpush1.bf16.msra.mxu0 %v1758
    %1849 = vmatprep.subr.bf16.mxu0 0
    %1850 = vmatpush1.bf16.msra.mxu0 0
    %1851 = vmatprep.subr.bf16.mxu0 0
    %1852 = vmatpush1.bf16.msra.mxu0 0
    %1853 = vmatprep.subr.bf16.mxu0 0
    %1854 = vmatpush1.bf16.msra.mxu0 0
    %1855 = vmatprep.subr.bf16.mxu0 0
    %1856 = vmatpush1.bf16.msra.mxu0 0
    %1857 = vmatprep.subr.bf16.mxu0 0
    %1858 = vmatpush1.bf16.msra.mxu0 0
    %1859 = vmatprep.subr.bf16.mxu0 0
    %1860 = vmatpush1.bf16.msra.mxu0 0
    %1861 = vmatprep.subr.bf16.mxu0 0
    %1862 = vmatpush1.bf16.msra.mxu0 0
    %1863 = vmatprep.subr.bf16.mxu0 0
    %1864 = vmatpush1.bf16.msra.mxu0 0
    %1865 = vmatprep.mubr.bf16.mxu0 0
    %1866 = vmatmul.mubr.bf16.gmra.mrb[0].mxu0 %v1592
    %v1867 = vpop.f32.mrb[0].mxu0
    %v1868 = vadd.f32 0.0, %v1867
    %v1869 = vpop.f32.mrb[0].mxu0
    %v1870 = vadd.f32 0.0, %v1869
    %v1871 = vpop.f32.mrb[0].mxu0
    %v1872 = vpop.f32.mrb[0].mxu0
    %1873 = vdwg.mxu0
    %v1874 = vadd.f32 %v1596, %v1827
    %v1875 = vadd.f32 %v1597, %v1829
    %v1876 = vadd.f32 %v1598, %v1868
    %v1877 = vadd.f32 %v1599, %v1870
    %v1878 = vxor.u32 %v1874, 2147483648
    %v1879 = vmul.f32 %v1878, 1.442695
    %v1880 = vpow.pop %v1879
    %v1881 = vadd.f32 %v1880, 1.0
    %v1882 = vrcp.pop %v1881
    %v1883 = vmul.f32 1.0, %v1882
    %v1884 = vxor.u32 %v1875, 2147483648
    %v1885 = vmul.f32 %v1884, 1.442695
    %v1886 = vpow.pop %v1885
    %v1887 = vadd.f32 %v1886, 1.0
    %v1888 = vrcp.pop %v1887
    %v1889 = vmul.f32 1.0, %v1888
    %v1890 = vtanh.pop %v1876
    %v1891 = vxor.u32 %v1877, 2147483648
    %v1892 = vmul.f32 %v1891, 1.442695
    %v1893 = vpow.pop %v1892
    %v1894 = vadd.f32 %v1893, 1.0
    %v1895 = vrcp.pop %v1894
    %v1896 = vmul.f32 1.0, %v1895
    %v1897 = vmul.f32 %v1889, %v1589
    %v1898 = vmul.f32 %v1883, %v1890
    %v1899 = vadd.f32 %v1897, %v1898
    %v1900 = vtanh.pop %v1899
    %v1901 = vmul.f32 %v1896, %v1900
    %v1902 = vpack.c.bf16 %v1901, %v1901
    %s1903 = scalar_lea.vmem [#allocation10], 16
    %1904 = vst [vmem:[%s1903] sm:$0xf] %v1902
    %s1905 = scalar_lea.vmem [#allocation4], 160
    %v1906 = vld [vmem:[%s1905] sm:$0xff]
    %v1907 = vld [vmem:[%s1905 + $0x8] sm:$0xff]
    %v1908 = vld [vmem:[%s1905 + $0x10] sm:$0xff]
    %v1909 = vld [vmem:[%s1905 + $0x18] sm:$0xff]
    %v1910 = vld [vmem:[#allocation8] sm:$0xff]
    %v1911 = vld [vmem:[#allocation8 + $0x8] sm:$0xff]
    %v1912 = vld [vmem:[#allocation8 + $0x10] sm:$0xff]
    %v1913 = vld [vmem:[#allocation8 + $0x18] sm:$0xff]
    %v1914 = vld [vmem:[#allocation8 + $0x20] sm:$0xff]
    %v1915 = vld [vmem:[#allocation8 + $0x28] sm:$0xff]
    %v1916 = vld [vmem:[#allocation8 + $0x30] sm:$0xff]
    %v1917 = vld [vmem:[#allocation8 + $0x38] sm:$0xff]
    %v1918 = vld [vmem:[#allocation8 + $0x40] sm:$0xff]
    %v1919 = vld [vmem:[#allocation8 + $0x48] sm:$0xff]
    %v1920 = vld [vmem:[#allocation8 + $0x50] sm:$0xff]
    %v1921 = vld [vmem:[#allocation8 + $0x58] sm:$0xff]
    %v1922 = vld [vmem:[#allocation8 + $0x60] sm:$0xff]
    %v1923 = vld [vmem:[#allocation8 + $0x68] sm:$0xff]
    %v1924 = vld [vmem:[#allocation8 + $0x70] sm:$0xff]
    %v1925 = vld [vmem:[#allocation8 + $0x78] sm:$0xff]
    %v1926 = vld [vmem:[#allocation8 + $0x80] sm:$0xff]
    %v1927 = vld [vmem:[#allocation8 + $0x88] sm:$0xff]
    %v1928 = vld [vmem:[#allocation8 + $0x90] sm:$0xff]
    %v1929 = vld [vmem:[#allocation8 + $0x98] sm:$0xff]
    %v1930 = vld [vmem:[#allocation8 + $0xa0] sm:$0xff]
    %v1931 = vld [vmem:[#allocation8 + $0xa8] sm:$0xff]
    %v1932 = vld [vmem:[#allocation8 + $0xb0] sm:$0xff]
    %v1933 = vld [vmem:[#allocation8 + $0xb8] sm:$0xff]
    %v1934 = vld [vmem:[#allocation8 + $0xc0] sm:$0xff]
    %v1935 = vld [vmem:[#allocation8 + $0xc8] sm:$0xff]
    %v1936 = vld [vmem:[#allocation8 + $0xd0] sm:$0xff]
    %v1937 = vld [vmem:[#allocation8 + $0xd8] sm:$0xff]
    %v1938 = vld [vmem:[#allocation8 + $0xe0] sm:$0xff]
    %v1939 = vld [vmem:[#allocation8 + $0xe8] sm:$0xff]
    %v1940 = vld [vmem:[#allocation8 + $0xf0] sm:$0xff]
    %v1941 = vld [vmem:[#allocation8 + $0xf8] sm:$0xff]
    %v1974 = vunpack.c.l.b16 %v1910
    %v1975 = vunpack.c.h.b16 %v1910
    %v1976 = vunpack.c.l.b16 %v1911
    %v1977 = vunpack.c.h.b16 %v1911
    %v1978 = vunpack.c.l.b16 %v1912
    %v1979 = vunpack.c.h.b16 %v1912
    %v1980 = vunpack.c.l.b16 %v1913
    %v1981 = vunpack.c.h.b16 %v1913
    %v1982 = vunpack.c.l.b16 %v1914
    %v1983 = vunpack.c.h.b16 %v1914
    %v1984 = vunpack.c.l.b16 %v1915
    %v1985 = vunpack.c.h.b16 %v1915
    %v1986 = vunpack.c.l.b16 %v1916
    %v1987 = vunpack.c.h.b16 %v1916
    %v1988 = vunpack.c.l.b16 %v1917
    %v1989 = vunpack.c.h.b16 %v1917
    %v1990 = vunpack.c.l.b16 %v1918
    %v1991 = vunpack.c.h.b16 %v1918
    %v1992 = vunpack.c.l.b16 %v1919
    %v1993 = vunpack.c.h.b16 %v1919
    %v1994 = vunpack.c.l.b16 %v1920
    %v1995 = vunpack.c.h.b16 %v1920
    %v1996 = vunpack.c.l.b16 %v1921
    %v1997 = vunpack.c.h.b16 %v1921
    %v1998 = vunpack.c.l.b16 %v1922
    %v1999 = vunpack.c.h.b16 %v1922
    %v2000 = vunpack.c.l.b16 %v1923
    %v2001 = vunpack.c.h.b16 %v1923
    %v2002 = vunpack.c.l.b16 %v1924
    %v2003 = vunpack.c.h.b16 %v1924
    %v2004 = vunpack.c.l.b16 %v1925
    %v2005 = vunpack.c.h.b16 %v1925
    %v2006 = vunpack.c.l.b16 %v1926
    %v2007 = vunpack.c.h.b16 %v1926
    %v2008 = vunpack.c.l.b16 %v1927
    %v2009 = vunpack.c.h.b16 %v1927
    %v2010 = vunpack.c.l.b16 %v1928
    %v2011 = vunpack.c.h.b16 %v1928
    %v2012 = vunpack.c.l.b16 %v1929
    %v2013 = vunpack.c.h.b16 %v1929
    %v2014 = vunpack.c.l.b16 %v1930
    %v2015 = vunpack.c.h.b16 %v1930
    %v2016 = vunpack.c.l.b16 %v1931
    %v2017 = vunpack.c.h.b16 %v1931
    %v2018 = vunpack.c.l.b16 %v1932
    %v2019 = vunpack.c.h.b16 %v1932
    %v2020 = vunpack.c.l.b16 %v1933
    %v2021 = vunpack.c.h.b16 %v1933
    %v2022 = vunpack.c.l.b16 %v1934
    %v2023 = vunpack.c.h.b16 %v1934
    %v2024 = vunpack.c.l.b16 %v1935
    %v2025 = vunpack.c.h.b16 %v1935
    %v2026 = vunpack.c.l.b16 %v1936
    %v2027 = vunpack.c.h.b16 %v1936
    %v2028 = vunpack.c.l.b16 %v1937
    %v2029 = vunpack.c.h.b16 %v1937
    %v2030 = vunpack.c.l.b16 %v1938
    %v2031 = vunpack.c.h.b16 %v1938
    %v2032 = vunpack.c.l.b16 %v1939
    %v2033 = vunpack.c.h.b16 %v1939
    %v2034 = vunpack.c.l.b16 %v1940
    %v2035 = vunpack.c.h.b16 %v1940
    %v2036 = vunpack.c.l.b16 %v1941
    %v2037 = vunpack.c.h.b16 %v1941
    %v2038 = vpack.c.b16 %v1978, %v1974
    %v2039 = vpack.c.b16 %v1979, %v1975
    %v2040 = vpack.c.b16 %v1980, %v1976
    %v2041 = vpack.c.b16 %v1981, %v1977
    %v2042 = vpack.c.b16 %v1986, %v1982
    %v2043 = vpack.c.b16 %v1987, %v1983
    %v2044 = vpack.c.b16 %v1988, %v1984
    %v2045 = vpack.c.b16 %v1989, %v1985
    %v2046 = vpack.c.b16 %v1994, %v1990
    %v2047 = vpack.c.b16 %v1995, %v1991
    %v2048 = vpack.c.b16 %v1996, %v1992
    %v2049 = vpack.c.b16 %v1997, %v1993
    %v2050 = vpack.c.b16 %v2002, %v1998
    %v2051 = vpack.c.b16 %v2003, %v1999
    %v2052 = vpack.c.b16 %v2004, %v2000
    %v2053 = vpack.c.b16 %v2005, %v2001
    %v2054 = vpack.c.b16 %v2010, %v2006
    %v2055 = vpack.c.b16 %v2011, %v2007
    %v2056 = vpack.c.b16 %v2012, %v2008
    %v2057 = vpack.c.b16 %v2013, %v2009
    %v2058 = vpack.c.b16 %v2018, %v2014
    %v2059 = vpack.c.b16 %v2019, %v2015
    %v2060 = vpack.c.b16 %v2020, %v2016
    %v2061 = vpack.c.b16 %v2021, %v2017
    %v2062 = vpack.c.b16 %v2026, %v2022
    %v2063 = vpack.c.b16 %v2027, %v2023
    %v2064 = vpack.c.b16 %v2028, %v2024
    %v2065 = vpack.c.b16 %v2029, %v2025
    %v2066 = vpack.c.b16 %v2034, %v2030
    %v2067 = vpack.c.b16 %v2035, %v2031
    %v2068 = vpack.c.b16 %v2036, %v2032
    %v2069 = vpack.c.b16 %v2037, %v2033
    %2102 = vmatprep.subr.bf16.mxu0 %v2039
    %2103 = vmatpush1.bf16.msra.mxu0 %v2038
    %2104 = vmatprep.subr.bf16.mxu0 %v2043
    %2105 = vmatpush1.bf16.msra.mxu0 %v2042
    %2106 = vmatprep.subr.bf16.mxu0 %v2047
    %2107 = vmatpush1.bf16.msra.mxu0 %v2046
    %2108 = vmatprep.subr.bf16.mxu0 %v2051
    %2109 = vmatpush1.bf16.msra.mxu0 %v2050
    %2110 = vmatprep.subr.bf16.mxu0 %v2055
    %2111 = vmatpush1.bf16.msra.mxu0 %v2054
    %2112 = vmatprep.subr.bf16.mxu0 %v2059
    %2113 = vmatpush1.bf16.msra.mxu0 %v2058
    %2114 = vmatprep.subr.bf16.mxu0 %v2063
    %2115 = vmatpush1.bf16.msra.mxu0 %v2062
    %2116 = vmatprep.subr.bf16.mxu0 %v2067
    %2117 = vmatpush1.bf16.msra.mxu0 %v2066
    %2118 = vmatprep.subr.bf16.mxu0 0
    %2119 = vmatpush1.bf16.msra.mxu0 0
    %2120 = vmatprep.subr.bf16.mxu0 0
    %2121 = vmatpush1.bf16.msra.mxu0 0
    %2122 = vmatprep.subr.bf16.mxu0 0
    %2123 = vmatpush1.bf16.msra.mxu0 0
    %2124 = vmatprep.subr.bf16.mxu0 0
    %2125 = vmatpush1.bf16.msra.mxu0 0
    %2126 = vmatprep.subr.bf16.mxu0 0
    %2127 = vmatpush1.bf16.msra.mxu0 0
    %2128 = vmatprep.subr.bf16.mxu0 0
    %2129 = vmatpush1.bf16.msra.mxu0 0
    %2130 = vmatprep.subr.bf16.mxu0 0
    %2131 = vmatpush1.bf16.msra.mxu0 0
    %2132 = vmatprep.subr.bf16.mxu0 0
    %2133 = vmatpush1.bf16.msra.mxu0 0
    %2134 = vmatprep.mubr.bf16.mxu0 0
    %2135 = vmatmul.mubr.bf16.gmra.mrb[0].mxu0 %v1902
    %v2136 = vpop.f32.mrb[0].mxu0
    %v2137 = vadd.f32 0.0, %v2136
    %v2138 = vpop.f32.mrb[0].mxu0
    %v2139 = vadd.f32 0.0, %v2138
    %v2140 = vpop.f32.mrb[0].mxu0
    %v2141 = vpop.f32.mrb[0].mxu0
    %2142 = vdwg.mxu0
    %2143 = vmatprep.subr.bf16.mxu0 %v2041
    %2144 = vmatpush1.bf16.msra.mxu0 %v2040
    %2145 = vmatprep.subr.bf16.mxu0 %v2045
    %2146 = vmatpush1.bf16.msra.mxu0 %v2044
    %2147 = vmatprep.subr.bf16.mxu0 %v2049
    %2148 = vmatpush1.bf16.msra.mxu0 %v2048
    %2149 = vmatprep.subr.bf16.mxu0 %v2053
    %2150 = vmatpush1.bf16.msra.mxu0 %v2052
    %2151 = vmatprep.subr.bf16.mxu0 %v2057
    %2152 = vmatpush1.bf16.msra.mxu0 %v2056
    %2153 = vmatprep.subr.bf16.mxu0 %v2061
    %2154 = vmatpush1.bf16.msra.mxu0 %v2060
    %2155 = vmatprep.subr.bf16.mxu0 %v2065
    %2156 = vmatpush1.bf16.msra.mxu0 %v2064
    %2157 = vmatprep.subr.bf16.mxu0 %v2069
    %2158 = vmatpush1.bf16.msra.mxu0 %v2068
    %2159 = vmatprep.subr.bf16.mxu0 0
    %2160 = vmatpush1.bf16.msra.mxu0 0
    %2161 = vmatprep.subr.bf16.mxu0 0
    %2162 = vmatpush1.bf16.msra.mxu0 0
    %2163 = vmatprep.subr.bf16.mxu0 0
    %2164 = vmatpush1.bf16.msra.mxu0 0
    %2165 = vmatprep.subr.bf16.mxu0 0
    %2166 = vmatpush1.bf16.msra.mxu0 0
    %2167 = vmatprep.subr.bf16.mxu0 0
    %2168 = vmatpush1.bf16.msra.mxu0 0
    %2169 = vmatprep.subr.bf16.mxu0 0
    %2170 = vmatpush1.bf16.msra.mxu0 0
    %2171 = vmatprep.subr.bf16.mxu0 0
    %2172 = vmatpush1.bf16.msra.mxu0 0
    %2173 = vmatprep.subr.bf16.mxu0 0
    %2174 = vmatpush1.bf16.msra.mxu0 0
    %2175 = vmatprep.mubr.bf16.mxu0 0
    %2176 = vmatmul.mubr.bf16.gmra.mrb[0].mxu0 %v1902
    %v2177 = vpop.f32.mrb[0].mxu0
    %v2178 = vadd.f32 0.0, %v2177
    %v2179 = vpop.f32.mrb[0].mxu0
    %v2180 = vadd.f32 0.0, %v2179
    %v2181 = vpop.f32.mrb[0].mxu0
    %v2182 = vpop.f32.mrb[0].mxu0
    %2183 = vdwg.mxu0
    %v2184 = vadd.f32 %v1906, %v2137
    %v2185 = vadd.f32 %v1907, %v2139
    %v2186 = vadd.f32 %v1908, %v2178
    %v2187 = vadd.f32 %v1909, %v2180
    %v2188 = vxor.u32 %v2184, 2147483648
    %v2189 = vmul.f32 %v2188, 1.442695
    %v2190 = vpow.pop %v2189
    %v2191 = vadd.f32 %v2190, 1.0
    %v2192 = vrcp.pop %v2191
    %v2193 = vmul.f32 1.0, %v2192
    %v2194 = vxor.u32 %v2185, 2147483648
    %v2195 = vmul.f32 %v2194, 1.442695
    %v2196 = vpow.pop %v2195
    %v2197 = vadd.f32 %v2196, 1.0
    %v2198 = vrcp.pop %v2197
    %v2199 = vmul.f32 1.0, %v2198
    %v2200 = vtanh.pop %v2186
    %v2201 = vxor.u32 %v2187, 2147483648
    %v2202 = vmul.f32 %v2201, 1.442695
    %v2203 = vpow.pop %v2202
    %v2204 = vadd.f32 %v2203, 1.0
    %v2205 = vrcp.pop %v2204
    %v2206 = vmul.f32 1.0, %v2205
    %v2207 = vmul.f32 %v2199, %v1899
    %v2208 = vmul.f32 %v2193, %v2200
    %v2209 = vadd.f32 %v2207, %v2208
    %v2210 = vtanh.pop %v2209
    %v2211 = vmul.f32 %v2206, %v2210
    %v2212 = vpack.c.bf16 %v2211, %v2211
    %s2213 = scalar_lea.vmem [#allocation10], 20
    %2214 = vst [vmem:[%s2213] sm:$0xf] %v2212
    %s2215 = scalar_lea.vmem [#allocation4], 192
    %v2216 = vld [vmem:[%s2215] sm:$0xff]
    %v2217 = vld [vmem:[%s2215 + $0x8] sm:$0xff]
    %v2218 = vld [vmem:[%s2215 + $0x10] sm:$0xff]
    %v2219 = vld [vmem:[%s2215 + $0x18] sm:$0xff]
    %v2220 = vld [vmem:[#allocation8] sm:$0xff]
    %v2221 = vld [vmem:[#allocation8 + $0x8] sm:$0xff]
    %v2222 = vld [vmem:[#allocation8 + $0x10] sm:$0xff]
    %v2223 = vld [vmem:[#allocation8 + $0x18] sm:$0xff]
    %v2224 = vld [vmem:[#allocation8 + $0x20] sm:$0xff]
    %v2225 = vld [vmem:[#allocation8 + $0x28] sm:$0xff]
    %v2226 = vld [vmem:[#allocation8 + $0x30] sm:$0xff]
    %v2227 = vld [vmem:[#allocation8 + $0x38] sm:$0xff]
    %v2228 = vld [vmem:[#allocation8 + $0x40] sm:$0xff]
    %v2229 = vld [vmem:[#allocation8 + $0x48] sm:$0xff]
    %v2230 = vld [vmem:[#allocation8 + $0x50] sm:$0xff]
    %v2231 = vld [vmem:[#allocation8 + $0x58] sm:$0xff]
    %v2232 = vld [vmem:[#allocation8 + $0x60] sm:$0xff]
    %v2233 = vld [vmem:[#allocation8 + $0x68] sm:$0xff]
    %v2234 = vld [vmem:[#allocation8 + $0x70] sm:$0xff]
    %v2235 = vld [vmem:[#allocation8 + $0x78] sm:$0xff]
    %v2236 = vld [vmem:[#allocation8 + $0x80] sm:$0xff]
    %v2237 = vld [vmem:[#allocation8 + $0x88] sm:$0xff]
    %v2238 = vld [vmem:[#allocation8 + $0x90] sm:$0xff]
    %v2239 = vld [vmem:[#allocation8 + $0x98] sm:$0xff]
    %v2240 = vld [vmem:[#allocation8 + $0xa0] sm:$0xff]
    %v2241 = vld [vmem:[#allocation8 + $0xa8] sm:$0xff]
    %v2242 = vld [vmem:[#allocation8 + $0xb0] sm:$0xff]
    %v2243 = vld [vmem:[#allocation8 + $0xb8] sm:$0xff]
    %v2244 = vld [vmem:[#allocation8 + $0xc0] sm:$0xff]
    %v2245 = vld [vmem:[#allocation8 + $0xc8] sm:$0xff]
    %v2246 = vld [vmem:[#allocation8 + $0xd0] sm:$0xff]
    %v2247 = vld [vmem:[#allocation8 + $0xd8] sm:$0xff]
    %v2248 = vld [vmem:[#allocation8 + $0xe0] sm:$0xff]
    %v2249 = vld [vmem:[#allocation8 + $0xe8] sm:$0xff]
    %v2250 = vld [vmem:[#allocation8 + $0xf0] sm:$0xff]
    %v2251 = vld [vmem:[#allocation8 + $0xf8] sm:$0xff]
    %v2284 = vunpack.c.l.b16 %v2220
    %v2285 = vunpack.c.h.b16 %v2220
    %v2286 = vunpack.c.l.b16 %v2221
    %v2287 = vunpack.c.h.b16 %v2221
    %v2288 = vunpack.c.l.b16 %v2222
    %v2289 = vunpack.c.h.b16 %v2222
    %v2290 = vunpack.c.l.b16 %v2223
    %v2291 = vunpack.c.h.b16 %v2223
    %v2292 = vunpack.c.l.b16 %v2224
    %v2293 = vunpack.c.h.b16 %v2224
    %v2294 = vunpack.c.l.b16 %v2225
    %v2295 = vunpack.c.h.b16 %v2225
    %v2296 = vunpack.c.l.b16 %v2226
    %v2297 = vunpack.c.h.b16 %v2226
    %v2298 = vunpack.c.l.b16 %v2227
    %v2299 = vunpack.c.h.b16 %v2227
    %v2300 = vunpack.c.l.b16 %v2228
    %v2301 = vunpack.c.h.b16 %v2228
    %v2302 = vunpack.c.l.b16 %v2229
    %v2303 = vunpack.c.h.b16 %v2229
    %v2304 = vunpack.c.l.b16 %v2230
    %v2305 = vunpack.c.h.b16 %v2230
    %v2306 = vunpack.c.l.b16 %v2231
    %v2307 = vunpack.c.h.b16 %v2231
    %v2308 = vunpack.c.l.b16 %v2232
    %v2309 = vunpack.c.h.b16 %v2232
    %v2310 = vunpack.c.l.b16 %v2233
    %v2311 = vunpack.c.h.b16 %v2233
    %v2312 = vunpack.c.l.b16 %v2234
    %v2313 = vunpack.c.h.b16 %v2234
    %v2314 = vunpack.c.l.b16 %v2235
    %v2315 = vunpack.c.h.b16 %v2235
    %v2316 = vunpack.c.l.b16 %v2236
    %v2317 = vunpack.c.h.b16 %v2236
    %v2318 = vunpack.c.l.b16 %v2237
    %v2319 = vunpack.c.h.b16 %v2237
    %v2320 = vunpack.c.l.b16 %v2238
    %v2321 = vunpack.c.h.b16 %v2238
    %v2322 = vunpack.c.l.b16 %v2239
    %v2323 = vunpack.c.h.b16 %v2239
    %v2324 = vunpack.c.l.b16 %v2240
    %v2325 = vunpack.c.h.b16 %v2240
    %v2326 = vunpack.c.l.b16 %v2241
    %v2327 = vunpack.c.h.b16 %v2241
    %v2328 = vunpack.c.l.b16 %v2242
    %v2329 = vunpack.c.h.b16 %v2242
    %v2330 = vunpack.c.l.b16 %v2243
    %v2331 = vunpack.c.h.b16 %v2243
    %v2332 = vunpack.c.l.b16 %v2244
    %v2333 = vunpack.c.h.b16 %v2244
    %v2334 = vunpack.c.l.b16 %v2245
    %v2335 = vunpack.c.h.b16 %v2245
    %v2336 = vunpack.c.l.b16 %v2246
    %v2337 = vunpack.c.h.b16 %v2246
    %v2338 = vunpack.c.l.b16 %v2247
    %v2339 = vunpack.c.h.b16 %v2247
    %v2340 = vunpack.c.l.b16 %v2248
    %v2341 = vunpack.c.h.b16 %v2248
    %v2342 = vunpack.c.l.b16 %v2249
    %v2343 = vunpack.c.h.b16 %v2249
    %v2344 = vunpack.c.l.b16 %v2250
    %v2345 = vunpack.c.h.b16 %v2250
    %v2346 = vunpack.c.l.b16 %v2251
    %v2347 = vunpack.c.h.b16 %v2251
    %v2348 = vpack.c.b16 %v2288, %v2284
    %v2349 = vpack.c.b16 %v2289, %v2285
    %v2350 = vpack.c.b16 %v2290, %v2286
    %v2351 = vpack.c.b16 %v2291, %v2287
    %v2352 = vpack.c.b16 %v2296, %v2292
    %v2353 = vpack.c.b16 %v2297, %v2293
    %v2354 = vpack.c.b16 %v2298, %v2294
    %v2355 = vpack.c.b16 %v2299, %v2295
    %v2356 = vpack.c.b16 %v2304, %v2300
    %v2357 = vpack.c.b16 %v2305, %v2301
    %v2358 = vpack.c.b16 %v2306, %v2302
    %v2359 = vpack.c.b16 %v2307, %v2303
    %v2360 = vpack.c.b16 %v2312, %v2308
    %v2361 = vpack.c.b16 %v2313, %v2309
    %v2362 = vpack.c.b16 %v2314, %v2310
    %v2363 = vpack.c.b16 %v2315, %v2311
    %v2364 = vpack.c.b16 %v2320, %v2316
    %v2365 = vpack.c.b16 %v2321, %v2317
    %v2366 = vpack.c.b16 %v2322, %v2318
    %v2367 = vpack.c.b16 %v2323, %v2319
    %v2368 = vpack.c.b16 %v2328, %v2324
    %v2369 = vpack.c.b16 %v2329, %v2325
    %v2370 = vpack.c.b16 %v2330, %v2326
    %v2371 = vpack.c.b16 %v2331, %v2327
    %v2372 = vpack.c.b16 %v2336, %v2332
    %v2373 = vpack.c.b16 %v2337, %v2333
    %v2374 = vpack.c.b16 %v2338, %v2334
    %v2375 = vpack.c.b16 %v2339, %v2335
    %v2376 = vpack.c.b16 %v2344, %v2340
    %v2377 = vpack.c.b16 %v2345, %v2341
    %v2378 = vpack.c.b16 %v2346, %v2342
    %v2379 = vpack.c.b16 %v2347, %v2343
    %2412 = vmatprep.subr.bf16.mxu0 %v2349
    %2413 = vmatpush1.bf16.msra.mxu0 %v2348
    %2414 = vmatprep.subr.bf16.mxu0 %v2353
    %2415 = vmatpush1.bf16.msra.mxu0 %v2352
    %2416 = vmatprep.subr.bf16.mxu0 %v2357
    %2417 = vmatpush1.bf16.msra.mxu0 %v2356
    %2418 = vmatprep.subr.bf16.mxu0 %v2361
    %2419 = vmatpush1.bf16.msra.mxu0 %v2360
    %2420 = vmatprep.subr.bf16.mxu0 %v2365
    %2421 = vmatpush1.bf16.msra.mxu0 %v2364
    %2422 = vmatprep.subr.bf16.mxu0 %v2369
    %2423 = vmatpush1.bf16.msra.mxu0 %v2368
    %2424 = vmatprep.subr.bf16.mxu0 %v2373
    %2425 = vmatpush1.bf16.msra.mxu0 %v2372
    %2426 = vmatprep.subr.bf16.mxu0 %v2377
    %2427 = vmatpush1.bf16.msra.mxu0 %v2376
    %2428 = vmatprep.subr.bf16.mxu0 0
    %2429 = vmatpush1.bf16.msra.mxu0 0
    %2430 = vmatprep.subr.bf16.mxu0 0
    %2431 = vmatpush1.bf16.msra.mxu0 0
    %2432 = vmatprep.subr.bf16.mxu0 0
    %2433 = vmatpush1.bf16.msra.mxu0 0
    %2434 = vmatprep.subr.bf16.mxu0 0
    %2435 = vmatpush1.bf16.msra.mxu0 0
    %2436 = vmatprep.subr.bf16.mxu0 0
    %2437 = vmatpush1.bf16.msra.mxu0 0
    %2438 = vmatprep.subr.bf16.mxu0 0
    %2439 = vmatpush1.bf16.msra.mxu0 0
    %2440 = vmatprep.subr.bf16.mxu0 0
    %2441 = vmatpush1.bf16.msra.mxu0 0
    %2442 = vmatprep.subr.bf16.mxu0 0
    %2443 = vmatpush1.bf16.msra.mxu0 0
    %2444 = vmatprep.mubr.bf16.mxu0 0
    %2445 = vmatmul.mubr.bf16.gmra.mrb[0].mxu0 %v2212
    %v2446 = vpop.f32.mrb[0].mxu0
    %v2447 = vadd.f32 0.0, %v2446
    %v2448 = vpop.f32.mrb[0].mxu0
    %v2449 = vadd.f32 0.0, %v2448
    %v2450 = vpop.f32.mrb[0].mxu0
    %v2451 = vpop.f32.mrb[0].mxu0
    %2452 = vdwg.mxu0
    %2453 = vmatprep.subr.bf16.mxu0 %v2351
    %2454 = vmatpush1.bf16.msra.mxu0 %v2350
    %2455 = vmatprep.subr.bf16.mxu0 %v2355
    %2456 = vmatpush1.bf16.msra.mxu0 %v2354
    %2457 = vmatprep.subr.bf16.mxu0 %v2359
    %2458 = vmatpush1.bf16.msra.mxu0 %v2358
    %2459 = vmatprep.subr.bf16.mxu0 %v2363
    %2460 = vmatpush1.bf16.msra.mxu0 %v2362
    %2461 = vmatprep.subr.bf16.mxu0 %v2367
    %2462 = vmatpush1.bf16.msra.mxu0 %v2366
    %2463 = vmatprep.subr.bf16.mxu0 %v2371
    %2464 = vmatpush1.bf16.msra.mxu0 %v2370
    %2465 = vmatprep.subr.bf16.mxu0 %v2375
    %2466 = vmatpush1.bf16.msra.mxu0 %v2374
    %2467 = vmatprep.subr.bf16.mxu0 %v2379
    %2468 = vmatpush1.bf16.msra.mxu0 %v2378
    %2469 = vmatprep.subr.bf16.mxu0 0
    %2470 = vmatpush1.bf16.msra.mxu0 0
    %2471 = vmatprep.subr.bf16.mxu0 0
    %2472 = vmatpush1.bf16.msra.mxu0 0
    %2473 = vmatprep.subr.bf16.mxu0 0
    %2474 = vmatpush1.bf16.msra.mxu0 0
    %2475 = vmatprep.subr.bf16.mxu0 0
    %2476 = vmatpush1.bf16.msra.mxu0 0
    %2477 = vmatprep.subr.bf16.mxu0 0
    %2478 = vmatpush1.bf16.msra.mxu0 0
    %2479 = vmatprep.subr.bf16.mxu0 0
    %2480 = vmatpush1.bf16.msra.mxu0 0
    %2481 = vmatprep.subr.bf16.mxu0 0
    %2482 = vmatpush1.bf16.msra.mxu0 0
    %2483 = vmatprep.subr.bf16.mxu0 0
    %2484 = vmatpush1.bf16.msra.mxu0 0
    %2485 = vmatprep.mubr.bf16.mxu0 0
    %2486 = vmatmul.mubr.bf16.gmra.mrb[0].mxu0 %v2212
    %v2487 = vpop.f32.mrb[0].mxu0
    %v2488 = vadd.f32 0.0, %v2487
    %v2489 = vpop.f32.mrb[0].mxu0
    %v2490 = vadd.f32 0.0, %v2489
    %v2491 = vpop.f32.mrb[0].mxu0
    %v2492 = vpop.f32.mrb[0].mxu0
    %2493 = vdwg.mxu0
    %v2494 = vadd.f32 %v2216, %v2447
    %v2495 = vadd.f32 %v2217, %v2449
    %v2496 = vadd.f32 %v2218, %v2488
    %v2497 = vadd.f32 %v2219, %v2490
    %v2498 = vxor.u32 %v2494, 2147483648
    %v2499 = vmul.f32 %v2498, 1.442695
    %v2500 = vpow.pop %v2499
    %v2501 = vadd.f32 %v2500, 1.0
    %v2502 = vrcp.pop %v2501
    %v2503 = vmul.f32 1.0, %v2502
    %v2504 = vxor.u32 %v2495, 2147483648
    %v2505 = vmul.f32 %v2504, 1.442695
    %v2506 = vpow.pop %v2505
    %v2507 = vadd.f32 %v2506, 1.0
    %v2508 = vrcp.pop %v2507
    %v2509 = vmul.f32 1.0, %v2508
    %v2510 = vtanh.pop %v2496
    %v2511 = vxor.u32 %v2497, 2147483648
    %v2512 = vmul.f32 %v2511, 1.442695
    %v2513 = vpow.pop %v2512
    %v2514 = vadd.f32 %v2513, 1.0
    %v2515 = vrcp.pop %v2514
    %v2516 = vmul.f32 1.0, %v2515
    %v2517 = vmul.f32 %v2509, %v2209
    %v2518 = vmul.f32 %v2503, %v2510
    %v2519 = vadd.f32 %v2517, %v2518
    %v2520 = vtanh.pop %v2519
    %v2521 = vmul.f32 %v2516, %v2520
    %v2522 = vpack.c.bf16 %v2521, %v2521
    %s2523 = scalar_lea.vmem [#allocation10], 24
    %2524 = vst [vmem:[%s2523] sm:$0xf] %v2522
    %s2525 = scalar_lea.vmem [#allocation4], 224
    %v2526 = vld [vmem:[%s2525] sm:$0xff]
    %v2527 = vld [vmem:[%s2525 + $0x8] sm:$0xff]
    %v2528 = vld [vmem:[%s2525 + $0x10] sm:$0xff]
    %v2529 = vld [vmem:[%s2525 + $0x18] sm:$0xff]
    %v2530 = vld [vmem:[#allocation8] sm:$0xff]
    %v2531 = vld [vmem:[#allocation8 + $0x8] sm:$0xff]
    %v2532 = vld [vmem:[#allocation8 + $0x10] sm:$0xff]
    %v2533 = vld [vmem:[#allocation8 + $0x18] sm:$0xff]
    %v2534 = vld [vmem:[#allocation8 + $0x20] sm:$0xff]
    %v2535 = vld [vmem:[#allocation8 + $0x28] sm:$0xff]
    %v2536 = vld [vmem:[#allocation8 + $0x30] sm:$0xff]
    %v2537 = vld [vmem:[#allocation8 + $0x38] sm:$0xff]
    %v2538 = vld [vmem:[#allocation8 + $0x40] sm:$0xff]
    %v2539 = vld [vmem:[#allocation8 + $0x48] sm:$0xff]
    %v2540 = vld [vmem:[#allocation8 + $0x50] sm:$0xff]
    %v2541 = vld [vmem:[#allocation8 + $0x58] sm:$0xff]
    %v2542 = vld [vmem:[#allocation8 + $0x60] sm:$0xff]
    %v2543 = vld [vmem:[#allocation8 + $0x68] sm:$0xff]
    %v2544 = vld [vmem:[#allocation8 + $0x70] sm:$0xff]
    %v2545 = vld [vmem:[#allocation8 + $0x78] sm:$0xff]
    %v2546 = vld [vmem:[#allocation8 + $0x80] sm:$0xff]
    %v2547 = vld [vmem:[#allocation8 + $0x88] sm:$0xff]
    %v2548 = vld [vmem:[#allocation8 + $0x90] sm:$0xff]
    %v2549 = vld [vmem:[#allocation8 + $0x98] sm:$0xff]
    %v2550 = vld [vmem:[#allocation8 + $0xa0] sm:$0xff]
    %v2551 = vld [vmem:[#allocation8 + $0xa8] sm:$0xff]
    %v2552 = vld [vmem:[#allocation8 + $0xb0] sm:$0xff]
    %v2553 = vld [vmem:[#allocation8 + $0xb8] sm:$0xff]
    %v2554 = vld [vmem:[#allocation8 + $0xc0] sm:$0xff]
    %v2555 = vld [vmem:[#allocation8 + $0xc8] sm:$0xff]
    %v2556 = vld [vmem:[#allocation8 + $0xd0] sm:$0xff]
    %v2557 = vld [vmem:[#allocation8 + $0xd8] sm:$0xff]
    %v2558 = vld [vmem:[#allocation8 + $0xe0] sm:$0xff]
    %v2559 = vld [vmem:[#allocation8 + $0xe8] sm:$0xff]
    %v2560 = vld [vmem:[#allocation8 + $0xf0] sm:$0xff]
    %v2561 = vld [vmem:[#allocation8 + $0xf8] sm:$0xff]
    %v2594 = vunpack.c.l.b16 %v2530
    %v2595 = vunpack.c.h.b16 %v2530
    %v2596 = vunpack.c.l.b16 %v2531
    %v2597 = vunpack.c.h.b16 %v2531
    %v2598 = vunpack.c.l.b16 %v2532
    %v2599 = vunpack.c.h.b16 %v2532
    %v2600 = vunpack.c.l.b16 %v2533
    %v2601 = vunpack.c.h.b16 %v2533
    %v2602 = vunpack.c.l.b16 %v2534
    %v2603 = vunpack.c.h.b16 %v2534
    %v2604 = vunpack.c.l.b16 %v2535
    %v2605 = vunpack.c.h.b16 %v2535
    %v2606 = vunpack.c.l.b16 %v2536
    %v2607 = vunpack.c.h.b16 %v2536
    %v2608 = vunpack.c.l.b16 %v2537
    %v2609 = vunpack.c.h.b16 %v2537
    %v2610 = vunpack.c.l.b16 %v2538
    %v2611 = vunpack.c.h.b16 %v2538
    %v2612 = vunpack.c.l.b16 %v2539
    %v2613 = vunpack.c.h.b16 %v2539
    %v2614 = vunpack.c.l.b16 %v2540
    %v2615 = vunpack.c.h.b16 %v2540
    %v2616 = vunpack.c.l.b16 %v2541
    %v2617 = vunpack.c.h.b16 %v2541
    %v2618 = vunpack.c.l.b16 %v2542
    %v2619 = vunpack.c.h.b16 %v2542
    %v2620 = vunpack.c.l.b16 %v2543
    %v2621 = vunpack.c.h.b16 %v2543
    %v2622 = vunpack.c.l.b16 %v2544
    %v2623 = vunpack.c.h.b16 %v2544
    %v2624 = vunpack.c.l.b16 %v2545
    %v2625 = vunpack.c.h.b16 %v2545
    %v2626 = vunpack.c.l.b16 %v2546
    %v2627 = vunpack.c.h.b16 %v2546
    %v2628 = vunpack.c.l.b16 %v2547
    %v2629 = vunpack.c.h.b16 %v2547
    %v2630 = vunpack.c.l.b16 %v2548
    %v2631 = vunpack.c.h.b16 %v2548
    %v2632 = vunpack.c.l.b16 %v2549
    %v2633 = vunpack.c.h.b16 %v2549
    %v2634 = vunpack.c.l.b16 %v2550
    %v2635 = vunpack.c.h.b16 %v2550
    %v2636 = vunpack.c.l.b16 %v2551
    %v2637 = vunpack.c.h.b16 %v2551
    %v2638 = vunpack.c.l.b16 %v2552
    %v2639 = vunpack.c.h.b16 %v2552
    %v2640 = vunpack.c.l.b16 %v2553
    %v2641 = vunpack.c.h.b16 %v2553
    %v2642 = vunpack.c.l.b16 %v2554
    %v2643 = vunpack.c.h.b16 %v2554
    %v2644 = vunpack.c.l.b16 %v2555
    %v2645 = vunpack.c.h.b16 %v2555
    %v2646 = vunpack.c.l.b16 %v2556
    %v2647 = vunpack.c.h.b16 %v2556
    %v2648 = vunpack.c.l.b16 %v2557
    %v2649 = vunpack.c.h.b16 %v2557
    %v2650 = vunpack.c.l.b16 %v2558
    %v2651 = vunpack.c.h.b16 %v2558
    %v2652 = vunpack.c.l.b16 %v2559
    %v2653 = vunpack.c.h.b16 %v2559
    %v2654 = vunpack.c.l.b16 %v2560
    %v2655 = vunpack.c.h.b16 %v2560
    %v2656 = vunpack.c.l.b16 %v2561
    %v2657 = vunpack.c.h.b16 %v2561
    %v2658 = vpack.c.b16 %v2598, %v2594
    %v2659 = vpack.c.b16 %v2599, %v2595
    %v2660 = vpack.c.b16 %v2600, %v2596
    %v2661 = vpack.c.b16 %v2601, %v2597
    %v2662 = vpack.c.b16 %v2606, %v2602
    %v2663 = vpack.c.b16 %v2607, %v2603
    %v2664 = vpack.c.b16 %v2608, %v2604
    %v2665 = vpack.c.b16 %v2609, %v2605
    %v2666 = vpack.c.b16 %v2614, %v2610
    %v2667 = vpack.c.b16 %v2615, %v2611
    %v2668 = vpack.c.b16 %v2616, %v2612
    %v2669 = vpack.c.b16 %v2617, %v2613
    %v2670 = vpack.c.b16 %v2622, %v2618
    %v2671 = vpack.c.b16 %v2623, %v2619
    %v2672 = vpack.c.b16 %v2624, %v2620
    %v2673 = vpack.c.b16 %v2625, %v2621
    %v2674 = vpack.c.b16 %v2630, %v2626
    %v2675 = vpack.c.b16 %v2631, %v2627
    %v2676 = vpack.c.b16 %v2632, %v2628
    %v2677 = vpack.c.b16 %v2633, %v2629
    %v2678 = vpack.c.b16 %v2638, %v2634
    %v2679 = vpack.c.b16 %v2639, %v2635
    %v2680 = vpack.c.b16 %v2640, %v2636
    %v2681 = vpack.c.b16 %v2641, %v2637
    %v2682 = vpack.c.b16 %v2646, %v2642
    %v2683 = vpack.c.b16 %v2647, %v2643
    %v2684 = vpack.c.b16 %v2648, %v2644
    %v2685 = vpack.c.b16 %v2649, %v2645
    %v2686 = vpack.c.b16 %v2654, %v2650
    %v2687 = vpack.c.b16 %v2655, %v2651
    %v2688 = vpack.c.b16 %v2656, %v2652
    %v2689 = vpack.c.b16 %v2657, %v2653
    %2722 = vmatprep.subr.bf16.mxu0 %v2659
    %2723 = vmatpush1.bf16.msra.mxu0 %v2658
    %2724 = vmatprep.subr.bf16.mxu0 %v2663
    %2725 = vmatpush1.bf16.msra.mxu0 %v2662
    %2726 = vmatprep.subr.bf16.mxu0 %v2667
    %2727 = vmatpush1.bf16.msra.mxu0 %v2666
    %2728 = vmatprep.subr.bf16.mxu0 %v2671
    %2729 = vmatpush1.bf16.msra.mxu0 %v2670
    %2730 = vmatprep.subr.bf16.mxu0 %v2675
    %2731 = vmatpush1.bf16.msra.mxu0 %v2674
    %2732 = vmatprep.subr.bf16.mxu0 %v2679
    %2733 = vmatpush1.bf16.msra.mxu0 %v2678
    %2734 = vmatprep.subr.bf16.mxu0 %v2683
    %2735 = vmatpush1.bf16.msra.mxu0 %v2682
    %2736 = vmatprep.subr.bf16.mxu0 %v2687
    %2737 = vmatpush1.bf16.msra.mxu0 %v2686
    %2738 = vmatprep.subr.bf16.mxu0 0
    %2739 = vmatpush1.bf16.msra.mxu0 0
    %2740 = vmatprep.subr.bf16.mxu0 0
    %2741 = vmatpush1.bf16.msra.mxu0 0
    %2742 = vmatprep.subr.bf16.mxu0 0
    %2743 = vmatpush1.bf16.msra.mxu0 0
    %2744 = vmatprep.subr.bf16.mxu0 0
    %2745 = vmatpush1.bf16.msra.mxu0 0
    %2746 = vmatprep.subr.bf16.mxu0 0
    %2747 = vmatpush1.bf16.msra.mxu0 0
    %2748 = vmatprep.subr.bf16.mxu0 0
    %2749 = vmatpush1.bf16.msra.mxu0 0
    %2750 = vmatprep.subr.bf16.mxu0 0
    %2751 = vmatpush1.bf16.msra.mxu0 0
    %2752 = vmatprep.subr.bf16.mxu0 0
    %2753 = vmatpush1.bf16.msra.mxu0 0
    %2754 = vmatprep.mubr.bf16.mxu0 0
    %2755 = vmatmul.mubr.bf16.gmra.mrb[0].mxu0 %v2522
    %v2756 = vpop.f32.mrb[0].mxu0
    %v2757 = vadd.f32 0.0, %v2756
    %v2758 = vpop.f32.mrb[0].mxu0
    %v2759 = vadd.f32 0.0, %v2758
    %v2760 = vpop.f32.mrb[0].mxu0
    %v2761 = vpop.f32.mrb[0].mxu0
    %2762 = vdwg.mxu0
    %2763 = vmatprep.subr.bf16.mxu0 %v2661
    %2764 = vmatpush1.bf16.msra.mxu0 %v2660
    %2765 = vmatprep.subr.bf16.mxu0 %v2665
    %2766 = vmatpush1.bf16.msra.mxu0 %v2664
    %2767 = vmatprep.subr.bf16.mxu0 %v2669
    %2768 = vmatpush1.bf16.msra.mxu0 %v2668
    %2769 = vmatprep.subr.bf16.mxu0 %v2673
    %2770 = vmatpush1.bf16.msra.mxu0 %v2672
    %2771 = vmatprep.subr.bf16.mxu0 %v2677
    %2772 = vmatpush1.bf16.msra.mxu0 %v2676
    %2773 = vmatprep.subr.bf16.mxu0 %v2681
    %2774 = vmatpush1.bf16.msra.mxu0 %v2680
    %2775 = vmatprep.subr.bf16.mxu0 %v2685
    %2776 = vmatpush1.bf16.msra.mxu0 %v2684
    %2777 = vmatprep.subr.bf16.mxu0 %v2689
    %2778 = vmatpush1.bf16.msra.mxu0 %v2688
    %2779 = vmatprep.subr.bf16.mxu0 0
    %2780 = vmatpush1.bf16.msra.mxu0 0
    %2781 = vmatprep.subr.bf16.mxu0 0
    %2782 = vmatpush1.bf16.msra.mxu0 0
    %2783 = vmatprep.subr.bf16.mxu0 0
    %2784 = vmatpush1.bf16.msra.mxu0 0
    %2785 = vmatprep.subr.bf16.mxu0 0
    %2786 = vmatpush1.bf16.msra.mxu0 0
    %2787 = vmatprep.subr.bf16.mxu0 0
    %2788 = vmatpush1.bf16.msra.mxu0 0
    %2789 = vmatprep.subr.bf16.mxu0 0
    %2790 = vmatpush1.bf16.msra.mxu0 0
    %2791 = vmatprep.subr.bf16.mxu0 0
    %2792 = vmatpush1.bf16.msra.mxu0 0
    %2793 = vmatprep.subr.bf16.mxu0 0
    %2794 = vmatpush1.bf16.msra.mxu0 0
    %2795 = vmatprep.mubr.bf16.mxu0 0
    %2796 = vmatmul.mubr.bf16.gmra.mrb[0].mxu0 %v2522
    %v2797 = vpop.f32.mrb[0].mxu0
    %v2798 = vadd.f32 0.0, %v2797
    %v2799 = vpop.f32.mrb[0].mxu0
    %v2800 = vadd.f32 0.0, %v2799
    %v2801 = vpop.f32.mrb[0].mxu0
    %v2802 = vpop.f32.mrb[0].mxu0
    %2803 = vdwg.mxu0
    %v2804 = vadd.f32 %v2526, %v2757
    %v2805 = vadd.f32 %v2527, %v2759
    %v2806 = vadd.f32 %v2528, %v2798
    %v2807 = vadd.f32 %v2529, %v2800
    %v2808 = vxor.u32 %v2804, 2147483648
    %v2809 = vmul.f32 %v2808, 1.442695
    %v2810 = vpow.pop %v2809
    %v2811 = vadd.f32 %v2810, 1.0
    %v2812 = vrcp.pop %v2811
    %v2813 = vmul.f32 1.0, %v2812
    %v2814 = vxor.u32 %v2805, 2147483648
    %v2815 = vmul.f32 %v2814, 1.442695
    %v2816 = vpow.pop %v2815
    %v2817 = vadd.f32 %v2816, 1.0
    %v2818 = vrcp.pop %v2817
    %v2819 = vmul.f32 1.0, %v2818
    %v2820 = vtanh.pop %v2806
    %v2821 = vxor.u32 %v2807, 2147483648
    %v2822 = vmul.f32 %v2821, 1.442695
    %v2823 = vpow.pop %v2822
    %v2824 = vadd.f32 %v2823, 1.0
    %v2825 = vrcp.pop %v2824
    %v2826 = vmul.f32 1.0, %v2825
    %v2827 = vmul.f32 %v2819, %v2519
    %v2828 = vmul.f32 %v2813, %v2820
    %v2829 = vadd.f32 %v2827, %v2828
    %v2830 = vtanh.pop %v2829
    %v2831 = vmul.f32 %v2826, %v2830
    %v2832 = vpack.c.bf16 %v2831, %v2831
    %s2833 = scalar_lea.vmem [#allocation10], 28
    %2834 = vst [vmem:[%s2833] sm:$0xf] %v2832
    %2835 = vst [vmem:[#allocation2] sm:$0xff] %v2831
    %2836 = vst [vmem:[#allocation3] sm:$0xff] %v2829
    // Predicated region
    $region38: #{tpu_custom_call.1} parent=1 // pred_check
      %p2837 = pneg %p57
    $region39: #{tpu_custom_call.1} parent=1 // pred_check_branch
      %2839 = sbr.rel (%p2837) target = $region41
    $region40: #{tpu_custom_call.1} parent=1 // pred_region
      %2840 = vst [vmem:[#allocation11] sm:$0xff] %v2831
      %2841 = vst [vmem:[#allocation13] sm:$0xff] %v2829
    $region41: #{tpu_custom_call.1} parent=1 // pred_fallthru
      _
    // Predicated region
    $region42: #{tpu_custom_call.1} parent=1 // pred_check
      _
    $region43: #{tpu_custom_call.1} parent=1 // pred_check_branch
      %2843 = sbr.rel (0) target = $region45
    $region44: #{tpu_custom_call.1} parent=1 // pred_region
      %s2845 = ssub.s32 512, 512
      %2846 = vsyncadd [#allocation7], %s2845
      %s2847 = sshll.u32 [#allocation10], 4
      %s2848 = int_to_ptr.vmem [resolvable:$true] %s2847
      %2853 = dma.vmem_to_hbm [thread:$0]  %s2848, 512, %s6, [#allocation7], 64, 64, 4
    $region45: #{tpu_custom_call.1} parent=1 // pred_fallthru
      _
    // Predicated region
    $region46: #{tpu_custom_call.1} parent=1 // pred_check
      _
    $region47: #{tpu_custom_call.1} parent=1 // pred_check_branch
      %2855 = sbr.rel (0) target = $region49
    $region48: #{tpu_custom_call.1} parent=1 // pred_region
      %s2857 = ssub.s32 128, 128
      %2858 = vsyncadd [#allocation12], %s2857
      %s2860 = sshll.u32 [#allocation11], 4
      %s2861 = int_to_ptr.vmem [resolvable:$true] %s2860
      %2863 = dma.vmem_to_hbm [thread:$0]  %s2861, 128, %s7, [#allocation12]
    $region49: #{tpu_custom_call.1} parent=1 // pred_fallthru
      _
    // Predicated region
    $region50: #{tpu_custom_call.1} parent=1 // pred_check
      _
    $region51: #{tpu_custom_call.1} parent=1 // pred_check_branch
      %2865 = sbr.rel (0) target = $region53
    $region52: #{tpu_custom_call.1} parent=1 // pred_region
      %s2867 = ssub.s32 128, 128
      %2868 = vsyncadd [#allocation12], %s2867
      %s2870 = sshll.u32 [#allocation13], 4
      %s2871 = int_to_ptr.vmem [resolvable:$true] %s2870
      %2873 = dma.vmem_to_hbm [thread:$0]  %s2871, 128, %s8, [#allocation12]
    $region53: #{tpu_custom_call.1} parent=1 // pred_fallthru
      _
    // Predicated region
    $region54: #{tpu_custom_call.1} parent=1 // pred_check
      _
    $region55: #{tpu_custom_call.1} parent=1 // pred_check_branch
      %2875 = sbr.rel (0) target = $region57
    $region56: #{tpu_custom_call.1} parent=1 // pred_region
      %2876 = dma.done [#allocation7], 512
    $region57: #{tpu_custom_call.1} parent=1 // pred_fallthru
      _
    // Predicated region
    $region58: #{tpu_custom_call.1} parent=1 // pred_check
      _
    $region59: #{tpu_custom_call.1} parent=1 // pred_check_branch
      %2878 = sbr.rel (0) target = $region61
    $region60: #{tpu_custom_call.1} parent=1 // pred_region
      %2879 = dma.done [#allocation12], 128
    $region61: #{tpu_custom_call.1} parent=1 // pred_fallthru
      _
    // Predicated region
    $region62: #{tpu_custom_call.1} parent=1 // pred_check
      _
    $region63: #{tpu_custom_call.1} parent=1 // pred_check_branch
      %2881 = sbr.rel (0) target = $region65
    $region64: #{tpu_custom_call.1} parent=1 // pred_region
      %2882 = dma.done [#allocation12], 128
    $region65: #{tpu_custom_call.1} parent=1 // pred_fallthru
      _
    %2883 = vsyncpa [#allocation6], 1
    %2884 = vsyncpa [#allocation9], 1
    %2885 = vsyncpa [#allocation7], 1
    %2886 = vsyncpa [#allocation12], 1

// kernel: tpu_custom_call.1
$region0: #{tpu_custom_call.1}
  #allocation0 [shape = 'u32[]', space=smem, size = 0x4, offset = 0x4, fixed_abs, tag = 'smem constant byte address 0x4 - core index']
  #allocation1 [shape = 'u32[144,128]{1,0:T(1,128)}', space=vmem, size = 0x12000, scoped, tag = 'internal scratch']
  #allocation2 [shape = 'f32[8,128]{1,0:T(8,128)}', space=vmem, size = 0x1000, scoped, tag = 'scratch operand']
  #allocation3 [shape = 'f32[8,128]{1,0:T(8,128)}', space=vmem, size = 0x1000, scoped, tag = 'scratch operand']
  #allocation4 [shape = 'f32[8,8,512]{2,1,0:T(8,128)}', space=vmem, size = 0x20000, scoped, tag = 'scratch operand']
  %s0 = inlined_call_operand.vmem [shape: bf16[64,32], index: 0, kind: input, shape index: {}]
  %s1 = inlined_call_operand.vmem [shape: f32[8,128], index: 1, kind: input, shape index: {}]
  %s2 = inlined_call_operand.vmem [shape: f32[8,128], index: 2, kind: input, shape index: {}]
  %s3 = inlined_call_operand.hbm [shape: bf16[32,512], index: 3, kind: input, shape index: {}]
  %s4 = inlined_call_operand.hbm [shape: bf16[128,512], index: 4, kind: input, shape index: {}]
  %s5 = inlined_call_operand.vmem [shape: f32[1,512], index: 5, kind: input, shape index: {}]
  %s6 = inlined_call_operand.hbm [shape: bf16[8,8,128], index: 6, kind: output, shape index: {0}]
  %s7 = inlined_call_operand.hbm [shape: f32[8,128], index: 7, kind: output, shape index: {1}]
  %s8 = inlined_call_operand.hbm [shape: f32[8,128], index: 8, kind: output, shape index: {2}]
  %9 = xla_tuple %s6, %s7, %s8
  %s10 = sld [smem:[#allocation0]]
  $region66: #{tpu_custom_call.1} parent=0
    _
  %s12 = ssub.s32 1, %s10
  %s13 = scalar_select 0, %s12, %s10
  $region1: #{tpu_custom_call.1} parent=0
    #allocation5 [shape = 'u8[32768]{0}', space=vmem, size = 0x8000, scoped, tag = 'input window, operand 3, single buffered']
    #allocation6 [shape = 's32[1]{0}', space=sflag, size = 0x4, scoped, tag = 'scoped memory for tpu_custom_call.1']
    #allocation7 [shape = 's32[1]{0}', space=sflag, size = 0x4, scoped, tag = 'scoped memory for tpu_custom_call.1']
    #allocation8 [shape = 'u8[131072]{0}', space=vmem, size = 0x20000, scoped, tag = 'input window, operand 4, single buffered']
    #allocation9 [shape = 's32[1]{0}', space=sflag, size = 0x4, scoped, tag = 'scoped memory for tpu_custom_call.1']
    #allocation10 [shape = 'u8[16384]{0}', space=vmem, size = 0x4000, scoped, tag = 'output window, operand 0, single buffered']
    #allocation11 [shape = 'u8[4096]{0}', space=vmem, size = 0x1000, scoped, tag = 'output window, operand 1, single buffered']
    #allocation12 [shape = 's32[1]{0}', space=sflag, size = 0x4, scoped, tag = 'scoped memory for tpu_custom_call.1']
    #allocation13 [shape = 'u8[4096]{0}', space=vmem, size = 0x1000, scoped, tag = 'output window, operand 2, single buffered']
    %14 = vsyncpa [#allocation6], 0
    %15 = vsyncpa [#allocation9], 0
    %16 = vsyncpa [#allocation7], 0
    %17 = vsyncpa [#allocation12], 0
    // Predicated region
    $region2: #{tpu_custom_call.1} parent=1 // pred_check
      _
    $region3: #{tpu_custom_call.1} parent=1 // pred_check_branch
      %19 = sbr.rel (0) target = $region5
    $region4: #{tpu_custom_call.1} parent=1 // pred_region
      _
    $region5: #{tpu_custom_call.1} parent=1 // pred_fallthru
      _
    // Predicated region
    $region6: #{tpu_custom_call.1} parent=1 // pred_check
      _
    $region7: #{tpu_custom_call.1} parent=1 // pred_check_branch
      %21 = sbr.rel (0) target = $region9
    $region8: #{tpu_custom_call.1} parent=1 // pred_region
      _
    $region9: #{tpu_custom_call.1} parent=1 // pred_fallthru
      _
    // Predicated region
    $region10: #{tpu_custom_call.1} parent=1 // pred_check
      _
    $region11: #{tpu_custom_call.1} parent=1 // pred_check_branch
      %23 = sbr.rel (0) target = $region13
    $region12: #{tpu_custom_call.1} parent=1 // pred_region
      _
    $region13: #{tpu_custom_call.1} parent=1 // pred_fallthru
      _
    // Predicated region
    $region14: #{tpu_custom_call.1} parent=1 // pred_check
      _
    $region15: #{tpu_custom_call.1} parent=1 // pred_check_branch
      %25 = sbr.rel (0) target = $region17
    $region16: #{tpu_custom_call.1} parent=1 // pred_region
      %s27 = ssub.s32 1024, 1024
      %28 = vsyncadd [#allocation6], %s27
      %s29 = sshll.u32 [#allocation5], 4
      %s30 = int_to_ptr.vmem [resolvable:$true] %s29
      %35 = dma.hbm_to_vmem [thread:$0]  %s3, 1024, %s30, [#allocation6], 256, 256, 16
    $region17: #{tpu_custom_call.1} parent=1 // pred_fallthru
      _
    // Predicated region
    $region18: #{tpu_custom_call.1} parent=1 // pred_check
      _
    $region19: #{tpu_custom_call.1} parent=1 // pred_check_branch
      %37 = sbr.rel (0) target = $region21
    $region20: #{tpu_custom_call.1} parent=1 // pred_region
      %s39 = ssub.s32 4096, 4096
      %40 = vsyncadd [#allocation9], %s39
      %s41 = sshll.u32 [#allocation8], 4
      %s42 = int_to_ptr.vmem [resolvable:$true] %s41
      %47 = dma.hbm_to_vmem [thread:$0]  %s4, 4096, %s42, [#allocation9], 256, 256, 16
    $region21: #{tpu_custom_call.1} parent=1 // pred_fallthru
      _
    // Predicated region
    $region22: #{tpu_custom_call.1} parent=1 // pred_check
      _
    $region23: #{tpu_custom_call.1} parent=1 // pred_check_branch
      %49 = sbr.rel (0) target = $region25
    $region24: #{tpu_custom_call.1} parent=1 // pred_region
      _
    $region25: #{tpu_custom_call.1} parent=1 // pred_fallthru
      _
    // Predicated region
    $region26: #{tpu_custom_call.1} parent=1 // pred_check
      _
    $region27: #{tpu_custom_call.1} parent=1 // pred_check_branch
      %51 = sbr.rel (0) target = $region29
    $region28: #{tpu_custom_call.1} parent=1 // pred_region
      %52 = dma.done [#allocation6], 1024
    $region29: #{tpu_custom_call.1} parent=1 // pred_fallthru
      _
    // Predicated region
    $region30: #{tpu_custom_call.1} parent=1 // pred_check
      _
    $region31: #{tpu_custom_call.1} parent=1 // pred_check_branch
      %54 = sbr.rel (0) target = $region33
    $region32: #{tpu_custom_call.1} parent=1 // pred_region
      %55 = dma.done [#allocation9], 4096
    $region33: #{tpu_custom_call.1} parent=1 // pred_fallthru
      _
    %p57 = scmp.eq.s32.totalorder 0, 0
    // Predicated region
    $region34: #{tpu_custom_call.1} parent=1 // pred_check
      %p58 = pneg %p57
    $region35: #{tpu_custom_call.1} parent=1 // pred_check_branch
      %60 = sbr.rel (%p58) target = $region37
    $region36: #{tpu_custom_call.1} parent=1 // pred_region
      %v61 = vld [vmem:[%s1] sm:$0xff]
      %62 = vst [vmem:[#allocation2] sm:$0xff] %v61
      %v63 = vld [vmem:[%s2] sm:$0xff]
      %64 = vst [vmem:[#allocation3] sm:$0xff] %v63
    $region37: #{tpu_custom_call.1} parent=1 // pred_fallthru
      _
    %v65 = vld [vmem:[%s0] sm:$0xf]
    %v66 = vld [vmem:[%s0 + $0x4] sm:$0xf]
    %v67 = vld [vmem:[%s0 + $0x8] sm:$0xf]
    %v68 = vld [vmem:[%s0 + $0xc] sm:$0xf]
    %v69 = vld [vmem:[%s0 + $0x10] sm:$0xf]
    %v70 = vld [vmem:[%s0 + $0x14] sm:$0xf]
    %v71 = vld [vmem:[%s0 + $0x18] sm:$0xf]
    %v72 = vld [vmem:[%s0 + $0x1c] sm:$0xf]
    %v73 = vld [vmem:[#allocation5] sm:$0xff]
    %v74 = vld [vmem:[#allocation5 + $0x8] sm:$0xff]
    %v75 = vld [vmem:[#allocation5 + $0x10] sm:$0xff]
    %v76 = vld [vmem:[#allocation5 + $0x18] sm:$0xff]
    %v77 = vld [vmem:[#allocation5 + $0x20] sm:$0xff]
    %v78 = vld [vmem:[#allocation5 + $0x28] sm:$0xff]
    %v79 = vld [vmem:[#allocation5 + $0x30] sm:$0xff]
    %v80 = vld [vmem:[#allocation5 + $0x38] sm:$0xff]
    %v81 = vld [vmem:[%s5] sm:$0xf]
    %v83 = vlaneseq
    %v84 = vshrl.u32 %v83, 7
    %v85 = vsub.s32 0, %v84
    %v86 = vrot.slane %v81, %v85
    %v87 = vlaneseq
    %v88 = vshrl.u32 %v87, 7
    %v89 = vsub.s32 1, %v88
    %v90 = vrot.slane %v81, %v89
    %v91 = vlaneseq
    %v92 = vshrl.u32 %v91, 7
    %v93 = vsub.s32 2, %v92
    %v94 = vrot.slane %v81, %v93
    %v95 = vlaneseq
    %v96 = vshrl.u32 %v95, 7
    %v97 = vsub.s32 3, %v96
    %v98 = vrot.slane %v81, %v97
    %v111 = vunpack.c.l.b16 %v65
    %v112 = vunpack.c.l.b16 %v66
    %v113 = vunpack.c.l.b16 %v67
    %v114 = vunpack.c.l.b16 %v68
    %v115 = vunpack.c.l.b16 %v69
    %v116 = vunpack.c.l.b16 %v70
    %v117 = vunpack.c.l.b16 %v71
    %v118 = vunpack.c.l.b16 %v72
    %v119 = vpack.c.b16 %v112, %v111
    %v120 = vpack.c.b16 %v114, %v113
    %v121 = vpack.c.b16 %v116, %v115
    %v122 = vpack.c.b16 %v118, %v117
    %v131 = vunpack.c.l.b16 %v73
    %v132 = vunpack.c.h.b16 %v73
    %v133 = vunpack.c.l.b16 %v74
    %v134 = vunpack.c.h.b16 %v74
    %v135 = vunpack.c.l.b16 %v75
    %v136 = vunpack.c.h.b16 %v75
    %v137 = vunpack.c.l.b16 %v76
    %v138 = vunpack.c.h.b16 %v76
    %v139 = vunpack.c.l.b16 %v77
    %v140 = vunpack.c.h.b16 %v77
    %v141 = vunpack.c.l.b16 %v78
    %v142 = vunpack.c.h.b16 %v78
    %v143 = vunpack.c.l.b16 %v79
    %v144 = vunpack.c.h.b16 %v79
    %v145 = vunpack.c.l.b16 %v80
    %v146 = vunpack.c.h.b16 %v80
    %v147 = vpack.c.b16 %v135, %v131
    %v148 = vpack.c.b16 %v136, %v132
    %v149 = vpack.c.b16 %v137, %v133
    %v150 = vpack.c.b16 %v138, %v134
    %v151 = vpack.c.b16 %v143, %v139
    %v152 = vpack.c.b16 %v144, %v140
    %v153 = vpack.c.b16 %v145, %v141
    %v154 = vpack.c.b16 %v146, %v142
    %vm163 = vcmask 261120
    %v165 = vsel %vm163, %v119, 0
    %v168 = vsel %vm163, %v120, 0
    %v171 = vsel %vm163, %v121, 0
    %v174 = vsel %vm163, %v122, 0
    %176 = vmatprep.subr.bf16.mxu0 %v148
    %177 = vmatpush1.bf16.msra.mxu0 %v147
    %178 = vmatprep.subr.bf16.mxu0 %v152
    %179 = vmatpush1.bf16.msra.mxu0 %v151
    %180 = vmatprep.subr.bf16.mxu0 0
    %181 = vmatpush1.bf16.msra.mxu0 0
    %182 = vmatprep.subr.bf16.mxu0 0
    %183 = vmatpush1.bf16.msra.mxu0 0
    %184 = vmatprep.subr.bf16.mxu0 0
    %185 = vmatpush1.bf16.msra.mxu0 0
    %186 = vmatprep.subr.bf16.mxu0 0
    %187 = vmatpush1.bf16.msra.mxu0 0
    %188 = vmatprep.subr.bf16.mxu0 0
    %189 = vmatpush1.bf16.msra.mxu0 0
    %190 = vmatprep.subr.bf16.mxu0 0
    %191 = vmatpush1.bf16.msra.mxu0 0
    %192 = vmatprep.subr.bf16.mxu0 0
    %193 = vmatpush1.bf16.msra.mxu0 0
    %194 = vmatprep.subr.bf16.mxu0 0
    %195 = vmatpush1.bf16.msra.mxu0 0
    %196 = vmatprep.subr.bf16.mxu0 0
    %197 = vmatpush1.bf16.msra.mxu0 0
    %198 = vmatprep.subr.bf16.mxu0 0
    %199 = vmatpush1.bf16.msra.mxu0 0
    %200 = vmatprep.subr.bf16.mxu0 0
    %201 = vmatpush1.bf16.msra.mxu0 0
    %202 = vmatprep.subr.bf16.mxu0 0
    %203 = vmatpush1.bf16.msra.mxu0 0
    %204 = vmatprep.subr.bf16.mxu0 0
    %205 = vmatpush1.bf16.msra.mxu0 0
    %206 = vmatprep.subr.bf16.mxu0 0
    %207 = vmatpush1.bf16.msra.mxu0 0
    %208 = vmatprep.mubr.bf16.mxu0 0
    %209 = vmatmul.mubr.bf16.gmra.mrb[0].mxu0 %v165
    %v210 = vpop.f32.mrb[0].mxu0
    %v211 = vadd.f32 %v86, %v210
    %v212 = vpop.f32.mrb[0].mxu0
    %v213 = vadd.f32 %v90, %v212
    %v214 = vpop.f32.mrb[0].mxu0
    %v215 = vadd.f32 %v86, %v214
    %v216 = vpop.f32.mrb[0].mxu0
    %v217 = vadd.f32 %v90, %v216
    %218 = vmatprep.mubr.bf16.mxu0 0
    %219 = vmatmul.mubr.bf16.gmra.mrb[0].mxu0 %v168
    %v220 = vpop.f32.mrb[0].mxu0
    %v221 = vadd.f32 %v86, %v220
    %v222 = vpop.f32.mrb[0].mxu0
    %v223 = vadd.f32 %v90, %v222
    %v224 = vpop.f32.mrb[0].mxu0
    %v225 = vadd.f32 %v86, %v224
    %v226 = vpop.f32.mrb[0].mxu0
    %v227 = vadd.f32 %v90, %v226
    %228 = vmatprep.mubr.bf16.mxu0 0
    %229 = vmatmul.mubr.bf16.gmra.mrb[0].mxu0 %v171
    %v230 = vpop.f32.mrb[0].mxu0
    %v231 = vadd.f32 %v86, %v230
    %v232 = vpop.f32.mrb[0].mxu0
    %v233 = vadd.f32 %v90, %v232
    %v234 = vpop.f32.mrb[0].mxu0
    %v235 = vadd.f32 %v86, %v234
    %v236 = vpop.f32.mrb[0].mxu0
    %v237 = vadd.f32 %v90, %v236
    %238 = vmatprep.mubr.bf16.mxu0 0
    %239 = vmatmul.mubr.bf16.gmra.mrb[0].mxu0 %v174
    %v240 = vpop.f32.mrb[0].mxu0
    %v241 = vadd.f32 %v86, %v240
    %v242 = vpop.f32.mrb[0].mxu0
    %v243 = vadd.f32 %v90, %v242
    %v244 = vpop.f32.mrb[0].mxu0
    %v245 = vadd.f32 %v86, %v244
    %v246 = vpop.f32.mrb[0].mxu0
    %v247 = vadd.f32 %v90, %v246
    %248 = vdwg.mxu0
    %249 = vmatprep.subr.bf16.mxu0 %v150
    %250 = vmatpush1.bf16.msra.mxu0 %v149
    %251 = vmatprep.subr.bf16.mxu0 %v154
    %252 = vmatpush1.bf16.msra.mxu0 %v153
    %253 = vmatprep.subr.bf16.mxu0 0
    %254 = vmatpush1.bf16.msra.mxu0 0
    %255 = vmatprep.subr.bf16.mxu0 0
    %256 = vmatpush1.bf16.msra.mxu0 0
    %257 = vmatprep.subr.bf16.mxu0 0
    %258 = vmatpush1.bf16.msra.mxu0 0
    %259 = vmatprep.subr.bf16.mxu0 0
    %260 = vmatpush1.bf16.msra.mxu0 0
    %261 = vmatprep.subr.bf16.mxu0 0
    %262 = vmatpush1.bf16.msra.mxu0 0
    %263 = vmatprep.subr.bf16.mxu0 0
    %264 = vmatpush1.bf16.msra.mxu0 0
    %265 = vmatprep.subr.bf16.mxu0 0
    %266 = vmatpush1.bf16.msra.mxu0 0
    %267 = vmatprep.subr.bf16.mxu0 0
    %268 = vmatpush1.bf16.msra.mxu0 0
    %269 = vmatprep.subr.bf16.mxu0 0
    %270 = vmatpush1.bf16.msra.mxu0 0
    %271 = vmatprep.subr.bf16.mxu0 0
    %272 = vmatpush1.bf16.msra.mxu0 0
    %273 = vmatprep.subr.bf16.mxu0 0
    %274 = vmatpush1.bf16.msra.mxu0 0
    %275 = vmatprep.subr.bf16.mxu0 0
    %276 = vmatpush1.bf16.msra.mxu0 0
    %277 = vmatprep.subr.bf16.mxu0 0
    %278 = vmatpush1.bf16.msra.mxu0 0
    %279 = vmatprep.subr.bf16.mxu0 0
    %280 = vmatpush1.bf16.msra.mxu0 0
    %281 = vmatprep.mubr.bf16.mxu0 0
    %282 = vmatmul.mubr.bf16.gmra.mrb[0].mxu0 %v165
    %v283 = vpop.f32.mrb[0].mxu0
    %v284 = vadd.f32 %v94, %v283
    %v285 = vpop.f32.mrb[0].mxu0
    %v286 = vadd.f32 %v98, %v285
    %v287 = vpop.f32.mrb[0].mxu0
    %v288 = vadd.f32 %v94, %v287
    %v289 = vpop.f32.mrb[0].mxu0
    %v290 = vadd.f32 %v98, %v289
    %291 = vmatprep.mubr.bf16.mxu0 0
    %292 = vmatmul.mubr.bf16.gmra.mrb[0].mxu0 %v168
    %v293 = vpop.f32.mrb[0].mxu0
    %v294 = vadd.f32 %v94, %v293
    %v295 = vpop.f32.mrb[0].mxu0
    %v296 = vadd.f32 %v98, %v295
    %v297 = vpop.f32.mrb[0].mxu0
    %v298 = vadd.f32 %v94, %v297
    %v299 = vpop.f32.mrb[0].mxu0
    %v300 = vadd.f32 %v98, %v299
    %301 = vmatprep.mubr.bf16.mxu0 0
    %302 = vmatmul.mubr.bf16.gmra.mrb[0].mxu0 %v171
    %v303 = vpop.f32.mrb[0].mxu0
    %v304 = vadd.f32 %v94, %v303
    %v305 = vpop.f32.mrb[0].mxu0
    %v306 = vadd.f32 %v98, %v305
    %v307 = vpop.f32.mrb[0].mxu0
    %v308 = vadd.f32 %v94, %v307
    %v309 = vpop.f32.mrb[0].mxu0
    %v310 = vadd.f32 %v98, %v309
    %311 = vmatprep.mubr.bf16.mxu0 0
    %312 = vmatmul.mubr.bf16.gmra.mrb[0].mxu0 %v174
    %v313 = vpop.f32.mrb[0].mxu0
    %v314 = vadd.f32 %v94, %v313
    %v315 = vpop.f32.mrb[0].mxu0
    %v316 = vadd.f32 %v98, %v315
    %v317 = vpop.f32.mrb[0].mxu0
    %v318 = vadd.f32 %v94, %v317
    %v319 = vpop.f32.mrb[0].mxu0
    %v320 = vadd.f32 %v98, %v319
    %321 = vdwg.mxu0
    %322 = vst [vmem:[#allocation4] sm:$0xff] %v211
    %323 = vst [vmem:[#allocation4 + $0x8] sm:$0xff] %v213
    %324 = vst [vmem:[#allocation4 + $0x10] sm:$0xff] %v284
    %325 = vst [vmem:[#allocation4 + $0x18] sm:$0xff] %v286
    %326 = vst [vmem:[#allocation4 + $0x20] sm:$0xff] %v215
    %327 = vst [vmem:[#allocation4 + $0x28] sm:$0xff] %v217
    %328 = vst [vmem:[#allocation4 + $0x30] sm:$0xff] %v288
    %329 = vst [vmem:[#allocation4 + $0x38] sm:$0xff] %v290
    %330 = vst [vmem:[#allocation4 + $0x40] sm:$0xff] %v221
    %331 = vst [vmem:[#allocation4 + $0x48] sm:$0xff] %v223
    %332 = vst [vmem:[#allocation4 + $0x50] sm:$0xff] %v294
    %333 = vst [vmem:[#allocation4 + $0x58] sm:$0xff] %v296
    %334 = vst [vmem:[#allocation4 + $0x60] sm:$0xff] %v225
    %335 = vst [vmem:[#allocation4 + $0x68] sm:$0xff] %v227
    %336 = vst [vmem:[#allocation4 + $0x70] sm:$0xff] %v298
    %337 = vst [vmem:[#allocation4 + $0x78] sm:$0xff] %v300
    %338 = vst [vmem:[#allocation4 + $0x80] sm:$0xff] %v231
    %339 = vst [vmem:[#allocation4 + $0x88] sm:$0xff] %v233
    %340 = vst [vmem:[#allocation4 + $0x90] sm:$0xff] %v304
    %341 = vst [vmem:[#allocation4 + $0x98] sm:$0xff] %v306
    %342 = vst [vmem:[#allocation4 + $0xa0] sm:$0xff] %v235
    %343 = vst [vmem:[#allocation4 + $0xa8] sm:$0xff] %v237
    %344 = vst [vmem:[#allocation4 + $0xb0] sm:$0xff] %v308
    %345 = vst [vmem:[#allocation4 + $0xb8] sm:$0xff] %v310
    %346 = vst [vmem:[#allocation4 + $0xc0] sm:$0xff] %v241
    %347 = vst [vmem:[#allocation4 + $0xc8] sm:$0xff] %v243
    %348 = vst [vmem:[#allocation4 + $0xd0] sm:$0xff] %v314
    %349 = vst [vmem:[#allocation4 + $0xd8] sm:$0xff] %v316
    %350 = vst [vmem:[#allocation4 + $0xe0] sm:$0xff] %v245
    %351 = vst [vmem:[#allocation4 + $0xe8] sm:$0xff] %v247
    %352 = vst [vmem:[#allocation4 + $0xf0] sm:$0xff] %v318
    %353 = vst [vmem:[#allocation4 + $0xf8] sm:$0xff] %v320
    %v354 = vld [vmem:[#allocation2] sm:$0xff]
    %v355 = vld [vmem:[#allocation3] sm:$0xff]
    %v356 = vld [vmem:[#allocation4] sm:$0xff]
    %v357 = vld [vmem:[#allocation4 + $0x8] sm:$0xff]
    %v358 = vld [vmem:[#allocation4 + $0x10] sm:$0xff]
    %v359 = vld [vmem:[#allocation4 + $0x18] sm:$0xff]
    %v360 = vpack.c.bf16 %v354, %v354
    %v361 = vld [vmem:[#allocation8] sm:$0xff]
    %v362 = vld [vmem:[#allocation8 + $0x8] sm:$0xff]
    %v363 = vld [vmem:[#allocation8 + $0x10] sm:$0xff]
    %v364 = vld [vmem:[#allocation8 + $0x18] sm:$0xff]
    %v365 = vld [vmem:[#allocation8 + $0x20] sm:$0xff]
    %v366 = vld [vmem:[#allocation8 + $0x28] sm:$0xff]
    %v367 = vld [vmem:[#allocation8 + $0x30] sm:$0xff]
    %v368 = vld [vmem:[#allocation8 + $0x38] sm:$0xff]
    %v369 = vld [vmem:[#allocation8 + $0x40] sm:$0xff]
    %v370 = vld [vmem:[#allocation8 + $0x48] sm:$0xff]
    %v371 = vld [vmem:[#allocation8 + $0x50] sm:$0xff]
    %v372 = vld [vmem:[#allocation8 + $0x58] sm:$0xff]
    %v373 = vld [vmem:[#allocation8 + $0x60] sm:$0xff]
    %v374 = vld [vmem:[#allocation8 + $0x68] sm:$0xff]
    %v375 = vld [vmem:[#allocation8 + $0x70] sm:$0xff]
    %v376 = vld [vmem:[#allocation8 + $0x78] sm:$0xff]
    %v377 = vld [vmem:[#allocation8 + $0x80] sm:$0xff]
    %v378 = vld [vmem:[#allocation8 + $0x88] sm:$0xff]
    %v379 = vld [vmem:[#allocation8 + $0x90] sm:$0xff]
    %v380 = vld [vmem:[#allocation8 + $0x98] sm:$0xff]
    %v381 = vld [vmem:[#allocation8 + $0xa0] sm:$0xff]
    %v382 = vld [vmem:[#allocation8 + $0xa8] sm:$0xff]
    %v383 = vld [vmem:[#allocation8 + $0xb0] sm:$0xff]
    %v384 = vld [vmem:[#allocation8 + $0xb8] sm:$0xff]
    %v385 = vld [vmem:[#allocation8 + $0xc0] sm:$0xff]
    %v386 = vld [vmem:[#allocation8 + $0xc8] sm:$0xff]
    %v387 = vld [vmem:[#allocation8 + $0xd0] sm:$0xff]
    %v388 = vld [vmem:[#allocation8 + $0xd8] sm:$0xff]
    %v389 = vld [vmem:[#allocation8 + $0xe0] sm:$0xff]
    %v390 = vld [vmem:[#allocation8 + $0xe8] sm:$0xff]
    %v391 = vld [vmem:[#allocation8 + $0xf0] sm:$0xff]
    %v392 = vld [vmem:[#allocation8 + $0xf8] sm:$0xff]
    %v425 = vunpack.c.l.b16 %v361
    %v426 = vunpack.c.h.b16 %v361
    %v427 = vunpack.c.l.b16 %v362
    %v428 = vunpack.c.h.b16 %v362
    %v429 = vunpack.c.l.b16 %v363
    %v430 = vunpack.c.h.b16 %v363
    %v431 = vunpack.c.l.b16 %v364
    %v432 = vunpack.c.h.b16 %v364
    %v433 = vunpack.c.l.b16 %v365
    %v434 = vunpack.c.h.b16 %v365
    %v435 = vunpack.c.l.b16 %v366
    %v436 = vunpack.c.h.b16 %v366
    %v437 = vunpack.c.l.b16 %v367
    %v438 = vunpack.c.h.b16 %v367
    %v439 = vunpack.c.l.b16 %v368
    %v440 = vunpack.c.h.b16 %v368
    %v441 = vunpack.c.l.b16 %v369
    %v442 = vunpack.c.h.b16 %v369
    %v443 = vunpack.c.l.b16 %v370
    %v444 = vunpack.c.h.b16 %v370
    %v445 = vunpack.c.l.b16 %v371
    %v446 = vunpack.c.h.b16 %v371
    %v447 = vunpack.c.l.b16 %v372
    %v448 = vunpack.c.h.b16 %v372
    %v449 = vunpack.c.l.b16 %v373
    %v450 = vunpack.c.h.b16 %v373
    %v451 = vunpack.c.l.b16 %v374
    %v452 = vunpack.c.h.b16 %v374
    %v453 = vunpack.c.l.b16 %v375
    %v454 = vunpack.c.h.b16 %v375
    %v455 = vunpack.c.l.b16 %v376
    %v456 = vunpack.c.h.b16 %v376
    %v457 = vunpack.c.l.b16 %v377
    %v458 = vunpack.c.h.b16 %v377
    %v459 = vunpack.c.l.b16 %v378
    %v460 = vunpack.c.h.b16 %v378
    %v461 = vunpack.c.l.b16 %v379
    %v462 = vunpack.c.h.b16 %v379
    %v463 = vunpack.c.l.b16 %v380
    %v464 = vunpack.c.h.b16 %v380
    %v465 = vunpack.c.l.b16 %v381
    %v466 = vunpack.c.h.b16 %v381
    %v467 = vunpack.c.l.b16 %v382
    %v468 = vunpack.c.h.b16 %v382
    %v469 = vunpack.c.l.b16 %v383
    %v470 = vunpack.c.h.b16 %v383
    %v471 = vunpack.c.l.b16 %v384
    %v472 = vunpack.c.h.b16 %v384
    %v473 = vunpack.c.l.b16 %v385
    %v474 = vunpack.c.h.b16 %v385
    %v475 = vunpack.c.l.b16 %v386
    %v476 = vunpack.c.h.b16 %v386
    %v477 = vunpack.c.l.b16 %v387
    %v478 = vunpack.c.h.b16 %v387
    %v479 = vunpack.c.l.b16 %v388
    %v480 = vunpack.c.h.b16 %v388
    %v481 = vunpack.c.l.b16 %v389
    %v482 = vunpack.c.h.b16 %v389
    %v483 = vunpack.c.l.b16 %v390
    %v484 = vunpack.c.h.b16 %v390
    %v485 = vunpack.c.l.b16 %v391
    %v486 = vunpack.c.h.b16 %v391
    %v487 = vunpack.c.l.b16 %v392
    %v488 = vunpack.c.h.b16 %v392
    %v489 = vpack.c.b16 %v429, %v425
    %v490 = vpack.c.b16 %v430, %v426
    %v491 = vpack.c.b16 %v431, %v427
    %v492 = vpack.c.b16 %v432, %v428
    %v493 = vpack.c.b16 %v437, %v433
    %v494 = vpack.c.b16 %v438, %v434
    %v495 = vpack.c.b16 %v439, %v435
    %v496 = vpack.c.b16 %v440, %v436
    %v497 = vpack.c.b16 %v445, %v441
    %v498 = vpack.c.b16 %v446, %v442
    %v499 = vpack.c.b16 %v447, %v443
    %v500 = vpack.c.b16 %v448, %v444
    %v501 = vpack.c.b16 %v453, %v449
    %v502 = vpack.c.b16 %v454, %v450
    %v503 = vpack.c.b16 %v455, %v451
    %v504 = vpack.c.b16 %v456, %v452
    %v505 = vpack.c.b16 %v461, %v457
    %v506 = vpack.c.b16 %v462, %v458
    %v507 = vpack.c.b16 %v463, %v459
    %v508 = vpack.c.b16 %v464, %v460
    %v509 = vpack.c.b16 %v469, %v465
    %v510 = vpack.c.b16 %v470, %v466
    %v511 = vpack.c.b16 %v471, %v467
    %v512 = vpack.c.b16 %v472, %v468
    %v513 = vpack.c.b16 %v477, %v473
    %v514 = vpack.c.b16 %v478, %v474
    %v515 = vpack.c.b16 %v479, %v475
    %v516 = vpack.c.b16 %v480, %v476
    %v517 = vpack.c.b16 %v485, %v481
    %v518 = vpack.c.b16 %v486, %v482
    %v519 = vpack.c.b16 %v487, %v483
    %v520 = vpack.c.b16 %v488, %v484
    %553 = vmatprep.subr.bf16.mxu0 %v490
    %554 = vmatpush1.bf16.msra.mxu0 %v489
    %555 = vmatprep.subr.bf16.mxu0 %v494
    %556 = vmatpush1.bf16.msra.mxu0 %v493
    %557 = vmatprep.subr.bf16.mxu0 %v498
    %558 = vmatpush1.bf16.msra.mxu0 %v497
    %559 = vmatprep.subr.bf16.mxu0 %v502
    %560 = vmatpush1.bf16.msra.mxu0 %v501
    %561 = vmatprep.subr.bf16.mxu0 %v506
    %562 = vmatpush1.bf16.msra.mxu0 %v505
    %563 = vmatprep.subr.bf16.mxu0 %v510
    %564 = vmatpush1.bf16.msra.mxu0 %v509
    %565 = vmatprep.subr.bf16.mxu0 %v514
    %566 = vmatpush1.bf16.msra.mxu0 %v513
    %567 = vmatprep.subr.bf16.mxu0 %v518
    %568 = vmatpush1.bf16.msra.mxu0 %v517
    %569 = vmatprep.subr.bf16.mxu0 0
    %570 = vmatpush1.bf16.msra.mxu0 0
    %571 = vmatprep.subr.bf16.mxu0 0
    %572 = vmatpush1.bf16.msra.mxu0 0
    %573 = vmatprep.subr.bf16.mxu0 0
    %574 = vmatpush1.bf16.msra.mxu0 0
    %575 = vmatprep.subr.bf16.mxu0 0
    %576 = vmatpush1.bf16.msra.mxu0 0
    %577 = vmatprep.subr.bf16.mxu0 0
    %578 = vmatpush1.bf16.msra.mxu0 0
    %579 = vmatprep.subr.bf16.mxu0 0
    %580 = vmatpush1.bf16.msra.mxu0 0
    %581 = vmatprep.subr.bf16.mxu0 0
    %582 = vmatpush1.bf16.msra.mxu0 0
    %583 = vmatprep.subr.bf16.mxu0 0
    %584 = vmatpush1.bf16.msra.mxu0 0
    %585 = vmatprep.mubr.bf16.mxu0 0
    %586 = vmatmul.mubr.bf16.gmra.mrb[0].mxu0 %v360
    %v587 = vpop.f32.mrb[0].mxu0
    %v588 = vadd.f32 0.0, %v587
    %v589 = vpop.f32.mrb[0].mxu0
    %v590 = vadd.f32 0.0, %v589
    %v591 = vpop.f32.mrb[0].mxu0
    %v592 = vpop.f32.mrb[0].mxu0
    %593 = vdwg.mxu0
    %594 = vmatprep.subr.bf16.mxu0 %v492
    %595 = vmatpush1.bf16.msra.mxu0 %v491
    %596 = vmatprep.subr.bf16.mxu0 %v496
    %597 = vmatpush1.bf16.msra.mxu0 %v495
    %598 = vmatprep.subr.bf16.mxu0 %v500
    %599 = vmatpush1.bf16.msra.mxu0 %v499
    %600 = vmatprep.subr.bf16.mxu0 %v504
    %601 = vmatpush1.bf16.msra.mxu0 %v503
    %602 = vmatprep.subr.bf16.mxu0 %v508
    %603 = vmatpush1.bf16.msra.mxu0 %v507
    %604 = vmatprep.subr.bf16.mxu0 %v512
    %605 = vmatpush1.bf16.msra.mxu0 %v511
    %606 = vmatprep.subr.bf16.mxu0 %v516
    %607 = vmatpush1.bf16.msra.mxu0 %v515
    %608 = vmatprep.subr.bf16.mxu0 %v520
    %609 = vmatpush1.bf16.msra.mxu0 %v519
    %610 = vmatprep.subr.bf16.mxu0 0
    %611 = vmatpush1.bf16.msra.mxu0 0
    %612 = vmatprep.subr.bf16.mxu0 0
    %613 = vmatpush1.bf16.msra.mxu0 0
    %614 = vmatprep.subr.bf16.mxu0 0
    %615 = vmatpush1.bf16.msra.mxu0 0
    %616 = vmatprep.subr.bf16.mxu0 0
    %617 = vmatpush1.bf16.msra.mxu0 0
    %618 = vmatprep.subr.bf16.mxu0 0
    %619 = vmatpush1.bf16.msra.mxu0 0
    %620 = vmatprep.subr.bf16.mxu0 0
    %621 = vmatpush1.bf16.msra.mxu0 0
    %622 = vmatprep.subr.bf16.mxu0 0
    %623 = vmatpush1.bf16.msra.mxu0 0
    %624 = vmatprep.subr.bf16.mxu0 0
    %625 = vmatpush1.bf16.msra.mxu0 0
    %626 = vmatprep.mubr.bf16.mxu0 0
    %627 = vmatmul.mubr.bf16.gmra.mrb[0].mxu0 %v360
    %v628 = vpop.f32.mrb[0].mxu0
    %v629 = vadd.f32 0.0, %v628
    %v630 = vpop.f32.mrb[0].mxu0
    %v631 = vadd.f32 0.0, %v630
    %v632 = vpop.f32.mrb[0].mxu0
    %v633 = vpop.f32.mrb[0].mxu0
    %634 = vdwg.mxu0
    %v635 = vadd.f32 %v356, %v588
    %v636 = vadd.f32 %v357, %v590
    %v637 = vadd.f32 %v358, %v629
    %v638 = vadd.f32 %v359, %v631
    %v639 = vxor.u32 %v635, 2147483648
    %v640 = vmul.f32 %v639, 1.442695
    %v641 = vpow.pop %v640
    %v642 = vadd.f32 %v641, 1.0
    %v643 = vrcp.pop %v642
    %v644 = vmul.f32 1.0, %v643
    %v645 = vxor.u32 %v636, 2147483648
    %v646 = vmul.f32 %v645, 1.442695
    %v647 = vpow.pop %v646
    %v648 = vadd.f32 %v647, 1.0
    %v649 = vrcp.pop %v648
    %v650 = vmul.f32 1.0, %v649
    %v651 = vtanh.pop %v637
    %v652 = vxor.u32 %v638, 2147483648
    %v653 = vmul.f32 %v652, 1.442695
    %v654 = vpow.pop %v653
    %v655 = vadd.f32 %v654, 1.0
    %v656 = vrcp.pop %v655
    %v657 = vmul.f32 1.0, %v656
    %v658 = vmul.f32 %v650, %v355
    %v659 = vmul.f32 %v644, %v651
    %v660 = vadd.f32 %v658, %v659
    %v661 = vtanh.pop %v660
    %v662 = vmul.f32 %v657, %v661
    %v663 = vpack.c.bf16 %v662, %v662
    %664 = vst [vmem:[#allocation10] sm:$0xf] %v663
    %s665 = scalar_lea.vmem [#allocation4], 32
    %v666 = vld [vmem:[%s665] sm:$0xff]
    %v667 = vld [vmem:[%s665 + $0x8] sm:$0xff]
    %v668 = vld [vmem:[%s665 + $0x10] sm:$0xff]
    %v669 = vld [vmem:[%s665 + $0x18] sm:$0xff]
    %v670 = vld [vmem:[#allocation8] sm:$0xff]
    %v671 = vld [vmem:[#allocation8 + $0x8] sm:$0xff]
    %v672 = vld [vmem:[#allocation8 + $0x10] sm:$0xff]
    %v673 = vld [vmem:[#allocation8 + $0x18] sm:$0xff]
    %v674 = vld [vmem:[#allocation8 + $0x20] sm:$0xff]
    %v675 = vld [vmem:[#allocation8 + $0x28] sm:$0xff]
    %v676 = vld [vmem:[#allocation8 + $0x30] sm:$0xff]
    %v677 = vld [vmem:[#allocation8 + $0x38] sm:$0xff]
    %v678 = vld [vmem:[#allocation8 + $0x40] sm:$0xff]
    %v679 = vld [vmem:[#allocation8 + $0x48] sm:$0xff]
    %v680 = vld [vmem:[#allocation8 + $0x50] sm:$0xff]
    %v681 = vld [vmem:[#allocation8 + $0x58] sm:$0xff]
    %v682 = vld [vmem:[#allocation8 + $0x60] sm:$0xff]
    %v683 = vld [vmem:[#allocation8 + $0x68] sm:$0xff]
    %v684 = vld [vmem:[#allocation8 + $0x70] sm:$0xff]
    %v685 = vld [vmem:[#allocation8 + $0x78] sm:$0xff]
    %v686 = vld [vmem:[#allocation8 + $0x80] sm:$0xff]
    %v687 = vld [vmem:[#allocation8 + $0x88] sm:$0xff]
    %v688 = vld [vmem:[#allocation8 + $0x90] sm:$0xff]
    %v689 = vld [vmem:[#allocation8 + $0x98] sm:$0xff]
    %v690 = vld [vmem:[#allocation8 + $0xa0] sm:$0xff]
    %v691 = vld [vmem:[#allocation8 + $0xa8] sm:$0xff]
    %v692 = vld [vmem:[#allocation8 + $0xb0] sm:$0xff]
    %v693 = vld [vmem:[#allocation8 + $0xb8] sm:$0xff]
    %v694 = vld [vmem:[#allocation8 + $0xc0] sm:$0xff]
    %v695 = vld [vmem:[#allocation8 + $0xc8] sm:$0xff]
    %v696 = vld [vmem:[#allocation8 + $0xd0] sm:$0xff]
    %v697 = vld [vmem:[#allocation8 + $0xd8] sm:$0xff]
    %v698 = vld [vmem:[#allocation8 + $0xe0] sm:$0xff]
    %v699 = vld [vmem:[#allocation8 + $0xe8] sm:$0xff]
    %v700 = vld [vmem:[#allocation8 + $0xf0] sm:$0xff]
    %v701 = vld [vmem:[#allocation8 + $0xf8] sm:$0xff]
    %v734 = vunpack.c.l.b16 %v670
    %v735 = vunpack.c.h.b16 %v670
    %v736 = vunpack.c.l.b16 %v671
    %v737 = vunpack.c.h.b16 %v671
    %v738 = vunpack.c.l.b16 %v672
    %v739 = vunpack.c.h.b16 %v672
    %v740 = vunpack.c.l.b16 %v673
    %v741 = vunpack.c.h.b16 %v673
    %v742 = vunpack.c.l.b16 %v674
    %v743 = vunpack.c.h.b16 %v674
    %v744 = vunpack.c.l.b16 %v675
    %v745 = vunpack.c.h.b16 %v675
    %v746 = vunpack.c.l.b16 %v676
    %v747 = vunpack.c.h.b16 %v676
    %v748 = vunpack.c.l.b16 %v677
    %v749 = vunpack.c.h.b16 %v677
    %v750 = vunpack.c.l.b16 %v678
    %v751 = vunpack.c.h.b16 %v678
    %v752 = vunpack.c.l.b16 %v679
    %v753 = vunpack.c.h.b16 %v679
    %v754 = vunpack.c.l.b16 %v680
    %v755 = vunpack.c.h.b16 %v680
    %v756 = vunpack.c.l.b16 %v681
    %v757 = vunpack.c.h.b16 %v681
    %v758 = vunpack.c.l.b16 %v682
    %v759 = vunpack.c.h.b16 %v682
    %v760 = vunpack.c.l.b16 %v683
    %v761 = vunpack.c.h.b16 %v683
    %v762 = vunpack.c.l.b16 %v684
    %v763 = vunpack.c.h.b16 %v684
    %v764 = vunpack.c.l.b16 %v685
    %v765 = vunpack.c.h.b16 %v685
    %v766 = vunpack.c.l.b16 %v686
    %v767 = vunpack.c.h.b16 %v686
    %v768 = vunpack.c.l.b16 %v687
    %v769 = vunpack.c.h.b16 %v687
    %v770 = vunpack.c.l.b16 %v688
    %v771 = vunpack.c.h.b16 %v688
    %v772 = vunpack.c.l.b16 %v689
    %v773 = vunpack.c.h.b16 %v689
    %v774 = vunpack.c.l.b16 %v690
    %v775 = vunpack.c.h.b16 %v690
    %v776 = vunpack.c.l.b16 %v691
    %v777 = vunpack.c.h.b16 %v691
    %v778 = vunpack.c.l.b16 %v692
    %v779 = vunpack.c.h.b16 %v692
    %v780 = vunpack.c.l.b16 %v693
    %v781 = vunpack.c.h.b16 %v693
    %v782 = vunpack.c.l.b16 %v694
    %v783 = vunpack.c.h.b16 %v694
    %v784 = vunpack.c.l.b16 %v695
    %v785 = vunpack.c.h.b16 %v695
    %v786 = vunpack.c.l.b16 %v696
    %v787 = vunpack.c.h.b16 %v696
    %v788 = vunpack.c.l.b16 %v697
    %v789 = vunpack.c.h.b16 %v697
    %v790 = vunpack.c.l.b16 %v698
    %v791 = vunpack.c.h.b16 %v698
    %v792 = vunpack.c.l.b16 %v699
    %v793 = vunpack.c.h.b16 %v699
    %v794 = vunpack.c.l.b16 %v700
    %v795 = vunpack.c.h.b16 %v700
    %v796 = vunpack.c.l.b16 %v701
    %v797 = vunpack.c.h.b16 %v701
    %v798 = vpack.c.b16 %v738, %v734
    %v799 = vpack.c.b16 %v739, %v735
    %v800 = vpack.c.b16 %v740, %v736
    %v801 = vpack.c.b16 %v741, %v737
    %v802 = vpack.c.b16 %v746, %v742
    %v803 = vpack.c.b16 %v747, %v743
    %v804 = vpack.c.b16 %v748, %v744
    %v805 = vpack.c.b16 %v749, %v745
    %v806 = vpack.c.b16 %v754, %v750
    %v807 = vpack.c.b16 %v755, %v751
    %v808 = vpack.c.b16 %v756, %v752
    %v809 = vpack.c.b16 %v757, %v753
    %v810 = vpack.c.b16 %v762, %v758
    %v811 = vpack.c.b16 %v763, %v759
    %v812 = vpack.c.b16 %v764, %v760
    %v813 = vpack.c.b16 %v765, %v761
    %v814 = vpack.c.b16 %v770, %v766
    %v815 = vpack.c.b16 %v771, %v767
    %v816 = vpack.c.b16 %v772, %v768
    %v817 = vpack.c.b16 %v773, %v769
    %v818 = vpack.c.b16 %v778, %v774
    %v819 = vpack.c.b16 %v779, %v775
    %v820 = vpack.c.b16 %v780, %v776
    %v821 = vpack.c.b16 %v781, %v777
    %v822 = vpack.c.b16 %v786, %v782
    %v823 = vpack.c.b16 %v787, %v783
    %v824 = vpack.c.b16 %v788, %v784
    %v825 = vpack.c.b16 %v789, %v785
    %v826 = vpack.c.b16 %v794, %v790
    %v827 = vpack.c.b16 %v795, %v791
    %v828 = vpack.c.b16 %v796, %v792
    %v829 = vpack.c.b16 %v797, %v793
    %862 = vmatprep.subr.bf16.mxu0 %v799
    %863 = vmatpush1.bf16.msra.mxu0 %v798
    %864 = vmatprep.subr.bf16.mxu0 %v803
    %865 = vmatpush1.bf16.msra.mxu0 %v802
    %866 = vmatprep.subr.bf16.mxu0 %v807
    %867 = vmatpush1.bf16.msra.mxu0 %v806
    %868 = vmatprep.subr.bf16.mxu0 %v811
    %869 = vmatpush1.bf16.msra.mxu0 %v810
    %870 = vmatprep.subr.bf16.mxu0 %v815
    %871 = vmatpush1.bf16.msra.mxu0 %v814
    %872 = vmatprep.subr.bf16.mxu0 %v819
    %873 = vmatpush1.bf16.msra.mxu0 %v818
    %874 = vmatprep.subr.bf16.mxu0 %v823
    %875 = vmatpush1.bf16.msra.mxu0 %v822
    %876 = vmatprep.subr.bf16.mxu0 %v827
    %877 = vmatpush1.bf16.msra.mxu0 %v826
    %878 = vmatprep.subr.bf16.mxu0 0
    %879 = vmatpush1.bf16.msra.mxu0 0
    %880 = vmatprep.subr.bf16.mxu0 0
    %881 = vmatpush1.bf16.msra.mxu0 0
    %882 = vmatprep.subr.bf16.mxu0 0
    %883 = vmatpush1.bf16.msra.mxu0 0
    %884 = vmatprep.subr.bf16.mxu0 0
    %885 = vmatpush1.bf16.msra.mxu0 0
    %886 = vmatprep.subr.bf16.mxu0 0
    %887 = vmatpush1.bf16.msra.mxu0 0
    %888 = vmatprep.subr.bf16.mxu0 0
    %889 = vmatpush1.bf16.msra.mxu0 0
    %890 = vmatprep.subr.bf16.mxu0 0
    %891 = vmatpush1.bf16.msra.mxu0 0
    %892 = vmatprep.subr.bf16.mxu0 0
    %893 = vmatpush1.bf16.msra.mxu0 0
    %894 = vmatprep.mubr.bf16.mxu0 0
    %895 = vmatmul.mubr.bf16.gmra.mrb[0].mxu0 %v663
    %v896 = vpop.f32.mrb[0].mxu0
    %v897 = vadd.f32 0.0, %v896
    %v898 = vpop.f32.mrb[0].mxu0
    %v899 = vadd.f32 0.0, %v898
    %v900 = vpop.f32.mrb[0].mxu0
    %v901 = vpop.f32.mrb[0].mxu0
    %902 = vdwg.mxu0
    %903 = vmatprep.subr.bf16.mxu0 %v801
    %904 = vmatpush1.bf16.msra.mxu0 %v800
    %905 = vmatprep.subr.bf16.mxu0 %v805
    %906 = vmatpush1.bf16.msra.mxu0 %v804
    %907 = vmatprep.subr.bf16.mxu0 %v809
    %908 = vmatpush1.bf16.msra.mxu0 %v808
    %909 = vmatprep.subr.bf16.mxu0 %v813
    %910 = vmatpush1.bf16.msra.mxu0 %v812
    %911 = vmatprep.subr.bf16.mxu0 %v817
    %912 = vmatpush1.bf16.msra.mxu0 %v816
    %913 = vmatprep.subr.bf16.mxu0 %v821
    %914 = vmatpush1.bf16.msra.mxu0 %v820
    %915 = vmatprep.subr.bf16.mxu0 %v825
    %916 = vmatpush1.bf16.msra.mxu0 %v824
    %917 = vmatprep.subr.bf16.mxu0 %v829
    %918 = vmatpush1.bf16.msra.mxu0 %v828
    %919 = vmatprep.subr.bf16.mxu0 0
    %920 = vmatpush1.bf16.msra.mxu0 0
    %921 = vmatprep.subr.bf16.mxu0 0
    %922 = vmatpush1.bf16.msra.mxu0 0
    %923 = vmatprep.subr.bf16.mxu0 0
    %924 = vmatpush1.bf16.msra.mxu0 0
    %925 = vmatprep.subr.bf16.mxu0 0
    %926 = vmatpush1.bf16.msra.mxu0 0
    %927 = vmatprep.subr.bf16.mxu0 0
    %928 = vmatpush1.bf16.msra.mxu0 0
    %929 = vmatprep.subr.bf16.mxu0 0
    %930 = vmatpush1.bf16.msra.mxu0 0
    %931 = vmatprep.subr.bf16.mxu0 0
    %932 = vmatpush1.bf16.msra.mxu0 0
    %933 = vmatprep.subr.bf16.mxu0 0
    %934 = vmatpush1.bf16.msra.mxu0 0
    %935 = vmatprep.mubr.bf16.mxu0 0
    %936 = vmatmul.mubr.bf16.gmra.mrb[0].mxu0 %v663
    %v937 = vpop.f32.mrb[0].mxu0
    %v938 = vadd.f32 0.0, %v937
    %v939 = vpop.f32.mrb[0].mxu0
    %v940 = vadd.f32 0.0, %v939
    %v941 = vpop.f32.mrb[0].mxu0
    %v942 = vpop.f32.mrb[0].mxu0
    %943 = vdwg.mxu0
    %v944 = vadd.f32 %v666, %v897
    %v945 = vadd.f32 %v667, %v899
    %v946 = vadd.f32 %v668, %v938
    %v947 = vadd.f32 %v669, %v940
    %v948 = vxor.u32 %v944, 2147483648
    %v949 = vmul.f32 %v948, 1.442695
    %v950 = vpow.pop %v949
    %v951 = vadd.f32 %v950, 1.0
    %v952 = vrcp.pop %v951
    %v953 = vmul.f32 1.0, %v952
    %v954 = vxor.u32 %v945, 2147483648
    %v955 = vmul.f32 %v954, 1.442695
    %v956 = vpow.pop %v955
    %v957 = vadd.f32 %v956, 1.0
    %v958 = vrcp.pop %v957
    %v959 = vmul.f32 1.0, %v958
    %v960 = vtanh.pop %v946
    %v961 = vxor.u32 %v947, 2147483648
    %v962 = vmul.f32 %v961, 1.442695
    %v963 = vpow.pop %v962
    %v964 = vadd.f32 %v963, 1.0
    %v965 = vrcp.pop %v964
    %v966 = vmul.f32 1.0, %v965
    %v967 = vmul.f32 %v959, %v660
    %v968 = vmul.f32 %v953, %v960
    %v969 = vadd.f32 %v967, %v968
    %v970 = vtanh.pop %v969
    %v971 = vmul.f32 %v966, %v970
    %v972 = vpack.c.bf16 %v971, %v971
    %s973 = scalar_lea.vmem [#allocation10], 4
    %974 = vst [vmem:[%s973] sm:$0xf] %v972
    %s975 = scalar_lea.vmem [#allocation4], 64
    %v976 = vld [vmem:[%s975] sm:$0xff]
    %v977 = vld [vmem:[%s975 + $0x8] sm:$0xff]
    %v978 = vld [vmem:[%s975 + $0x10] sm:$0xff]
    %v979 = vld [vmem:[%s975 + $0x18] sm:$0xff]
    %v980 = vld [vmem:[#allocation8] sm:$0xff]
    %v981 = vld [vmem:[#allocation8 + $0x8] sm:$0xff]
    %v982 = vld [vmem:[#allocation8 + $0x10] sm:$0xff]
    %v983 = vld [vmem:[#allocation8 + $0x18] sm:$0xff]
    %v984 = vld [vmem:[#allocation8 + $0x20] sm:$0xff]
    %v985 = vld [vmem:[#allocation8 + $0x28] sm:$0xff]
    %v986 = vld [vmem:[#allocation8 + $0x30] sm:$0xff]
    %v987 = vld [vmem:[#allocation8 + $0x38] sm:$0xff]
    %v988 = vld [vmem:[#allocation8 + $0x40] sm:$0xff]
    %v989 = vld [vmem:[#allocation8 + $0x48] sm:$0xff]
    %v990 = vld [vmem:[#allocation8 + $0x50] sm:$0xff]
    %v991 = vld [vmem:[#allocation8 + $0x58] sm:$0xff]
    %v992 = vld [vmem:[#allocation8 + $0x60] sm:$0xff]
    %v993 = vld [vmem:[#allocation8 + $0x68] sm:$0xff]
    %v994 = vld [vmem:[#allocation8 + $0x70] sm:$0xff]
    %v995 = vld [vmem:[#allocation8 + $0x78] sm:$0xff]
    %v996 = vld [vmem:[#allocation8 + $0x80] sm:$0xff]
    %v997 = vld [vmem:[#allocation8 + $0x88] sm:$0xff]
    %v998 = vld [vmem:[#allocation8 + $0x90] sm:$0xff]
    %v999 = vld [vmem:[#allocation8 + $0x98] sm:$0xff]
    %v1000 = vld [vmem:[#allocation8 + $0xa0] sm:$0xff]
    %v1001 = vld [vmem:[#allocation8 + $0xa8] sm:$0xff]
    %v1002 = vld [vmem:[#allocation8 + $0xb0] sm:$0xff]
    %v1003 = vld [vmem:[#allocation8 + $0xb8] sm:$0xff]
    %v1004 = vld [vmem:[#allocation8 + $0xc0] sm:$0xff]
    %v1005 = vld [vmem:[#allocation8 + $0xc8] sm:$0xff]
    %v1006 = vld [vmem:[#allocation8 + $0xd0] sm:$0xff]
    %v1007 = vld [vmem:[#allocation8 + $0xd8] sm:$0xff]
    %v1008 = vld [vmem:[#allocation8 + $0xe0] sm:$0xff]
    %v1009 = vld [vmem:[#allocation8 + $0xe8] sm:$0xff]
    %v1010 = vld [vmem:[#allocation8 + $0xf0] sm:$0xff]
    %v1011 = vld [vmem:[#allocation8 + $0xf8] sm:$0xff]
    %v1044 = vunpack.c.l.b16 %v980
    %v1045 = vunpack.c.h.b16 %v980
    %v1046 = vunpack.c.l.b16 %v981
    %v1047 = vunpack.c.h.b16 %v981
    %v1048 = vunpack.c.l.b16 %v982
    %v1049 = vunpack.c.h.b16 %v982
    %v1050 = vunpack.c.l.b16 %v983
    %v1051 = vunpack.c.h.b16 %v983
    %v1052 = vunpack.c.l.b16 %v984
    %v1053 = vunpack.c.h.b16 %v984
    %v1054 = vunpack.c.l.b16 %v985
    %v1055 = vunpack.c.h.b16 %v985
    %v1056 = vunpack.c.l.b16 %v986
    %v1057 = vunpack.c.h.b16 %v986
    %v1058 = vunpack.c.l.b16 %v987
    %v1059 = vunpack.c.h.b16 %v987
    %v1060 = vunpack.c.l.b16 %v988
    %v1061 = vunpack.c.h.b16 %v988
    %v1062 = vunpack.c.l.b16 %v989
    %v1063 = vunpack.c.h.b16 %v989
    %v1064 = vunpack.c.l.b16 %v990
    %v1065 = vunpack.c.h.b16 %v990
    %v1066 = vunpack.c.l.b16 %v991
    %v1067 = vunpack.c.h.b16 %v991
    %v1068 = vunpack.c.l.b16 %v992
    %v1069 = vunpack.c.h.b16 %v992
    %v1070 = vunpack.c.l.b16 %v993
    %v1071 = vunpack.c.h.b16 %v993
    %v1072 = vunpack.c.l.b16 %v994
    %v1073 = vunpack.c.h.b16 %v994
    %v1074 = vunpack.c.l.b16 %v995
    %v1075 = vunpack.c.h.b16 %v995
    %v1076 = vunpack.c.l.b16 %v996
    %v1077 = vunpack.c.h.b16 %v996
    %v1078 = vunpack.c.l.b16 %v997
    %v1079 = vunpack.c.h.b16 %v997
    %v1080 = vunpack.c.l.b16 %v998
    %v1081 = vunpack.c.h.b16 %v998
    %v1082 = vunpack.c.l.b16 %v999
    %v1083 = vunpack.c.h.b16 %v999
    %v1084 = vunpack.c.l.b16 %v1000
    %v1085 = vunpack.c.h.b16 %v1000
    %v1086 = vunpack.c.l.b16 %v1001
    %v1087 = vunpack.c.h.b16 %v1001
    %v1088 = vunpack.c.l.b16 %v1002
    %v1089 = vunpack.c.h.b16 %v1002
    %v1090 = vunpack.c.l.b16 %v1003
    %v1091 = vunpack.c.h.b16 %v1003
    %v1092 = vunpack.c.l.b16 %v1004
    %v1093 = vunpack.c.h.b16 %v1004
    %v1094 = vunpack.c.l.b16 %v1005
    %v1095 = vunpack.c.h.b16 %v1005
    %v1096 = vunpack.c.l.b16 %v1006
    %v1097 = vunpack.c.h.b16 %v1006
    %v1098 = vunpack.c.l.b16 %v1007
    %v1099 = vunpack.c.h.b16 %v1007
    %v1100 = vunpack.c.l.b16 %v1008
    %v1101 = vunpack.c.h.b16 %v1008
    %v1102 = vunpack.c.l.b16 %v1009
    %v1103 = vunpack.c.h.b16 %v1009
    %v1104 = vunpack.c.l.b16 %v1010
    %v1105 = vunpack.c.h.b16 %v1010
    %v1106 = vunpack.c.l.b16 %v1011
    %v1107 = vunpack.c.h.b16 %v1011
    %v1108 = vpack.c.b16 %v1048, %v1044
    %v1109 = vpack.c.b16 %v1049, %v1045
    %v1110 = vpack.c.b16 %v1050, %v1046
    %v1111 = vpack.c.b16 %v1051, %v1047
    %v1112 = vpack.c.b16 %v1056, %v1052
    %v1113 = vpack.c.b16 %v1057, %v1053
    %v1114 = vpack.c.b16 %v1058, %v1054
    %v1115 = vpack.c.b16 %v1059, %v1055
    %v1116 = vpack.c.b16 %v1064, %v1060
    %v1117 = vpack.c.b16 %v1065, %v1061
    %v1118 = vpack.c.b16 %v1066, %v1062
    %v1119 = vpack.c.b16 %v1067, %v1063
    %v1120 = vpack.c.b16 %v1072, %v1068
    %v1121 = vpack.c.b16 %v1073, %v1069
    %v1122 = vpack.c.b16 %v1074, %v1070
    %v1123 = vpack.c.b16 %v1075, %v1071
    %v1124 = vpack.c.b16 %v1080, %v1076
    %v1125 = vpack.c.b16 %v1081, %v1077
    %v1126 = vpack.c.b16 %v1082, %v1078
    %v1127 = vpack.c.b16 %v1083, %v1079
    %v1128 = vpack.c.b16 %v1088, %v1084
    %v1129 = vpack.c.b16 %v1089, %v1085
    %v1130 = vpack.c.b16 %v1090, %v1086
    %v1131 = vpack.c.b16 %v1091, %v1087
    %v1132 = vpack.c.b16 %v1096, %v1092
    %v1133 = vpack.c.b16 %v1097, %v1093
    %v1134 = vpack.c.b16 %v1098, %v1094
    %v1135 = vpack.c.b16 %v1099, %v1095
    %v1136 = vpack.c.b16 %v1104, %v1100
    %v1137 = vpack.c.b16 %v1105, %v1101
    %v1138 = vpack.c.b16 %v1106, %v1102
    %v1139 = vpack.c.b16 %v1107, %v1103
    %1172 = vmatprep.subr.bf16.mxu0 %v1109
    %1173 = vmatpush1.bf16.msra.mxu0 %v1108
    %1174 = vmatprep.subr.bf16.mxu0 %v1113
    %1175 = vmatpush1.bf16.msra.mxu0 %v1112
    %1176 = vmatprep.subr.bf16.mxu0 %v1117
    %1177 = vmatpush1.bf16.msra.mxu0 %v1116
    %1178 = vmatprep.subr.bf16.mxu0 %v1121
    %1179 = vmatpush1.bf16.msra.mxu0 %v1120
    %1180 = vmatprep.subr.bf16.mxu0 %v1125
    %1181 = vmatpush1.bf16.msra.mxu0 %v1124
    %1182 = vmatprep.subr.bf16.mxu0 %v1129
    %1183 = vmatpush1.bf16.msra.mxu0 %v1128
    %1184 = vmatprep.subr.bf16.mxu0 %v1133
    %1185 = vmatpush1.bf16.msra.mxu0 %v1132
    %1186 = vmatprep.subr.bf16.mxu0 %v1137
    %1187 = vmatpush1.bf16.msra.mxu0 %v1136
    %1188 = vmatprep.subr.bf16.mxu0 0
    %1189 = vmatpush1.bf16.msra.mxu0 0
    %1190 = vmatprep.subr.bf16.mxu0 0
    %1191 = vmatpush1.bf16.msra.mxu0 0
    %1192 = vmatprep.subr.bf16.mxu0 0
    %1193 = vmatpush1.bf16.msra.mxu0 0
    %1194 = vmatprep.subr.bf16.mxu0 0
    %1195 = vmatpush1.bf16.msra.mxu0 0
    %1196 = vmatprep.subr.bf16.mxu0 0
    %1197 = vmatpush1.bf16.msra.mxu0 0
    %1198 = vmatprep.subr.bf16.mxu0 0
    %1199 = vmatpush1.bf16.msra.mxu0 0
    %1200 = vmatprep.subr.bf16.mxu0 0
    %1201 = vmatpush1.bf16.msra.mxu0 0
    %1202 = vmatprep.subr.bf16.mxu0 0
    %1203 = vmatpush1.bf16.msra.mxu0 0
    %1204 = vmatprep.mubr.bf16.mxu0 0
    %1205 = vmatmul.mubr.bf16.gmra.mrb[0].mxu0 %v972
    %v1206 = vpop.f32.mrb[0].mxu0
    %v1207 = vadd.f32 0.0, %v1206
    %v1208 = vpop.f32.mrb[0].mxu0
    %v1209 = vadd.f32 0.0, %v1208
    %v1210 = vpop.f32.mrb[0].mxu0
    %v1211 = vpop.f32.mrb[0].mxu0
    %1212 = vdwg.mxu0
    %1213 = vmatprep.subr.bf16.mxu0 %v1111
    %1214 = vmatpush1.bf16.msra.mxu0 %v1110
    %1215 = vmatprep.subr.bf16.mxu0 %v1115
    %1216 = vmatpush1.bf16.msra.mxu0 %v1114
    %1217 = vmatprep.subr.bf16.mxu0 %v1119
    %1218 = vmatpush1.bf16.msra.mxu0 %v1118
    %1219 = vmatprep.subr.bf16.mxu0 %v1123
    %1220 = vmatpush1.bf16.msra.mxu0 %v1122
    %1221 = vmatprep.subr.bf16.mxu0 %v1127
    %1222 = vmatpush1.bf16.msra.mxu0 %v1126
    %1223 = vmatprep.subr.bf16.mxu0 %v1131
    %1224 = vmatpush1.bf16.msra.mxu0 %v1130
    %1225 = vmatprep.subr.bf16.mxu0 %v1135
    %1226 = vmatpush1.bf16.msra.mxu0 %v1134
    %1227 = vmatprep.subr.bf16.mxu0 %v1139
    %1228 = vmatpush1.bf16.msra.mxu0 %v1138
    %1229 = vmatprep.subr.bf16.mxu0 0
    %1230 = vmatpush1.bf16.msra.mxu0 0
    %1231 = vmatprep.subr.bf16.mxu0 0
    %1232 = vmatpush1.bf16.msra.mxu0 0
    %1233 = vmatprep.subr.bf16.mxu0 0
    %1234 = vmatpush1.bf16.msra.mxu0 0
    %1235 = vmatprep.subr.bf16.mxu0 0
    %1236 = vmatpush1.bf16.msra.mxu0 0
    %1237 = vmatprep.subr.bf16.mxu0 0
    %1238 = vmatpush1.bf16.msra.mxu0 0
    %1239 = vmatprep.subr.bf16.mxu0 0
    %1240 = vmatpush1.bf16.msra.mxu0 0
    %1241 = vmatprep.subr.bf16.mxu0 0
    %1242 = vmatpush1.bf16.msra.mxu0 0
    %1243 = vmatprep.subr.bf16.mxu0 0
    %1244 = vmatpush1.bf16.msra.mxu0 0
    %1245 = vmatprep.mubr.bf16.mxu0 0
    %1246 = vmatmul.mubr.bf16.gmra.mrb[0].mxu0 %v972
    %v1247 = vpop.f32.mrb[0].mxu0
    %v1248 = vadd.f32 0.0, %v1247
    %v1249 = vpop.f32.mrb[0].mxu0
    %v1250 = vadd.f32 0.0, %v1249
    %v1251 = vpop.f32.mrb[0].mxu0
    %v1252 = vpop.f32.mrb[0].mxu0
    %1253 = vdwg.mxu0
    %v1254 = vadd.f32 %v976, %v1207
    %v1255 = vadd.f32 %v977, %v1209
    %v1256 = vadd.f32 %v978, %v1248
    %v1257 = vadd.f32 %v979, %v1250
    %v1258 = vxor.u32 %v1254, 2147483648
    %v1259 = vmul.f32 %v1258, 1.442695
    %v1260 = vpow.pop %v1259
    %v1261 = vadd.f32 %v1260, 1.0
    %v1262 = vrcp.pop %v1261
    %v1263 = vmul.f32 1.0, %v1262
    %v1264 = vxor.u32 %v1255, 2147483648
    %v1265 = vmul.f32 %v1264, 1.442695
    %v1266 = vpow.pop %v1265
    %v1267 = vadd.f32 %v1266, 1.0
    %v1268 = vrcp.pop %v1267
    %v1269 = vmul.f32 1.0, %v1268
    %v1270 = vtanh.pop %v1256
    %v1271 = vxor.u32 %v1257, 2147483648
    %v1272 = vmul.f32 %v1271, 1.442695
    %v1273 = vpow.pop %v1272
    %v1274 = vadd.f32 %v1273, 1.0
    %v1275 = vrcp.pop %v1274
    %v1276 = vmul.f32 1.0, %v1275
    %v1277 = vmul.f32 %v1269, %v969
    %v1278 = vmul.f32 %v1263, %v1270
    %v1279 = vadd.f32 %v1277, %v1278
    %v1280 = vtanh.pop %v1279
    %v1281 = vmul.f32 %v1276, %v1280
    %v1282 = vpack.c.bf16 %v1281, %v1281
    %s1283 = scalar_lea.vmem [#allocation10], 8
    %1284 = vst [vmem:[%s1283] sm:$0xf] %v1282
    %s1285 = scalar_lea.vmem [#allocation4], 96
    %v1286 = vld [vmem:[%s1285] sm:$0xff]
    %v1287 = vld [vmem:[%s1285 + $0x8] sm:$0xff]
    %v1288 = vld [vmem:[%s1285 + $0x10] sm:$0xff]
    %v1289 = vld [vmem:[%s1285 + $0x18] sm:$0xff]
    %v1290 = vld [vmem:[#allocation8] sm:$0xff]
    %v1291 = vld [vmem:[#allocation8 + $0x8] sm:$0xff]
    %v1292 = vld [vmem:[#allocation8 + $0x10] sm:$0xff]
    %v1293 = vld [vmem:[#allocation8 + $0x18] sm:$0xff]
    %v1294 = vld [vmem:[#allocation8 + $0x20] sm:$0xff]
    %v1295 = vld [vmem:[#allocation8 + $0x28] sm:$0xff]
    %v1296 = vld [vmem:[#allocation8 + $0x30] sm:$0xff]
    %v1297 = vld [vmem:[#allocation8 + $0x38] sm:$0xff]
    %v1298 = vld [vmem:[#allocation8 + $0x40] sm:$0xff]
    %v1299 = vld [vmem:[#allocation8 + $0x48] sm:$0xff]
    %v1300 = vld [vmem:[#allocation8 + $0x50] sm:$0xff]
    %v1301 = vld [vmem:[#allocation8 + $0x58] sm:$0xff]
    %v1302 = vld [vmem:[#allocation8 + $0x60] sm:$0xff]
    %v1303 = vld [vmem:[#allocation8 + $0x68] sm:$0xff]
    %v1304 = vld [vmem:[#allocation8 + $0x70] sm:$0xff]
    %v1305 = vld [vmem:[#allocation8 + $0x78] sm:$0xff]
    %v1306 = vld [vmem:[#allocation8 + $0x80] sm:$0xff]
    %v1307 = vld [vmem:[#allocation8 + $0x88] sm:$0xff]
    %v1308 = vld [vmem:[#allocation8 + $0x90] sm:$0xff]
    %v1309 = vld [vmem:[#allocation8 + $0x98] sm:$0xff]
    %v1310 = vld [vmem:[#allocation8 + $0xa0] sm:$0xff]
    %v1311 = vld [vmem:[#allocation8 + $0xa8] sm:$0xff]
    %v1312 = vld [vmem:[#allocation8 + $0xb0] sm:$0xff]
    %v1313 = vld [vmem:[#allocation8 + $0xb8] sm:$0xff]
    %v1314 = vld [vmem:[#allocation8 + $0xc0] sm:$0xff]
    %v1315 = vld [vmem:[#allocation8 + $0xc8] sm:$0xff]
    %v1316 = vld [vmem:[#allocation8 + $0xd0] sm:$0xff]
    %v1317 = vld [vmem:[#allocation8 + $0xd8] sm:$0xff]
    %v1318 = vld [vmem:[#allocation8 + $0xe0] sm:$0xff]
    %v1319 = vld [vmem:[#allocation8 + $0xe8] sm:$0xff]
    %v1320 = vld [vmem:[#allocation8 + $0xf0] sm:$0xff]
    %v1321 = vld [vmem:[#allocation8 + $0xf8] sm:$0xff]
    %v1354 = vunpack.c.l.b16 %v1290
    %v1355 = vunpack.c.h.b16 %v1290
    %v1356 = vunpack.c.l.b16 %v1291
    %v1357 = vunpack.c.h.b16 %v1291
    %v1358 = vunpack.c.l.b16 %v1292
    %v1359 = vunpack.c.h.b16 %v1292
    %v1360 = vunpack.c.l.b16 %v1293
    %v1361 = vunpack.c.h.b16 %v1293
    %v1362 = vunpack.c.l.b16 %v1294
    %v1363 = vunpack.c.h.b16 %v1294
    %v1364 = vunpack.c.l.b16 %v1295
    %v1365 = vunpack.c.h.b16 %v1295
    %v1366 = vunpack.c.l.b16 %v1296
    %v1367 = vunpack.c.h.b16 %v1296
    %v1368 = vunpack.c.l.b16 %v1297
    %v1369 = vunpack.c.h.b16 %v1297
    %v1370 = vunpack.c.l.b16 %v1298
    %v1371 = vunpack.c.h.b16 %v1298
    %v1372 = vunpack.c.l.b16 %v1299
    %v1373 = vunpack.c.h.b16 %v1299
    %v1374 = vunpack.c.l.b16 %v1300
    %v1375 = vunpack.c.h.b16 %v1300
    %v1376 = vunpack.c.l.b16 %v1301
    %v1377 = vunpack.c.h.b16 %v1301
    %v1378 = vunpack.c.l.b16 %v1302
    %v1379 = vunpack.c.h.b16 %v1302
    %v1380 = vunpack.c.l.b16 %v1303
    %v1381 = vunpack.c.h.b16 %v1303
    %v1382 = vunpack.c.l.b16 %v1304
    %v1383 = vunpack.c.h.b16 %v1304
    %v1384 = vunpack.c.l.b16 %v1305
    %v1385 = vunpack.c.h.b16 %v1305
    %v1386 = vunpack.c.l.b16 %v1306
    %v1387 = vunpack.c.h.b16 %v1306
    %v1388 = vunpack.c.l.b16 %v1307
    %v1389 = vunpack.c.h.b16 %v1307
    %v1390 = vunpack.c.l.b16 %v1308
    %v1391 = vunpack.c.h.b16 %v1308
    %v1392 = vunpack.c.l.b16 %v1309
    %v1393 = vunpack.c.h.b16 %v1309
    %v1394 = vunpack.c.l.b16 %v1310
    %v1395 = vunpack.c.h.b16 %v1310
    %v1396 = vunpack.c.l.b16 %v1311
    %v1397 = vunpack.c.h.b16 %v1311
    %v1398 = vunpack.c.l.b16 %v1312
    %v1399 = vunpack.c.h.b16 %v1312
    %v1400 = vunpack.c.l.b16 %v1313
    %v1401 = vunpack.c.h.b16 %v1313
    %v1402 = vunpack.c.l.b16 %v1314
    %v1403 = vunpack.c.h.b16 %v1314
    %v1404 = vunpack.c.l.b16 %v1315
    %v1405 = vunpack.c.h.b16 %v1315
    %v1406 = vunpack.c.l.b16 %v1316
    %v1407 = vunpack.c.h.b16 %v1316
    %v1408 = vunpack.c.l.b16 %v1317
    %v1409 = vunpack.c.h.b16 %v1317
    %v1410 = vunpack.c.l.b16 %v1318
    %v1411 = vunpack.c.h.b16 %v1318
    %v1412 = vunpack.c.l.b16 %v1319
    %v1413 = vunpack.c.h.b16 %v1319
    %v1414 = vunpack.c.l.b16 %v1320
    %v1415 = vunpack.c.h.b16 %v1320
    %v1416 = vunpack.c.l.b16 %v1321
    %v1417 = vunpack.c.h.b16 %v1321
    %v1418 = vpack.c.b16 %v1358, %v1354
    %v1419 = vpack.c.b16 %v1359, %v1355
    %v1420 = vpack.c.b16 %v1360, %v1356
    %v1421 = vpack.c.b16 %v1361, %v1357
    %v1422 = vpack.c.b16 %v1366, %v1362
    %v1423 = vpack.c.b16 %v1367, %v1363
    %v1424 = vpack.c.b16 %v1368, %v1364
    %v1425 = vpack.c.b16 %v1369, %v1365
    %v1426 = vpack.c.b16 %v1374, %v1370
    %v1427 = vpack.c.b16 %v1375, %v1371
    %v1428 = vpack.c.b16 %v1376, %v1372
    %v1429 = vpack.c.b16 %v1377, %v1373
    %v1430 = vpack.c.b16 %v1382, %v1378
    %v1431 = vpack.c.b16 %v1383, %v1379
    %v1432 = vpack.c.b16 %v1384, %v1380
    %v1433 = vpack.c.b16 %v1385, %v1381
    %v1434 = vpack.c.b16 %v1390, %v1386
    %v1435 = vpack.c.b16 %v1391, %v1387
    %v1436 = vpack.c.b16 %v1392, %v1388
    %v1437 = vpack.c.b16 %v1393, %v1389
    %v1438 = vpack.c.b16 %v1398, %v1394
    %v1439 = vpack.c.b16 %v1399, %v1395
    %v1440 = vpack.c.b16 %v1400, %v1396
    %v1441 = vpack.c.b16 %v1401, %v1397
    %v1442 = vpack.c.b16 %v1406, %v1402
    %v1443 = vpack.c.b16 %v1407, %v1403
    %v1444 = vpack.c.b16 %v1408, %v1404
    %v1445 = vpack.c.b16 %v1409, %v1405
    %v1446 = vpack.c.b16 %v1414, %v1410
    %v1447 = vpack.c.b16 %v1415, %v1411
    %v1448 = vpack.c.b16 %v1416, %v1412
    %v1449 = vpack.c.b16 %v1417, %v1413
    %1482 = vmatprep.subr.bf16.mxu0 %v1419
    %1483 = vmatpush1.bf16.msra.mxu0 %v1418
    %1484 = vmatprep.subr.bf16.mxu0 %v1423
    %1485 = vmatpush1.bf16.msra.mxu0 %v1422
    %1486 = vmatprep.subr.bf16.mxu0 %v1427
    %1487 = vmatpush1.bf16.msra.mxu0 %v1426
    %1488 = vmatprep.subr.bf16.mxu0 %v1431
    %1489 = vmatpush1.bf16.msra.mxu0 %v1430
    %1490 = vmatprep.subr.bf16.mxu0 %v1435
    %1491 = vmatpush1.bf16.msra.mxu0 %v1434
    %1492 = vmatprep.subr.bf16.mxu0 %v1439
    %1493 = vmatpush1.bf16.msra.mxu0 %v1438
    %1494 = vmatprep.subr.bf16.mxu0 %v1443
    %1495 = vmatpush1.bf16.msra.mxu0 %v1442
    %1496 = vmatprep.subr.bf16.mxu0 %v1447
    %1497 = vmatpush1.bf16.msra.mxu0 %v1446
    %1498 = vmatprep.subr.bf16.mxu0 0
    %1499 = vmatpush1.bf16.msra.mxu0 0
    %1500 = vmatprep.subr.bf16.mxu0 0
    %1501 = vmatpush1.bf16.msra.mxu0 0
    %1502 = vmatprep.subr.bf16.mxu0 0
    %1503 = vmatpush1.bf16.msra.mxu0 0
    %1504 = vmatprep.subr.bf16.mxu0 0
    %1505 = vmatpush1.bf16.msra.mxu0 0
    %1506 = vmatprep.subr.bf16.mxu0 0
    %1507 = vmatpush1.bf16.msra.mxu0 0
    %1508 = vmatprep.subr.bf16.mxu0 0
    %1509 = vmatpush1.bf16.msra.mxu0 0
    %1510 = vmatprep.subr.bf16.mxu0 0
    %1511 = vmatpush1.bf16.msra.mxu0 0
    %1512 = vmatprep.subr.bf16.mxu0 0
    %1513 = vmatpush1.bf16.msra.mxu0 0
    %1514 = vmatprep.mubr.bf16.mxu0 0
    %1515 = vmatmul.mubr.bf16.gmra.mrb[0].mxu0 %v1282
    %v1516 = vpop.f32.mrb[0].mxu0
    %v1517 = vadd.f32 0.0, %v1516
    %v1518 = vpop.f32.mrb[0].mxu0
    %v1519 = vadd.f32 0.0, %v1518
    %v1520 = vpop.f32.mrb[0].mxu0
    %v1521 = vpop.f32.mrb[0].mxu0
    %1522 = vdwg.mxu0
    %1523 = vmatprep.subr.bf16.mxu0 %v1421
    %1524 = vmatpush1.bf16.msra.mxu0 %v1420
    %1525 = vmatprep.subr.bf16.mxu0 %v1425
    %1526 = vmatpush1.bf16.msra.mxu0 %v1424
    %1527 = vmatprep.subr.bf16.mxu0 %v1429
    %1528 = vmatpush1.bf16.msra.mxu0 %v1428
    %1529 = vmatprep.subr.bf16.mxu0 %v1433
    %1530 = vmatpush1.bf16.msra.mxu0 %v1432
    %1531 = vmatprep.subr.bf16.mxu0 %v1437
    %1532 = vmatpush1.bf16.msra.mxu0 %v1436
    %1533 = vmatprep.subr.bf16.mxu0 %v1441
    %1534 = vmatpush1.bf16.msra.mxu0 %v1440
    %1535 = vmatprep.subr.bf16.mxu0 %v1445
    %1536 = vmatpush1.bf16.msra.mxu0 %v1444
    %1537 = vmatprep.subr.bf16.mxu0 %v1449
    %1538 = vmatpush1.bf16.msra.mxu0 %v1448
    %1539 = vmatprep.subr.bf16.mxu0 0
    %1540 = vmatpush1.bf16.msra.mxu0 0
    %1541 = vmatprep.subr.bf16.mxu0 0
    %1542 = vmatpush1.bf16.msra.mxu0 0
    %1543 = vmatprep.subr.bf16.mxu0 0
    %1544 = vmatpush1.bf16.msra.mxu0 0
    %1545 = vmatprep.subr.bf16.mxu0 0
    %1546 = vmatpush1.bf16.msra.mxu0 0
    %1547 = vmatprep.subr.bf16.mxu0 0
    %1548 = vmatpush1.bf16.msra.mxu0 0
    %1549 = vmatprep.subr.bf16.mxu0 0
    %1550 = vmatpush1.bf16.msra.mxu0 0
    %1551 = vmatprep.subr.bf16.mxu0 0
    %1552 = vmatpush1.bf16.msra.mxu0 0
    %1553 = vmatprep.subr.bf16.mxu0 0
    %1554 = vmatpush1.bf16.msra.mxu0 0
    %1555 = vmatprep.mubr.bf16.mxu0 0
    %1556 = vmatmul.mubr.bf16.gmra.mrb[0].mxu0 %v1282
    %v1557 = vpop.f32.mrb[0].mxu0
    %v1558 = vadd.f32 0.0, %v1557
    %v1559 = vpop.f32.mrb[0].mxu0
    %v1560 = vadd.f32 0.0, %v1559
    %v1561 = vpop.f32.mrb[0].mxu0
    %v1562 = vpop.f32.mrb[0].mxu0
    %1563 = vdwg.mxu0
    %v1564 = vadd.f32 %v1286, %v1517
    %v1565 = vadd.f32 %v1287, %v1519
    %v1566 = vadd.f32 %v1288, %v1558
    %v1567 = vadd.f32 %v1289, %v1560
    %v1568 = vxor.u32 %v1564, 2147483648
    %v1569 = vmul.f32 %v1568, 1.442695
    %v1570 = vpow.pop %v1569
    %v1571 = vadd.f32 %v1570, 1.0
    %v1572 = vrcp.pop %v1571
    %v1573 = vmul.f32 1.0, %v1572
    %v1574 = vxor.u32 %v1565, 2147483648
    %v1575 = vmul.f32 %v1574, 1.442695
    %v1576 = vpow.pop %v1575
    %v1577 = vadd.f32 %v1576, 1.0
    %v1578 = vrcp.pop %v1577
    %v1579 = vmul.f32 1.0, %v1578
    %v1580 = vtanh.pop %v1566
    %v1581 = vxor.u32 %v1567, 2147483648
    %v1582 = vmul.f32 %v1581, 1.442695
    %v1583 = vpow.pop %v1582
    %v1584 = vadd.f32 %v1583, 1.0
    %v1585 = vrcp.pop %v1584
    %v1586 = vmul.f32 1.0, %v1585
    %v1587 = vmul.f32 %v1579, %v1279
    %v1588 = vmul.f32 %v1573, %v1580
    %v1589 = vadd.f32 %v1587, %v1588
    %v1590 = vtanh.pop %v1589
    %v1591 = vmul.f32 %v1586, %v1590
    %v1592 = vpack.c.bf16 %v1591, %v1591
    %s1593 = scalar_lea.vmem [#allocation10], 12
    %1594 = vst [vmem:[%s1593] sm:$0xf] %v1592
    %s1595 = scalar_lea.vmem [#allocation4], 128
    %v1596 = vld [vmem:[%s1595] sm:$0xff]
    %v1597 = vld [vmem:[%s1595 + $0x8] sm:$0xff]
    %v1598 = vld [vmem:[%s1595 + $0x10] sm:$0xff]
    %v1599 = vld [vmem:[%s1595 + $0x18] sm:$0xff]
    %v1600 = vld [vmem:[#allocation8] sm:$0xff]
    %v1601 = vld [vmem:[#allocation8 + $0x8] sm:$0xff]
    %v1602 = vld [vmem:[#allocation8 + $0x10] sm:$0xff]
    %v1603 = vld [vmem:[#allocation8 + $0x18] sm:$0xff]
    %v1604 = vld [vmem:[#allocation8 + $0x20] sm:$0xff]
    %v1605 = vld [vmem:[#allocation8 + $0x28] sm:$0xff]
    %v1606 = vld [vmem:[#allocation8 + $0x30] sm:$0xff]
    %v1607 = vld [vmem:[#allocation8 + $0x38] sm:$0xff]
    %v1608 = vld [vmem:[#allocation8 + $0x40] sm:$0xff]
    %v1609 = vld [vmem:[#allocation8 + $0x48] sm:$0xff]
    %v1610 = vld [vmem:[#allocation8 + $0x50] sm:$0xff]
    %v1611 = vld [vmem:[#allocation8 + $0x58] sm:$0xff]
    %v1612 = vld [vmem:[#allocation8 + $0x60] sm:$0xff]
    %v1613 = vld [vmem:[#allocation8 + $0x68] sm:$0xff]
    %v1614 = vld [vmem:[#allocation8 + $0x70] sm:$0xff]
    %v1615 = vld [vmem:[#allocation8 + $0x78] sm:$0xff]
    %v1616 = vld [vmem:[#allocation8 + $0x80] sm:$0xff]
    %v1617 = vld [vmem:[#allocation8 + $0x88] sm:$0xff]
    %v1618 = vld [vmem:[#allocation8 + $0x90] sm:$0xff]
    %v1619 = vld [vmem:[#allocation8 + $0x98] sm:$0xff]
    %v1620 = vld [vmem:[#allocation8 + $0xa0] sm:$0xff]
    %v1621 = vld [vmem:[#allocation8 + $0xa8] sm:$0xff]
    %v1622 = vld [vmem:[#allocation8 + $0xb0] sm:$0xff]
    %v1623 = vld [vmem:[#allocation8 + $0xb8] sm:$0xff]
    %v1624 = vld [vmem:[#allocation8 + $0xc0] sm:$0xff]
    %v1625 = vld [vmem:[#allocation8 + $0xc8] sm:$0xff]
    %v1626 = vld [vmem:[#allocation8 + $0xd0] sm:$0xff]
    %v1627 = vld [vmem:[#allocation8 + $0xd8] sm:$0xff]
    %v1628 = vld [vmem:[#allocation8 + $0xe0] sm:$0xff]
    %v1629 = vld [vmem:[#allocation8 + $0xe8] sm:$0xff]
    %v1630 = vld [vmem:[#allocation8 + $0xf0] sm:$0xff]
    %v1631 = vld [vmem:[#allocation8 + $0xf8] sm:$0xff]
    %v1664 = vunpack.c.l.b16 %v1600
    %v1665 = vunpack.c.h.b16 %v1600
    %v1666 = vunpack.c.l.b16 %v1601
    %v1667 = vunpack.c.h.b16 %v1601
    %v1668 = vunpack.c.l.b16 %v1602
    %v1669 = vunpack.c.h.b16 %v1602
    %v1670 = vunpack.c.l.b16 %v1603
    %v1671 = vunpack.c.h.b16 %v1603
    %v1672 = vunpack.c.l.b16 %v1604
    %v1673 = vunpack.c.h.b16 %v1604
    %v1674 = vunpack.c.l.b16 %v1605
    %v1675 = vunpack.c.h.b16 %v1605
    %v1676 = vunpack.c.l.b16 %v1606
    %v1677 = vunpack.c.h.b16 %v1606
    %v1678 = vunpack.c.l.b16 %v1607
    %v1679 = vunpack.c.h.b16 %v1607
    %v1680 = vunpack.c.l.b16 %v1608
    %v1681 = vunpack.c.h.b16 %v1608
    %v1682 = vunpack.c.l.b16 %v1609
    %v1683 = vunpack.c.h.b16 %v1609
    %v1684 = vunpack.c.l.b16 %v1610
    %v1685 = vunpack.c.h.b16 %v1610
    %v1686 = vunpack.c.l.b16 %v1611
    %v1687 = vunpack.c.h.b16 %v1611
    %v1688 = vunpack.c.l.b16 %v1612
    %v1689 = vunpack.c.h.b16 %v1612
    %v1690 = vunpack.c.l.b16 %v1613
    %v1691 = vunpack.c.h.b16 %v1613
    %v1692 = vunpack.c.l.b16 %v1614
    %v1693 = vunpack.c.h.b16 %v1614
    %v1694 = vunpack.c.l.b16 %v1615
    %v1695 = vunpack.c.h.b16 %v1615
    %v1696 = vunpack.c.l.b16 %v1616
    %v1697 = vunpack.c.h.b16 %v1616
    %v1698 = vunpack.c.l.b16 %v1617
    %v1699 = vunpack.c.h.b16 %v1617
    %v1700 = vunpack.c.l.b16 %v1618
    %v1701 = vunpack.c.h.b16 %v1618
    %v1702 = vunpack.c.l.b16 %v1619
    %v1703 = vunpack.c.h.b16 %v1619
    %v1704 = vunpack.c.l.b16 %v1620
    %v1705 = vunpack.c.h.b16 %v1620
    %v1706 = vunpack.c.l.b16 %v1621
    %v1707 = vunpack.c.h.b16 %v1621
    %v1708 = vunpack.c.l.b16 %v1622
    %v1709 = vunpack.c.h.b16 %v1622
    %v1710 = vunpack.c.l.b16 %v1623
    %v1711 = vunpack.c.h.b16 %v1623
    %v1712 = vunpack.c.l.b16 %v1624
    %v1713 = vunpack.c.h.b16 %v1624
    %v1714 = vunpack.c.l.b16 %v1625
    %v1715 = vunpack.c.h.b16 %v1625
    %v1716 = vunpack.c.l.b16 %v1626
    %v1717 = vunpack.c.h.b16 %v1626
    %v1718 = vunpack.c.l.b16 %v1627
    %v1719 = vunpack.c.h.b16 %v1627
    %v1720 = vunpack.c.l.b16 %v1628
    %v1721 = vunpack.c.h.b16 %v1628
    %v1722 = vunpack.c.l.b16 %v1629
    %v1723 = vunpack.c.h.b16 %v1629
    %v1724 = vunpack.c.l.b16 %v1630
    %v1725 = vunpack.c.h.b16 %v1630
    %v1726 = vunpack.c.l.b16 %v1631
    %v1727 = vunpack.c.h.b16 %v1631
    %v1728 = vpack.c.b16 %v1668, %v1664
    %v1729 = vpack.c.b16 %v1669, %v1665
    %v1730 = vpack.c.b16 %v1670, %v1666
    %v1731 = vpack.c.b16 %v1671, %v1667
    %v1732 = vpack.c.b16 %v1676, %v1672
    %v1733 = vpack.c.b16 %v1677, %v1673
    %v1734 = vpack.c.b16 %v1678, %v1674
    %v1735 = vpack.c.b16 %v1679, %v1675
    %v1736 = vpack.c.b16 %v1684, %v1680
    %v1737 = vpack.c.b16 %v1685, %v1681
    %v1738 = vpack.c.b16 %v1686, %v1682
    %v1739 = vpack.c.b16 %v1687, %v1683
    %v1740 = vpack.c.b16 %v1692, %v1688
    %v1741 = vpack.c.b16 %v1693, %v1689
    %v1742 = vpack.c.b16 %v1694, %v1690
    %v1743 = vpack.c.b16 %v1695, %v1691
    %v1744 = vpack.c.b16 %v1700, %v1696
    %v1745 = vpack.c.b16 %v1701, %v1697
    %v1746 = vpack.c.b16 %v1702, %v1698
    %v1747 = vpack.c.b16 %v1703, %v1699
    %v1748 = vpack.c.b16 %v1708, %v1704
    %v1749 = vpack.c.b16 %v1709, %v1705
    %v1750 = vpack.c.b16 %v1710, %v1706
    %v1751 = vpack.c.b16 %v1711, %v1707
    %v1752 = vpack.c.b16 %v1716, %v1712
    %v1753 = vpack.c.b16 %v1717, %v1713
    %v1754 = vpack.c.b16 %v1718, %v1714
    %v1755 = vpack.c.b16 %v1719, %v1715
    %v1756 = vpack.c.b16 %v1724, %v1720
    %v1757 = vpack.c.b16 %v1725, %v1721
    %v1758 = vpack.c.b16 %v1726, %v1722
    %v1759 = vpack.c.b16 %v1727, %v1723
    %1792 = vmatprep.subr.bf16.mxu0 %v1729
    %1793 = vmatpush1.bf16.msra.mxu0 %v1728
    %1794 = vmatprep.subr.bf16.mxu0 %v1733
    %1795 = vmatpush1.bf16.msra.mxu0 %v1732
    %1796 = vmatprep.subr.bf16.mxu0 %v1737
    %1797 = vmatpush1.bf16.msra.mxu0 %v1736
    %1798 = vmatprep.subr.bf16.mxu0 %v1741
    %1799 = vmatpush1.bf16.msra.mxu0 %v1740
    %1800 = vmatprep.subr.bf16.mxu0 %v1745
    %1801 = vmatpush1.bf16.msra.mxu0 %v1744
    %1802 = vmatprep.subr.bf16.mxu0 %v1749
    %1803 = vmatpush1.bf16.msra.mxu0 %v1748
    %1804 = vmatprep.subr.bf16.mxu0 %v1753
    %1805 = vmatpush1.bf16.msra.mxu0 %v1752
    %1806 = vmatprep.subr.bf16.mxu0 %v1757
    %1807 = vmatpush1.bf16.msra.mxu0 %v1756
    %1808 = vmatprep.subr.bf16.mxu0 0
    %1809 = vmatpush1.bf16.msra.mxu0 0
    %1810 = vmatprep.subr.bf16.mxu0 0
    %1811 = vmatpush1.bf16.msra.mxu0 0
    %1812 = vmatprep.subr.bf16.mxu0 0
    %1813 = vmatpush1.bf16.msra.mxu0 0
    %1814 = vmatprep.subr.bf16.mxu0 0
    %1815 = vmatpush1.bf16.msra.mxu0 0
    %1816 = vmatprep.subr.bf16.mxu0 0
    %1817 = vmatpush1.bf16.msra.mxu0 0
    %1818 = vmatprep.subr.bf16.mxu0 0
    %1819 = vmatpush1.bf16.msra.mxu0 0
    %1820 = vmatprep.subr.bf16.mxu0 0
    %1821 = vmatpush1.bf16.msra.mxu0 0
    %1822 = vmatprep.subr.bf16.mxu0 0
    %1823 = vmatpush1.bf16.msra.mxu0 0
    %1824 = vmatprep.mubr.bf16.mxu0 0
    %1825 = vmatmul.mubr.bf16.gmra.mrb[0].mxu0 %v1592
    %v1826 = vpop.f32.mrb[0].mxu0
    %v1827 = vadd.f32 0.0, %v1826
    %v1828 = vpop.f32.mrb[0].mxu0
    %v1829 = vadd.f32 0.0, %v1828
    %v1830 = vpop.f32.mrb[0].mxu0
    %v1831 = vpop.f32.mrb[0].mxu0
    %1832 = vdwg.mxu0
    %1833 = vmatprep.subr.bf16.mxu0 %v1731
    %1834 = vmatpush1.bf16.msra.mxu0 %v1730
    %1835 = vmatprep.subr.bf16.mxu0 %v1735
    %1836 = vmatpush1.bf16.msra.mxu0 %v1734
    %1837 = vmatprep.subr.bf16.mxu0 %v1739
    %1838 = vmatpush1.bf16.msra.mxu0 %v1738
    %1839 = vmatprep.subr.bf16.mxu0 %v1743
    %1840 = vmatpush1.bf16.msra.mxu0 %v1742
    %1841 = vmatprep.subr.bf16.mxu0 %v1747
    %1842 = vmatpush1.bf16.msra.mxu0 %v1746
    %1843 = vmatprep.subr.bf16.mxu0 %v1751
    %1844 = vmatpush1.bf16.msra.mxu0 %v1750
    %1845 = vmatprep.subr.bf16.mxu0 %v1755
    %1846 = vmatpush1.bf16.msra.mxu0 %v1754
    %1847 = vmatprep.subr.bf16.mxu0 %v1759
    %1848 = vmatpush1.bf16.msra.mxu0 %v1758
    %1849 = vmatprep.subr.bf16.mxu0 0
    %1850 = vmatpush1.bf16.msra.mxu0 0
    %1851 = vmatprep.subr.bf16.mxu0 0
    %1852 = vmatpush1.bf16.msra.mxu0 0
    %1853 = vmatprep.subr.bf16.mxu0 0
    %1854 = vmatpush1.bf16.msra.mxu0 0
    %1855 = vmatprep.subr.bf16.mxu0 0
    %1856 = vmatpush1.bf16.msra.mxu0 0
    %1857 = vmatprep.subr.bf16.mxu0 0
    %1858 = vmatpush1.bf16.msra.mxu0 0
    %1859 = vmatprep.subr.bf16.mxu0 0
    %1860 = vmatpush1.bf16.msra.mxu0 0
    %1861 = vmatprep.subr.bf16.mxu0 0
    %1862 = vmatpush1.bf16.msra.mxu0 0
    %1863 = vmatprep.subr.bf16.mxu0 0
    %1864 = vmatpush1.bf16.msra.mxu0 0
    %1865 = vmatprep.mubr.bf16.mxu0 0
    %1866 = vmatmul.mubr.bf16.gmra.mrb[0].mxu0 %v1592
    %v1867 = vpop.f32.mrb[0].mxu0
    %v1868 = vadd.f32 0.0, %v1867
    %v1869 = vpop.f32.mrb[0].mxu0
    %v1870 = vadd.f32 0.0, %v1869
    %v1871 = vpop.f32.mrb[0].mxu0
    %v1872 = vpop.f32.mrb[0].mxu0
    %1873 = vdwg.mxu0
    %v1874 = vadd.f32 %v1596, %v1827
    %v1875 = vadd.f32 %v1597, %v1829
    %v1876 = vadd.f32 %v1598, %v1868
    %v1877 = vadd.f32 %v1599, %v1870
    %v1878 = vxor.u32 %v1874, 2147483648
    %v1879 = vmul.f32 %v1878, 1.442695
    %v1880 = vpow.pop %v1879
    %v1881 = vadd.f32 %v1880, 1.0
    %v1882 = vrcp.pop %v1881
    %v1883 = vmul.f32 1.0, %v1882
    %v1884 = vxor.u32 %v1875, 2147483648
    %v1885 = vmul.f32 %v1884, 1.442695
    %v1886 = vpow.pop %v1885
    %v1887 = vadd.f32 %v1886, 1.0
    %v1888 = vrcp.pop %v1887
    %v1889 = vmul.f32 1.0, %v1888
    %v1890 = vtanh.pop %v1876
    %v1891 = vxor.u32 %v1877, 2147483648
    %v1892 = vmul.f32 %v1891, 1.442695
    %v1893 = vpow.pop %v1892
    %v1894 = vadd.f32 %v1893, 1.0
    %v1895 = vrcp.pop %v1894
    %v1896 = vmul.f32 1.0, %v1895
    %v1897 = vmul.f32 %v1889, %v1589
    %v1898 = vmul.f32 %v1883, %v1890
    %v1899 = vadd.f32 %v1897, %v1898
    %v1900 = vtanh.pop %v1899
    %v1901 = vmul.f32 %v1896, %v1900
    %v1902 = vpack.c.bf16 %v1901, %v1901
    %s1903 = scalar_lea.vmem [#allocation10], 16
    %1904 = vst [vmem:[%s1903] sm:$0xf] %v1902
    %s1905 = scalar_lea.vmem [#allocation4], 160
    %v1906 = vld [vmem:[%s1905] sm:$0xff]
    %v1907 = vld [vmem:[%s1905 + $0x8] sm:$0xff]
    %v1908 = vld [vmem:[%s1905 + $0x10] sm:$0xff]
    %v1909 = vld [vmem:[%s1905 + $0x18] sm:$0xff]
    %v1910 = vld [vmem:[#allocation8] sm:$0xff]
    %v1911 = vld [vmem:[#allocation8 + $0x8] sm:$0xff]
    %v1912 = vld [vmem:[#allocation8 + $0x10] sm:$0xff]
    %v1913 = vld [vmem:[#allocation8 + $0x18] sm:$0xff]
    %v1914 = vld [vmem:[#allocation8 + $0x20] sm:$0xff]
    %v1915 = vld [vmem:[#allocation8 + $0x28] sm:$0xff]
    %v1916 = vld [vmem:[#allocation8 + $0x30] sm:$0xff]
    %v1917 = vld [vmem:[#allocation8 + $0x38] sm:$0xff]
    %v1918 = vld [vmem:[#allocation8 + $0x40] sm:$0xff]
    %v1919 = vld [vmem:[#allocation8 + $0x48] sm:$0xff]
    %v1920 = vld [vmem:[#allocation8 + $0x50] sm:$0xff]
    %v1921 = vld [vmem:[#allocation8 + $0x58] sm:$0xff]
    %v1922 = vld [vmem:[#allocation8 + $0x60] sm:$0xff]
    %v1923 = vld [vmem:[#allocation8 + $0x68] sm:$0xff]
    %v1924 = vld [vmem:[#allocation8 + $0x70] sm:$0xff]
    %v1925 = vld [vmem:[#allocation8 + $0x78] sm:$0xff]
    %v1926 = vld [vmem:[#allocation8 + $0x80] sm:$0xff]
    %v1927 = vld [vmem:[#allocation8 + $0x88] sm:$0xff]
    %v1928 = vld [vmem:[#allocation8 + $0x90] sm:$0xff]
    %v1929 = vld [vmem:[#allocation8 + $0x98] sm:$0xff]
    %v1930 = vld [vmem:[#allocation8 + $0xa0] sm:$0xff]
    %v1931 = vld [vmem:[#allocation8 + $0xa8] sm:$0xff]
    %v1932 = vld [vmem:[#allocation8 + $0xb0] sm:$0xff]
    %v1933 = vld [vmem:[#allocation8 + $0xb8] sm:$0xff]
    %v1934 = vld [vmem:[#allocation8 + $0xc0] sm:$0xff]
    %v1935 = vld [vmem:[#allocation8 + $0xc8] sm:$0xff]
    %v1936 = vld [vmem:[#allocation8 + $0xd0] sm:$0xff]
    %v1937 = vld [vmem:[#allocation8 + $0xd8] sm:$0xff]
    %v1938 = vld [vmem:[#allocation8 + $0xe0] sm:$0xff]
    %v1939 = vld [vmem:[#allocation8 + $0xe8] sm:$0xff]
    %v1940 = vld [vmem:[#allocation8 + $0xf0] sm:$0xff]
    %v1941 = vld [vmem:[#allocation8 + $0xf8] sm:$0xff]
    %v1974 = vunpack.c.l.b16 %v1910
    %v1975 = vunpack.c.h.b16 %v1910
    %v1976 = vunpack.c.l.b16 %v1911
    %v1977 = vunpack.c.h.b16 %v1911
    %v1978 = vunpack.c.l.b16 %v1912
    %v1979 = vunpack.c.h.b16 %v1912
    %v1980 = vunpack.c.l.b16 %v1913
    %v1981 = vunpack.c.h.b16 %v1913
    %v1982 = vunpack.c.l.b16 %v1914
    %v1983 = vunpack.c.h.b16 %v1914
    %v1984 = vunpack.c.l.b16 %v1915
    %v1985 = vunpack.c.h.b16 %v1915
    %v1986 = vunpack.c.l.b16 %v1916
    %v1987 = vunpack.c.h.b16 %v1916
    %v1988 = vunpack.c.l.b16 %v1917
    %v1989 = vunpack.c.h.b16 %v1917
    %v1990 = vunpack.c.l.b16 %v1918
    %v1991 = vunpack.c.h.b16 %v1918
    %v1992 = vunpack.c.l.b16 %v1919
    %v1993 = vunpack.c.h.b16 %v1919
    %v1994 = vunpack.c.l.b16 %v1920
    %v1995 = vunpack.c.h.b16 %v1920
    %v1996 = vunpack.c.l.b16 %v1921
    %v1997 = vunpack.c.h.b16 %v1921
    %v1998 = vunpack.c.l.b16 %v1922
    %v1999 = vunpack.c.h.b16 %v1922
    %v2000 = vunpack.c.l.b16 %v1923
    %v2001 = vunpack.c.h.b16 %v1923
    %v2002 = vunpack.c.l.b16 %v1924
    %v2003 = vunpack.c.h.b16 %v1924
    %v2004 = vunpack.c.l.b16 %v1925
    %v2005 = vunpack.c.h.b16 %v1925
    %v2006 = vunpack.c.l.b16 %v1926
    %v2007 = vunpack.c.h.b16 %v1926
    %v2008 = vunpack.c.l.b16 %v1927
    %v2009 = vunpack.c.h.b16 %v1927
    %v2010 = vunpack.c.l.b16 %v1928
    %v2011 = vunpack.c.h.b16 %v1928
    %v2012 = vunpack.c.l.b16 %v1929
    %v2013 = vunpack.c.h.b16 %v1929
    %v2014 = vunpack.c.l.b16 %v1930
    %v2015 = vunpack.c.h.b16 %v1930
    %v2016 = vunpack.c.l.b16 %v1931
    %v2017 = vunpack.c.h.b16 %v1931
    %v2018 = vunpack.c.l.b16 %v1932
    %v2019 = vunpack.c.h.b16 %v1932
    %v2020 = vunpack.c.l.b16 %v1933
    %v2021 = vunpack.c.h.b16 %v1933
    %v2022 = vunpack.c.l.b16 %v1934
    %v2023 = vunpack.c.h.b16 %v1934
    %v2024 = vunpack.c.l.b16 %v1935
    %v2025 = vunpack.c.h.b16 %v1935
    %v2026 = vunpack.c.l.b16 %v1936
    %v2027 = vunpack.c.h.b16 %v1936
    %v2028 = vunpack.c.l.b16 %v1937
    %v2029 = vunpack.c.h.b16 %v1937
    %v2030 = vunpack.c.l.b16 %v1938
    %v2031 = vunpack.c.h.b16 %v1938
    %v2032 = vunpack.c.l.b16 %v1939
    %v2033 = vunpack.c.h.b16 %v1939
    %v2034 = vunpack.c.l.b16 %v1940
    %v2035 = vunpack.c.h.b16 %v1940
    %v2036 = vunpack.c.l.b16 %v1941
    %v2037 = vunpack.c.h.b16 %v1941
    %v2038 = vpack.c.b16 %v1978, %v1974
    %v2039 = vpack.c.b16 %v1979, %v1975
    %v2040 = vpack.c.b16 %v1980, %v1976
    %v2041 = vpack.c.b16 %v1981, %v1977
    %v2042 = vpack.c.b16 %v1986, %v1982
    %v2043 = vpack.c.b16 %v1987, %v1983
    %v2044 = vpack.c.b16 %v1988, %v1984
    %v2045 = vpack.c.b16 %v1989, %v1985
    %v2046 = vpack.c.b16 %v1994, %v1990
    %v2047 = vpack.c.b16 %v1995, %v1991
    %v2048 = vpack.c.b16 %v1996, %v1992
    %v2049 = vpack.c.b16 %v1997, %v1993
    %v2050 = vpack.c.b16 %v2002, %v1998
    %v2051 = vpack.c.b16 %v2003, %v1999
    %v2052 = vpack.c.b16 %v2004, %v2000
    %v2053 = vpack.c.b16 %v2005, %v2001
    %v2054 = vpack.c.b16 %v2010, %v2006
    %v2055 = vpack.c.b16 %v2011, %v2007
    %v2056 = vpack.c.b16 %v2012, %v2008
    %v2057 = vpack.c.b16 %v2013, %v2009
    %v2058 = vpack.c.b16 %v2018, %v2014
    %v2059 = vpack.c.b16 %v2019, %v2015
    %v2060 = vpack.c.b16 %v2020, %v2016
    %v2061 = vpack.c.b16 %v2021, %v2017
    %v2062 = vpack.c.b16 %v2026, %v2022
    %v2063 = vpack.c.b16 %v2027, %v2023
    %v2064 = vpack.c.b16 %v2028, %v2024
    %v2065 = vpack.c.b16 %v2029, %v2025
    %v2066 = vpack.c.b16 %v2034, %v2030
    %v2067 = vpack.c.b16 %v2035, %v2031
    %v2068 = vpack.c.b16 %v2036, %v2032
    %v2069 = vpack.c.b16 %v2037, %v2033
    %2102 = vmatprep.subr.bf16.mxu0 %v2039
    %2103 = vmatpush1.bf16.msra.mxu0 %v2038
    %2104 = vmatprep.subr.bf16.mxu0 %v2043
    %2105 = vmatpush1.bf16.msra.mxu0 %v2042
    %2106 = vmatprep.subr.bf16.mxu0 %v2047
    %2107 = vmatpush1.bf16.msra.mxu0 %v2046
    %2108 = vmatprep.subr.bf16.mxu0 %v2051
    %2109 = vmatpush1.bf16.msra.mxu0 %v2050
    %2110 = vmatprep.subr.bf16.mxu0 %v2055
    %2111 = vmatpush1.bf16.msra.mxu0 %v2054
    %2112 = vmatprep.subr.bf16.mxu0 %v2059
    %2113 = vmatpush1.bf16.msra.mxu0 %v2058
    %2114 = vmatprep.subr.bf16.mxu0 %v2063
    %2115 = vmatpush1.bf16.msra.mxu0 %v2062
    %2116 = vmatprep.subr.bf16.mxu0 %v2067
    %2117 = vmatpush1.bf16.msra.mxu0 %v2066
    %2118 = vmatprep.subr.bf16.mxu0 0
    %2119 = vmatpush1.bf16.msra.mxu0 0
    %2120 = vmatprep.subr.bf16.mxu0 0
    %2121 = vmatpush1.bf16.msra.mxu0 0
    %2122 = vmatprep.subr.bf16.mxu0 0
    %2123 = vmatpush1.bf16.msra.mxu0 0
    %2124 = vmatprep.subr.bf16.mxu0 0
    %2125 = vmatpush1.bf16.msra.mxu0 0
    %2126 = vmatprep.subr.bf16.mxu0 0
    %2127 = vmatpush1.bf16.msra.mxu0 0
    %2128 = vmatprep.subr.bf16.mxu0 0
    %2129 = vmatpush1.bf16.msra.mxu0 0
    %2130 = vmatprep.subr.bf16.mxu0 0
    %2131 = vmatpush1.bf16.msra.mxu0 0
    %2132 = vmatprep.subr.bf16.mxu0 0
    %2133 = vmatpush1.bf16.msra.mxu0 0
    %2134 = vmatprep.mubr.bf16.mxu0 0
    %2135 = vmatmul.mubr.bf16.gmra.mrb[0].mxu0 %v1902
    %v2136 = vpop.f32.mrb[0].mxu0
    %v2137 = vadd.f32 0.0, %v2136
    %v2138 = vpop.f32.mrb[0].mxu0
    %v2139 = vadd.f32 0.0, %v2138
    %v2140 = vpop.f32.mrb[0].mxu0
    %v2141 = vpop.f32.mrb[0].mxu0
    %2142 = vdwg.mxu0
    %2143 = vmatprep.subr.bf16.mxu0 %v2041
    %2144 = vmatpush1.bf16.msra.mxu0 %v2040
    %2145 = vmatprep.subr.bf16.mxu0 %v2045
    %2146 = vmatpush1.bf16.msra.mxu0 %v2044
    %2147 = vmatprep.subr.bf16.mxu0 %v2049
    %2148 = vmatpush1.bf16.msra.mxu0 %v2048
    %2149 = vmatprep.subr.bf16.mxu0 %v2053
    %2150 = vmatpush1.bf16.msra.mxu0 %v2052
    %2151 = vmatprep.subr.bf16.mxu0 %v2057
    %2152 = vmatpush1.bf16.msra.mxu0 %v2056
    %2153 = vmatprep.subr.bf16.mxu0 %v2061
    %2154 = vmatpush1.bf16.msra.mxu0 %v2060
    %2155 = vmatprep.subr.bf16.mxu0 %v2065
    %2156 = vmatpush1.bf16.msra.mxu0 %v2064
    %2157 = vmatprep.subr.bf16.mxu0 %v2069
    %2158 = vmatpush1.bf16.msra.mxu0 %v2068
    %2159 = vmatprep.subr.bf16.mxu0 0
    %2160 = vmatpush1.bf16.msra.mxu0 0
    %2161 = vmatprep.subr.bf16.mxu0 0
    %2162 = vmatpush1.bf16.msra.mxu0 0
    %2163 = vmatprep.subr.bf16.mxu0 0
    %2164 = vmatpush1.bf16.msra.mxu0 0
    %2165 = vmatprep.subr.bf16.mxu0 0
    %2166 = vmatpush1.bf16.msra.mxu0 0
    %2167 = vmatprep.subr.bf16.mxu0 0
    %2168 = vmatpush1.bf16.msra.mxu0 0
    %2169 = vmatprep.subr.bf16.mxu0 0
    %2170 = vmatpush1.bf16.msra.mxu0 0
    %2171 = vmatprep.subr.bf16.mxu0 0
    %2172 = vmatpush1.bf16.msra.mxu0 0
    %2173 = vmatprep.subr.bf16.mxu0 0
    %2174 = vmatpush1.bf16.msra.mxu0 0
    %2175 = vmatprep.mubr.bf16.mxu0 0
    %2176 = vmatmul.mubr.bf16.gmra.mrb[0].mxu0 %v1902
    %v2177 = vpop.f32.mrb[0].mxu0
    %v2178 = vadd.f32 0.0, %v2177
    %v2179 = vpop.f32.mrb[0].mxu0
    %v2180 = vadd.f32 0.0, %v2179
    %v2181 = vpop.f32.mrb[0].mxu0
    %v2182 = vpop.f32.mrb[0].mxu0
    %2183 = vdwg.mxu0
    %v2184 = vadd.f32 %v1906, %v2137
    %v2185 = vadd.f32 %v1907, %v2139
    %v2186 = vadd.f32 %v1908, %v2178
    %v2187 = vadd.f32 %v1909, %v2180
    %v2188 = vxor.u32 %v2184, 2147483648
    %v2189 = vmul.f32 %v2188, 1.442695
    %v2190 = vpow.pop %v2189
    %v2191 = vadd.f32 %v2190, 1.0
    %v2192 = vrcp.pop %v2191
    %v2193 = vmul.f32 1.0, %v2192
    %v2194 = vxor.u32 %v2185, 2147483648
    %v2195 = vmul.f32 %v2194, 1.442695
    %v2196 = vpow.pop %v2195
    %v2197 = vadd.f32 %v2196, 1.0
    %v2198 = vrcp.pop %v2197
    %v2199 = vmul.f32 1.0, %v2198
    %v2200 = vtanh.pop %v2186
    %v2201 = vxor.u32 %v2187, 2147483648
    %v2202 = vmul.f32 %v2201, 1.442695
    %v2203 = vpow.pop %v2202
    %v2204 = vadd.f32 %v2203, 1.0
    %v2205 = vrcp.pop %v2204
    %v2206 = vmul.f32 1.0, %v2205
    %v2207 = vmul.f32 %v2199, %v1899
    %v2208 = vmul.f32 %v2193, %v2200
    %v2209 = vadd.f32 %v2207, %v2208
    %v2210 = vtanh.pop %v2209
    %v2211 = vmul.f32 %v2206, %v2210
    %v2212 = vpack.c.bf16 %v2211, %v2211
    %s2213 = scalar_lea.vmem [#allocation10], 20
    %2214 = vst [vmem:[%s2213] sm:$0xf] %v2212
    %s2215 = scalar_lea.vmem [#allocation4], 192
    %v2216 = vld [vmem:[%s2215] sm:$0xff]
    %v2217 = vld [vmem:[%s2215 + $0x8] sm:$0xff]
    %v2218 = vld [vmem:[%s2215 + $0x10] sm:$0xff]
    %v2219 = vld [vmem:[%s2215 + $0x18] sm:$0xff]
    %v2220 = vld [vmem:[#allocation8] sm:$0xff]
    %v2221 = vld [vmem:[#allocation8 + $0x8] sm:$0xff]
    %v2222 = vld [vmem:[#allocation8 + $0x10] sm:$0xff]
    %v2223 = vld [vmem:[#allocation8 + $0x18] sm:$0xff]
    %v2224 = vld [vmem:[#allocation8 + $0x20] sm:$0xff]
    %v2225 = vld [vmem:[#allocation8 + $0x28] sm:$0xff]
    %v2226 = vld [vmem:[#allocation8 + $0x30] sm:$0xff]
    %v2227 = vld [vmem:[#allocation8 + $0x38] sm:$0xff]
    %v2228 = vld [vmem:[#allocation8 + $0x40] sm:$0xff]
    %v2229 = vld [vmem:[#allocation8 + $0x48] sm:$0xff]
    %v2230 = vld [vmem:[#allocation8 + $0x50] sm:$0xff]
    %v2231 = vld [vmem:[#allocation8 + $0x58] sm:$0xff]
    %v2232 = vld [vmem:[#allocation8 + $0x60] sm:$0xff]
    %v2233 = vld [vmem:[#allocation8 + $0x68] sm:$0xff]
    %v2234 = vld [vmem:[#allocation8 + $0x70] sm:$0xff]
    %v2235 = vld [vmem:[#allocation8 + $0x78] sm:$0xff]
    %v2236 = vld [vmem:[#allocation8 + $0x80] sm:$0xff]
    %v2237 = vld [vmem:[#allocation8 + $0x88] sm:$0xff]
    %v2238 = vld [vmem:[#allocation8 + $0x90] sm:$0xff]
    %v2239 = vld [vmem:[#allocation8 + $0x98] sm:$0xff]
    %v2240 = vld [vmem:[#allocation8 + $0xa0] sm:$0xff]
    %v2241 = vld [vmem:[#allocation8 + $0xa8] sm:$0xff]
    %v2242 = vld [vmem:[#allocation8 + $0xb0] sm:$0xff]
    %v2243 = vld [vmem:[#allocation8 + $0xb8] sm:$0xff]
    %v2244 = vld [vmem:[#allocation8 + $0xc0] sm:$0xff]
    %v2245 = vld [vmem:[#allocation8 + $0xc8] sm:$0xff]
    %v2246 = vld [vmem:[#allocation8 + $0xd0] sm:$0xff]
    %v2247 = vld [vmem:[#allocation8 + $0xd8] sm:$0xff]
    %v2248 = vld [vmem:[#allocation8 + $0xe0] sm:$0xff]
    %v2249 = vld [vmem:[#allocation8 + $0xe8] sm:$0xff]
    %v2250 = vld [vmem:[#allocation8 + $0xf0] sm:$0xff]
    %v2251 = vld [vmem:[#allocation8 + $0xf8] sm:$0xff]
    %v2284 = vunpack.c.l.b16 %v2220
    %v2285 = vunpack.c.h.b16 %v2220
    %v2286 = vunpack.c.l.b16 %v2221
    %v2287 = vunpack.c.h.b16 %v2221
    %v2288 = vunpack.c.l.b16 %v2222
    %v2289 = vunpack.c.h.b16 %v2222
    %v2290 = vunpack.c.l.b16 %v2223
    %v2291 = vunpack.c.h.b16 %v2223
    %v2292 = vunpack.c.l.b16 %v2224
    %v2293 = vunpack.c.h.b16 %v2224
    %v2294 = vunpack.c.l.b16 %v2225
    %v2295 = vunpack.c.h.b16 %v2225
    %v2296 = vunpack.c.l.b16 %v2226
    %v2297 = vunpack.c.h.b16 %v2226
    %v2298 = vunpack.c.l.b16 %v2227
    %v2299 = vunpack.c.h.b16 %v2227
    %v2300 = vunpack.c.l.b16 %v2228
    %v2301 = vunpack.c.h.b16 %v2228
    %v2302 = vunpack.c.l.b16 %v2229
    %v2303 = vunpack.c.h.b16 %v2229
    %v2304 = vunpack.c.l.b16 %v2230
    %v2305 = vunpack.c.h.b16 %v2230
    %v2306 = vunpack.c.l.b16 %v2231
    %v2307 = vunpack.c.h.b16 %v2231
    %v2308 = vunpack.c.l.b16 %v2232
    %v2309 = vunpack.c.h.b16 %v2232
    %v2310 = vunpack.c.l.b16 %v2233
    %v2311 = vunpack.c.h.b16 %v2233
    %v2312 = vunpack.c.l.b16 %v2234
    %v2313 = vunpack.c.h.b16 %v2234
    %v2314 = vunpack.c.l.b16 %v2235
    %v2315 = vunpack.c.h.b16 %v2235
    %v2316 = vunpack.c.l.b16 %v2236
    %v2317 = vunpack.c.h.b16 %v2236
    %v2318 = vunpack.c.l.b16 %v2237
    %v2319 = vunpack.c.h.b16 %v2237
    %v2320 = vunpack.c.l.b16 %v2238
    %v2321 = vunpack.c.h.b16 %v2238
    %v2322 = vunpack.c.l.b16 %v2239
    %v2323 = vunpack.c.h.b16 %v2239
    %v2324 = vunpack.c.l.b16 %v2240
    %v2325 = vunpack.c.h.b16 %v2240
    %v2326 = vunpack.c.l.b16 %v2241
    %v2327 = vunpack.c.h.b16 %v2241
    %v2328 = vunpack.c.l.b16 %v2242
    %v2329 = vunpack.c.h.b16 %v2242
    %v2330 = vunpack.c.l.b16 %v2243
    %v2331 = vunpack.c.h.b16 %v2243
    %v2332 = vunpack.c.l.b16 %v2244
    %v2333 = vunpack.c.h.b16 %v2244
    %v2334 = vunpack.c.l.b16 %v2245
    %v2335 = vunpack.c.h.b16 %v2245
    %v2336 = vunpack.c.l.b16 %v2246
    %v2337 = vunpack.c.h.b16 %v2246
    %v2338 = vunpack.c.l.b16 %v2247
    %v2339 = vunpack.c.h.b16 %v2247
    %v2340 = vunpack.c.l.b16 %v2248
    %v2341 = vunpack.c.h.b16 %v2248
    %v2342 = vunpack.c.l.b16 %v2249
    %v2343 = vunpack.c.h.b16 %v2249
    %v2344 = vunpack.c.l.b16 %v2250
    %v2345 = vunpack.c.h.b16 %v2250
    %v2346 = vunpack.c.l.b16 %v2251
    %v2347 = vunpack.c.h.b16 %v2251
    %v2348 = vpack.c.b16 %v2288, %v2284
    %v2349 = vpack.c.b16 %v2289, %v2285
    %v2350 = vpack.c.b16 %v2290, %v2286
    %v2351 = vpack.c.b16 %v2291, %v2287
    %v2352 = vpack.c.b16 %v2296, %v2292
    %v2353 = vpack.c.b16 %v2297, %v2293
    %v2354 = vpack.c.b16 %v2298, %v2294
    %v2355 = vpack.c.b16 %v2299, %v2295
    %v2356 = vpack.c.b16 %v2304, %v2300
    %v2357 = vpack.c.b16 %v2305, %v2301
    %v2358 = vpack.c.b16 %v2306, %v2302
    %v2359 = vpack.c.b16 %v2307, %v2303
    %v2360 = vpack.c.b16 %v2312, %v2308
    %v2361 = vpack.c.b16 %v2313, %v2309
    %v2362 = vpack.c.b16 %v2314, %v2310
    %v2363 = vpack.c.b16 %v2315, %v2311
    %v2364 = vpack.c.b16 %v2320, %v2316
    %v2365 = vpack.c.b16 %v2321, %v2317
    %v2366 = vpack.c.b16 %v2322, %v2318
    %v2367 = vpack.c.b16 %v2323, %v2319
    %v2368 = vpack.c.b16 %v2328, %v2324
    %v2369 = vpack.c.b16 %v2329, %v2325
    %v2370 = vpack.c.b16 %v2330, %v2326
    %v2371 = vpack.c.b16 %v2331, %v2327
    %v2372 = vpack.c.b16 %v2336, %v2332
    %v2373 = vpack.c.b16 %v2337, %v2333
    %v2374 = vpack.c.b16 %v2338, %v2334
    %v2375 = vpack.c.b16 %v2339, %v2335
    %v2376 = vpack.c.b16 %v2344, %v2340
    %v2377 = vpack.c.b16 %v2345, %v2341
    %v2378 = vpack.c.b16 %v2346, %v2342
    %v2379 = vpack.c.b16 %v2347, %v2343
    %2412 = vmatprep.subr.bf16.mxu0 %v2349
    %2413 = vmatpush1.bf16.msra.mxu0 %v2348
    %2414 = vmatprep.subr.bf16.mxu0 %v2353
    %2415 = vmatpush1.bf16.msra.mxu0 %v2352
    %2416 = vmatprep.subr.bf16.mxu0 %v2357
    %2417 = vmatpush1.bf16.msra.mxu0 %v2356
    %2418 = vmatprep.subr.bf16.mxu0 %v2361
    %2419 = vmatpush1.bf16.msra.mxu0 %v2360
    %2420 = vmatprep.subr.bf16.mxu0 %v2365
    %2421 = vmatpush1.bf16.msra.mxu0 %v2364
    %2422 = vmatprep.subr.bf16.mxu0 %v2369
    %2423 = vmatpush1.bf16.msra.mxu0 %v2368
    %2424 = vmatprep.subr.bf16.mxu0 %v2373
    %2425 = vmatpush1.bf16.msra.mxu0 %v2372
    %2426 = vmatprep.subr.bf16.mxu0 %v2377
    %2427 = vmatpush1.bf16.msra.mxu0 %v2376
    %2428 = vmatprep.subr.bf16.mxu0 0
    %2429 = vmatpush1.bf16.msra.mxu0 0
    %2430 = vmatprep.subr.bf16.mxu0 0
    %2431 = vmatpush1.bf16.msra.mxu0 0
    %2432 = vmatprep.subr.bf16.mxu0 0
    %2433 = vmatpush1.bf16.msra.mxu0 0
    %2434 = vmatprep.subr.bf16.mxu0 0
    %2435 = vmatpush1.bf16.msra.mxu0 0
    %2436 = vmatprep.subr.bf16.mxu0 0
    %2437 = vmatpush1.bf16.msra.mxu0 0
    %2438 = vmatprep.subr.bf16.mxu0 0
    %2439 = vmatpush1.bf16.msra.mxu0 0
    %2440 = vmatprep.subr.bf16.mxu0 0
    %2441 = vmatpush1.bf16.msra.mxu0 0
    %2442 = vmatprep.subr.bf16.mxu0 0
    %2443 = vmatpush1.bf16.msra.mxu0 0
    %2444 = vmatprep.mubr.bf16.mxu0 0
    %2445 = vmatmul.mubr.bf16.gmra.mrb[0].mxu0 %v2212
    %v2446 = vpop.f32.mrb[0].mxu0
    %v2447 = vadd.f32 0.0, %v2446
    %v2448 = vpop.f32.mrb[0].mxu0
    %v2449 = vadd.f32 0.0, %v2448
    %v2450 = vpop.f32.mrb[0].mxu0
    %v2451 = vpop.f32.mrb[0].mxu0
    %2452 = vdwg.mxu0
    %2453 = vmatprep.subr.bf16.mxu0 %v2351
    %2454 = vmatpush1.bf16.msra.mxu0 %v2350
    %2455 = vmatprep.subr.bf16.mxu0 %v2355
    %2456 = vmatpush1.bf16.msra.mxu0 %v2354
    %2457 = vmatprep.subr.bf16.mxu0 %v2359
    %2458 = vmatpush1.bf16.msra.mxu0 %v2358
    %2459 = vmatprep.subr.bf16.mxu0 %v2363
    %2460 = vmatpush1.bf16.msra.mxu0 %v2362
    %2461 = vmatprep.subr.bf16.mxu0 %v2367
    %2462 = vmatpush1.bf16.msra.mxu0 %v2366
    %2463 = vmatprep.subr.bf16.mxu0 %v2371
    %2464 = vmatpush1.bf16.msra.mxu0 %v2370
    %2465 = vmatprep.subr.bf16.mxu0 %v2375
    %2466 = vmatpush1.bf16.msra.mxu0 %v2374
    %2467 = vmatprep.subr.bf16.mxu0 %v2379
    %2468 = vmatpush1.bf16.msra.mxu0 %v2378
    %2469 = vmatprep.subr.bf16.mxu0 0
    %2470 = vmatpush1.bf16.msra.mxu0 0
    %2471 = vmatprep.subr.bf16.mxu0 0
    %2472 = vmatpush1.bf16.msra.mxu0 0
    %2473 = vmatprep.subr.bf16.mxu0 0
    %2474 = vmatpush1.bf16.msra.mxu0 0
    %2475 = vmatprep.subr.bf16.mxu0 0
    %2476 = vmatpush1.bf16.msra.mxu0 0
    %2477 = vmatprep.subr.bf16.mxu0 0
    %2478 = vmatpush1.bf16.msra.mxu0 0
    %2479 = vmatprep.subr.bf16.mxu0 0
    %2480 = vmatpush1.bf16.msra.mxu0 0
    %2481 = vmatprep.subr.bf16.mxu0 0
    %2482 = vmatpush1.bf16.msra.mxu0 0
    %2483 = vmatprep.subr.bf16.mxu0 0
    %2484 = vmatpush1.bf16.msra.mxu0 0
    %2485 = vmatprep.mubr.bf16.mxu0 0
    %2486 = vmatmul.mubr.bf16.gmra.mrb[0].mxu0 %v2212
    %v2487 = vpop.f32.mrb[0].mxu0
    %v2488 = vadd.f32 0.0, %v2487
    %v2489 = vpop.f32.mrb[0].mxu0
    %v2490 = vadd.f32 0.0, %v2489
    %v2491 = vpop.f32.mrb[0].mxu0
    %v2492 = vpop.f32.mrb[0].mxu0
    %2493 = vdwg.mxu0
    %v2494 = vadd.f32 %v2216, %v2447
    %v2495 = vadd.f32 %v2217, %v2449
    %v2496 = vadd.f32 %v2218, %v2488
    %v2497 = vadd.f32 %v2219, %v2490
    %v2498 = vxor.u32 %v2494, 2147483648
    %v2499 = vmul.f32 %v2498, 1.442695
    %v2500 = vpow.pop %v2499
    %v2501 = vadd.f32 %v2500, 1.0
    %v2502 = vrcp.pop %v2501
    %v2503 = vmul.f32 1.0, %v2502
    %v2504 = vxor.u32 %v2495, 2147483648
    %v2505 = vmul.f32 %v2504, 1.442695
    %v2506 = vpow.pop %v2505
    %v2507 = vadd.f32 %v2506, 1.0
    %v2508 = vrcp.pop %v2507
    %v2509 = vmul.f32 1.0, %v2508
    %v2510 = vtanh.pop %v2496
    %v2511 = vxor.u32 %v2497, 2147483648
    %v2512 = vmul.f32 %v2511, 1.442695
    %v2513 = vpow.pop %v2512
    %v2514 = vadd.f32 %v2513, 1.0
    %v2515 = vrcp.pop %v2514
    %v2516 = vmul.f32 1.0, %v2515
    %v2517 = vmul.f32 %v2509, %v2209
    %v2518 = vmul.f32 %v2503, %v2510
    %v2519 = vadd.f32 %v2517, %v2518
    %v2520 = vtanh.pop %v2519
    %v2521 = vmul.f32 %v2516, %v2520
    %v2522 = vpack.c.bf16 %v2521, %v2521
    %s2523 = scalar_lea.vmem [#allocation10], 24
    %2524 = vst [vmem:[%s2523] sm:$0xf] %v2522
    %s2525 = scalar_lea.vmem [#allocation4], 224
    %v2526 = vld [vmem:[%s2525] sm:$0xff]
    %v2527 = vld [vmem:[%s2525 + $0x8] sm:$0xff]
    %v2528 = vld [vmem:[%s2525 + $0x10] sm:$0xff]
    %v2529 = vld [vmem:[%s2525 + $0x18] sm:$0xff]
    %v2530 = vld [vmem:[#allocation8] sm:$0xff]
    %v2531 = vld [vmem:[#allocation8 + $0x8] sm:$0xff]
    %v2532 = vld [vmem:[#allocation8 + $0x10] sm:$0xff]
    %v2533 = vld [vmem:[#allocation8 + $0x18] sm:$0xff]
    %v2534 = vld [vmem:[#allocation8 + $0x20] sm:$0xff]
    %v2535 = vld [vmem:[#allocation8 + $0x28] sm:$0xff]
    %v2536 = vld [vmem:[#allocation8 + $0x30] sm:$0xff]
    %v2537 = vld [vmem:[#allocation8 + $0x38] sm:$0xff]
    %v2538 = vld [vmem:[#allocation8 + $0x40] sm:$0xff]
    %v2539 = vld [vmem:[#allocation8 + $0x48] sm:$0xff]
    %v2540 = vld [vmem:[#allocation8 + $0x50] sm:$0xff]
    %v2541 = vld [vmem:[#allocation8 + $0x58] sm:$0xff]
    %v2542 = vld [vmem:[#allocation8 + $0x60] sm:$0xff]
    %v2543 = vld [vmem:[#allocation8 + $0x68] sm:$0xff]
    %v2544 = vld [vmem:[#allocation8 + $0x70] sm:$0xff]
    %v2545 = vld [vmem:[#allocation8 + $0x78] sm:$0xff]
    %v2546 = vld [vmem:[#allocation8 + $0x80] sm:$0xff]
    %v2547 = vld [vmem:[#allocation8 + $0x88] sm:$0xff]
    %v2548 = vld [vmem:[#allocation8 + $0x90] sm:$0xff]
    %v2549 = vld [vmem:[#allocation8 + $0x98] sm:$0xff]
    %v2550 = vld [vmem:[#allocation8 + $0xa0] sm:$0xff]
    %v2551 = vld [vmem:[#allocation8 + $0xa8] sm:$0xff]
    %v2552 = vld [vmem:[#allocation8 + $0xb0] sm:$0xff]
    %v2553 = vld [vmem:[#allocation8 + $0xb8] sm:$0xff]
    %v2554 = vld [vmem:[#allocation8 + $0xc0] sm:$0xff]
    %v2555 = vld [vmem:[#allocation8 + $0xc8] sm:$0xff]
    %v2556 = vld [vmem:[#allocation8 + $0xd0] sm:$0xff]
    %v2557 = vld [vmem:[#allocation8 + $0xd8] sm:$0xff]
    %v2558 = vld [vmem:[#allocation8 + $0xe0] sm:$0xff]
    %v2559 = vld [vmem:[#allocation8 + $0xe8] sm:$0xff]
    %v2560 = vld [vmem:[#allocation8 + $0xf0] sm:$0xff]
    %v2561 = vld [vmem:[#allocation8 + $0xf8] sm:$0xff]
    %v2594 = vunpack.c.l.b16 %v2530
    %v2595 = vunpack.c.h.b16 %v2530
    %v2596 = vunpack.c.l.b16 %v2531
    %v2597 = vunpack.c.h.b16 %v2531
    %v2598 = vunpack.c.l.b16 %v2532
    %v2599 = vunpack.c.h.b16 %v2532
    %v2600 = vunpack.c.l.b16 %v2533
    %v2601 = vunpack.c.h.b16 %v2533
    %v2602 = vunpack.c.l.b16 %v2534
    %v2603 = vunpack.c.h.b16 %v2534
    %v2604 = vunpack.c.l.b16 %v2535
    %v2605 = vunpack.c.h.b16 %v2535
    %v2606 = vunpack.c.l.b16 %v2536
    %v2607 = vunpack.c.h.b16 %v2536
    %v2608 = vunpack.c.l.b16 %v2537
    %v2609 = vunpack.c.h.b16 %v2537
    %v2610 = vunpack.c.l.b16 %v2538
    %v2611 = vunpack.c.h.b16 %v2538
    %v2612 = vunpack.c.l.b16 %v2539
    %v2613 = vunpack.c.h.b16 %v2539
    %v2614 = vunpack.c.l.b16 %v2540
    %v2615 = vunpack.c.h.b16 %v2540
    %v2616 = vunpack.c.l.b16 %v2541
    %v2617 = vunpack.c.h.b16 %v2541
    %v2618 = vunpack.c.l.b16 %v2542
    %v2619 = vunpack.c.h.b16 %v2542
    %v2620 = vunpack.c.l.b16 %v2543
    %v2621 = vunpack.c.h.b16 %v2543
    %v2622 = vunpack.c.l.b16 %v2544
    %v2623 = vunpack.c.h.b16 %v2544
    %v2624 = vunpack.c.l.b16 %v2545
    %v2625 = vunpack.c.h.b16 %v2545
    %v2626 = vunpack.c.l.b16 %v2546
    %v2627 = vunpack.c.h.b16 %v2546
    %v2628 = vunpack.c.l.b16 %v2547
    %v2629 = vunpack.c.h.b16 %v2547
    %v2630 = vunpack.c.l.b16 %v2548
    %v2631 = vunpack.c.h.b16 %v2548
    %v2632 = vunpack.c.l.b16 %v2549
    %v2633 = vunpack.c.h.b16 %v2549
    %v2634 = vunpack.c.l.b16 %v2550
    %v2635 = vunpack.c.h.b16 %v2550
    %v2636 = vunpack.c.l.b16 %v2551
    %v2637 = vunpack.c.h.b16 %v2551
    %v2638 = vunpack.c.l.b16 %v2552
    %v2639 = vunpack.c.h.b16 %v2552
    %v2640 = vunpack.c.l.b16 %v2553
    %v2641 = vunpack.c.h.b16 %v2553
    %v2642 = vunpack.c.l.b16 %v2554
    %v2643 = vunpack.c.h.b16 %v2554
    %v2644 = vunpack.c.l.b16 %v2555
    %v2645 = vunpack.c.h.b16 %v2555
    %v2646 = vunpack.c.l.b16 %v2556
    %v2647 = vunpack.c.h.b16 %v2556
    %v2648 = vunpack.c.l.b16 %v2557
    %v2649 = vunpack.c.h.b16 %v2557
    %v2650 = vunpack.c.l.b16 %v2558
    %v2651 = vunpack.c.h.b16 %v2558
    %v2652 = vunpack.c.l.b16 %v2559
    %v2653 = vunpack.c.h.b16 %v2559
    %v2654 = vunpack.c.l.b16 %v2560
    %v2655 = vunpack.c.h.b16 %v2560
    %v2656 = vunpack.c.l.b16 %v2561
    %v2657 = vunpack.c.h.b16 %v2561
    %v2658 = vpack.c.b16 %v2598, %v2594
    %v2659 = vpack.c.b16 %v2599, %v2595
    %v2660 = vpack.c.b16 %v2600, %v2596
    %v2661 = vpack.c.b16 %v2601, %v2597
    %v2662 = vpack.c.b16 %v2606, %v2602
    %v2663 = vpack.c.b16 %v2607, %v2603
    %v2664 = vpack.c.b16 %v2608, %v2604
    %v2665 = vpack.c.b16 %v2609, %v2605
    %v2666 = vpack.c.b16 %v2614, %v2610
    %v2667 = vpack.c.b16 %v2615, %v2611
    %v2668 = vpack.c.b16 %v2616, %v2612
    %v2669 = vpack.c.b16 %v2617, %v2613
    %v2670 = vpack.c.b16 %v2622, %v2618
    %v2671 = vpack.c.b16 %v2623, %v2619
    %v2672 = vpack.c.b16 %v2624, %v2620
    %v2673 = vpack.c.b16 %v2625, %v2621
    %v2674 = vpack.c.b16 %v2630, %v2626
    %v2675 = vpack.c.b16 %v2631, %v2627
    %v2676 = vpack.c.b16 %v2632, %v2628
    %v2677 = vpack.c.b16 %v2633, %v2629
    %v2678 = vpack.c.b16 %v2638, %v2634
    %v2679 = vpack.c.b16 %v2639, %v2635
    %v2680 = vpack.c.b16 %v2640, %v2636
    %v2681 = vpack.c.b16 %v2641, %v2637
    %v2682 = vpack.c.b16 %v2646, %v2642
    %v2683 = vpack.c.b16 %v2647, %v2643
    %v2684 = vpack.c.b16 %v2648, %v2644
    %v2685 = vpack.c.b16 %v2649, %v2645
    %v2686 = vpack.c.b16 %v2654, %v2650
    %v2687 = vpack.c.b16 %v2655, %v2651
    %v2688 = vpack.c.b16 %v2656, %v2652
    %v2689 = vpack.c.b16 %v2657, %v2653
    %2722 = vmatprep.subr.bf16.mxu0 %v2659
    %2723 = vmatpush1.bf16.msra.mxu0 %v2658
    %2724 = vmatprep.subr.bf16.mxu0 %v2663
    %2725 = vmatpush1.bf16.msra.mxu0 %v2662
    %2726 = vmatprep.subr.bf16.mxu0 %v2667
    %2727 = vmatpush1.bf16.msra.mxu0 %v2666
    %2728 = vmatprep.subr.bf16.mxu0 %v2671
    %2729 = vmatpush1.bf16.msra.mxu0 %v2670
    %2730 = vmatprep.subr.bf16.mxu0 %v2675
    %2731 = vmatpush1.bf16.msra.mxu0 %v2674
    %2732 = vmatprep.subr.bf16.mxu0 %v2679
    %2733 = vmatpush1.bf16.msra.mxu0 %v2678
    %2734 = vmatprep.subr.bf16.mxu0 %v2683
    %2735 = vmatpush1.bf16.msra.mxu0 %v2682
    %2736 = vmatprep.subr.bf16.mxu0 %v2687
    %2737 = vmatpush1.bf16.msra.mxu0 %v2686
    %2738 = vmatprep.subr.bf16.mxu0 0
    %2739 = vmatpush1.bf16.msra.mxu0 0
    %2740 = vmatprep.subr.bf16.mxu0 0
    %2741 = vmatpush1.bf16.msra.mxu0 0
    %2742 = vmatprep.subr.bf16.mxu0 0
    %2743 = vmatpush1.bf16.msra.mxu0 0
    %2744 = vmatprep.subr.bf16.mxu0 0
    %2745 = vmatpush1.bf16.msra.mxu0 0
    %2746 = vmatprep.subr.bf16.mxu0 0
    %2747 = vmatpush1.bf16.msra.mxu0 0
    %2748 = vmatprep.subr.bf16.mxu0 0
    %2749 = vmatpush1.bf16.msra.mxu0 0
    %2750 = vmatprep.subr.bf16.mxu0 0
    %2751 = vmatpush1.bf16.msra.mxu0 0
    %2752 = vmatprep.subr.bf16.mxu0 0
    %2753 = vmatpush1.bf16.msra.mxu0 0
    %2754 = vmatprep.mubr.bf16.mxu0 0
    %2755 = vmatmul.mubr.bf16.gmra.mrb[0].mxu0 %v2522
    %v2756 = vpop.f32.mrb[0].mxu0
    %v2757 = vadd.f32 0.0, %v2756
    %v2758 = vpop.f32.mrb[0].mxu0
    %v2759 = vadd.f32 0.0, %v2758
    %v2760 = vpop.f32.mrb[0].mxu0
    %v2761 = vpop.f32.mrb[0].mxu0
    %2762 = vdwg.mxu0
    %2763 = vmatprep.subr.bf16.mxu0 %v2661
    %2764 = vmatpush1.bf16.msra.mxu0 %v2660
    %2765 = vmatprep.subr.bf16.mxu0 %v2665
    %2766 = vmatpush1.bf16.msra.mxu0 %v2664
    %2767 = vmatprep.subr.bf16.mxu0 %v2669
    %2768 = vmatpush1.bf16.msra.mxu0 %v2668
    %2769 = vmatprep.subr.bf16.mxu0 %v2673
    %2770 = vmatpush1.bf16.msra.mxu0 %v2672
    %2771 = vmatprep.subr.bf16.mxu0 %v2677
    %2772 = vmatpush1.bf16.msra.mxu0 %v2676
    %2773 = vmatprep.subr.bf16.mxu0 %v2681
    %2774 = vmatpush1.bf16.msra.mxu0 %v2680
    %2775 = vmatprep.subr.bf16.mxu0 %v2685
    %2776 = vmatpush1.bf16.msra.mxu0 %v2684
    %2777 = vmatprep.subr.bf16.mxu0 %v2689
    %2778 = vmatpush1.bf16.msra.mxu0 %v2688
    %2779 = vmatprep.subr.bf16.mxu0 0
    %2780 = vmatpush1.bf16.msra.mxu0 0
    %2781 = vmatprep.subr.bf16.mxu0 0
    %2782 = vmatpush1.bf16.msra.mxu0 0
    %2783 = vmatprep.subr.bf16.mxu0 0
    %2784 = vmatpush1.bf16.msra.mxu0 0
    %2785 = vmatprep.subr.bf16.mxu0 0
    %2786 = vmatpush1.bf16.msra.mxu0 0
    %2787 = vmatprep.subr.bf16.mxu0 0
    %2788 = vmatpush1.bf16.msra.mxu0 0
    %2789 = vmatprep.subr.bf16.mxu0 0
    %2790 = vmatpush1.bf16.msra.mxu0 0
    %2791 = vmatprep.subr.bf16.mxu0 0
    %2792 = vmatpush1.bf16.msra.mxu0 0
    %2793 = vmatprep.subr.bf16.mxu0 0
    %2794 = vmatpush1.bf16.msra.mxu0 0
    %2795 = vmatprep.mubr.bf16.mxu0 0
    %2796 = vmatmul.mubr.bf16.gmra.mrb[0].mxu0 %v2522
    %v2797 = vpop.f32.mrb[0].mxu0
    %v2798 = vadd.f32 0.0, %v2797
    %v2799 = vpop.f32.mrb[0].mxu0
    %v2800 = vadd.f32 0.0, %v2799
    %v2801 = vpop.f32.mrb[0].mxu0
    %v2802 = vpop.f32.mrb[0].mxu0
    %2803 = vdwg.mxu0
    %v2804 = vadd.f32 %v2526, %v2757
    %v2805 = vadd.f32 %v2527, %v2759
    %v2806 = vadd.f32 %v2528, %v2798
    %v2807 = vadd.f32 %v2529, %v2800
    %v2808 = vxor.u32 %v2804, 2147483648
    %v2809 = vmul.f32 %v2808, 1.442695
    %v2810 = vpow.pop %v2809
    %v2811 = vadd.f32 %v2810, 1.0
    %v2812 = vrcp.pop %v2811
    %v2813 = vmul.f32 1.0, %v2812
    %v2814 = vxor.u32 %v2805, 2147483648
    %v2815 = vmul.f32 %v2814, 1.442695
    %v2816 = vpow.pop %v2815
    %v2817 = vadd.f32 %v2816, 1.0
    %v2818 = vrcp.pop %v2817
    %v2819 = vmul.f32 1.0, %v2818
    %v2820 = vtanh.pop %v2806
    %v2821 = vxor.u32 %v2807, 2147483648
    %v2822 = vmul.f32 %v2821, 1.442695
    %v2823 = vpow.pop %v2822
    %v2824 = vadd.f32 %v2823, 1.0
    %v2825 = vrcp.pop %v2824
    %v2826 = vmul.f32 1.0, %v2825
    %v2827 = vmul.f32 %v2819, %v2519
    %v2828 = vmul.f32 %v2813, %v2820
    %v2829 = vadd.f32 %v2827, %v2828
    %v2830 = vtanh.pop %v2829
    %v2831 = vmul.f32 %v2826, %v2830
    %v2832 = vpack.c.bf16 %v2831, %v2831
    %s2833 = scalar_lea.vmem [#allocation10], 28
    %2834 = vst [vmem:[%s2833] sm:$0xf] %v2832
    %2835 = vst [vmem:[#allocation2] sm:$0xff] %v2831
    %2836 = vst [vmem:[#allocation3] sm:$0xff] %v2829
    // Predicated region
    $region38: #{tpu_custom_call.1} parent=1 // pred_check
      %p2837 = pneg %p57
    $region39: #{tpu_custom_call.1} parent=1 // pred_check_branch
      %2839 = sbr.rel (%p2837) target = $region41
    $region40: #{tpu_custom_call.1} parent=1 // pred_region
      %2840 = vst [vmem:[#allocation11] sm:$0xff] %v2831
      %2841 = vst [vmem:[#allocation13] sm:$0xff] %v2829
    $region41: #{tpu_custom_call.1} parent=1 // pred_fallthru
      _
    // Predicated region
    $region42: #{tpu_custom_call.1} parent=1 // pred_check
      _
    $region43: #{tpu_custom_call.1} parent=1 // pred_check_branch
      %2843 = sbr.rel (0) target = $region45
    $region44: #{tpu_custom_call.1} parent=1 // pred_region
      %s2845 = ssub.s32 512, 512
      %2846 = vsyncadd [#allocation7], %s2845
      %s2847 = sshll.u32 [#allocation10], 4
      %s2848 = int_to_ptr.vmem [resolvable:$true] %s2847
      %2853 = dma.vmem_to_hbm [thread:$0]  %s2848, 512, %s6, [#allocation7], 64, 64, 4
    $region45: #{tpu_custom_call.1} parent=1 // pred_fallthru
      _
    // Predicated region
    $region46: #{tpu_custom_call.1} parent=1 // pred_check
      _
    $region47: #{tpu_custom_call.1} parent=1 // pred_check_branch
      %2855 = sbr.rel (0) target = $region49
    $region48: #{tpu_custom_call.1} parent=1 // pred_region
      %s2857 = ssub.s32 128, 128
      %2858 = vsyncadd [#allocation12], %s2857
      %s2860 = sshll.u32 [#allocation11], 4
      %s2861 = int_to_ptr.vmem [resolvable:$true] %s2860
      %2863 = dma.vmem_to_hbm [thread:$0]  %s2861, 128, %s7, [#allocation12]
    $region49: #{tpu_custom_call.1} parent=1 // pred_fallthru
      _
    // Predicated region
    $region50: #{tpu_custom_call.1} parent=1 // pred_check
      _
    $region51: #{tpu_custom_call.1} parent=1 // pred_check_branch
      %2865 = sbr.rel (0) target = $region53
    $region52: #{tpu_custom_call.1} parent=1 // pred_region
      %s2867 = ssub.s32 128, 128
      %2868 = vsyncadd [#allocation12], %s2867
      %s2870 = sshll.u32 [#allocation13], 4
      %s2871 = int_to_ptr.vmem [resolvable:$true] %s2870
      %2873 = dma.vmem_to_hbm [thread:$0]  %s2871, 128, %s8, [#allocation12]
    $region53: #{tpu_custom_call.1} parent=1 // pred_fallthru
      _
    // Predicated region
    $region54: #{tpu_custom_call.1} parent=1 // pred_check
      _
    $region55: #{tpu_custom_call.1} parent=1 // pred_check_branch
      %2875 = sbr.rel (0) target = $region57
    $region56: #{tpu_custom_call.1} parent=1 // pred_region
      %2876 = dma.done [#allocation7], 512
    $region57: #{tpu_custom_call.1} parent=1 // pred_fallthru
      _
    // Predicated region
    $region58: #{tpu_custom_call.1} parent=1 // pred_check
      _
    $region59: #{tpu_custom_call.1} parent=1 // pred_check_branch
      %2878 = sbr.rel (0) target = $region61
    $region60: #{tpu_custom_call.1} parent=1 // pred_region
      %2879 = dma.done [#allocation12], 128
    $region61: #{tpu_custom_call.1} parent=1 // pred_fallthru
      _
    // Predicated region
    $region62: #{tpu_custom_call.1} parent=1 // pred_check
      _
    $region63: #{tpu_custom_call.1} parent=1 // pred_check_branch
      %2881 = sbr.rel (0) target = $region65
    $region64: #{tpu_custom_call.1} parent=1 // pred_region
      %2882 = dma.done [#allocation12], 128
    $region65: #{tpu_custom_call.1} parent=1 // pred_fallthru
      _
    %2883 = vsyncpa [#allocation6], 1
    %2884 = vsyncpa [#allocation9], 1
    %2885 = vsyncpa [#allocation7], 1
    %2886 = vsyncpa [#allocation12], 1

</llo_original>
